<compile_context>
chip_gen: v7x
topology: tpu7x:2x2x1
jax: 0.10.0
libtpu: 0.0.40
codegen_flags: <defaults>
</compile_context>

<pallas_src>
import functools
import math

import numpy as np
import jax
import jax.numpy as jnp
from jax import lax
from jax.experimental import pallas as pl
from jax.experimental.pallas import tpu as pltpu

WINDOW_SIZE = 9
_VMEM_LIMIT = 48 * 1024 * 1024  # safe on v5e/v6e (128 MiB) and v7x (64 MiB)


# ----------------------------------------------------------------------------
# Kernel 1: fused ConvTranspose2d(3,s2,p1,op1)+bias+ReLU -> Conv2d(3,p1)+BN
# ----------------------------------------------------------------------------
def _fused_deconv_conv_kernel(pre_ref, wd_ref, b4_ref, wcp_ref, s2_ref, t2_ref,
                              o_ref, pp_ref):
    """One row tile of the upsampled output, fully fused.

    pre_ref: (1, H, W, C) bf16   low-res input (resident, full image per batch)
    wd_ref:  (4C, 4C)     bf16   packed subpixel deconv weight ([p00|p01|p10|p11] -> [E0|E1|O0|O1])
    b4_ref:  (1, 4C)      f32    deconv bias replicated per phase
    wcp_ref: (18C, 2C)    bf16   packed 3x3 conv weight (tap-packed, col-phase in lanes)
    s2/t2:   (1, 2C)      f32    folded BN scale / bias (replicated per col phase)
    o_ref:   (1, 2*TH, W, 2C)    output row tile; lanes = [even col chans | odd col chans]
    pp_ref:  (H+3, W+3, C) bf16  zero-padded copy of pre (1 before, 2 after), per batch
    """
    r = pl.program_id(1)
    H, W, C = pre_ref.shape[1], pre_ref.shape[2], pre_ref.shape[3]
    R2 = o_ref.shape[1]
    TH = R2 // 2
    A, B = TH + 2, W + 2
    m0 = r * TH

    # Fill the padded-pre scratch once per batch (row axis is "arbitrary").
    @pl.when(r == 0)
    def _():
        pp_ref[...] = jnp.zeros_like(pp_ref)
        pp_ref[1:1 + H, 1:1 + W, :] = pre_ref[0]

    # Window of pre rows m0-1 .. m0+TH+1 (in padded coords), plus +1 for (a+1,b+1) taps.
    pw = pp_ref[pl.ds(m0, TH + 3), :, :]                      # (TH+3, W+3, C)
    p00 = pw[0:A, 0:B, :]
    p01 = pw[0:A, 1:B + 1, :]
    p10 = pw[1:A + 1, 0:B, :]
    p11 = pw[1:A + 1, 1:B + 1, :]
    p4 = jnp.concatenate([p00, p01, p10, p11], axis=-1).reshape(A * B, 4 * C)

    # Subpixel deconv: one packed matmul -> the four x1 phases [E0|E1|O0|O1].
    x = jnp.dot(p4, wd_ref[...], preferred_element_type=jnp.float32)
    x = jnp.maximum(x + b4_ref[...], 0.0)                     # deconv bias + ReLU

    # Zero positions whose x1 location falls outside [0,2H)x[0,2W): these act as the
    # 3x3 conv's zero padding (bias+ReLU would otherwise make them non-zero).
    ai = lax.broadcasted_iota(jnp.int32, (A, B, 1), 0)
    bi = lax.broadcasted_iota(jnp.int32, (A, B, 1), 1)
    valid = (ai + m0 >= 1) & (ai + m0 <= H) & (bi >= 1) & (bi <= W)
    xcat = jnp.where(valid, x.reshape(A, B, 4 * C), 0.0).astype(jnp.bfloat16)
    xe = xcat[:, :, 0:2 * C]        # even x1 rows, lanes = [even col | odd col]
    xo = xcat[:, :, 2 * C:4 * C]    # odd  x1 rows

    # Tap-packed 3x3 conv. For each output row phase, gather the 3 (row source) x
    # 3 (column-pair) shifted slabs along lanes -> (TH, W, 18C) patch, one matmul.
    def colcat(s, off):
        srow = s[off:off + TH]                                # (TH, B, 2C)
        return jnp.concatenate(
            [srow[:, 0:W, :], srow[:, 1:W + 1, :], srow[:, 2:W + 2, :]], axis=-1)

    patch0 = jnp.concatenate([colcat(xo, 0), colcat(xe, 1), colcat(xo, 1)], axis=-1)
    patch1 = jnp.concatenate([colcat(xe, 1), colcat(xo, 1), colcat(xe, 2)], axis=-1)

    y0 = jnp.dot(patch0.reshape(TH * W, 18 * C), wcp_ref[...],
                 preferred_element_type=jnp.float32)
    y1 = jnp.dot(patch1.reshape(TH * W, 18 * C), wcp_ref[...],
                 preferred_element_type=jnp.float32)
    y0 = y0 * s2_ref[...] + t2_ref[...]                       # folded BatchNorm
    y1 = y1 * s2_ref[...] + t2_ref[...]

    # Interleave even/odd output rows (leading-dim reshape only; column phases are
    # already packed in lanes and de-interleaved by a free reshape in the wrapper).
    y = jnp.stack([y0.reshape(TH, W, 2 * C), y1.reshape(TH, W, 2 * C)], axis=1)
    o_ref[...] = y.reshape(1, R2, W, 2 * C).astype(o_ref.dtype)


def _fused_upsample(pre_nhwc, wd, b4, wcp, s2, t2, tile_pre_rows):
    N, H, W, C = pre_nhwc.shape
    TH = tile_pre_rows
    return pl.pallas_call(
        _fused_deconv_conv_kernel,
        out_shape=jax.ShapeDtypeStruct((N, 2 * H, W, 2 * C), jnp.float32),
        grid=(N, H // TH),
        in_specs=[
            pl.BlockSpec((1, H, W, C), lambda n, r: (n, 0, 0, 0)),
            pl.BlockSpec((4 * C, 4 * C), lambda n, r: (0, 0)),
            pl.BlockSpec((1, 4 * C), lambda n, r: (0, 0)),
            pl.BlockSpec((18 * C, 2 * C), lambda n, r: (0, 0)),
            pl.BlockSpec((1, 2 * C), lambda n, r: (0, 0)),
            pl.BlockSpec((1, 2 * C), lambda n, r: (0, 0)),
        ],
        out_specs=pl.BlockSpec((1, 2 * TH, W, 2 * C), lambda n, r: (n, r, 0, 0)),
        scratch_shapes=[pltpu.VMEM((H + 3, W + 3, C), jnp.bfloat16)],
        compiler_params=pltpu.CompilerParams(
            dimension_semantics=("parallel", "arbitrary"),
            vmem_limit_bytes=_VMEM_LIMIT),
    )(pre_nhwc.astype(jnp.bfloat16), wd.astype(jnp.bfloat16),
      b4.astype(jnp.float32), wcp.astype(jnp.bfloat16),
      s2.astype(jnp.float32), t2.astype(jnp.float32))


# ----------------------------------------------------------------------------
# Kernel 2: structure = |cur - pre_up| + alpha * SSIM(cur, pre_up)  (9x9 gaussian)
# ----------------------------------------------------------------------------
def _structure_kernel(cur_ref, pre_ref, o_ref, curp_ref, prep_ref, *, g1d, alpha):
    """Row tile of the structure map; single separable blur over a 5C-lane concat."""
    r = pl.program_id(1)
    RS = o_ref.shape[1]
    H2, W2, C = cur_ref.shape[1], cur_ref.shape[2], cur_ref.shape[3]
    K = WINDOW_SIZE
    PAD = K // 2

    @pl.when(r == 0)
    def _():
        curp_ref[...] = jnp.zeros_like(curp_ref)
        prep_ref[...] = jnp.zeros_like(prep_ref)
        curp_ref[PAD:PAD + H2, PAD:PAD + W2, :] = cur_ref[0].astype(jnp.float32)
        prep_ref[PAD:PAD + H2, PAD:PAD + W2, :] = pre_ref[0].astype(jnp.float32)

    r0 = r * RS
    cw = curp_ref[pl.ds(r0, RS + 2 * PAD), :, :]              # (RS+8, W2+8, C)
    pw = prep_ref[pl.ds(r0, RS + 2 * PAD), :, :]

    # One separable 9-tap blur over [c | p | c*c | p*p | c*p] (5C lanes).
    cat5 = jnp.concatenate([cw, pw, cw * cw, pw * pw, cw * pw], axis=-1)
    h = g1d[0] * cat5[:, 0:W2, :]
    for i in range(1, K):
        h = h + g1d[i] * cat5[:, i:i + W2, :]
    v = g1d[0] * h[0:RS, :, :]
    for j in range(1, K):
        v = v + g1d[j] * h[j:j + RS, :, :]

    mu1, mu2 = v[..., 0:C], v[..., C:2 * C]
    e11, e22, e12 = v[..., 2 * C:3 * C], v[..., 3 * C:4 * C], v[..., 4 * C:5 * C]
    s11 = e11 - mu1 * mu1
    s22 = e22 - mu2 * mu2
    s12 = e12 - mu1 * mu2
    C1, C2 = 0.01 ** 2, 0.03 ** 2
    ssim_map = ((2.0 * mu1 * mu2 + C1) * (2.0 * s12 + C2)) / (
        (mu1 * mu1 + mu2 * mu2 + C1) * (s11 + s22 + C2))

    cc = cw[PAD:PAD + RS, PAD:PAD + W2, :]
    pc = pw[PAD:PAD + RS, PAD:PAD + W2, :]
    o_ref[...] = (jnp.abs(cc - pc) + alpha * ssim_map)[None].astype(o_ref.dtype)


def _structure(cur, pre_up, g1d, alpha, tile_out_rows):
    N, H2, W2, C = cur.shape
    RS = tile_out_rows
    kernel = functools.partial(_structure_kernel,
                               g1d=tuple(float(x) for x in g1d), alpha=float(alpha))
    return pl.pallas_call(
        kernel,
        out_shape=jax.ShapeDtypeStruct((N, H2, W2, C), jnp.float32),
        grid=(N, H2 // RS),
        in_specs=[pl.BlockSpec((1, H2, W2, C), lambda n, r: (n, 0, 0, 0)),
                  pl.BlockSpec((1, H2, W2, C), lambda n, r: (n, 0, 0, 0))],
        out_specs=pl.BlockSpec((1, RS, W2, C), lambda n, r: (n, r, 0, 0)),
        scratch_shapes=[pltpu.VMEM((H2 + 8, W2 + 8, C), jnp.float32),
                        pltpu.VMEM((H2 + 8, W2 + 8, C), jnp.float32)],
        compiler_params=pltpu.CompilerParams(
            dimension_semantics=("parallel", "arbitrary"),
            vmem_limit_bytes=_VMEM_LIMIT),
    )(cur.astype(jnp.float32), pre_up.astype(jnp.float32))


# ----------------------------------------------------------------------------
# Weight packing (trace-time, outside the kernels)
# ----------------------------------------------------------------------------
def _pack_deconv_weight(w_t):
    """ConvTranspose2d weight (Cin, Cout, 3, 3) -> (4C, 4C) subpixel-packed weight.

    Input lane blocks: pre at (a,b),(a,b+1),(a+1,b),(a+1,b+1);
    output lane blocks: x1 phases (row,col) = (0,0),(0,1),(1,0),(1,1).
    """
    C = w_t.shape[0]
    rows = []
    for dy2 in (0, 1):
        for dx2 in (0, 1):
            cols = []
            for py in (0, 1):
                for px in (0, 1):
                    ky = py + 1 - 2 * dy2
                    kx = px + 1 - 2 * dx2
                    if 0 <= ky <= 2 and 0 <= kx <= 2:
                        cols.append(w_t[:, :, ky, kx])
                    else:
                        cols.append(jnp.zeros((C, C), w_t.dtype))
            rows.append(jnp.concatenate(cols, axis=1))
    return jnp.concatenate(rows, axis=0)


def _pack_conv_weight(w_c):
    """Conv2d weight (Cout, Cin, 3, 3) -> (18C, 2C) tap-packed weight.

    Input rows: (dy, column-pair shift db, in-pair parity p, ci);
    output cols: (output col phase qx, co).  dx = 2*db + p - 1 - qx.
    """
    C = w_c.shape[0]
    w_hwio = jnp.transpose(w_c, (2, 3, 1, 0))     # (ky, kx, ci, co)
    rows = []
    for dy in range(3):
        for db in range(3):
            for p in range(2):
                cols = []
                for qx in range(2):
                    dx = 2 * db + p - 1 - qx
                    if 0 <= dx <= 2:
                        cols.append(w_hwio[dy, dx])
                    else:
                        cols.append(jnp.zeros((C, C), w_c.dtype))
                rows.append(jnp.concatenate(cols, axis=1))
    return jnp.concatenate(rows, axis=0)


def _gaussian_1d(window_size, sigma):
    g = np.array([math.exp(-((x - window_size // 2) ** 2) / (2.0 * sigma ** 2))
                  for x in range(window_size)], dtype=np.float64)
    return g / g.sum()


def _pick_tile(n, target):
    best = 1
    for d in range(1, min(n, target) + 1):
        if n % d == 0:
            best = d
    return best


# ----------------------------------------------------------------------------
# Parameters + forward
# ----------------------------------------------------------------------------
def init_params(key, channels):
    k1, k2, k3, k4, k5, k6 = jax.random.split(key, 6)
    C = channels
    return {
        # ConvTranspose2d weight layout: (in_channels, out_channels, kH, kW)
        "deconv_w": 0.1 * jax.random.normal(k1, (C, C, 3, 3), jnp.float32),
        "deconv_b": 0.1 * jax.random.normal(k2, (C,), jnp.float32),
        # Conv2d weight layout: (out_channels, in_channels, kH, kW), bias=False
        "conv_w": 0.1 * jax.random.normal(k3, (C, C, 3, 3), jnp.float32),
        # BatchNorm2d (inference statistics)
        "bn_gamma": 1.0 + 0.1 * jax.random.normal(k4, (C,), jnp.float32),
        "bn_beta": 0.1 * jax.random.normal(k5, (C,), jnp.float32),
        "bn_mean": 0.1 * jax.random.normal(k6, (C,), jnp.float32),
        "bn_var": jnp.ones((C,), jnp.float32),
    }


def upsampling_module_forward(cur_fea, pre_fea, params,
                              tile_pre_rows=None, tile_out_rows=None):
    """cur_fea: (N, C, 2H, 2W) NCHW;  pre_fea: (N, C, H, W) NCHW."""
    cur = jnp.transpose(cur_fea, (0, 2, 3, 1)).astype(jnp.float32)
    pre = jnp.transpose(pre_fea, (0, 2, 3, 1)).astype(jnp.float32)
    N, H, W, C = pre.shape
    TH = tile_pre_rows if tile_pre_rows is not None else _pick_tile(H, 16)
    RS = tile_out_rows if tile_out_rows is not None else _pick_tile(2 * H, 32)

    # Pack weights once (tiny, trace-time); they stay VMEM-resident in the kernel.
    wd = _pack_deconv_weight(params["deconv_w"])
    wcp = _pack_conv_weight(params["conv_w"])
    b4 = jnp.tile(params["deconv_b"], 4)[None, :]
    eps = 1e-5
    bn_scale = params["bn_gamma"] / jnp.sqrt(params["bn_var"] + eps)
    bn_bias = params["bn_beta"] - params["bn_mean"] * bn_scale
    s2 = jnp.tile(bn_scale, 2)[None, :]
    t2 = jnp.tile(bn_bias, 2)[None, :]

    # Fused deconv+ReLU+conv+BN; output packed as (N, 2H, W, 2C) with the column
    # phase in lanes -> de-interleave is a free row-major reshape.
    out_packed = _fused_upsample(pre, wd, b4, wcp, s2, t2, TH)
    pre_up = out_packed.reshape(N, 2 * H, 2 * W, C)

    g1d = _gaussian_1d(WINDOW_SIZE, 1.5)
    structure = _structure(cur, pre_up, g1d, 0.5, RS)

    return (jnp.transpose(structure, (0, 3, 1, 2)),
            cur_fea,
            jnp.transpose(pre_up, (0, 3, 1, 2)))


# ----------------------------------------------------------------------------
# Pure-numpy reference of the PyTorch semantics (float64, NCHW)
# ----------------------------------------------------------------------------
def _reference_numpy(cur_fea, pre_fea, params):
    cur = np.asarray(cur_fea, np.float64)
    pre = np.asarray(pre_fea, np.float64)
    w_t = np.asarray(params["deconv_w"], np.float64)
    b_t = np.asarray(params["deconv_b"], np.float64)
    w_c = np.asarray(params["conv_w"], np.float64)
    gamma = np.asarray(params["bn_gamma"], np.float64)
    beta = np.asarray(params["bn_beta"], np.float64)
    mean = np.asarray(params["bn_mean"], np.float64)
    var = np.asarray(params["bn_var"], np.float64)

    N, C, H, W = pre.shape
    s, p, op, K = 2, 1, 1, 3
    out_h = (H - 1) * s - 2 * p + K + op
    out_w = (W - 1) * s - 2 * p + K + op

    # ConvTranspose2d as scatter
    full = np.zeros((N, C, (H - 1) * s + K + op, (W - 1) * s + K + op))
    for i in range(H):
        for j in range(W):
            full[:, :, s * i:s * i + K, s * j:s * j + K] += np.einsum(
                "nc,cokl->nokl", pre[:, :, i, j], w_t)
    x1 = full[:, :, p:p + out_h, p:p + out_w] + b_t[None, :, None, None]
    x1 = np.maximum(x1, 0.0)

    # Conv2d 3x3, padding 1
    xp = np.pad(x1, ((0, 0), (0, 0), (1, 1), (1, 1)))
    y = np.zeros((N, C, out_h, out_w))
    for ky in range(3):
        for kx in range(3):
            y += np.einsum("nihw,oi->nohw",
                           xp[:, :, ky:ky + out_h, kx:kx + out_w],
                           w_c[:, :, ky, kx])
    scale = gamma / np.sqrt(var + 1e-5)
    pre_up = (y * scale[None, :, None, None]
              + (beta - mean * scale)[None, :, None, None])

    # SSIM with 9x9 gaussian depthwise window
    g1 = _gaussian_1d(WINDOW_SIZE, 1.5)
    g2 = np.outer(g1, g1)

    def dwblur(x):
        xpd = np.pad(x, ((0, 0), (0, 0), (4, 4), (4, 4)))
        out = np.zeros_like(x)
        for ky in range(WINDOW_SIZE):
            for kx in range(WINDOW_SIZE):
                out += g2[ky, kx] * xpd[:, :, ky:ky + x.shape[2],
                                        kx:kx + x.shape[3]]
        return out

    mu1, mu2 = dwblur(cur), dwblur(pre_up)
    s11 = dwblur(cur * cur) - mu1 ** 2
    s22 = dwblur(pre_up * pre_up) - mu2 ** 2
    s12 = dwblur(cur * pre_up) - mu1 * mu2
    C1, C2 = 0.01 ** 2, 0.03 ** 2
    ssim_map = ((2 * mu1 * mu2 + C1) * (2 * s12 + C2)) / (
        (mu1 ** 2 + mu2 ** 2 + C1) * (s11 + s22 + C2))
    structure = np.abs(cur - pre_up) + 0.5 * ssim_map
    return structure, cur, pre_up


# ----------------------------------------------------------------------------
if __name__ == "__main__":
    N, C, H, W = 2, 16, 16, 16  # pre_fea: (N,C,H,W); cur_fea: (N,C,2H,2W)
    key = jax.random.PRNGKey(0)
    kp, k_cur, k_pre = jax.random.split(key, 3)
    params = init_params(kp, C)
    cur_fea = jax.random.normal(k_cur, (N, C, 2 * H, 2 * W), jnp.float32)
    pre_fea = jax.random.normal(k_pre, (N, C, H, W), jnp.float32)

    # Small tiles so the multi-row-tile / halo paths are exercised at demo shapes.
    fwd = jax.jit(functools.partial(upsampling_module_forward, params=params,
                                    tile_pre_rows=4, tile_out_rows=8))
    structure, cur_out, pre_up = fwd(cur_fea, pre_fea)
    jax.block_until_ready((structure, cur_out, pre_up))

    # Correctness check vs. the numpy reference of the PyTorch semantics.
    # Tolerance 2e-2: MXU matmuls run in bf16 (f32 accumulate) per the perf review.
    ref_structure, _, ref_pre_up = _reference_numpy(cur_fea, pre_fea, params)
    np.testing.assert_allclose(np.asarray(pre_up), ref_pre_up,
                               rtol=2e-2, atol=2e-2)
    np.testing.assert_allclose(np.asarray(structure), ref_structure,
                               rtol=2e-2, atol=2e-2)
    assert cur_out.shape == cur_fea.shape

    print("KERNEL_OK")
</pallas_src>

<mosaic_0001>
module attributes {stable_mosaic.version = 11 : i64} {
  func.func @_fused_deconv_conv_kernel(%arg0: i32, %arg1: i32, %arg2: memref<1x16x16x16xbf16, #tpu.memory_space<vmem>>, %arg3: memref<64x64xbf16, #tpu.memory_space<vmem>>, %arg4: memref<1x64xf32, #tpu.memory_space<vmem>>, %arg5: memref<288x32xbf16, #tpu.memory_space<vmem>>, %arg6: memref<1x32xf32, #tpu.memory_space<vmem>>, %arg7: memref<1x32xf32, #tpu.memory_space<vmem>>, %arg8: memref<1x8x16x32xf32, #tpu.memory_space<vmem>>, %arg9: memref<19x19x16xbf16, #tpu.memory_space<vmem>>) attributes {dimension_semantics = [#tpu.dimension_semantics<parallel>, #tpu.dimension_semantics<arbitrary>], iteration_bounds = array<i64: 2, 4>, scalar_prefetch = 0 : i64, scratch_operands = 1 : i64, tpu.core_type = #tpu.core_type<tc>, window_params = [{transform_indices = @transform_0, window_bounds = array<i64: 1, 16, 16, 16>}, {pipeline_mode = #tpu.pipeline_mode<synchronous>, transform_indices = @transform_1, window_bounds = array<i64: 64, 64>}, {pipeline_mode = #tpu.pipeline_mode<synchronous>, transform_indices = @transform_2, window_bounds = array<i64: 1, 64>}, {pipeline_mode = #tpu.pipeline_mode<synchronous>, transform_indices = @transform_3, window_bounds = array<i64: 288, 32>}, {pipeline_mode = #tpu.pipeline_mode<synchronous>, transform_indices = @transform_4, window_bounds = array<i64: 1, 32>}, {pipeline_mode = #tpu.pipeline_mode<synchronous>, transform_indices = @transform_5, window_bounds = array<i64: 1, 32>}, {transform_indices = @transform_6, window_bounds = array<i64: 1, 8, 16, 32>}]} {
    %c4_i32 = arith.constant 4 : i32
    %0 = arith.muli %arg1, %c4_i32 : i32
    %c0_i32 = arith.constant 0 : i32
    %1 = arith.cmpi eq, %arg1, %c0_i32 : i32
    %2 = arith.extui %1 : i1 to i32
    %c0_i32_0 = arith.constant 0 : i32
    %3 = arith.cmpi ne, %2, %c0_i32_0 : i32
    scf.if %3 {
      %cst_28 = arith.constant 0.000000e+00 : bf16
      %101 = vector.broadcast %cst_28 : bf16 to vector<19x19x16xbf16>
      %c0_29 = arith.constant 0 : index
      %c0_30 = arith.constant 0 : index
      %c0_31 = arith.constant 0 : index
      %102 = vector.load %arg9[%c0_29, %c0_30, %c0_31] : memref<19x19x16xbf16, #tpu.memory_space<vmem>>, vector<19x19x16xbf16>
      tpu.vector_store %arg9[%c0_29, %c0_30, %c0_31], %101 {strides = array<i32>} : memref<19x19x16xbf16, #tpu.memory_space<vmem>>, vector<19x19x16xbf16>,
      %c0_32 = arith.constant 0 : index
      %c0_33 = arith.constant 0 : index
      %c0_34 = arith.constant 0 : index
      %c0_35 = arith.constant 0 : index
      %103 = vector.load %arg2[%c0_32, %c0_33, %c0_34, %c0_35] : memref<1x16x16x16xbf16, #tpu.memory_space<vmem>>, vector<1x16x16x16xbf16>
      %104 = vector.shape_cast %103 : vector<1x16x16x16xbf16> to vector<16x16x16xbf16>
      %c1 = arith.constant 1 : index
      %c1_36 = arith.constant 1 : index
      %c0_37 = arith.constant 0 : index
      %105 = vector.load %arg9[%c1, %c1_36, %c0_37] : memref<19x19x16xbf16, #tpu.memory_space<vmem>>, vector<16x16x16xbf16>
      tpu.vector_store %arg9[%c1, %c1_36, %c0_37], %104 {strides = array<i32>} : memref<19x19x16xbf16, #tpu.memory_space<vmem>>, vector<16x16x16xbf16>,
    } else {
    }
    %4 = arith.index_cast %0 : i32 to index
    %c0 = arith.constant 0 : index
    %c0_1 = arith.constant 0 : index
    %5 = vector.load %arg9[%4, %c0, %c0_1] : memref<19x19x16xbf16, #tpu.memory_space<vmem>>, vector<7x19x16xbf16>
    %6 = vector.extract_strided_slice %5 {offsets = [0, 0, 0], sizes = [6, 18, 16], strides = [1, 1, 1]} : vector<7x19x16xbf16> to vector<6x18x16xbf16>
    %7 = vector.extract_strided_slice %5 {offsets = [0, 1, 0], sizes = [6, 18, 16], strides = [1, 1, 1]} : vector<7x19x16xbf16> to vector<6x18x16xbf16>
    %8 = vector.extract_strided_slice %5 {offsets = [1, 0, 0], sizes = [6, 18, 16], strides = [1, 1, 1]} : vector<7x19x16xbf16> to vector<6x18x16xbf16>
    %9 = vector.extract_strided_slice %5 {offsets = [1, 1, 0], sizes = [6, 18, 16], strides = [1, 1, 1]} : vector<7x19x16xbf16> to vector<6x18x16xbf16>
    %10 = tpu.concatenate %6, %7, %8, %9 in 2 : vector<6x18x16xbf16>, vector<6x18x16xbf16>, vector<6x18x16xbf16>, vector<6x18x16xbf16> -> vector<6x18x64xbf16>
    %11 = vector.shape_cast %10 : vector<6x18x64xbf16> to vector<108x64xbf16>
    %c0_2 = arith.constant 0 : index
    %c0_3 = arith.constant 0 : index
    %12 = vector.load %arg3[%c0_2, %c0_3] : memref<64x64xbf16, #tpu.memory_space<vmem>>, vector<64x64xbf16>
    %cst = arith.constant dense<0.000000e+00> : vector<108x64xf32>
    %13 = tpu.matmul %11, %12, %cst {dimension_numbers = #tpu.dot_dimension_numbers<[1], [0], [0], [1], [0, 0, 1, 1], [], []>} : vector<108x64xbf16>, vector<64x64xbf16>, vector<108x64xf32> -> vector<108x64xf32>
    %c0_4 = arith.constant 0 : index
    %c0_5 = arith.constant 0 : index
    %14 = vector.load %arg4[%c0_4, %c0_5] : memref<1x64xf32, #tpu.memory_space<vmem>>, vector<1x64xf32>
    %15 = vector.broadcast %14 : vector<1x64xf32> to vector<108x64xf32>
    %16 = arith.addf %13, %15 : vector<108x64xf32>
    %cst_6 = arith.constant 0.000000e+00 : f32
    %17 = vector.broadcast %cst_6 : f32 to vector<108x64xf32>
    %18 = arith.maximumf %16, %17 : vector<108x64xf32>
    %19 = tpu.iota {dimensions = array<i32: 0>} : vector<6x18x1xi32>
    %20 = tpu.iota {dimensions = array<i32: 1>} : vector<6x18x1xi32>
    %21 = vector.broadcast %0 : i32 to vector<6x18x1xi32>
    %22 = arith.addi %19, %21 : vector<6x18x1xi32>
    %c1_i32 = arith.constant 1 : i32
    %23 = vector.broadcast %c1_i32 : i32 to vector<6x18x1xi32>
    %24 = arith.cmpi sge, %22, %23 : vector<6x18x1xi32>
    %25 = vector.broadcast %0 : i32 to vector<6x18x1xi32>
    %26 = arith.addi %19, %25 : vector<6x18x1xi32>
    %c16_i32 = arith.constant 16 : i32
    %27 = vector.broadcast %c16_i32 : i32 to vector<6x18x1xi32>
    %28 = arith.cmpi sle, %26, %27 : vector<6x18x1xi32>
    %29 = arith.andi %24, %28 : vector<6x18x1xi1>
    %c1_i32_7 = arith.constant 1 : i32
    %30 = vector.broadcast %c1_i32_7 : i32 to vector<6x18x1xi32>
    %31 = arith.cmpi sge, %20, %30 : vector<6x18x1xi32>
    %32 = arith.andi %29, %31 : vector<6x18x1xi1>
    %c16_i32_8 = arith.constant 16 : i32
    %33 = vector.broadcast %c16_i32_8 : i32 to vector<6x18x1xi32>
    %34 = arith.cmpi sle, %20, %33 : vector<6x18x1xi32>
    %35 = arith.andi %32, %34 : vector<6x18x1xi1>
    %36 = vector.shape_cast %18 : vector<108x64xf32> to vector<6x18x64xf32>
    %cst_9 = arith.constant 0.000000e+00 : f32
    %37 = vector.shape_cast %35 : vector<6x18x1xi1> to vector<6x18x1xi1>
    %38 = vector.broadcast %37 : vector<6x18x1xi1> to vector<6x18x64xi1>
    %39 = vector.broadcast %cst_9 : f32 to vector<6x18x64xf32>
    %40 = arith.select %38, %36, %39 : vector<6x18x64xi1>, vector<6x18x64xf32>
    %41 = arith.truncf %40 : vector<6x18x64xf32> to vector<6x18x64xbf16>
    %42 = vector.extract_strided_slice %41 {offsets = [0, 0, 0], sizes = [6, 18, 32], strides = [1, 1, 1]} : vector<6x18x64xbf16> to vector<6x18x32xbf16>
    %43 = vector.extract_strided_slice %41 {offsets = [0, 0, 32], sizes = [6, 18, 32], strides = [1, 1, 1]} : vector<6x18x64xbf16> to vector<6x18x32xbf16>
    %44 = vector.extract_strided_slice %43 {offsets = [0, 0, 0], sizes = [4, 18, 32], strides = [1, 1, 1]} : vector<6x18x32xbf16> to vector<4x18x32xbf16>
    %45 = vector.extract_strided_slice %44 {offsets = [0, 0, 0], sizes = [4, 16, 32], strides = [1, 1, 1]} : vector<4x18x32xbf16> to vector<4x16x32xbf16>
    %46 = vector.extract_strided_slice %44 {offsets = [0, 1, 0], sizes = [4, 16, 32], strides = [1, 1, 1]} : vector<4x18x32xbf16> to vector<4x16x32xbf16>
    %47 = vector.extract_strided_slice %44 {offsets = [0, 2, 0], sizes = [4, 16, 32], strides = [1, 1, 1]} : vector<4x18x32xbf16> to vector<4x16x32xbf16>
    %48 = tpu.concatenate %45, %46, %47 in 2 : vector<4x16x32xbf16>, vector<4x16x32xbf16>, vector<4x16x32xbf16> -> vector<4x16x96xbf16>
    %49 = vector.extract_strided_slice %42 {offsets = [1, 0, 0], sizes = [4, 18, 32], strides = [1, 1, 1]} : vector<6x18x32xbf16> to vector<4x18x32xbf16>
    %50 = vector.extract_strided_slice %49 {offsets = [0, 0, 0], sizes = [4, 16, 32], strides = [1, 1, 1]} : vector<4x18x32xbf16> to vector<4x16x32xbf16>
    %51 = vector.extract_strided_slice %49 {offsets = [0, 1, 0], sizes = [4, 16, 32], strides = [1, 1, 1]} : vector<4x18x32xbf16> to vector<4x16x32xbf16>
    %52 = vector.extract_strided_slice %49 {offsets = [0, 2, 0], sizes = [4, 16, 32], strides = [1, 1, 1]} : vector<4x18x32xbf16> to vector<4x16x32xbf16>
    %53 = tpu.concatenate %50, %51, %52 in 2 : vector<4x16x32xbf16>, vector<4x16x32xbf16>, vector<4x16x32xbf16> -> vector<4x16x96xbf16>
    %54 = vector.extract_strided_slice %43 {offsets = [1, 0, 0], sizes = [4, 18, 32], strides = [1, 1, 1]} : vector<6x18x32xbf16> to vector<4x18x32xbf16>
    %55 = vector.extract_strided_slice %54 {offsets = [0, 0, 0], sizes = [4, 16, 32], strides = [1, 1, 1]} : vector<4x18x32xbf16> to vector<4x16x32xbf16>
    %56 = vector.extract_strided_slice %54 {offsets = [0, 1, 0], sizes = [4, 16, 32], strides = [1, 1, 1]} : vector<4x18x32xbf16> to vector<4x16x32xbf16>
    %57 = vector.extract_strided_slice %54 {offsets = [0, 2, 0], sizes = [4, 16, 32], strides = [1, 1, 1]} : vector<4x18x32xbf16> to vector<4x16x32xbf16>
    %58 = tpu.concatenate %55, %56, %57 in 2 : vector<4x16x32xbf16>, vector<4x16x32xbf16>, vector<4x16x32xbf16> -> vector<4x16x96xbf16>
    %59 = tpu.concatenate %48, %53, %58 in 2 : vector<4x16x96xbf16>, vector<4x16x96xbf16>, vector<4x16x96xbf16> -> vector<4x16x288xbf16>
    %60 = vector.extract_strided_slice %42 {offsets = [1, 0, 0], sizes = [4, 18, 32], strides = [1, 1, 1]} : vector<6x18x32xbf16> to vector<4x18x32xbf16>
    %61 = vector.extract_strided_slice %60 {offsets = [0, 0, 0], sizes = [4, 16, 32], strides = [1, 1, 1]} : vector<4x18x32xbf16> to vector<4x16x32xbf16>
    %62 = vector.extract_strided_slice %60 {offsets = [0, 1, 0], sizes = [4, 16, 32], strides = [1, 1, 1]} : vector<4x18x32xbf16> to vector<4x16x32xbf16>
    %63 = vector.extract_strided_slice %60 {offsets = [0, 2, 0], sizes = [4, 16, 32], strides = [1, 1, 1]} : vector<4x18x32xbf16> to vector<4x16x32xbf16>
    %64 = tpu.concatenate %61, %62, %63 in 2 : vector<4x16x32xbf16>, vector<4x16x32xbf16>, vector<4x16x32xbf16> -> vector<4x16x96xbf16>
    %65 = vector.extract_strided_slice %43 {offsets = [1, 0, 0], sizes = [4, 18, 32], strides = [1, 1, 1]} : vector<6x18x32xbf16> to vector<4x18x32xbf16>
    %66 = vector.extract_strided_slice %65 {offsets = [0, 0, 0], sizes = [4, 16, 32], strides = [1, 1, 1]} : vector<4x18x32xbf16> to vector<4x16x32xbf16>
    %67 = vector.extract_strided_slice %65 {offsets = [0, 1, 0], sizes = [4, 16, 32], strides = [1, 1, 1]} : vector<4x18x32xbf16> to vector<4x16x32xbf16>
    %68 = vector.extract_strided_slice %65 {offsets = [0, 2, 0], sizes = [4, 16, 32], strides = [1, 1, 1]} : vector<4x18x32xbf16> to vector<4x16x32xbf16>
    %69 = tpu.concatenate %66, %67, %68 in 2 : vector<4x16x32xbf16>, vector<4x16x32xbf16>, vector<4x16x32xbf16> -> vector<4x16x96xbf16>
    %70 = vector.extract_strided_slice %42 {offsets = [2, 0, 0], sizes = [4, 18, 32], strides = [1, 1, 1]} : vector<6x18x32xbf16> to vector<4x18x32xbf16>
    %71 = vector.extract_strided_slice %70 {offsets = [0, 0, 0], sizes = [4, 16, 32], strides = [1, 1, 1]} : vector<4x18x32xbf16> to vector<4x16x32xbf16>
    %72 = vector.extract_strided_slice %70 {offsets = [0, 1, 0], sizes = [4, 16, 32], strides = [1, 1, 1]} : vector<4x18x32xbf16> to vector<4x16x32xbf16>
    %73 = vector.extract_strided_slice %70 {offsets = [0, 2, 0], sizes = [4, 16, 32], strides = [1, 1, 1]} : vector<4x18x32xbf16> to vector<4x16x32xbf16>
    %74 = tpu.concatenate %71, %72, %73 in 2 : vector<4x16x32xbf16>, vector<4x16x32xbf16>, vector<4x16x32xbf16> -> vector<4x16x96xbf16>
    %75 = tpu.concatenate %64, %69, %74 in 2 : vector<4x16x96xbf16>, vector<4x16x96xbf16>, vector<4x16x96xbf16> -> vector<4x16x288xbf16>
    %76 = vector.shape_cast %59 : vector<4x16x288xbf16> to vector<64x288xbf16>
    %c0_10 = arith.constant 0 : index
    %c0_11 = arith.constant 0 : index
    %77 = vector.load %arg5[%c0_10, %c0_11] : memref<288x32xbf16, #tpu.memory_space<vmem>>, vector<288x32xbf16>
    %cst_12 = arith.constant dense<0.000000e+00> : vector<64x32xf32>
    %78 = tpu.matmul %76, %77, %cst_12 {dimension_numbers = #tpu.dot_dimension_numbers<[1], [0], [0], [1], [0, 0, 1, 1], [], []>} : vector<64x288xbf16>, vector<288x32xbf16>, vector<64x32xf32> -> vector<64x32xf32>
    %79 = vector.shape_cast %75 : vector<4x16x288xbf16> to vector<64x288xbf16>
    %c0_13 = arith.constant 0 : index
    %c0_14 = arith.constant 0 : index
    %80 = vector.load %arg5[%c0_13, %c0_14] : memref<288x32xbf16, #tpu.memory_space<vmem>>, vector<288x32xbf16>
    %cst_15 = arith.constant dense<0.000000e+00> : vector<64x32xf32>
    %81 = tpu.matmul %79, %80, %cst_15 {dimension_numbers = #tpu.dot_dimension_numbers<[1], [0], [0], [1], [0, 0, 1, 1], [], []>} : vector<64x288xbf16>, vector<288x32xbf16>, vector<64x32xf32> -> vector<64x32xf32>
    %c0_16 = arith.constant 0 : index
    %c0_17 = arith.constant 0 : index
    %82 = vector.load %arg6[%c0_16, %c0_17] : memref<1x32xf32, #tpu.memory_space<vmem>>, vector<1x32xf32>
    %83 = vector.broadcast %82 : vector<1x32xf32> to vector<64x32xf32>
    %84 = arith.mulf %78, %83 : vector<64x32xf32>
    %c0_18 = arith.constant 0 : index
    %c0_19 = arith.constant 0 : index
    %85 = vector.load %arg7[%c0_18, %c0_19] : memref<1x32xf32, #tpu.memory_space<vmem>>, vector<1x32xf32>
    %86 = vector.broadcast %85 : vector<1x32xf32> to vector<64x32xf32>
    %87 = arith.addf %84, %86 : vector<64x32xf32>
    %c0_20 = arith.constant 0 : index
    %c0_21 = arith.constant 0 : index
    %88 = vector.load %arg6[%c0_20, %c0_21] : memref<1x32xf32, #tpu.memory_space<vmem>>, vector<1x32xf32>
    %89 = vector.broadcast %88 : vector<1x32xf32> to vector<64x32xf32>
    %90 = arith.mulf %81, %89 : vector<64x32xf32>
    %c0_22 = arith.constant 0 : index
    %c0_23 = arith.constant 0 : index
    %91 = vector.load %arg7[%c0_22, %c0_23] : memref<1x32xf32, #tpu.memory_space<vmem>>, vector<1x32xf32>
    %92 = vector.broadcast %91 : vector<1x32xf32> to vector<64x32xf32>
    %93 = arith.addf %90, %92 : vector<64x32xf32>
    %94 = vector.shape_cast %87 : vector<64x32xf32> to vector<4x16x32xf32>
    %95 = vector.shape_cast %93 : vector<64x32xf32> to vector<4x16x32xf32>
    %96 = vector.shape_cast %94 : vector<4x16x32xf32> to vector<4x1x16x32xf32>
    %97 = vector.shape_cast %95 : vector<4x16x32xf32> to vector<4x1x16x32xf32>
    %98 = tpu.concatenate %96, %97 in 1 : vector<4x1x16x32xf32>, vector<4x1x16x32xf32> -> vector<4x2x16x32xf32>
    %99 = vector.shape_cast %98 : vector<4x2x16x32xf32> to vector<1x8x16x32xf32>
    %c0_24 = arith.constant 0 : index
    %c0_25 = arith.constant 0 : index
    %c0_26 = arith.constant 0 : index
    %c0_27 = arith.constant 0 : index
    %100 = vector.load %arg8[%c0_24, %c0_25, %c0_26, %c0_27] : memref<1x8x16x32xf32, #tpu.memory_space<vmem>>, vector<1x8x16x32xf32>
    tpu.vector_store %arg8[%c0_24, %c0_25, %c0_26, %c0_27], %99 {strides = array<i32>} : memref<1x8x16x32xf32, #tpu.memory_space<vmem>>, vector<1x8x16x32xf32>,
    return
  }
  func.func @transform_0(%arg0: i32, %arg1: i32) -> (i32, i32, i32, i32) {
    %c0_i32 = arith.constant 0 : i32
    %c0_i32_0 = arith.constant 0 : i32
    %c0_i32_1 = arith.constant 0 : i32
    %c0_i32_2 = arith.constant 0 : i32
    return %arg0, %c0_i32, %c0_i32_0, %c0_i32_1 : i32, i32, i32, i32
  }
  func.func @transform_1(%arg0: i32, %arg1: i32) -> (i32, i32) {
    %c0_i32 = arith.constant 0 : i32
    %c0_i32_0 = arith.constant 0 : i32
    %c0_i32_1 = arith.constant 0 : i32
    return %c0_i32, %c0_i32_0 : i32, i32
  }
  func.func @transform_2(%arg0: i32, %arg1: i32) -> (i32, i32) {
    %c0_i32 = arith.constant 0 : i32
    %c0_i32_0 = arith.constant 0 : i32
    %c0_i32_1 = arith.constant 0 : i32
    return %c0_i32, %c0_i32_0 : i32, i32
  }
  func.func @transform_3(%arg0: i32, %arg1: i32) -> (i32, i32) {
    %c0_i32 = arith.constant 0 : i32
    %c0_i32_0 = arith.constant 0 : i32
    %c0_i32_1 = arith.constant 0 : i32
    return %c0_i32, %c0_i32_0 : i32, i32
  }
  func.func @transform_4(%arg0: i32, %arg1: i32) -> (i32, i32) {
    %c0_i32 = arith.constant 0 : i32
    %c0_i32_0 = arith.constant 0 : i32
    %c0_i32_1 = arith.constant 0 : i32
    return %c0_i32, %c0_i32_0 : i32, i32
  }
  func.func @transform_5(%arg0: i32, %arg1: i32) -> (i32, i32) {
    %c0_i32 = arith.constant 0 : i32
    %c0_i32_0 = arith.constant 0 : i32
    %c0_i32_1 = arith.constant 0 : i32
    return %c0_i32, %c0_i32_0 : i32, i32
  }
  func.func @transform_6(%arg0: i32, %arg1: i32) -> (i32, i32, i32, i32) {
    %c0_i32 = arith.constant 0 : i32
    %c0_i32_0 = arith.constant 0 : i32
    %c0_i32_1 = arith.constant 0 : i32
    return %arg0, %arg1, %c0_i32, %c0_i32_0 : i32, i32, i32, i32
  }
}

module attributes {stable_mosaic.version = 11 : i64} {
  func.func @_structure_kernel(%arg0: i32, %arg1: i32, %arg2: memref<1x32x32x16xf32, #tpu.memory_space<vmem>>, %arg3: memref<1x32x32x16xf32, #tpu.memory_space<vmem>>, %arg4: memref<1x8x32x16xf32, #tpu.memory_space<vmem>>, %arg5: memref<40x40x16xf32, #tpu.memory_space<vmem>>, %arg6: memref<40x40x16xf32, #tpu.memory_space<vmem>>) attributes {dimension_semantics = [#tpu.dimension_semantics<parallel>, #tpu.dimension_semantics<arbitrary>], iteration_bounds = array<i64: 2, 4>, scalar_prefetch = 0 : i64, scratch_operands = 2 : i64, tpu.core_type = #tpu.core_type<tc>, window_params = [{transform_indices = @transform_0, window_bounds = array<i64: 1, 32, 32, 16>}, {transform_indices = @transform_1, window_bounds = array<i64: 1, 32, 32, 16>}, {transform_indices = @transform_2, window_bounds = array<i64: 1, 8, 32, 16>}]} {
    %c0_i32 = arith.constant 0 : i32
    %0 = arith.cmpi eq, %arg1, %c0_i32 : i32
    %1 = arith.extui %0 : i1 to i32
    %c0_i32_0 = arith.constant 0 : i32
    %2 = arith.cmpi ne, %1, %c0_i32_0 : i32
    scf.if %2 {
      %cst_32 = arith.constant 0.000000e+00 : f32
      %122 = vector.broadcast %cst_32 : f32 to vector<40x40x16xf32>
      %c0_33 = arith.constant 0 : index
      %c0_34 = arith.constant 0 : index
      %c0_35 = arith.constant 0 : index
      %123 = vector.load %arg5[%c0_33, %c0_34, %c0_35] : memref<40x40x16xf32, #tpu.memory_space<vmem>>, vector<40x40x16xf32>
      tpu.vector_store %arg5[%c0_33, %c0_34, %c0_35], %122 {strides = array<i32>} : memref<40x40x16xf32, #tpu.memory_space<vmem>>, vector<40x40x16xf32>,
      %cst_36 = arith.constant 0.000000e+00 : f32
      %124 = vector.broadcast %cst_36 : f32 to vector<40x40x16xf32>
      %c0_37 = arith.constant 0 : index
      %c0_38 = arith.constant 0 : index
      %c0_39 = arith.constant 0 : index
      %125 = vector.load %arg6[%c0_37, %c0_38, %c0_39] : memref<40x40x16xf32, #tpu.memory_space<vmem>>, vector<40x40x16xf32>
      tpu.vector_store %arg6[%c0_37, %c0_38, %c0_39], %124 {strides = array<i32>} : memref<40x40x16xf32, #tpu.memory_space<vmem>>, vector<40x40x16xf32>,
      %c0_40 = arith.constant 0 : index
      %c0_41 = arith.constant 0 : index
      %c0_42 = arith.constant 0 : index
      %c0_43 = arith.constant 0 : index
      %126 = vector.load %arg2[%c0_40, %c0_41, %c0_42, %c0_43] : memref<1x32x32x16xf32, #tpu.memory_space<vmem>>, vector<1x32x32x16xf32>
      %127 = vector.shape_cast %126 : vector<1x32x32x16xf32> to vector<32x32x16xf32>
      %c4 = arith.constant 4 : index
      %c4_44 = arith.constant 4 : index
      %c0_45 = arith.constant 0 : index
      %128 = vector.load %arg5[%c4, %c4_44, %c0_45] : memref<40x40x16xf32, #tpu.memory_space<vmem>>, vector<32x32x16xf32>
      tpu.vector_store %arg5[%c4, %c4_44, %c0_45], %127 {strides = array<i32>} : memref<40x40x16xf32, #tpu.memory_space<vmem>>, vector<32x32x16xf32>,
      %c0_46 = arith.constant 0 : index
      %c0_47 = arith.constant 0 : index
      %c0_48 = arith.constant 0 : index
      %c0_49 = arith.constant 0 : index
      %129 = vector.load %arg3[%c0_46, %c0_47, %c0_48, %c0_49] : memref<1x32x32x16xf32, #tpu.memory_space<vmem>>, vector<1x32x32x16xf32>
      %130 = vector.shape_cast %129 : vector<1x32x32x16xf32> to vector<32x32x16xf32>
      %c4_50 = arith.constant 4 : index
      %c4_51 = arith.constant 4 : index
      %c0_52 = arith.constant 0 : index
      %131 = vector.load %arg6[%c4_50, %c4_51, %c0_52] : memref<40x40x16xf32, #tpu.memory_space<vmem>>, vector<32x32x16xf32>
      tpu.vector_store %arg6[%c4_50, %c4_51, %c0_52], %130 {strides = array<i32>} : memref<40x40x16xf32, #tpu.memory_space<vmem>>, vector<32x32x16xf32>,
    } else {
    }
    %c8_i32 = arith.constant 8 : i32
    %3 = arith.muli %arg1, %c8_i32 : i32
    %4 = arith.index_cast %3 : i32 to index
    %c0 = arith.constant 0 : index
    %c0_1 = arith.constant 0 : index
    %5 = vector.load %arg5[%4, %c0, %c0_1] : memref<40x40x16xf32, #tpu.memory_space<vmem>>, vector<16x40x16xf32>
    %6 = arith.index_cast %3 : i32 to index
    %c0_2 = arith.constant 0 : index
    %c0_3 = arith.constant 0 : index
    %7 = vector.load %arg6[%6, %c0_2, %c0_3] : memref<40x40x16xf32, #tpu.memory_space<vmem>>, vector<16x40x16xf32>
    %8 = arith.mulf %5, %5 : vector<16x40x16xf32>
    %9 = arith.mulf %7, %7 : vector<16x40x16xf32>
    %10 = arith.mulf %5, %7 : vector<16x40x16xf32>
    %11 = tpu.concatenate %5, %7, %8, %9, %10 in 2 : vector<16x40x16xf32>, vector<16x40x16xf32>, vector<16x40x16xf32>, vector<16x40x16xf32>, vector<16x40x16xf32> -> vector<16x40x80xf32>
    %12 = vector.extract_strided_slice %11 {offsets = [0, 0, 0], sizes = [16, 32, 80], strides = [1, 1, 1]} : vector<16x40x80xf32> to vector<16x32x80xf32>
    %cst = arith.constant 0.00761441933 : f32
    %13 = vector.broadcast %cst : f32 to vector<16x32x80xf32>
    %14 = arith.mulf %13, %12 : vector<16x32x80xf32>
    %15 = vector.extract_strided_slice %11 {offsets = [0, 1, 0], sizes = [16, 32, 80], strides = [1, 1, 1]} : vector<16x40x80xf32> to vector<16x32x80xf32>
    %cst_4 = arith.constant 0.0360749699 : f32
    %16 = vector.broadcast %cst_4 : f32 to vector<16x32x80xf32>
    %17 = arith.mulf %16, %15 : vector<16x32x80xf32>
    %18 = arith.addf %14, %17 : vector<16x32x80xf32>
    %19 = vector.extract_strided_slice %11 {offsets = [0, 2, 0], sizes = [16, 32, 80], strides = [1, 1, 1]} : vector<16x40x80xf32> to vector<16x32x80xf32>
    %cst_5 = arith.constant 0.109586082 : f32
    %20 = vector.broadcast %cst_5 : f32 to vector<16x32x80xf32>
    %21 = arith.mulf %20, %19 : vector<16x32x80xf32>
    %22 = arith.addf %18, %21 : vector<16x32x80xf32>
    %23 = vector.extract_strided_slice %11 {offsets = [0, 3, 0], sizes = [16, 32, 80], strides = [1, 1, 1]} : vector<16x40x80xf32> to vector<16x32x80xf32>
    %cst_6 = arith.constant 0.213444546 : f32
    %24 = vector.broadcast %cst_6 : f32 to vector<16x32x80xf32>
    %25 = arith.mulf %24, %23 : vector<16x32x80xf32>
    %26 = arith.addf %22, %25 : vector<16x32x80xf32>
    %27 = vector.extract_strided_slice %11 {offsets = [0, 4, 0], sizes = [16, 32, 80], strides = [1, 1, 1]} : vector<16x40x80xf32> to vector<16x32x80xf32>
    %cst_7 = arith.constant 2.665600e-01 : f32
    %28 = vector.broadcast %cst_7 : f32 to vector<16x32x80xf32>
    %29 = arith.mulf %28, %27 : vector<16x32x80xf32>
    %30 = arith.addf %26, %29 : vector<16x32x80xf32>
    %31 = vector.extract_strided_slice %11 {offsets = [0, 5, 0], sizes = [16, 32, 80], strides = [1, 1, 1]} : vector<16x40x80xf32> to vector<16x32x80xf32>
    %cst_8 = arith.constant 0.213444546 : f32
    %32 = vector.broadcast %cst_8 : f32 to vector<16x32x80xf32>
    %33 = arith.mulf %32, %31 : vector<16x32x80xf32>
    %34 = arith.addf %30, %33 : vector<16x32x80xf32>
    %35 = vector.extract_strided_slice %11 {offsets = [0, 6, 0], sizes = [16, 32, 80], strides = [1, 1, 1]} : vector<16x40x80xf32> to vector<16x32x80xf32>
    %cst_9 = arith.constant 0.109586082 : f32
    %36 = vector.broadcast %cst_9 : f32 to vector<16x32x80xf32>
    %37 = arith.mulf %36, %35 : vector<16x32x80xf32>
    %38 = arith.addf %34, %37 : vector<16x32x80xf32>
    %39 = vector.extract_strided_slice %11 {offsets = [0, 7, 0], sizes = [16, 32, 80], strides = [1, 1, 1]} : vector<16x40x80xf32> to vector<16x32x80xf32>
    %cst_10 = arith.constant 0.0360749699 : f32
    %40 = vector.broadcast %cst_10 : f32 to vector<16x32x80xf32>
    %41 = arith.mulf %40, %39 : vector<16x32x80xf32>
    %42 = arith.addf %38, %41 : vector<16x32x80xf32>
    %43 = vector.extract_strided_slice %11 {offsets = [0, 8, 0], sizes = [16, 32, 80], strides = [1, 1, 1]} : vector<16x40x80xf32> to vector<16x32x80xf32>
    %cst_11 = arith.constant 0.00761441933 : f32
    %44 = vector.broadcast %cst_11 : f32 to vector<16x32x80xf32>
    %45 = arith.mulf %44, %43 : vector<16x32x80xf32>
    %46 = arith.addf %42, %45 : vector<16x32x80xf32>
    %47 = vector.extract_strided_slice %46 {offsets = [0, 0, 0], sizes = [8, 32, 80], strides = [1, 1, 1]} : vector<16x32x80xf32> to vector<8x32x80xf32>
    %cst_12 = arith.constant 0.00761441933 : f32
    %48 = vector.broadcast %cst_12 : f32 to vector<8x32x80xf32>
    %49 = arith.mulf %48, %47 : vector<8x32x80xf32>
    %50 = vector.extract_strided_slice %46 {offsets = [1, 0, 0], sizes = [8, 32, 80], strides = [1, 1, 1]} : vector<16x32x80xf32> to vector<8x32x80xf32>
    %cst_13 = arith.constant 0.0360749699 : f32
    %51 = vector.broadcast %cst_13 : f32 to vector<8x32x80xf32>
    %52 = arith.mulf %51, %50 : vector<8x32x80xf32>
    %53 = arith.addf %49, %52 : vector<8x32x80xf32>
    %54 = vector.extract_strided_slice %46 {offsets = [2, 0, 0], sizes = [8, 32, 80], strides = [1, 1, 1]} : vector<16x32x80xf32> to vector<8x32x80xf32>
    %cst_14 = arith.constant 0.109586082 : f32
    %55 = vector.broadcast %cst_14 : f32 to vector<8x32x80xf32>
    %56 = arith.mulf %55, %54 : vector<8x32x80xf32>
    %57 = arith.addf %53, %56 : vector<8x32x80xf32>
    %58 = vector.extract_strided_slice %46 {offsets = [3, 0, 0], sizes = [8, 32, 80], strides = [1, 1, 1]} : vector<16x32x80xf32> to vector<8x32x80xf32>
    %cst_15 = arith.constant 0.213444546 : f32
    %59 = vector.broadcast %cst_15 : f32 to vector<8x32x80xf32>
    %60 = arith.mulf %59, %58 : vector<8x32x80xf32>
    %61 = arith.addf %57, %60 : vector<8x32x80xf32>
    %62 = vector.extract_strided_slice %46 {offsets = [4, 0, 0], sizes = [8, 32, 80], strides = [1, 1, 1]} : vector<16x32x80xf32> to vector<8x32x80xf32>
    %cst_16 = arith.constant 2.665600e-01 : f32
    %63 = vector.broadcast %cst_16 : f32 to vector<8x32x80xf32>
    %64 = arith.mulf %63, %62 : vector<8x32x80xf32>
    %65 = arith.addf %61, %64 : vector<8x32x80xf32>
    %66 = vector.extract_strided_slice %46 {offsets = [5, 0, 0], sizes = [8, 32, 80], strides = [1, 1, 1]} : vector<16x32x80xf32> to vector<8x32x80xf32>
    %cst_17 = arith.constant 0.213444546 : f32
    %67 = vector.broadcast %cst_17 : f32 to vector<8x32x80xf32>
    %68 = arith.mulf %67, %66 : vector<8x32x80xf32>
    %69 = arith.addf %65, %68 : vector<8x32x80xf32>
    %70 = vector.extract_strided_slice %46 {offsets = [6, 0, 0], sizes = [8, 32, 80], strides = [1, 1, 1]} : vector<16x32x80xf32> to vector<8x32x80xf32>
    %cst_18 = arith.constant 0.109586082 : f32
    %71 = vector.broadcast %cst_18 : f32 to vector<8x32x80xf32>
    %72 = arith.mulf %71, %70 : vector<8x32x80xf32>
    %73 = arith.addf %69, %72 : vector<8x32x80xf32>
    %74 = vector.extract_strided_slice %46 {offsets = [7, 0, 0], sizes = [8, 32, 80], strides = [1, 1, 1]} : vector<16x32x80xf32> to vector<8x32x80xf32>
    %cst_19 = arith.constant 0.0360749699 : f32
    %75 = vector.broadcast %cst_19 : f32 to vector<8x32x80xf32>
    %76 = arith.mulf %75, %74 : vector<8x32x80xf32>
    %77 = arith.addf %73, %76 : vector<8x32x80xf32>
    %78 = vector.extract_strided_slice %46 {offsets = [8, 0, 0], sizes = [8, 32, 80], strides = [1, 1, 1]} : vector<16x32x80xf32> to vector<8x32x80xf32>
    %cst_20 = arith.constant 0.00761441933 : f32
    %79 = vector.broadcast %cst_20 : f32 to vector<8x32x80xf32>
    %80 = arith.mulf %79, %78 : vector<8x32x80xf32>
    %81 = arith.addf %77, %80 : vector<8x32x80xf32>
    %82 = vector.extract_strided_slice %81 {offsets = [0, 0, 0], sizes = [8, 32, 16], strides = [1, 1, 1]} : vector<8x32x80xf32> to vector<8x32x16xf32>
    %83 = vector.extract_strided_slice %81 {offsets = [0, 0, 16], sizes = [8, 32, 16], strides = [1, 1, 1]} : vector<8x32x80xf32> to vector<8x32x16xf32>
    %84 = vector.extract_strided_slice %81 {offsets = [0, 0, 32], sizes = [8, 32, 16], strides = [1, 1, 1]} : vector<8x32x80xf32> to vector<8x32x16xf32>
    %85 = vector.extract_strided_slice %81 {offsets = [0, 0, 48], sizes = [8, 32, 16], strides = [1, 1, 1]} : vector<8x32x80xf32> to vector<8x32x16xf32>
    %86 = vector.extract_strided_slice %81 {offsets = [0, 0, 64], sizes = [8, 32, 16], strides = [1, 1, 1]} : vector<8x32x80xf32> to vector<8x32x16xf32>
    %87 = arith.mulf %82, %82 : vector<8x32x16xf32>
    %88 = arith.subf %84, %87 : vector<8x32x16xf32>
    %89 = arith.mulf %83, %83 : vector<8x32x16xf32>
    %90 = arith.subf %85, %89 : vector<8x32x16xf32>
    %91 = arith.mulf %82, %83 : vector<8x32x16xf32>
    %92 = arith.subf %86, %91 : vector<8x32x16xf32>
    %cst_21 = arith.constant 2.000000e+00 : f32
    %93 = vector.broadcast %cst_21 : f32 to vector<8x32x16xf32>
    %94 = arith.mulf %93, %82 : vector<8x32x16xf32>
    %95 = arith.mulf %94, %83 : vector<8x32x16xf32>
    %cst_22 = arith.constant 9.99999974E-5 : f32
    %96 = vector.broadcast %cst_22 : f32 to vector<8x32x16xf32>
    %97 = arith.addf %95, %96 : vector<8x32x16xf32>
    %cst_23 = arith.constant 2.000000e+00 : f32
    %98 = vector.broadcast %cst_23 : f32 to vector<8x32x16xf32>
    %99 = arith.mulf %98, %92 : vector<8x32x16xf32>
    %cst_24 = arith.constant 8.99999984E-4 : f32
    %100 = vector.broadcast %cst_24 : f32 to vector<8x32x16xf32>
    %101 = arith.addf %99, %100 : vector<8x32x16xf32>
    %102 = arith.mulf %97, %101 : vector<8x32x16xf32>
    %103 = arith.mulf %82, %82 : vector<8x32x16xf32>
    %104 = arith.mulf %83, %83 : vector<8x32x16xf32>
    %105 = arith.addf %103, %104 : vector<8x32x16xf32>
    %cst_25 = arith.constant 9.99999974E-5 : f32
    %106 = vector.broadcast %cst_25 : f32 to vector<8x32x16xf32>
    %107 = arith.addf %105, %106 : vector<8x32x16xf32>
    %108 = arith.addf %88, %90 : vector<8x32x16xf32>
    %cst_26 = arith.constant 8.99999984E-4 : f32
    %109 = vector.broadcast %cst_26 : f32 to vector<8x32x16xf32>
    %110 = arith.addf %108, %109 : vector<8x32x16xf32>
    %111 = arith.mulf %107, %110 : vector<8x32x16xf32>
    %112 = arith.divf %102, %111 : vector<8x32x16xf32>
    %113 = vector.extract_strided_slice %5 {offsets = [4, 4, 0], sizes = [8, 32, 16], strides = [1, 1, 1]} : vector<16x40x16xf32> to vector<8x32x16xf32>
    %114 = vector.extract_strided_slice %7 {offsets = [4, 4, 0], sizes = [8, 32, 16], strides = [1, 1, 1]} : vector<16x40x16xf32> to vector<8x32x16xf32>
    %115 = arith.subf %113, %114 : vector<8x32x16xf32>
    %116 = math.absf %115 : vector<8x32x16xf32>
    %cst_27 = arith.constant 5.000000e-01 : f32
    %117 = vector.broadcast %cst_27 : f32 to vector<8x32x16xf32>
    %118 = arith.mulf %117, %112 : vector<8x32x16xf32>
    %119 = arith.addf %116, %118 : vector<8x32x16xf32>
    %120 = vector.shape_cast %119 : vector<8x32x16xf32> to vector<1x8x32x16xf32>
    %c0_28 = arith.constant 0 : index
    %c0_29 = arith.constant 0 : index
    %c0_30 = arith.constant 0 : index
    %c0_31 = arith.constant 0 : index
    %121 = vector.load %arg4[%c0_28, %c0_29, %c0_30, %c0_31] : memref<1x8x32x16xf32, #tpu.memory_space<vmem>>, vector<1x8x32x16xf32>
    tpu.vector_store %arg4[%c0_28, %c0_29, %c0_30, %c0_31], %120 {strides = array<i32>} : memref<1x8x32x16xf32, #tpu.memory_space<vmem>>, vector<1x8x32x16xf32>,
    return
  }
  func.func @transform_0(%arg0: i32, %arg1: i32) -> (i32, i32, i32, i32) {
    %c0_i32 = arith.constant 0 : i32
    %c0_i32_0 = arith.constant 0 : i32
    %c0_i32_1 = arith.constant 0 : i32
    %c0_i32_2 = arith.constant 0 : i32
    return %arg0, %c0_i32, %c0_i32_0, %c0_i32_1 : i32, i32, i32, i32
  }
  func.func @transform_1(%arg0: i32, %arg1: i32) -> (i32, i32, i32, i32) {
    %c0_i32 = arith.constant 0 : i32
    %c0_i32_0 = arith.constant 0 : i32
    %c0_i32_1 = arith.constant 0 : i32
    %c0_i32_2 = arith.constant 0 : i32
    return %arg0, %c0_i32, %c0_i32_0, %c0_i32_1 : i32, i32, i32, i32
  }
  func.func @transform_2(%arg0: i32, %arg1: i32) -> (i32, i32, i32, i32) {
    %c0_i32 = arith.constant 0 : i32
    %c0_i32_0 = arith.constant 0 : i32
    %c0_i32_1 = arith.constant 0 : i32
    return %arg0, %arg1, %c0_i32, %c0_i32_0 : i32, i32, i32, i32
  }
}

</mosaic_0001>

<llo_original>
// kernel: tile.18
$region0: #{tile.18}
  #allocation0 [shape = 's32[1]{0}', space=sflag, size = 0x4, scoped, tag = 'scoped memory for tile.18']
  %s0 = inlined_call_operand.vmem [shape: f32[16], index: 0, kind: input, shape index: {}]
  %s1 = inlined_call_operand.vmem [shape: f32[2,16], index: 1, kind: output, shape index: {}]
  // Predicated region
  $region2: #{tile.18} parent=0 // pred_check
    _
  $region3: #{tile.18} parent=0 // pred_check_branch
    %3 = sbr.rel (0) target = $region5
  $region4: #{tile.18} parent=0 // pred_region
    _
  $region5: #{tile.18} parent=0 // pred_fallthru
    _
  %v4 = vld [vmem:[%s0] ss:$0 sm:$0xff]
  %5 = vst [vmem:[%s1] sm:$0x3] %v4

// kernel: tile.14
$region0: #{tile.14}
  #allocation0 [shape = 's32[1]{0}', space=sflag, size = 0x4, scoped, tag = 'scoped memory for tile.14']
  %s0 = inlined_call_operand.vmem [shape: f32[16], index: 0, kind: input, shape index: {}]
  %s1 = inlined_call_operand.vmem [shape: f32[4,16], index: 1, kind: output, shape index: {}]
  // Predicated region
  $region2: #{tile.14} parent=0 // pred_check
    _
  $region3: #{tile.14} parent=0 // pred_check_branch
    %3 = sbr.rel (0) target = $region5
  $region4: #{tile.14} parent=0 // pred_region
    _
  $region5: #{tile.14} parent=0 // pred_fallthru
    _
  %v4 = vld [vmem:[%s0] ss:$0 sm:$0xff]
  %5 = vst [vmem:[%s1] sm:$0xf] %v4

// kernel: tile.15
$region0: #{tile.15}
  %s0 = inlined_call_operand.vmem [shape: f32[4,16], index: 0, kind: input, shape index: {}]
  %s1 = inlined_call_operand.vmem [shape: f32[1,64], index: 1, kind: output, shape index: {}]
  $region1: #{tile.15} parent=0
    #allocation0 [shape = 'u8[4096]{0}', space=vmem, size = 0x1000, scoped, tag = 'scoped mem for output reshape']
    #allocation1 [shape = 'u8[4096]{0}', space=vmem, size = 0x1000, scoped, tag = 'scoped mem for input reshape']
    %s3 = sshllo.u32 0, 4
    %v4 = vld [vmem:[%s0] sm:%s3]
    %5 = vst [vmem:[#allocation1] sm:%s3] %v4
    %v6 = vld [vmem:[#allocation1] sm:$0x1]
    %vm7 = vcmask 130048
    %8 = vst.msk [vmem:[#allocation0] sm:$0x1] %vm7, %v6
    %s9 = scalar_lea.vmem [#allocation1], 3
    %v10 = vld [vmem:[%s9] sm:$0x1]
    %11 = vrot.lane.b32.xlu0 %v10, 48
    %v12 = vpop.permute.xlu0 %11
    %vm13 = vcmask 523648
    %14 = vst.msk [vmem:[#allocation0] sm:$0x1] %vm13, %v12
    %s15 = scalar_lea.vmem [#allocation1], 2
    %v16 = vld [vmem:[%s15] sm:$0x1]
    %17 = vrot.lane.b32.xlu0 %v16, 32
    %v18 = vpop.permute.xlu0 %17
    %vm19 = vcmask 392448
    %20 = vst.msk [vmem:[#allocation0] sm:$0x1] %vm19, %v18
    %s21 = scalar_lea.vmem [#allocation1], 1
    %v22 = vld [vmem:[%s21] sm:$0x1]
    %23 = vrot.lane.b32.xlu0 %v22, 16
    %v24 = vpop.permute.xlu0 %23
    %vm25 = vcmask 261248
    %26 = vst.msk [vmem:[#allocation0] sm:$0x1] %vm25, %v24
    %s28 = sshllo.u32 0, 1
    %v30 = vld [vmem:[#allocation0] sm:%s28]
    %s31 = sshllo.u32 0, 1
    %32 = vst [vmem:[%s1] sm:%s31] %v30

// kernel: tile.19
$region0: #{tile.19}
  %s0 = inlined_call_operand.vmem [shape: f32[2,16], index: 0, kind: input, shape index: {}]
  %s1 = inlined_call_operand.vmem [shape: f32[1,32], index: 1, kind: output, shape index: {}]
  $region1: #{tile.19} parent=0
    #allocation0 [shape = 'u8[4096]{0}', space=vmem, size = 0x1000, scoped, tag = 'scoped mem for output reshape']
    #allocation1 [shape = 'u8[4096]{0}', space=vmem, size = 0x1000, scoped, tag = 'scoped mem for input reshape']
    %s3 = sshllo.u32 0, 2
    %v4 = vld [vmem:[%s0] sm:%s3]
    %5 = vst [vmem:[#allocation1] sm:%s3] %v4
    %v6 = vld [vmem:[#allocation1] sm:$0x1]
    %vm7 = vcmask 130048
    %8 = vst.msk [vmem:[#allocation0] sm:$0x1] %vm7, %v6
    %s9 = scalar_lea.vmem [#allocation1], 1
    %v10 = vld [vmem:[%s9] sm:$0x1]
    %11 = vrot.lane.b32.xlu0 %v10, 16
    %v12 = vpop.permute.xlu0 %11
    %vm13 = vcmask 261248
    %14 = vst.msk [vmem:[#allocation0] sm:$0x1] %vm13, %v12
    %s16 = sshllo.u32 0, 1
    %v18 = vld [vmem:[#allocation0] sm:%s16]
    %s19 = sshllo.u32 0, 1
    %20 = vst [vmem:[%s1] sm:%s19] %v18

// kernel: upsampling_module_forward.2
$region0: #{upsampling_module_forward.2}
  #allocation0 [shape = 'u32[]', space=smem, size = 0x4, offset = 0x4, fixed_abs, tag = 'smem constant byte address 0x4 - core index']
  #allocation1 [shape = 'u32[144,128]{1,0:T(1,128)}', space=vmem, size = 0x12000, scoped, tag = 'internal scratch']
  #allocation2 [shape = 'bf16[19,19,16]{2,1,0:T(8,128)(2,1)}', space=vmem, size = 0x1c800, scoped, tag = 'scratch operand']
  %s0 = inlined_call_operand.vmem [shape: bf16[2,16,16,16], index: 0, kind: input, shape index: {}]
  %s1 = inlined_call_operand.vmem [shape: bf16[64,64], index: 1, kind: input, shape index: {}]
  %s2 = inlined_call_operand.vmem [shape: f32[1,64], index: 2, kind: input, shape index: {}]
  %s3 = inlined_call_operand.vmem [shape: bf16[288,32], index: 3, kind: input, shape index: {}]
  %s4 = inlined_call_operand.vmem [shape: f32[1,32], index: 4, kind: input, shape index: {}]
  %s5 = inlined_call_operand.vmem [shape: f32[1,32], index: 5, kind: input, shape index: {}]
  %s6 = inlined_call_operand.vmem [shape: f32[2,32,16,32], index: 6, kind: output, shape index: {}]
  %s7 = sld [smem:[#allocation0]]
  $region61: #{upsampling_module_forward.2} parent=0
    _
  %s9 = ssub.s32 1, %s7
  %s10 = scalar_select 0, %s9, %s7
  loop: start=0, step=1, limit=10
  $region2: #{upsampling_module_forward.2} parent=0 // loop_pre_header
    _
  $region3: #{upsampling_module_forward.2} parent=0 // loop_header
    %s12 = sphi 0, %s16
    %p13 = scmp.ge.s32.totalorder %s12, 10
    %s19 = sphi 0, %s31
    %s20 = sphi 0, %s27
    %s21 = sphi 0, %s19
    %s22 = sphi 0, %s20
    %s23 = sphi 0, %s21
    %s24 = sphi 0, %s22
    %s34 = sphi 0, %s36
    %s37 = sphi 0, %s34
    %s38 = sphi 0, %s37
    %s54 = sphi 0, %s38
    %s58 = sphi 0, %s58
    %s60 = sphi 0, %s58
    %s61 = sphi 0, %s60
    %s75 = sphi 0, %s61
    %s79 = sphi 0, %s79
    %s81 = sphi 0, %s79
    %s82 = sphi 0, %s81
    %s96 = sphi 0, %s82
    %s100 = sphi 0, %s100
    %s102 = sphi 0, %s100
    %s103 = sphi 0, %s102
    %s117 = sphi 0, %s103
    %s121 = sphi 0, %s121
    %s123 = sphi 0, %s121
    %s124 = sphi 0, %s123
    %s138 = sphi 0, %s124
    %s142 = sphi 0, %s142
    %s144 = sphi 0, %s142
    %s145 = sphi 0, %s144
    %s159 = sphi 0, %s145
    %s167 = sphi 0, %s169
    %s170 = sphi 0, %s167
    %s171 = sphi 0, %s170
    %s187 = sphi 0, %s171
  $region4: #{upsampling_module_forward.2} parent=0 // loop_header_branch
    %15 = sbr.rel (%p13) target = $region8
  $region5: #{upsampling_module_forward.2} parent=0 // loop_body
    %s17 = ssub.s32 %s12, 1
    %s18 = ssub.s32 %s12, 2
    %s25 = sadd.s32 1, %s20
    %p26 = scmp.ge.s32.totalorder %s25, 4
    %s27 = scalar_select %p26, 0, %s25
    %s28 = sadd.s32 1, %s19
    %s29 = scalar_select %p26, %s28, %s19
    %p30 = scmp.ge.s32.totalorder %s29, 2
    %s31 = scalar_select %p30, 0, %s29
    %s32 = ssub.s32 %s19, %s31
    %p33 = scmp.eq.s32.totalorder %s32, 0
    %s35 = sadd.s32 %s34, 1
    %s36 = scalar_select %p33, %s34, %s35
    %p39 = pneg %p33
    %p40 = scmp.eq.s32.totalorder %s12, 7
    %p41 = por %p39, %p40
    %p42 = scmp.ne.s32.totalorder %s34, %s37
    %p43 = scmp.eq.s32.totalorder %s12, 0
    %p44 = por %p42, %p43
    %p45 = scmp.ne.s32.totalorder %s34, %s37
    %p46 = scmp.eq.s32.totalorder %s17, 7
    %p47 = por %p45, %p46
    %p48 = scmp.ne.s32.totalorder %s37, %s38
    %p49 = scmp.eq.s32.totalorder %s17, 0
    %p50 = por %p48, %p49
    %p51 = scmp.ne.s32.totalorder %s37, %s38
    %p52 = scmp.eq.s32.totalorder %s18, 7
    %p53 = por %p51, %p52
    %p55 = scmp.ne.s32.totalorder %s38, %s54
    %p56 = scmp.eq.s32.totalorder %s18, 0
    %p57 = por %p55, %p56
    %s59 = sadd.s32 %s58, 1
    %p62 = scmp.eq.s32.totalorder %s12, 7
    %p63 = scmp.ne.s32.totalorder %s58, %s60
    %p64 = scmp.eq.s32.totalorder %s12, 0
    %p65 = por %p63, %p64
    %p66 = scmp.ne.s32.totalorder %s58, %s60
    %p67 = scmp.eq.s32.totalorder %s17, 7
    %p68 = por %p66, %p67
    %p69 = scmp.ne.s32.totalorder %s60, %s61
    %p70 = scmp.eq.s32.totalorder %s17, 0
    %p71 = por %p69, %p70
    %p72 = scmp.ne.s32.totalorder %s60, %s61
    %p73 = scmp.eq.s32.totalorder %s18, 7
    %p74 = por %p72, %p73
    %p76 = scmp.ne.s32.totalorder %s61, %s75
    %p77 = scmp.eq.s32.totalorder %s18, 0
    %p78 = por %p76, %p77
    %s80 = sadd.s32 %s79, 1
    %p83 = scmp.eq.s32.totalorder %s12, 7
    %p84 = scmp.ne.s32.totalorder %s79, %s81
    %p85 = scmp.eq.s32.totalorder %s12, 0
    %p86 = por %p84, %p85
    %p87 = scmp.ne.s32.totalorder %s79, %s81
    %p88 = scmp.eq.s32.totalorder %s17, 7
    %p89 = por %p87, %p88
    %p90 = scmp.ne.s32.totalorder %s81, %s82
    %p91 = scmp.eq.s32.totalorder %s17, 0
    %p92 = por %p90, %p91
    %p93 = scmp.ne.s32.totalorder %s81, %s82
    %p94 = scmp.eq.s32.totalorder %s18, 7
    %p95 = por %p93, %p94
    %p97 = scmp.ne.s32.totalorder %s82, %s96
    %p98 = scmp.eq.s32.totalorder %s18, 0
    %p99 = por %p97, %p98
    %s101 = sadd.s32 %s100, 1
    %p104 = scmp.eq.s32.totalorder %s12, 7
    %p105 = scmp.ne.s32.totalorder %s100, %s102
    %p106 = scmp.eq.s32.totalorder %s12, 0
    %p107 = por %p105, %p106
    %p108 = scmp.ne.s32.totalorder %s100, %s102
    %p109 = scmp.eq.s32.totalorder %s17, 7
    %p110 = por %p108, %p109
    %p111 = scmp.ne.s32.totalorder %s102, %s103
    %p112 = scmp.eq.s32.totalorder %s17, 0
    %p113 = por %p111, %p112
    %p114 = scmp.ne.s32.totalorder %s102, %s103
    %p115 = scmp.eq.s32.totalorder %s18, 7
    %p116 = por %p114, %p115
    %p118 = scmp.ne.s32.totalorder %s103, %s117
    %p119 = scmp.eq.s32.totalorder %s18, 0
    %p120 = por %p118, %p119
    %s122 = sadd.s32 %s121, 1
    %p125 = scmp.eq.s32.totalorder %s12, 7
    %p126 = scmp.ne.s32.totalorder %s121, %s123
    %p127 = scmp.eq.s32.totalorder %s12, 0
    %p128 = por %p126, %p127
    %p129 = scmp.ne.s32.totalorder %s121, %s123
    %p130 = scmp.eq.s32.totalorder %s17, 7
    %p131 = por %p129, %p130
    %p132 = scmp.ne.s32.totalorder %s123, %s124
    %p133 = scmp.eq.s32.totalorder %s17, 0
    %p134 = por %p132, %p133
    %p135 = scmp.ne.s32.totalorder %s123, %s124
    %p136 = scmp.eq.s32.totalorder %s18, 7
    %p137 = por %p135, %p136
    %p139 = scmp.ne.s32.totalorder %s124, %s138
    %p140 = scmp.eq.s32.totalorder %s18, 0
    %p141 = por %p139, %p140
    %s143 = sadd.s32 %s142, 1
    %p146 = scmp.eq.s32.totalorder %s12, 7
    %p147 = scmp.ne.s32.totalorder %s142, %s144
    %p148 = scmp.eq.s32.totalorder %s12, 0
    %p149 = por %p147, %p148
    %p150 = scmp.ne.s32.totalorder %s142, %s144
    %p151 = scmp.eq.s32.totalorder %s17, 7
    %p152 = por %p150, %p151
    %p153 = scmp.ne.s32.totalorder %s144, %s145
    %p154 = scmp.eq.s32.totalorder %s17, 0
    %p155 = por %p153, %p154
    %p156 = scmp.ne.s32.totalorder %s144, %s145
    %p157 = scmp.eq.s32.totalorder %s18, 7
    %p158 = por %p156, %p157
    %p160 = scmp.ne.s32.totalorder %s145, %s159
    %p161 = scmp.eq.s32.totalorder %s18, 0
    %p162 = por %p160, %p161
    %s163 = ssub.s32 %s19, %s31
    %s164 = ssub.s32 %s20, %s27
    %s165 = sor.u32 %s163, %s164
    %p166 = scmp.eq.s32.totalorder %s165, 0
    %s168 = sadd.s32 %s167, 1
    %s169 = scalar_select %p166, %s167, %s168
    %p172 = pneg %p166
    %p173 = scmp.eq.s32.totalorder %s12, 7
    %p174 = por %p172, %p173
    %p175 = scmp.ne.s32.totalorder %s167, %s170
    %p176 = scmp.eq.s32.totalorder %s12, 0
    %p177 = por %p175, %p176
    %p178 = scmp.ne.s32.totalorder %s167, %s170
    %p179 = scmp.eq.s32.totalorder %s17, 7
    %p180 = por %p178, %p179
    %p181 = scmp.ne.s32.totalorder %s170, %s171
    %p182 = scmp.eq.s32.totalorder %s17, 0
    %p183 = por %p181, %p182
    %p184 = scmp.ne.s32.totalorder %s170, %s171
    %p185 = scmp.eq.s32.totalorder %s18, 7
    %p186 = por %p184, %p185
    %p188 = scmp.ne.s32.totalorder %s171, %s187
    %p189 = scmp.eq.s32.totalorder %s18, 0
    %p190 = por %p188, %p189
    %p191 = scmp.le.s32.totalorder 1, %s12
    %p192 = scmp.lt.s32.totalorder %s12, 9
    %p193 = pnand %p191, %p192
    %p194 = pneg %p193
    // Predicated region
    $region9: #{upsampling_module_forward.2} parent=5 // pred_check
      _
    $region10: #{upsampling_module_forward.2} parent=5 // pred_check_branch
      %196 = sbr.rel (%p193) target = $region12
    $region11: #{upsampling_module_forward.2} parent=5 // pred_region
      %s197 = ssub.s32 %s12, 1
      // Predicated region
      $region13: #{upsampling_module_forward.2} parent=11 // pred_check
        %p198 = pneg %p71
      $region14: #{upsampling_module_forward.2} parent=11 // pred_check_branch
        %200 = sbr.rel (%p198) target = $region16
      $region15: #{upsampling_module_forward.2} parent=11 // pred_region
        _
      $region16: #{upsampling_module_forward.2} parent=11 // pred_fallthru
        _
      // Predicated region
      $region17: #{upsampling_module_forward.2} parent=11 // pred_check
        %p201 = pneg %p92
      $region18: #{upsampling_module_forward.2} parent=11 // pred_check_branch
        %203 = sbr.rel (%p201) target = $region20
      $region19: #{upsampling_module_forward.2} parent=11 // pred_region
        _
      $region20: #{upsampling_module_forward.2} parent=11 // pred_fallthru
        _
      // Predicated region
      $region21: #{upsampling_module_forward.2} parent=11 // pred_check
        %p204 = pneg %p113
      $region22: #{upsampling_module_forward.2} parent=11 // pred_check_branch
        %206 = sbr.rel (%p204) target = $region24
      $region23: #{upsampling_module_forward.2} parent=11 // pred_region
        _
      $region24: #{upsampling_module_forward.2} parent=11 // pred_fallthru
        _
      // Predicated region
      $region25: #{upsampling_module_forward.2} parent=11 // pred_check
        %p207 = pneg %p134
      $region26: #{upsampling_module_forward.2} parent=11 // pred_check_branch
        %209 = sbr.rel (%p207) target = $region28
      $region27: #{upsampling_module_forward.2} parent=11 // pred_region
        _
      $region28: #{upsampling_module_forward.2} parent=11 // pred_fallthru
        _
      // Predicated region
      $region29: #{upsampling_module_forward.2} parent=11 // pred_check
        %p210 = pneg %p155
      $region30: #{upsampling_module_forward.2} parent=11 // pred_check_branch
        %212 = sbr.rel (%p210) target = $region32
      $region31: #{upsampling_module_forward.2} parent=11 // pred_region
        _
      $region32: #{upsampling_module_forward.2} parent=11 // pred_fallthru
        _
    $region12: #{upsampling_module_forward.2} parent=5 // pred_fallthru
      _
    %p213 = scmp.lt.s32.totalorder %s12, 8
    // Predicated region
    $region33: #{upsampling_module_forward.2} parent=5 // pred_check
      %p214 = pneg %p213
    $region34: #{upsampling_module_forward.2} parent=5 // pred_check_branch
      %216 = sbr.rel (%p214) target = $region36
    $region35: #{upsampling_module_forward.2} parent=5 // pred_region
      // Predicated region
      $region37: #{upsampling_module_forward.2} parent=35 // pred_check
        %p217 = pneg %p44
      $region38: #{upsampling_module_forward.2} parent=35 // pred_check_branch
        %219 = sbr.rel (%p217) target = $region40
      $region39: #{upsampling_module_forward.2} parent=35 // pred_region
        %p220 = scmp.lt.s32.totalorder %s19, 1
        %s221 = scalar_select %p220, %s19, 1
        %s222 = smul.addr %s221, 32
        %s223 = smul.addr %s222, 4
        %s224 = scalar_lea.vmem %s0, %s223
      $region40: #{upsampling_module_forward.2} parent=35 // pred_fallthru
        _
    $region36: #{upsampling_module_forward.2} parent=5 // pred_fallthru
      _
    %p225 = scmp.le.s32.totalorder 1, %s12
    %p226 = scmp.lt.s32.totalorder %s12, 9
    %p227 = pnand %p225, %p226
    %p228 = pneg %p227
    // Predicated region
    $region41: #{upsampling_module_forward.2} parent=5 // pred_check
      _
    $region42: #{upsampling_module_forward.2} parent=5 // pred_check_branch
      %230 = sbr.rel (%p227) target = $region44
    $region43: #{upsampling_module_forward.2} parent=5 // pred_region
      %s231 = ssub.s32 %s12, 1
      %p232 = scmp.lt.s32.totalorder %s21, 1
      %s233 = scalar_select %p232, %s21, 1
      %s234 = smul.addr %s233, 32
      %s235 = smul.addr %s234, 4
      %s236 = scalar_lea.vmem %s0, %s235
      %p237 = pneg %p50
      %p238 = pneg %p47
      %p239 = pneg %p71
      %p240 = pneg %p68
      %p241 = pneg %p92
      %p242 = pneg %p89
      %p243 = pneg %p113
      %p244 = pneg %p110
      %p245 = pneg %p134
      %p246 = pneg %p131
      %p247 = pneg %p155
      %p248 = pneg %p152
      %p249 = pneg %p183
      %p250 = pneg %p180
      %s251 = smul.u32 8, %s22
      %p252 = scmp.lt.s32.totalorder %s21, 1
      %s253 = scalar_select %p252, %s21, 1
      %p254 = scmp.lt.s32.totalorder %s251, 31
      %s255 = scalar_select %p254, %s251, 31
      %s256 = smul.addr %s255, 2
      %s257 = smul.addr %s253, 64
      %s258 = sadd.s32 %s256, %s257
      %s259 = smul.addr %s258, 8
      %s260 = scalar_lea.vmem %s6, %s259
      %p261 = scmp.lt.s32.totalorder %s21, 1
      %s262 = scalar_select %p261, %s21, 1
      %s263 = smul.addr %s262, 32
      %s264 = smul.addr %s263, 4
      %s265 = scalar_lea.vmem %s0, %s264
      %s266 = smul.u32 8, %s22
      %p267 = scmp.lt.s32.totalorder %s21, 1
      %s268 = scalar_select %p267, %s21, 1
      %p269 = scmp.lt.s32.totalorder %s266, 31
      %s270 = scalar_select %p269, %s266, 31
      %s271 = smul.addr %s270, 2
      %s272 = smul.addr %s268, 64
      %s273 = sadd.s32 %s271, %s272
      %s274 = smul.addr %s273, 8
      %s275 = scalar_lea.vmem %s6, %s274
      %s276 = smul.u32 8, %s22
      %s278 = smul.u32 %s22, 4
      %p279 = scmp.eq.s32.totalorder %s22, 0
      // Predicated region
      $region45: #{upsampling_module_forward.2} parent=43 // pred_check
        %p280 = pneg %p279
      $region46: #{upsampling_module_forward.2} parent=43 // pred_check_branch
        %282 = sbr.rel (%p280) target = $region48
      $region47: #{upsampling_module_forward.2} parent=43 // pred_region
        %vm283 = vcmask 125952
        %284 = vst.msk [vmem:[#allocation2] sm:$0xf] %vm283, 0
        %285 = vst.msk [vmem:[#allocation2 + $0x4] sm:$0xf] %vm283, 0
        %vm286 = vcmask 123904
        %vm287 = vsmask.f32 1280
        %vm288 = vmand %vm286, %vm287
        %v289 = vld [vmem:[#allocation2 + $0x8] sm:$0x3]
        %v290 = vsel %vm288, 0, %v289
        %291 = vst [vmem:[#allocation2 + $0x8] sm:$0x3] %v290
        %292 = vst.msk [vmem:[#allocation2 + $0xc] sm:$0xf] %vm283, 0
        %293 = vst.msk [vmem:[#allocation2 + $0x10] sm:$0xf] %vm283, 0
        %v294 = vld [vmem:[#allocation2 + $0x14] sm:$0x3]
        %v295 = vsel %vm288, 0, %v294
        %296 = vst [vmem:[#allocation2 + $0x14] sm:$0x3] %v295
        %297 = vst.msk [vmem:[#allocation2 + $0x18] sm:$0xf] %vm283, 0
        %298 = vst.msk [vmem:[#allocation2 + $0x1c] sm:$0xf] %vm283, 0
        %v299 = vld [vmem:[#allocation2 + $0x20] sm:$0x3]
        %v300 = vsel %vm288, 0, %v299
        %301 = vst [vmem:[#allocation2 + $0x20] sm:$0x3] %v300
        %302 = vst.msk [vmem:[#allocation2 + $0x24] sm:$0xf] %vm283, 0
        %303 = vst.msk [vmem:[#allocation2 + $0x28] sm:$0xf] %vm283, 0
        %v304 = vld [vmem:[#allocation2 + $0x2c] sm:$0x3]
        %v305 = vsel %vm288, 0, %v304
        %306 = vst [vmem:[#allocation2 + $0x2c] sm:$0x3] %v305
        %307 = vst.msk [vmem:[#allocation2 + $0x30] sm:$0xf] %vm283, 0
        %308 = vst.msk [vmem:[#allocation2 + $0x34] sm:$0xf] %vm283, 0
        %v309 = vld [vmem:[#allocation2 + $0x38] sm:$0x3]
        %v310 = vsel %vm288, 0, %v309
        %311 = vst [vmem:[#allocation2 + $0x38] sm:$0x3] %v310
        %312 = vst.msk [vmem:[#allocation2 + $0x3c] sm:$0xf] %vm283, 0
        %313 = vst.msk [vmem:[#allocation2 + $0x40] sm:$0xf] %vm283, 0
        %v314 = vld [vmem:[#allocation2 + $0x44] sm:$0x3]
        %v315 = vsel %vm288, 0, %v314
        %316 = vst [vmem:[#allocation2 + $0x44] sm:$0x3] %v315
        %317 = vst.msk [vmem:[#allocation2 + $0x48] sm:$0xf] %vm283, 0
        %318 = vst.msk [vmem:[#allocation2 + $0x4c] sm:$0xf] %vm283, 0
        %v319 = vld [vmem:[#allocation2 + $0x50] sm:$0x3]
        %v320 = vsel %vm288, 0, %v319
        %321 = vst [vmem:[#allocation2 + $0x50] sm:$0x3] %v320
        %322 = vst.msk [vmem:[#allocation2 + $0x54] sm:$0xf] %vm283, 0
        %323 = vst.msk [vmem:[#allocation2 + $0x58] sm:$0xf] %vm283, 0
        %v324 = vld [vmem:[#allocation2 + $0x5c] sm:$0x3]
        %v325 = vsel %vm288, 0, %v324
        %326 = vst [vmem:[#allocation2 + $0x5c] sm:$0x3] %v325
        %327 = vst.msk [vmem:[#allocation2 + $0x60] sm:$0xf] %vm283, 0
        %328 = vst.msk [vmem:[#allocation2 + $0x64] sm:$0xf] %vm283, 0
        %v329 = vld [vmem:[#allocation2 + $0x68] sm:$0x3]
        %v330 = vsel %vm288, 0, %v329
        %331 = vst [vmem:[#allocation2 + $0x68] sm:$0x3] %v330
        %332 = vst.msk [vmem:[#allocation2 + $0x6c] sm:$0xf] %vm283, 0
        %333 = vst.msk [vmem:[#allocation2 + $0x70] sm:$0xf] %vm283, 0
        %v334 = vld [vmem:[#allocation2 + $0x74] sm:$0x3]
        %v335 = vsel %vm288, 0, %v334
        %336 = vst [vmem:[#allocation2 + $0x74] sm:$0x3] %v335
        %337 = vst.msk [vmem:[#allocation2 + $0x78] sm:$0xf] %vm283, 0
        %338 = vst.msk [vmem:[#allocation2 + $0x7c] sm:$0xf] %vm283, 0
        %v339 = vld [vmem:[#allocation2 + $0x80] sm:$0x3]
        %v340 = vsel %vm288, 0, %v339
        %341 = vst [vmem:[#allocation2 + $0x80] sm:$0x3] %v340
        %342 = vst.msk [vmem:[#allocation2 + $0x84] sm:$0xf] %vm283, 0
        %343 = vst.msk [vmem:[#allocation2 + $0x88] sm:$0xf] %vm283, 0
        %v344 = vld [vmem:[#allocation2 + $0x8c] sm:$0x3]
        %v345 = vsel %vm288, 0, %v344
        %346 = vst [vmem:[#allocation2 + $0x8c] sm:$0x3] %v345
        %347 = vst.msk [vmem:[#allocation2 + $0x90] sm:$0xf] %vm283, 0
        %348 = vst.msk [vmem:[#allocation2 + $0x94] sm:$0xf] %vm283, 0
        %v349 = vld [vmem:[#allocation2 + $0x98] sm:$0x3]
        %v350 = vsel %vm288, 0, %v349
        %351 = vst [vmem:[#allocation2 + $0x98] sm:$0x3] %v350
        %352 = vst.msk [vmem:[#allocation2 + $0x9c] sm:$0xf] %vm283, 0
        %353 = vst.msk [vmem:[#allocation2 + $0xa0] sm:$0xf] %vm283, 0
        %v354 = vld [vmem:[#allocation2 + $0xa4] sm:$0x3]
        %v355 = vsel %vm288, 0, %v354
        %356 = vst [vmem:[#allocation2 + $0xa4] sm:$0x3] %v355
        %357 = vst.msk [vmem:[#allocation2 + $0xa8] sm:$0xf] %vm283, 0
        %358 = vst.msk [vmem:[#allocation2 + $0xac] sm:$0xf] %vm283, 0
        %v359 = vld [vmem:[#allocation2 + $0xb0] sm:$0x3]
        %v360 = vsel %vm288, 0, %v359
        %361 = vst [vmem:[#allocation2 + $0xb0] sm:$0x3] %v360
        %362 = vst.msk [vmem:[#allocation2 + $0xb4] sm:$0xf] %vm283, 0
        %363 = vst.msk [vmem:[#allocation2 + $0xb8] sm:$0xf] %vm283, 0
        %v364 = vld [vmem:[#allocation2 + $0xbc] sm:$0x3]
        %v365 = vsel %vm288, 0, %v364
        %366 = vst [vmem:[#allocation2 + $0xbc] sm:$0x3] %v365
        %367 = vst.msk [vmem:[#allocation2 + $0xc0] sm:$0xf] %vm283, 0
        %368 = vst.msk [vmem:[#allocation2 + $0xc4] sm:$0xf] %vm283, 0
        %v369 = vld [vmem:[#allocation2 + $0xc8] sm:$0x3]
        %v370 = vsel %vm288, 0, %v369
        %371 = vst [vmem:[#allocation2 + $0xc8] sm:$0x3] %v370
        %372 = vst.msk [vmem:[#allocation2 + $0xcc] sm:$0xf] %vm283, 0
        %373 = vst.msk [vmem:[#allocation2 + $0xd0] sm:$0xf] %vm283, 0
        %v374 = vld [vmem:[#allocation2 + $0xd4] sm:$0x3]
        %v375 = vsel %vm288, 0, %v374
        %376 = vst [vmem:[#allocation2 + $0xd4] sm:$0x3] %v375
        %377 = vst.msk [vmem:[#allocation2 + $0xd8] sm:$0xf] %vm283, 0
        %378 = vst.msk [vmem:[#allocation2 + $0xdc] sm:$0xf] %vm283, 0
        %v379 = vld [vmem:[#allocation2 + $0xe0] sm:$0x3]
        %v380 = vsel %vm288, 0, %v379
        %381 = vst [vmem:[#allocation2 + $0xe0] sm:$0x3] %v380
        %v382 = vld [vmem:[%s265] sm:$0xf]
        %v383 = vld [vmem:[%s265 + $0x4] sm:$0xf]
        %v384 = vld [vmem:[%s265 + $0x8] sm:$0xf]
        %v385 = vld [vmem:[%s265 + $0xc] sm:$0xf]
        %v386 = vld [vmem:[%s265 + $0x10] sm:$0xf]
        %v387 = vld [vmem:[%s265 + $0x14] sm:$0xf]
        %v388 = vld [vmem:[%s265 + $0x18] sm:$0xf]
        %v389 = vld [vmem:[%s265 + $0x1c] sm:$0xf]
        %v390 = vld [vmem:[%s265 + $0x20] sm:$0xf]
        %v391 = vld [vmem:[%s265 + $0x24] sm:$0xf]
        %v392 = vld [vmem:[%s265 + $0x28] sm:$0xf]
        %v393 = vld [vmem:[%s265 + $0x2c] sm:$0xf]
        %v394 = vld [vmem:[%s265 + $0x30] sm:$0xf]
        %v395 = vld [vmem:[%s265 + $0x34] sm:$0xf]
        %v396 = vld [vmem:[%s265 + $0x38] sm:$0xf]
        %v397 = vld [vmem:[%s265 + $0x3c] sm:$0xf]
        %v398 = vld [vmem:[%s265 + $0x40] sm:$0xf]
        %v399 = vld [vmem:[%s265 + $0x44] sm:$0xf]
        %v400 = vld [vmem:[%s265 + $0x48] sm:$0xf]
        %v401 = vld [vmem:[%s265 + $0x4c] sm:$0xf]
        %v402 = vld [vmem:[%s265 + $0x50] sm:$0xf]
        %v403 = vld [vmem:[%s265 + $0x54] sm:$0xf]
        %v404 = vld [vmem:[%s265 + $0x58] sm:$0xf]
        %v405 = vld [vmem:[%s265 + $0x5c] sm:$0xf]
        %v406 = vld [vmem:[%s265 + $0x60] sm:$0xf]
        %v407 = vld [vmem:[%s265 + $0x64] sm:$0xf]
        %v408 = vld [vmem:[%s265 + $0x68] sm:$0xf]
        %v409 = vld [vmem:[%s265 + $0x6c] sm:$0xf]
        %v410 = vld [vmem:[%s265 + $0x70] sm:$0xf]
        %v411 = vld [vmem:[%s265 + $0x74] sm:$0xf]
        %v412 = vld [vmem:[%s265 + $0x78] sm:$0xf]
        %v413 = vld [vmem:[%s265 + $0x7c] sm:$0xf]
        %vm414 = vsmask.f32 256
        %vm415 = vsmask.f32 4368
        %vm416 = vmor %vm414, %vm415
        %v418 = vshrl.u32 %v382, 16
        %v420 = vrot.slane %v418, 7
        %v421 = vshll.u32 %v382, 16
        %v423 = vor.u32 %v420, %v421
        %v424 = vrot.slane %v420, 4
        %v426 = vshrl.u32 %v383, 16
        %v428 = vrot.slane %v426, 7
        %v429 = vshll.u32 %v383, 16
        %v431 = vor.u32 %v428, %v429
        %v432 = vsel %vm416, %v424, %v431
        %v433 = vrot.slane %v428, 4
        %v435 = vshrl.u32 %v384, 16
        %v437 = vrot.slane %v435, 7
        %v438 = vshll.u32 %v384, 16
        %v440 = vor.u32 %v437, %v438
        %v441 = vrot.slane %v437, 4
        %v443 = vshrl.u32 %v385, 16
        %v445 = vrot.slane %v443, 7
        %v446 = vshll.u32 %v385, 16
        %v448 = vor.u32 %v445, %v446
        %v449 = vsel %vm416, %v441, %v448
        %v450 = vrot.slane %v445, 4
        %v452 = vshrl.u32 %v386, 16
        %v454 = vrot.slane %v452, 7
        %v455 = vshll.u32 %v386, 16
        %v457 = vor.u32 %v454, %v455
        %v458 = vrot.slane %v454, 4
        %v460 = vshrl.u32 %v387, 16
        %v462 = vrot.slane %v460, 7
        %v463 = vshll.u32 %v387, 16
        %v465 = vor.u32 %v462, %v463
        %v466 = vsel %vm416, %v458, %v465
        %v467 = vrot.slane %v462, 4
        %v469 = vshrl.u32 %v388, 16
        %v471 = vrot.slane %v469, 7
        %v472 = vshll.u32 %v388, 16
        %v474 = vor.u32 %v471, %v472
        %v475 = vrot.slane %v471, 4
        %v477 = vshrl.u32 %v389, 16
        %v479 = vrot.slane %v477, 7
        %v480 = vshll.u32 %v389, 16
        %v482 = vor.u32 %v479, %v480
        %v483 = vsel %vm416, %v475, %v482
        %v484 = vrot.slane %v479, 4
        %v486 = vshrl.u32 %v390, 16
        %v488 = vrot.slane %v486, 7
        %v489 = vshll.u32 %v390, 16
        %v491 = vor.u32 %v488, %v489
        %v492 = vrot.slane %v488, 4
        %v494 = vshrl.u32 %v391, 16
        %v496 = vrot.slane %v494, 7
        %v497 = vshll.u32 %v391, 16
        %v499 = vor.u32 %v496, %v497
        %v500 = vsel %vm416, %v492, %v499
        %v501 = vrot.slane %v496, 4
        %v503 = vshrl.u32 %v392, 16
        %v505 = vrot.slane %v503, 7
        %v506 = vshll.u32 %v392, 16
        %v508 = vor.u32 %v505, %v506
        %v509 = vrot.slane %v505, 4
        %v511 = vshrl.u32 %v393, 16
        %v513 = vrot.slane %v511, 7
        %v514 = vshll.u32 %v393, 16
        %v516 = vor.u32 %v513, %v514
        %v517 = vsel %vm416, %v509, %v516
        %v518 = vrot.slane %v513, 4
        %v520 = vshrl.u32 %v394, 16
        %v522 = vrot.slane %v520, 7
        %v523 = vshll.u32 %v394, 16
        %v525 = vor.u32 %v522, %v523
        %v526 = vrot.slane %v522, 4
        %v528 = vshrl.u32 %v395, 16
        %v530 = vrot.slane %v528, 7
        %v531 = vshll.u32 %v395, 16
        %v533 = vor.u32 %v530, %v531
        %v534 = vsel %vm416, %v526, %v533
        %v535 = vrot.slane %v530, 4
        %v537 = vshrl.u32 %v396, 16
        %v539 = vrot.slane %v537, 7
        %v540 = vshll.u32 %v396, 16
        %v542 = vor.u32 %v539, %v540
        %v543 = vrot.slane %v539, 4
        %v545 = vshrl.u32 %v397, 16
        %v547 = vrot.slane %v545, 7
        %v548 = vshll.u32 %v397, 16
        %v550 = vor.u32 %v547, %v548
        %v551 = vsel %vm416, %v543, %v550
        %v552 = vrot.slane %v547, 4
        %v554 = vshrl.u32 %v398, 16
        %v556 = vrot.slane %v554, 7
        %v557 = vshll.u32 %v398, 16
        %v559 = vor.u32 %v556, %v557
        %v560 = vrot.slane %v556, 4
        %v562 = vshrl.u32 %v399, 16
        %v564 = vrot.slane %v562, 7
        %v565 = vshll.u32 %v399, 16
        %v567 = vor.u32 %v564, %v565
        %v568 = vsel %vm416, %v560, %v567
        %v569 = vrot.slane %v564, 4
        %v571 = vshrl.u32 %v400, 16
        %v573 = vrot.slane %v571, 7
        %v574 = vshll.u32 %v400, 16
        %v576 = vor.u32 %v573, %v574
        %v577 = vrot.slane %v573, 4
        %v579 = vshrl.u32 %v401, 16
        %v581 = vrot.slane %v579, 7
        %v582 = vshll.u32 %v401, 16
        %v584 = vor.u32 %v581, %v582
        %v585 = vsel %vm416, %v577, %v584
        %v586 = vrot.slane %v581, 4
        %v588 = vshrl.u32 %v402, 16
        %v590 = vrot.slane %v588, 7
        %v591 = vshll.u32 %v402, 16
        %v593 = vor.u32 %v590, %v591
        %v594 = vrot.slane %v590, 4
        %v596 = vshrl.u32 %v403, 16
        %v598 = vrot.slane %v596, 7
        %v599 = vshll.u32 %v403, 16
        %v601 = vor.u32 %v598, %v599
        %v602 = vsel %vm416, %v594, %v601
        %v603 = vrot.slane %v598, 4
        %v605 = vshrl.u32 %v404, 16
        %v607 = vrot.slane %v605, 7
        %v608 = vshll.u32 %v404, 16
        %v610 = vor.u32 %v607, %v608
        %v611 = vrot.slane %v607, 4
        %v613 = vshrl.u32 %v405, 16
        %v615 = vrot.slane %v613, 7
        %v616 = vshll.u32 %v405, 16
        %v618 = vor.u32 %v615, %v616
        %v619 = vsel %vm416, %v611, %v618
        %v620 = vrot.slane %v615, 4
        %v622 = vshrl.u32 %v406, 16
        %v624 = vrot.slane %v622, 7
        %v625 = vshll.u32 %v406, 16
        %v627 = vor.u32 %v624, %v625
        %v628 = vrot.slane %v624, 4
        %v630 = vshrl.u32 %v407, 16
        %v632 = vrot.slane %v630, 7
        %v633 = vshll.u32 %v407, 16
        %v635 = vor.u32 %v632, %v633
        %v636 = vsel %vm416, %v628, %v635
        %v637 = vrot.slane %v632, 4
        %v639 = vshrl.u32 %v408, 16
        %v641 = vrot.slane %v639, 7
        %v642 = vshll.u32 %v408, 16
        %v644 = vor.u32 %v641, %v642
        %v645 = vrot.slane %v641, 4
        %v647 = vshrl.u32 %v409, 16
        %v649 = vrot.slane %v647, 7
        %v650 = vshll.u32 %v409, 16
        %v652 = vor.u32 %v649, %v650
        %v653 = vsel %vm416, %v645, %v652
        %v654 = vrot.slane %v649, 4
        %v656 = vshrl.u32 %v410, 16
        %v658 = vrot.slane %v656, 7
        %v659 = vshll.u32 %v410, 16
        %v661 = vor.u32 %v658, %v659
        %v662 = vrot.slane %v658, 4
        %v664 = vshrl.u32 %v411, 16
        %v666 = vrot.slane %v664, 7
        %v667 = vshll.u32 %v411, 16
        %v669 = vor.u32 %v666, %v667
        %v670 = vsel %vm416, %v662, %v669
        %v671 = vrot.slane %v666, 4
        %v673 = vshrl.u32 %v412, 16
        %v675 = vrot.slane %v673, 7
        %v676 = vshll.u32 %v412, 16
        %v678 = vor.u32 %v675, %v676
        %v679 = vrot.slane %v675, 4
        %v681 = vshrl.u32 %v413, 16
        %v683 = vrot.slane %v681, 7
        %v684 = vshll.u32 %v413, 16
        %v686 = vor.u32 %v683, %v684
        %v687 = vsel %vm416, %v679, %v686
        %v688 = vrot.slane %v683, 4
        %s737 = scalar_lea.vmem [#allocation2], 12
        %vm738 = vcmask 125952
        %vm739 = vsmask.f32 7938
        %vm740 = vmand %vm738, %vm739
        %v741 = vld [vmem:[%s737] sm:$0xf]
        %v742 = vsel %vm740, %v423, %v741
        %743 = vst [vmem:[%s737] sm:$0xf] %v742
        %744 = vst.msk [vmem:[%s737 + $0x4] sm:$0xf] %vm283, %v432
        %vm745 = vcmask 122880
        %vm746 = vmand %vm745, %vm414
        %v747 = vld [vmem:[%s737 + $0x8] sm:$0x1]
        %v748 = vsel %vm746, %v433, %v747
        %749 = vst [vmem:[%s737 + $0x8] sm:$0x1] %v748
        %v750 = vld [vmem:[%s737 + $0xc] sm:$0xf]
        %v751 = vsel %vm740, %v440, %v750
        %752 = vst [vmem:[%s737 + $0xc] sm:$0xf] %v751
        %753 = vst.msk [vmem:[%s737 + $0x10] sm:$0xf] %vm283, %v449
        %v754 = vld [vmem:[%s737 + $0x14] sm:$0x1]
        %v755 = vsel %vm746, %v450, %v754
        %756 = vst [vmem:[%s737 + $0x14] sm:$0x1] %v755
        %v757 = vld [vmem:[%s737 + $0x18] sm:$0xf]
        %v758 = vsel %vm740, %v457, %v757
        %759 = vst [vmem:[%s737 + $0x18] sm:$0xf] %v758
        %760 = vst.msk [vmem:[%s737 + $0x1c] sm:$0xf] %vm283, %v466
        %v761 = vld [vmem:[%s737 + $0x20] sm:$0x1]
        %v762 = vsel %vm746, %v467, %v761
        %763 = vst [vmem:[%s737 + $0x20] sm:$0x1] %v762
        %v764 = vld [vmem:[%s737 + $0x24] sm:$0xf]
        %v765 = vsel %vm740, %v474, %v764
        %766 = vst [vmem:[%s737 + $0x24] sm:$0xf] %v765
        %767 = vst.msk [vmem:[%s737 + $0x28] sm:$0xf] %vm283, %v483
        %v768 = vld [vmem:[%s737 + $0x2c] sm:$0x1]
        %v769 = vsel %vm746, %v484, %v768
        %770 = vst [vmem:[%s737 + $0x2c] sm:$0x1] %v769
        %v771 = vld [vmem:[%s737 + $0x30] sm:$0xf]
        %v772 = vsel %vm740, %v491, %v771
        %773 = vst [vmem:[%s737 + $0x30] sm:$0xf] %v772
        %774 = vst.msk [vmem:[%s737 + $0x34] sm:$0xf] %vm283, %v500
        %v775 = vld [vmem:[%s737 + $0x38] sm:$0x1]
        %v776 = vsel %vm746, %v501, %v775
        %777 = vst [vmem:[%s737 + $0x38] sm:$0x1] %v776
        %v778 = vld [vmem:[%s737 + $0x3c] sm:$0xf]
        %v779 = vsel %vm740, %v508, %v778
        %780 = vst [vmem:[%s737 + $0x3c] sm:$0xf] %v779
        %781 = vst.msk [vmem:[%s737 + $0x40] sm:$0xf] %vm283, %v517
        %v782 = vld [vmem:[%s737 + $0x44] sm:$0x1]
        %v783 = vsel %vm746, %v518, %v782
        %784 = vst [vmem:[%s737 + $0x44] sm:$0x1] %v783
        %v785 = vld [vmem:[%s737 + $0x48] sm:$0xf]
        %v786 = vsel %vm740, %v525, %v785
        %787 = vst [vmem:[%s737 + $0x48] sm:$0xf] %v786
        %788 = vst.msk [vmem:[%s737 + $0x4c] sm:$0xf] %vm283, %v534
        %v789 = vld [vmem:[%s737 + $0x50] sm:$0x1]
        %v790 = vsel %vm746, %v535, %v789
        %791 = vst [vmem:[%s737 + $0x50] sm:$0x1] %v790
        %v792 = vld [vmem:[%s737 + $0x54] sm:$0xf]
        %v793 = vsel %vm740, %v542, %v792
        %794 = vst [vmem:[%s737 + $0x54] sm:$0xf] %v793
        %795 = vst.msk [vmem:[%s737 + $0x58] sm:$0xf] %vm283, %v551
        %v796 = vld [vmem:[%s737 + $0x5c] sm:$0x1]
        %v797 = vsel %vm746, %v552, %v796
        %798 = vst [vmem:[%s737 + $0x5c] sm:$0x1] %v797
        %v799 = vld [vmem:[%s737 + $0x60] sm:$0xf]
        %v800 = vsel %vm740, %v559, %v799
        %801 = vst [vmem:[%s737 + $0x60] sm:$0xf] %v800
        %802 = vst.msk [vmem:[%s737 + $0x64] sm:$0xf] %vm283, %v568
        %v803 = vld [vmem:[%s737 + $0x68] sm:$0x1]
        %v804 = vsel %vm746, %v569, %v803
        %805 = vst [vmem:[%s737 + $0x68] sm:$0x1] %v804
        %v806 = vld [vmem:[%s737 + $0x6c] sm:$0xf]
        %v807 = vsel %vm740, %v576, %v806
        %808 = vst [vmem:[%s737 + $0x6c] sm:$0xf] %v807
        %809 = vst.msk [vmem:[%s737 + $0x70] sm:$0xf] %vm283, %v585
        %v810 = vld [vmem:[%s737 + $0x74] sm:$0x1]
        %v811 = vsel %vm746, %v586, %v810
        %812 = vst [vmem:[%s737 + $0x74] sm:$0x1] %v811
        %v813 = vld [vmem:[%s737 + $0x78] sm:$0xf]
        %v814 = vsel %vm740, %v593, %v813
        %815 = vst [vmem:[%s737 + $0x78] sm:$0xf] %v814
        %816 = vst.msk [vmem:[%s737 + $0x7c] sm:$0xf] %vm283, %v602
        %v817 = vld [vmem:[%s737 + $0x80] sm:$0x1]
        %v818 = vsel %vm746, %v603, %v817
        %819 = vst [vmem:[%s737 + $0x80] sm:$0x1] %v818
        %v820 = vld [vmem:[%s737 + $0x84] sm:$0xf]
        %v821 = vsel %vm740, %v610, %v820
        %822 = vst [vmem:[%s737 + $0x84] sm:$0xf] %v821
        %823 = vst.msk [vmem:[%s737 + $0x88] sm:$0xf] %vm283, %v619
        %v824 = vld [vmem:[%s737 + $0x8c] sm:$0x1]
        %v825 = vsel %vm746, %v620, %v824
        %826 = vst [vmem:[%s737 + $0x8c] sm:$0x1] %v825
        %v827 = vld [vmem:[%s737 + $0x90] sm:$0xf]
        %v828 = vsel %vm740, %v627, %v827
        %829 = vst [vmem:[%s737 + $0x90] sm:$0xf] %v828
        %830 = vst.msk [vmem:[%s737 + $0x94] sm:$0xf] %vm283, %v636
        %v831 = vld [vmem:[%s737 + $0x98] sm:$0x1]
        %v832 = vsel %vm746, %v637, %v831
        %833 = vst [vmem:[%s737 + $0x98] sm:$0x1] %v832
        %v834 = vld [vmem:[%s737 + $0x9c] sm:$0xf]
        %v835 = vsel %vm740, %v644, %v834
        %836 = vst [vmem:[%s737 + $0x9c] sm:$0xf] %v835
        %837 = vst.msk [vmem:[%s737 + $0xa0] sm:$0xf] %vm283, %v653
        %v838 = vld [vmem:[%s737 + $0xa4] sm:$0x1]
        %v839 = vsel %vm746, %v654, %v838
        %840 = vst [vmem:[%s737 + $0xa4] sm:$0x1] %v839
        %v841 = vld [vmem:[%s737 + $0xa8] sm:$0xf]
        %v842 = vsel %vm740, %v661, %v841
        %843 = vst [vmem:[%s737 + $0xa8] sm:$0xf] %v842
        %844 = vst.msk [vmem:[%s737 + $0xac] sm:$0xf] %vm283, %v670
        %v845 = vld [vmem:[%s737 + $0xb0] sm:$0x1]
        %v846 = vsel %vm746, %v671, %v845
        %847 = vst [vmem:[%s737 + $0xb0] sm:$0x1] %v846
        %v848 = vld [vmem:[%s737 + $0xb4] sm:$0xf]
        %v849 = vsel %vm740, %v678, %v848
        %850 = vst [vmem:[%s737 + $0xb4] sm:$0xf] %v849
        %851 = vst.msk [vmem:[%s737 + $0xb8] sm:$0xf] %vm283, %v687
        %v852 = vld [vmem:[%s737 + $0xbc] sm:$0x1]
        %v853 = vsel %vm746, %v688, %v852
        %854 = vst [vmem:[%s737 + $0xbc] sm:$0x1] %v853
      $region48: #{upsampling_module_forward.2} parent=43 // pred_fallthru
        _
      %s855 = smul.u32 %s278, 3
      %s856 = smul.addr %s855, 4
      %s857 = scalar_lea.vmem [#allocation2], %s856
      %v858 = vld [vmem:[%s857] sm:$0xf]
      %v859 = vld [vmem:[%s857 + $0x4] sm:$0xf]
      %v860 = vld [vmem:[%s857 + $0x8] sm:$0x3]
      %v861 = vld [vmem:[%s857 + $0xc] sm:$0xf]
      %v862 = vld [vmem:[%s857 + $0x10] sm:$0xf]
      %v863 = vld [vmem:[%s857 + $0x14] sm:$0x3]
      %v864 = vld [vmem:[%s857 + $0x18] sm:$0xf]
      %v865 = vld [vmem:[%s857 + $0x1c] sm:$0xf]
      %v866 = vld [vmem:[%s857 + $0x20] sm:$0x3]
      %v867 = vld [vmem:[%s857 + $0x24] sm:$0xf]
      %v868 = vld [vmem:[%s857 + $0x28] sm:$0xf]
      %v869 = vld [vmem:[%s857 + $0x2c] sm:$0x3]
      %v870 = vld [vmem:[%s857 + $0x30] sm:$0xf]
      %v871 = vld [vmem:[%s857 + $0x34] sm:$0xf]
      %v872 = vld [vmem:[%s857 + $0x38] sm:$0x3]
      %v873 = vld [vmem:[%s857 + $0x3c] sm:$0xf]
      %v874 = vld [vmem:[%s857 + $0x40] sm:$0xf]
      %v875 = vld [vmem:[%s857 + $0x44] sm:$0x3]
      %v876 = vld [vmem:[%s857 + $0x48] sm:$0xf]
      %v877 = vld [vmem:[%s857 + $0x4c] sm:$0xf]
      %v878 = vld [vmem:[%s857 + $0x50] sm:$0x3]
      %v897 = vunpack.c.l.b16 %v858
      %v898 = vunpack.c.l.b16 %v859
      %v899 = vunpack.c.l.b16 %v860
      %v900 = vunpack.c.l.b16 %v861
      %v901 = vunpack.c.l.b16 %v862
      %v902 = vunpack.c.l.b16 %v863
      %v903 = vunpack.c.l.b16 %v864
      %v904 = vunpack.c.l.b16 %v865
      %v905 = vunpack.c.l.b16 %v866
      %v906 = vunpack.c.l.b16 %v867
      %v907 = vunpack.c.l.b16 %v868
      %v908 = vunpack.c.l.b16 %v869
      %v909 = vunpack.c.l.b16 %v870
      %v910 = vunpack.c.l.b16 %v871
      %v911 = vunpack.c.l.b16 %v872
      %v912 = vunpack.c.l.b16 %v873
      %v913 = vunpack.c.l.b16 %v874
      %v914 = vunpack.c.l.b16 %v875
      %v915 = vpack.c.b16 %v898, %v897
      %v916 = vpack.c.b16 %v899, %v899
      %v917 = vpack.c.b16 %v901, %v900
      %v918 = vpack.c.b16 %v902, %v902
      %v919 = vpack.c.b16 %v904, %v903
      %v920 = vpack.c.b16 %v905, %v905
      %v921 = vpack.c.b16 %v907, %v906
      %v922 = vpack.c.b16 %v908, %v908
      %v923 = vpack.c.b16 %v910, %v909
      %v924 = vpack.c.b16 %v911, %v911
      %v925 = vpack.c.b16 %v913, %v912
      %v926 = vpack.c.b16 %v914, %v914
      %vm927 = vsmask.f32 7424
      %v929 = vshrl.u32 %v915, 16
      %v931 = vshll.u32 %v915, 16
      %v933 = vrot.slane %v931, 1
      %v934 = vor.u32 %v929, %v933
      %v936 = vshll.u32 %v916, 16
      %v938 = vrot.slane %v936, 1
      %v939 = vsel %vm927, %v934, %v938
      %v940 = vshrl.u32 %v916, 16
      %v942 = vor.u32 %v940, %v938
      %v944 = vshrl.u32 %v917, 16
      %v946 = vshll.u32 %v917, 16
      %v948 = vrot.slane %v946, 1
      %v949 = vor.u32 %v944, %v948
      %v951 = vshll.u32 %v918, 16
      %v953 = vrot.slane %v951, 1
      %v954 = vsel %vm927, %v949, %v953
      %v955 = vshrl.u32 %v918, 16
      %v957 = vor.u32 %v955, %v953
      %v959 = vshrl.u32 %v919, 16
      %v961 = vshll.u32 %v919, 16
      %v963 = vrot.slane %v961, 1
      %v964 = vor.u32 %v959, %v963
      %v966 = vshll.u32 %v920, 16
      %v968 = vrot.slane %v966, 1
      %v969 = vsel %vm927, %v964, %v968
      %v970 = vshrl.u32 %v920, 16
      %v972 = vor.u32 %v970, %v968
      %v974 = vshrl.u32 %v921, 16
      %v976 = vshll.u32 %v921, 16
      %v978 = vrot.slane %v976, 1
      %v979 = vor.u32 %v974, %v978
      %v981 = vshll.u32 %v922, 16
      %v983 = vrot.slane %v981, 1
      %v984 = vsel %vm927, %v979, %v983
      %v985 = vshrl.u32 %v922, 16
      %v987 = vor.u32 %v985, %v983
      %v989 = vshrl.u32 %v923, 16
      %v991 = vshll.u32 %v923, 16
      %v993 = vrot.slane %v991, 1
      %v994 = vor.u32 %v989, %v993
      %v996 = vshll.u32 %v924, 16
      %v998 = vrot.slane %v996, 1
      %v999 = vsel %vm927, %v994, %v998
      %v1000 = vshrl.u32 %v924, 16
      %v1002 = vor.u32 %v1000, %v998
      %v1004 = vshrl.u32 %v925, 16
      %v1006 = vshll.u32 %v925, 16
      %v1008 = vrot.slane %v1006, 1
      %v1009 = vor.u32 %v1004, %v1008
      %v1011 = vshll.u32 %v926, 16
      %v1013 = vrot.slane %v1011, 1
      %v1014 = vsel %vm927, %v1009, %v1013
      %v1015 = vshrl.u32 %v926, 16
      %v1017 = vor.u32 %v1015, %v1013
      %1018 = vrot.lane.b32.xlu0 %v939, 16
      %v1019 = vpop.permute.xlu0 %1018
      %1020 = vrot.lane.b32.xlu0 %v942, 16
      %v1021 = vpop.permute.xlu0 %1020
      %1022 = vrot.lane.b32.xlu0 %v954, 16
      %v1023 = vpop.permute.xlu0 %1022
      %1024 = vrot.lane.b32.xlu0 %v957, 16
      %v1025 = vpop.permute.xlu0 %1024
      %1026 = vrot.lane.b32.xlu0 %v969, 16
      %v1027 = vpop.permute.xlu0 %1026
      %1028 = vrot.lane.b32.xlu0 %v972, 16
      %v1029 = vpop.permute.xlu0 %1028
      %1030 = vrot.lane.b32.xlu0 %v984, 16
      %v1031 = vpop.permute.xlu0 %1030
      %1032 = vrot.lane.b32.xlu0 %v987, 16
      %v1033 = vpop.permute.xlu0 %1032
      %1034 = vrot.lane.b32.xlu0 %v999, 16
      %v1035 = vpop.permute.xlu0 %1034
      %1036 = vrot.lane.b32.xlu0 %v1002, 16
      %v1037 = vpop.permute.xlu0 %1036
      %1038 = vrot.lane.b32.xlu0 %v1014, 16
      %v1039 = vpop.permute.xlu0 %1038
      %1040 = vrot.lane.b32.xlu0 %v1017, 16
      %v1041 = vpop.permute.xlu0 %1040
      %v1045 = vunpack.c.l.b16 %v876
      %v1046 = vunpack.c.l.b16 %v877
      %v1047 = vunpack.c.l.b16 %v878
      %v1048 = vpack.c.b16 %v1046, %v1045
      %v1049 = vpack.c.b16 %v1047, %v1047
      %1050 = vrot.lane.b32.xlu0 %v917, 32
      %v1051 = vpop.permute.xlu0 %1050
      %1052 = vrot.lane.b32.xlu0 %v918, 32
      %v1053 = vpop.permute.xlu0 %1052
      %1054 = vrot.lane.b32.xlu0 %v919, 32
      %v1055 = vpop.permute.xlu0 %1054
      %1056 = vrot.lane.b32.xlu0 %v920, 32
      %v1057 = vpop.permute.xlu0 %1056
      %1058 = vrot.lane.b32.xlu0 %v921, 32
      %v1059 = vpop.permute.xlu0 %1058
      %1060 = vrot.lane.b32.xlu0 %v922, 32
      %v1061 = vpop.permute.xlu0 %1060
      %1062 = vrot.lane.b32.xlu0 %v923, 32
      %v1063 = vpop.permute.xlu0 %1062
      %1064 = vrot.lane.b32.xlu0 %v924, 32
      %v1065 = vpop.permute.xlu0 %1064
      %1066 = vrot.lane.b32.xlu0 %v925, 32
      %v1067 = vpop.permute.xlu0 %1066
      %1068 = vrot.lane.b32.xlu0 %v926, 32
      %v1069 = vpop.permute.xlu0 %1068
      %1070 = vrot.lane.b32.xlu0 %v1048, 32
      %v1071 = vpop.permute.xlu0 %1070
      %1072 = vrot.lane.b32.xlu0 %v1049, 32
      %v1073 = vpop.permute.xlu0 %1072
      %v1075 = vshrl.u32 %v1048, 16
      %v1077 = vshll.u32 %v1048, 16
      %v1079 = vrot.slane %v1077, 1
      %v1080 = vor.u32 %v1075, %v1079
      %v1082 = vshll.u32 %v1049, 16
      %v1084 = vrot.slane %v1082, 1
      %v1085 = vsel %vm927, %v1080, %v1084
      %v1086 = vshrl.u32 %v1049, 16
      %v1088 = vor.u32 %v1086, %v1084
      %1089 = vrot.lane.b32.xlu0 %v954, 48
      %v1090 = vpop.permute.xlu0 %1089
      %1091 = vrot.lane.b32.xlu0 %v957, 48
      %v1092 = vpop.permute.xlu0 %1091
      %1093 = vrot.lane.b32.xlu0 %v969, 48
      %v1094 = vpop.permute.xlu0 %1093
      %1095 = vrot.lane.b32.xlu0 %v972, 48
      %v1096 = vpop.permute.xlu0 %1095
      %1097 = vrot.lane.b32.xlu0 %v984, 48
      %v1098 = vpop.permute.xlu0 %1097
      %1099 = vrot.lane.b32.xlu0 %v987, 48
      %v1100 = vpop.permute.xlu0 %1099
      %1101 = vrot.lane.b32.xlu0 %v999, 48
      %v1102 = vpop.permute.xlu0 %1101
      %1103 = vrot.lane.b32.xlu0 %v1002, 48
      %v1104 = vpop.permute.xlu0 %1103
      %1105 = vrot.lane.b32.xlu0 %v1014, 48
      %v1106 = vpop.permute.xlu0 %1105
      %1107 = vrot.lane.b32.xlu0 %v1017, 48
      %v1108 = vpop.permute.xlu0 %1107
      %1109 = vrot.lane.b32.xlu0 %v1085, 48
      %v1110 = vpop.permute.xlu0 %1109
      %1111 = vrot.lane.b32.xlu0 %v1088, 48
      %v1112 = vpop.permute.xlu0 %1111
      %vm1113 = vcmask 130048
      %v1115 = vsel %vm1113, %v915, %v1019
      %v1117 = vsel %vm1113, %v916, %v1021
      %v1119 = vsel %vm1113, %v917, %v1023
      %v1121 = vsel %vm1113, %v918, %v1025
      %v1123 = vsel %vm1113, %v919, %v1027
      %v1125 = vsel %vm1113, %v920, %v1029
      %v1127 = vsel %vm1113, %v921, %v1031
      %v1129 = vsel %vm1113, %v922, %v1033
      %v1131 = vsel %vm1113, %v923, %v1035
      %v1133 = vsel %vm1113, %v924, %v1037
      %v1135 = vsel %vm1113, %v925, %v1039
      %v1137 = vsel %vm1113, %v926, %v1041
      %vm1138 = vcmask 261120
      %v1140 = vsel %vm1138, %v1115, %v1051
      %v1142 = vsel %vm1138, %v1117, %v1053
      %v1144 = vsel %vm1138, %v1119, %v1055
      %v1146 = vsel %vm1138, %v1121, %v1057
      %v1148 = vsel %vm1138, %v1123, %v1059
      %v1150 = vsel %vm1138, %v1125, %v1061
      %v1152 = vsel %vm1138, %v1127, %v1063
      %v1154 = vsel %vm1138, %v1129, %v1065
      %v1156 = vsel %vm1138, %v1131, %v1067
      %v1158 = vsel %vm1138, %v1133, %v1069
      %v1160 = vsel %vm1138, %v1135, %v1071
      %v1162 = vsel %vm1138, %v1137, %v1073
      %vm1163 = vcmask 392192
      %v1165 = vsel %vm1163, %v1140, %v1090
      %v1167 = vsel %vm1163, %v1142, %v1092
      %v1169 = vsel %vm1163, %v1144, %v1094
      %v1171 = vsel %vm1163, %v1146, %v1096
      %v1173 = vsel %vm1163, %v1148, %v1098
      %v1175 = vsel %vm1163, %v1150, %v1100
      %v1177 = vsel %vm1163, %v1152, %v1102
      %v1179 = vsel %vm1163, %v1154, %v1104
      %v1181 = vsel %vm1163, %v1156, %v1106
      %v1183 = vsel %vm1163, %v1158, %v1108
      %v1185 = vsel %vm1163, %v1160, %v1110
      %v1187 = vsel %vm1163, %v1162, %v1112
      %v1200 = vcombine.high %v1165, %v1165
      %v1202 = vunpack.c.l.s4 1966171168
      %v1203 = vunpack.c.0.s8 %v1202
      %v1204 = vlaneseq
      %v1205 = vshrl.u32 %v1204, 7
      %v1206 = vsub.s32 %v1203, %v1205
      %v1207 = vrot.slane %v1165, %v1206
      %v1209 = vunpack.c.l.s4 1966171168
      %v1210 = vunpack.c.0.s8 %v1209
      %v1211 = vlaneseq
      %v1212 = vshrl.u32 %v1211, 7
      %v1213 = vsub.s32 %v1210, %v1212
      %v1214 = vrot.slane %v1200, %v1213
      %v1215 = vcombine.high %v1207, %v1207
      %v1216 = vcombine.high %v1214, %v1214
      %v1218 = vunpack.c.l.s4 1966171168
      %v1219 = vunpack.c.0.s8 %v1218
      %v1220 = vlaneseq
      %v1221 = vshrl.u32 %v1220, 7
      %v1222 = vsub.s32 %v1219, %v1221
      %v1223 = vrot.slane %v1207, %v1222
      %v1225 = vunpack.c.l.s4 1966171168
      %v1226 = vunpack.c.0.s8 %v1225
      %v1227 = vlaneseq
      %v1228 = vshrl.u32 %v1227, 7
      %v1229 = vsub.s32 %v1226, %v1228
      %v1230 = vrot.slane %v1214, %v1229
      %v1232 = vunpack.c.l.s4 1966171168
      %v1233 = vunpack.c.0.s8 %v1232
      %v1234 = vlaneseq
      %v1235 = vshrl.u32 %v1234, 7
      %v1236 = vsub.s32 %v1233, %v1235
      %v1237 = vrot.slane %v1215, %v1236
      %v1239 = vunpack.c.l.s4 1966171168
      %v1240 = vunpack.c.0.s8 %v1239
      %v1241 = vlaneseq
      %v1242 = vshrl.u32 %v1241, 7
      %v1243 = vsub.s32 %v1240, %v1242
      %v1244 = vrot.slane %v1216, %v1243
      %v1245 = vcombine.high %v1223, %v1223
      %v1246 = vcombine.high %v1230, %v1230
      %v1247 = vcombine.high %v1237, %v1237
      %v1248 = vcombine.high %v1244, %v1244
      %v1250 = vunpack.c.l.s4 1966171168
      %v1251 = vunpack.c.0.s8 %v1250
      %v1252 = vlaneseq
      %v1253 = vshrl.u32 %v1252, 7
      %v1254 = vsub.s32 %v1251, %v1253
      %v1255 = vrot.slane %v1167, %v1254
      %v1257 = vunpack.c.l.s4 1966171168
      %v1258 = vunpack.c.0.s8 %v1257
      %v1259 = vlaneseq
      %v1260 = vshrl.u32 %v1259, 7
      %v1261 = vsub.s32 %v1258, %v1260
      %v1262 = vrot.slane %v1255, %v1261
      %v1263 = vcombine.high %v1169, %v1169
      %v1265 = vunpack.c.l.s4 1966171168
      %v1266 = vunpack.c.0.s8 %v1265
      %v1267 = vlaneseq
      %v1268 = vshrl.u32 %v1267, 7
      %v1269 = vsub.s32 %v1266, %v1268
      %v1270 = vrot.slane %v1169, %v1269
      %v1272 = vunpack.c.l.s4 1966171168
      %v1273 = vunpack.c.0.s8 %v1272
      %v1274 = vlaneseq
      %v1275 = vshrl.u32 %v1274, 7
      %v1276 = vsub.s32 %v1273, %v1275
      %v1277 = vrot.slane %v1263, %v1276
      %v1278 = vcombine.high %v1270, %v1270
      %v1279 = vcombine.high %v1277, %v1277
      %v1281 = vunpack.c.l.s4 1966171168
      %v1282 = vunpack.c.0.s8 %v1281
      %v1283 = vlaneseq
      %v1284 = vshrl.u32 %v1283, 7
      %v1285 = vsub.s32 %v1282, %v1284
      %v1286 = vrot.slane %v1270, %v1285
      %v1288 = vunpack.c.l.s4 1966171168
      %v1289 = vunpack.c.0.s8 %v1288
      %v1290 = vlaneseq
      %v1291 = vshrl.u32 %v1290, 7
      %v1292 = vsub.s32 %v1289, %v1291
      %v1293 = vrot.slane %v1277, %v1292
      %v1295 = vunpack.c.l.s4 1966171168
      %v1296 = vunpack.c.0.s8 %v1295
      %v1297 = vlaneseq
      %v1298 = vshrl.u32 %v1297, 7
      %v1299 = vsub.s32 %v1296, %v1298
      %v1300 = vrot.slane %v1278, %v1299
      %v1302 = vunpack.c.l.s4 1966171168
      %v1303 = vunpack.c.0.s8 %v1302
      %v1304 = vlaneseq
      %v1305 = vshrl.u32 %v1304, 7
      %v1306 = vsub.s32 %v1303, %v1305
      %v1307 = vrot.slane %v1279, %v1306
      %v1308 = vcombine.high %v1286, %v1286
      %v1309 = vcombine.high %v1293, %v1293
      %v1310 = vcombine.high %v1300, %v1300
      %v1311 = vcombine.high %v1307, %v1307
      %v1313 = vunpack.c.l.s4 1966171168
      %v1314 = vunpack.c.0.s8 %v1313
      %v1315 = vlaneseq
      %v1316 = vshrl.u32 %v1315, 7
      %v1317 = vsub.s32 %v1314, %v1316
      %v1318 = vrot.slane %v1171, %v1317
      %v1320 = vunpack.c.l.s4 1966171168
      %v1321 = vunpack.c.0.s8 %v1320
      %v1322 = vlaneseq
      %v1323 = vshrl.u32 %v1322, 7
      %v1324 = vsub.s32 %v1321, %v1323
      %v1325 = vrot.slane %v1318, %v1324
      %v1326 = vcombine.high %v1173, %v1173
      %v1328 = vunpack.c.l.s4 1966171168
      %v1329 = vunpack.c.0.s8 %v1328
      %v1330 = vlaneseq
      %v1331 = vshrl.u32 %v1330, 7
      %v1332 = vsub.s32 %v1329, %v1331
      %v1333 = vrot.slane %v1173, %v1332
      %v1335 = vunpack.c.l.s4 1966171168
      %v1336 = vunpack.c.0.s8 %v1335
      %v1337 = vlaneseq
      %v1338 = vshrl.u32 %v1337, 7
      %v1339 = vsub.s32 %v1336, %v1338
      %v1340 = vrot.slane %v1326, %v1339
      %v1341 = vcombine.high %v1333, %v1333
      %v1342 = vcombine.high %v1340, %v1340
      %v1344 = vunpack.c.l.s4 1966171168
      %v1345 = vunpack.c.0.s8 %v1344
      %v1346 = vlaneseq
      %v1347 = vshrl.u32 %v1346, 7
      %v1348 = vsub.s32 %v1345, %v1347
      %v1349 = vrot.slane %v1333, %v1348
      %v1351 = vunpack.c.l.s4 1966171168
      %v1352 = vunpack.c.0.s8 %v1351
      %v1353 = vlaneseq
      %v1354 = vshrl.u32 %v1353, 7
      %v1355 = vsub.s32 %v1352, %v1354
      %v1356 = vrot.slane %v1340, %v1355
      %v1358 = vunpack.c.l.s4 1966171168
      %v1359 = vunpack.c.0.s8 %v1358
      %v1360 = vlaneseq
      %v1361 = vshrl.u32 %v1360, 7
      %v1362 = vsub.s32 %v1359, %v1361
      %v1363 = vrot.slane %v1341, %v1362
      %v1365 = vunpack.c.l.s4 1966171168
      %v1366 = vunpack.c.0.s8 %v1365
      %v1367 = vlaneseq
      %v1368 = vshrl.u32 %v1367, 7
      %v1369 = vsub.s32 %v1366, %v1368
      %v1370 = vrot.slane %v1342, %v1369
      %v1371 = vcombine.high %v1349, %v1349
      %v1372 = vcombine.high %v1356, %v1356
      %v1373 = vcombine.high %v1363, %v1363
      %v1374 = vcombine.high %v1370, %v1370
      %v1376 = vunpack.c.l.s4 1966171168
      %v1377 = vunpack.c.0.s8 %v1376
      %v1378 = vlaneseq
      %v1379 = vshrl.u32 %v1378, 7
      %v1380 = vsub.s32 %v1377, %v1379
      %v1381 = vrot.slane %v1175, %v1380
      %v1383 = vunpack.c.l.s4 1966171168
      %v1384 = vunpack.c.0.s8 %v1383
      %v1385 = vlaneseq
      %v1386 = vshrl.u32 %v1385, 7
      %v1387 = vsub.s32 %v1384, %v1386
      %v1388 = vrot.slane %v1381, %v1387
      %v1389 = vcombine.high %v1177, %v1177
      %v1391 = vunpack.c.l.s4 1966171168
      %v1392 = vunpack.c.0.s8 %v1391
      %v1393 = vlaneseq
      %v1394 = vshrl.u32 %v1393, 7
      %v1395 = vsub.s32 %v1392, %v1394
      %v1396 = vrot.slane %v1177, %v1395
      %v1398 = vunpack.c.l.s4 1966171168
      %v1399 = vunpack.c.0.s8 %v1398
      %v1400 = vlaneseq
      %v1401 = vshrl.u32 %v1400, 7
      %v1402 = vsub.s32 %v1399, %v1401
      %v1403 = vrot.slane %v1389, %v1402
      %v1404 = vcombine.high %v1396, %v1396
      %v1405 = vcombine.high %v1403, %v1403
      %v1407 = vunpack.c.l.s4 1966171168
      %v1408 = vunpack.c.0.s8 %v1407
      %v1409 = vlaneseq
      %v1410 = vshrl.u32 %v1409, 7
      %v1411 = vsub.s32 %v1408, %v1410
      %v1412 = vrot.slane %v1396, %v1411
      %v1414 = vunpack.c.l.s4 1966171168
      %v1415 = vunpack.c.0.s8 %v1414
      %v1416 = vlaneseq
      %v1417 = vshrl.u32 %v1416, 7
      %v1418 = vsub.s32 %v1415, %v1417
      %v1419 = vrot.slane %v1403, %v1418
      %v1421 = vunpack.c.l.s4 1966171168
      %v1422 = vunpack.c.0.s8 %v1421
      %v1423 = vlaneseq
      %v1424 = vshrl.u32 %v1423, 7
      %v1425 = vsub.s32 %v1422, %v1424
      %v1426 = vrot.slane %v1404, %v1425
      %v1428 = vunpack.c.l.s4 1966171168
      %v1429 = vunpack.c.0.s8 %v1428
      %v1430 = vlaneseq
      %v1431 = vshrl.u32 %v1430, 7
      %v1432 = vsub.s32 %v1429, %v1431
      %v1433 = vrot.slane %v1405, %v1432
      %v1434 = vcombine.high %v1412, %v1412
      %v1435 = vcombine.high %v1419, %v1419
      %v1436 = vcombine.high %v1426, %v1426
      %v1437 = vcombine.high %v1433, %v1433
      %v1439 = vunpack.c.l.s4 1966171168
      %v1440 = vunpack.c.0.s8 %v1439
      %v1441 = vlaneseq
      %v1442 = vshrl.u32 %v1441, 7
      %v1443 = vsub.s32 %v1440, %v1442
      %v1444 = vrot.slane %v1179, %v1443
      %v1446 = vunpack.c.l.s4 1966171168
      %v1447 = vunpack.c.0.s8 %v1446
      %v1448 = vlaneseq
      %v1449 = vshrl.u32 %v1448, 7
      %v1450 = vsub.s32 %v1447, %v1449
      %v1451 = vrot.slane %v1444, %v1450
      %v1452 = vcombine.high %v1181, %v1181
      %v1454 = vunpack.c.l.s4 1966171168
      %v1455 = vunpack.c.0.s8 %v1454
      %v1456 = vlaneseq
      %v1457 = vshrl.u32 %v1456, 7
      %v1458 = vsub.s32 %v1455, %v1457
      %v1459 = vrot.slane %v1181, %v1458
      %v1461 = vunpack.c.l.s4 1966171168
      %v1462 = vunpack.c.0.s8 %v1461
      %v1463 = vlaneseq
      %v1464 = vshrl.u32 %v1463, 7
      %v1465 = vsub.s32 %v1462, %v1464
      %v1466 = vrot.slane %v1452, %v1465
      %v1467 = vcombine.high %v1459, %v1459
      %v1468 = vcombine.high %v1466, %v1466
      %v1470 = vunpack.c.l.s4 1966171168
      %v1471 = vunpack.c.0.s8 %v1470
      %v1472 = vlaneseq
      %v1473 = vshrl.u32 %v1472, 7
      %v1474 = vsub.s32 %v1471, %v1473
      %v1475 = vrot.slane %v1459, %v1474
      %v1477 = vunpack.c.l.s4 1966171168
      %v1478 = vunpack.c.0.s8 %v1477
      %v1479 = vlaneseq
      %v1480 = vshrl.u32 %v1479, 7
      %v1481 = vsub.s32 %v1478, %v1480
      %v1482 = vrot.slane %v1466, %v1481
      %v1484 = vunpack.c.l.s4 1966171168
      %v1485 = vunpack.c.0.s8 %v1484
      %v1486 = vlaneseq
      %v1487 = vshrl.u32 %v1486, 7
      %v1488 = vsub.s32 %v1485, %v1487
      %v1489 = vrot.slane %v1467, %v1488
      %v1491 = vunpack.c.l.s4 1966171168
      %v1492 = vunpack.c.0.s8 %v1491
      %v1493 = vlaneseq
      %v1494 = vshrl.u32 %v1493, 7
      %v1495 = vsub.s32 %v1492, %v1494
      %v1496 = vrot.slane %v1468, %v1495
      %v1497 = vcombine.high %v1475, %v1475
      %v1498 = vcombine.high %v1482, %v1482
      %v1499 = vcombine.high %v1489, %v1489
      %v1500 = vcombine.high %v1496, %v1496
      %v1502 = vunpack.c.l.s4 1966171168
      %v1503 = vunpack.c.0.s8 %v1502
      %v1504 = vlaneseq
      %v1505 = vshrl.u32 %v1504, 7
      %v1506 = vsub.s32 %v1503, %v1505
      %v1507 = vrot.slane %v1183, %v1506
      %v1509 = vunpack.c.l.s4 1966171168
      %v1510 = vunpack.c.0.s8 %v1509
      %v1511 = vlaneseq
      %v1512 = vshrl.u32 %v1511, 7
      %v1513 = vsub.s32 %v1510, %v1512
      %v1514 = vrot.slane %v1507, %v1513
      %v1515 = vcombine.high %v1185, %v1185
      %v1517 = vunpack.c.l.s4 1966171168
      %v1518 = vunpack.c.0.s8 %v1517
      %v1519 = vlaneseq
      %v1520 = vshrl.u32 %v1519, 7
      %v1521 = vsub.s32 %v1518, %v1520
      %v1522 = vrot.slane %v1185, %v1521
      %v1524 = vunpack.c.l.s4 1966171168
      %v1525 = vunpack.c.0.s8 %v1524
      %v1526 = vlaneseq
      %v1527 = vshrl.u32 %v1526, 7
      %v1528 = vsub.s32 %v1525, %v1527
      %v1529 = vrot.slane %v1515, %v1528
      %v1530 = vcombine.high %v1522, %v1522
      %v1531 = vcombine.high %v1529, %v1529
      %v1533 = vunpack.c.l.s4 1966171168
      %v1534 = vunpack.c.0.s8 %v1533
      %v1535 = vlaneseq
      %v1536 = vshrl.u32 %v1535, 7
      %v1537 = vsub.s32 %v1534, %v1536
      %v1538 = vrot.slane %v1522, %v1537
      %v1540 = vunpack.c.l.s4 1966171168
      %v1541 = vunpack.c.0.s8 %v1540
      %v1542 = vlaneseq
      %v1543 = vshrl.u32 %v1542, 7
      %v1544 = vsub.s32 %v1541, %v1543
      %v1545 = vrot.slane %v1529, %v1544
      %v1547 = vunpack.c.l.s4 1966171168
      %v1548 = vunpack.c.0.s8 %v1547
      %v1549 = vlaneseq
      %v1550 = vshrl.u32 %v1549, 7
      %v1551 = vsub.s32 %v1548, %v1550
      %v1552 = vrot.slane %v1530, %v1551
      %v1554 = vunpack.c.l.s4 1966171168
      %v1555 = vunpack.c.0.s8 %v1554
      %v1556 = vlaneseq
      %v1557 = vshrl.u32 %v1556, 7
      %v1558 = vsub.s32 %v1555, %v1557
      %v1559 = vrot.slane %v1531, %v1558
      %v1560 = vcombine.high %v1538, %v1538
      %v1561 = vcombine.high %v1545, %v1545
      %v1562 = vcombine.high %v1552, %v1552
      %v1563 = vcombine.high %v1559, %v1559
      %v1565 = vunpack.c.l.s4 1966171168
      %v1566 = vunpack.c.0.s8 %v1565
      %v1567 = vlaneseq
      %v1568 = vshrl.u32 %v1567, 7
      %v1569 = vsub.s32 %v1566, %v1568
      %v1570 = vrot.slane %v1187, %v1569
      %v1572 = vunpack.c.l.s4 1966171168
      %v1573 = vunpack.c.0.s8 %v1572
      %v1574 = vlaneseq
      %v1575 = vshrl.u32 %v1574, 7
      %v1576 = vsub.s32 %v1573, %v1575
      %v1577 = vrot.slane %v1570, %v1576
      %v1578 = vld [vmem:[%s1] sm:$0xf]
      %v1579 = vld [vmem:[%s1 + $0x4] sm:$0xf]
      %v1580 = vld [vmem:[%s1 + $0x8] sm:$0xf]
      %v1581 = vld [vmem:[%s1 + $0xc] sm:$0xf]
      %v1582 = vld [vmem:[%s1 + $0x10] sm:$0xf]
      %v1583 = vld [vmem:[%s1 + $0x14] sm:$0xf]
      %v1584 = vld [vmem:[%s1 + $0x18] sm:$0xf]
      %v1585 = vld [vmem:[%s1 + $0x1c] sm:$0xf]
      %v1586 = vld [vmem:[%s2] sm:$0x1]
      %v1588 = vlaneseq
      %v1589 = vshrl.u32 %v1588, 7
      %v1590 = vsub.s32 0, %v1589
      %v1591 = vrot.slane %v1586, %v1590
      %v1593 = vcombine.low %v1223, %v1237
      %v1594 = vcombine.low %v1245, %v1247
      %v1595 = vcombine.low %v1230, %v1244
      %v1596 = vcombine.low %v1246, %v1248
      %v1598 = vunpack.c.l.s4 1966171168
      %v1599 = vunpack.c.0.s8 %v1598
      %v1600 = vlaneseq
      %v1601 = vshrl.u32 %v1600, 7
      %v1602 = vsub.s32 %v1599, %v1601
      %v1603 = vrot.slane %v1593, %v1602
      %v1605 = vunpack.c.l.s4 1966171168
      %v1606 = vunpack.c.0.s8 %v1605
      %v1607 = vlaneseq
      %v1608 = vshrl.u32 %v1607, 7
      %v1609 = vsub.s32 %v1606, %v1608
      %v1610 = vrot.slane %v1594, %v1609
      %v1612 = vunpack.c.l.s4 1966171168
      %v1613 = vunpack.c.0.s8 %v1612
      %v1614 = vlaneseq
      %v1615 = vshrl.u32 %v1614, 7
      %v1616 = vsub.s32 %v1613, %v1615
      %v1617 = vrot.slane %v1595, %v1616
      %v1619 = vunpack.c.l.s4 1966171168
      %v1620 = vunpack.c.0.s8 %v1619
      %v1621 = vlaneseq
      %v1622 = vshrl.u32 %v1621, 7
      %v1623 = vsub.s32 %v1620, %v1622
      %v1624 = vrot.slane %v1596, %v1623
      %v1625 = vcombine.low %v1603, %v1610
      %v1626 = vcombine.low %v1617, %v1624
      %v1628 = vunpack.c.l.s4 1966171168
      %v1629 = vunpack.c.0.s8 %v1628
      %v1630 = vlaneseq
      %v1631 = vshrl.u32 %v1630, 7
      %v1632 = vsub.s32 %v1629, %v1631
      %v1633 = vrot.slane %v1625, %v1632
      %v1635 = vunpack.c.l.s4 1966171168
      %v1636 = vunpack.c.0.s8 %v1635
      %v1637 = vlaneseq
      %v1638 = vshrl.u32 %v1637, 7
      %v1639 = vsub.s32 %v1636, %v1638
      %v1640 = vrot.slane %v1626, %v1639
      %v1641 = vcombine.low %v1633, %v1640
      %v1642 = vcombine.low %v1262, %v1286
      %v1643 = vcombine.low %v1300, %v1308
      %v1644 = vcombine.low %v1310, %v1293
      %v1645 = vcombine.low %v1307, %v1309
      %v1647 = vunpack.c.l.s4 1966171168
      %v1648 = vunpack.c.0.s8 %v1647
      %v1649 = vlaneseq
      %v1650 = vshrl.u32 %v1649, 7
      %v1651 = vsub.s32 %v1648, %v1650
      %v1652 = vrot.slane %v1642, %v1651
      %v1654 = vunpack.c.l.s4 1966171168
      %v1655 = vunpack.c.0.s8 %v1654
      %v1656 = vlaneseq
      %v1657 = vshrl.u32 %v1656, 7
      %v1658 = vsub.s32 %v1655, %v1657
      %v1659 = vrot.slane %v1643, %v1658
      %v1661 = vunpack.c.l.s4 1966171168
      %v1662 = vunpack.c.0.s8 %v1661
      %v1663 = vlaneseq
      %v1664 = vshrl.u32 %v1663, 7
      %v1665 = vsub.s32 %v1662, %v1664
      %v1666 = vrot.slane %v1644, %v1665
      %v1668 = vunpack.c.l.s4 1966171168
      %v1669 = vunpack.c.0.s8 %v1668
      %v1670 = vlaneseq
      %v1671 = vshrl.u32 %v1670, 7
      %v1672 = vsub.s32 %v1669, %v1671
      %v1673 = vrot.slane %v1645, %v1672
      %v1674 = vcombine.low %v1652, %v1659
      %v1675 = vcombine.low %v1666, %v1673
      %v1677 = vunpack.c.l.s4 1966171168
      %v1678 = vunpack.c.0.s8 %v1677
      %v1679 = vlaneseq
      %v1680 = vshrl.u32 %v1679, 7
      %v1681 = vsub.s32 %v1678, %v1680
      %v1682 = vrot.slane %v1674, %v1681
      %v1684 = vunpack.c.l.s4 1966171168
      %v1685 = vunpack.c.0.s8 %v1684
      %v1686 = vlaneseq
      %v1687 = vshrl.u32 %v1686, 7
      %v1688 = vsub.s32 %v1685, %v1687
      %v1689 = vrot.slane %v1675, %v1688
      %v1690 = vcombine.low %v1682, %v1689
      %v1691 = vcombine.low %v1311, %v1325
      %v1692 = vcombine.low %v1349, %v1363
      %v1693 = vcombine.low %v1371, %v1373
      %v1694 = vcombine.low %v1356, %v1370
      %v1696 = vunpack.c.l.s4 1966171168
      %v1697 = vunpack.c.0.s8 %v1696
      %v1698 = vlaneseq
      %v1699 = vshrl.u32 %v1698, 7
      %v1700 = vsub.s32 %v1697, %v1699
      %v1701 = vrot.slane %v1691, %v1700
      %v1703 = vunpack.c.l.s4 1966171168
      %v1704 = vunpack.c.0.s8 %v1703
      %v1705 = vlaneseq
      %v1706 = vshrl.u32 %v1705, 7
      %v1707 = vsub.s32 %v1704, %v1706
      %v1708 = vrot.slane %v1692, %v1707
      %v1710 = vunpack.c.l.s4 1966171168
      %v1711 = vunpack.c.0.s8 %v1710
      %v1712 = vlaneseq
      %v1713 = vshrl.u32 %v1712, 7
      %v1714 = vsub.s32 %v1711, %v1713
      %v1715 = vrot.slane %v1693, %v1714
      %v1717 = vunpack.c.l.s4 1966171168
      %v1718 = vunpack.c.0.s8 %v1717
      %v1719 = vlaneseq
      %v1720 = vshrl.u32 %v1719, 7
      %v1721 = vsub.s32 %v1718, %v1720
      %v1722 = vrot.slane %v1694, %v1721
      %v1723 = vcombine.low %v1701, %v1708
      %v1724 = vcombine.low %v1715, %v1722
      %v1726 = vunpack.c.l.s4 1966171168
      %v1727 = vunpack.c.0.s8 %v1726
      %v1728 = vlaneseq
      %v1729 = vshrl.u32 %v1728, 7
      %v1730 = vsub.s32 %v1727, %v1729
      %v1731 = vrot.slane %v1723, %v1730
      %v1733 = vunpack.c.l.s4 1966171168
      %v1734 = vunpack.c.0.s8 %v1733
      %v1735 = vlaneseq
      %v1736 = vshrl.u32 %v1735, 7
      %v1737 = vsub.s32 %v1734, %v1736
      %v1738 = vrot.slane %v1724, %v1737
      %v1739 = vcombine.low %v1731, %v1738
      %v1740 = vcombine.low %v1372, %v1374
      %v1741 = vcombine.low %v1388, %v1412
      %v1742 = vcombine.low %v1426, %v1434
      %v1743 = vcombine.low %v1436, %v1419
      %v1745 = vunpack.c.l.s4 1966171168
      %v1746 = vunpack.c.0.s8 %v1745
      %v1747 = vlaneseq
      %v1748 = vshrl.u32 %v1747, 7
      %v1749 = vsub.s32 %v1746, %v1748
      %v1750 = vrot.slane %v1740, %v1749
      %v1752 = vunpack.c.l.s4 1966171168
      %v1753 = vunpack.c.0.s8 %v1752
      %v1754 = vlaneseq
      %v1755 = vshrl.u32 %v1754, 7
      %v1756 = vsub.s32 %v1753, %v1755
      %v1757 = vrot.slane %v1741, %v1756
      %v1759 = vunpack.c.l.s4 1966171168
      %v1760 = vunpack.c.0.s8 %v1759
      %v1761 = vlaneseq
      %v1762 = vshrl.u32 %v1761, 7
      %v1763 = vsub.s32 %v1760, %v1762
      %v1764 = vrot.slane %v1742, %v1763
      %v1766 = vunpack.c.l.s4 1966171168
      %v1767 = vunpack.c.0.s8 %v1766
      %v1768 = vlaneseq
      %v1769 = vshrl.u32 %v1768, 7
      %v1770 = vsub.s32 %v1767, %v1769
      %v1771 = vrot.slane %v1743, %v1770
      %v1772 = vcombine.low %v1750, %v1757
      %v1773 = vcombine.low %v1764, %v1771
      %v1775 = vunpack.c.l.s4 1966171168
      %v1776 = vunpack.c.0.s8 %v1775
      %v1777 = vlaneseq
      %v1778 = vshrl.u32 %v1777, 7
      %v1779 = vsub.s32 %v1776, %v1778
      %v1780 = vrot.slane %v1772, %v1779
      %v1782 = vunpack.c.l.s4 1966171168
      %v1783 = vunpack.c.0.s8 %v1782
      %v1784 = vlaneseq
      %v1785 = vshrl.u32 %v1784, 7
      %v1786 = vsub.s32 %v1783, %v1785
      %v1787 = vrot.slane %v1773, %v1786
      %v1788 = vcombine.low %v1780, %v1787
      %v1789 = vcombine.low %v1433, %v1435
      %v1790 = vcombine.low %v1437, %v1451
      %v1791 = vcombine.low %v1475, %v1489
      %v1792 = vcombine.low %v1497, %v1499
      %v1794 = vunpack.c.l.s4 1966171168
      %v1795 = vunpack.c.0.s8 %v1794
      %v1796 = vlaneseq
      %v1797 = vshrl.u32 %v1796, 7
      %v1798 = vsub.s32 %v1795, %v1797
      %v1799 = vrot.slane %v1789, %v1798
      %v1801 = vunpack.c.l.s4 1966171168
      %v1802 = vunpack.c.0.s8 %v1801
      %v1803 = vlaneseq
      %v1804 = vshrl.u32 %v1803, 7
      %v1805 = vsub.s32 %v1802, %v1804
      %v1806 = vrot.slane %v1790, %v1805
      %v1808 = vunpack.c.l.s4 1966171168
      %v1809 = vunpack.c.0.s8 %v1808
      %v1810 = vlaneseq
      %v1811 = vshrl.u32 %v1810, 7
      %v1812 = vsub.s32 %v1809, %v1811
      %v1813 = vrot.slane %v1791, %v1812
      %v1815 = vunpack.c.l.s4 1966171168
      %v1816 = vunpack.c.0.s8 %v1815
      %v1817 = vlaneseq
      %v1818 = vshrl.u32 %v1817, 7
      %v1819 = vsub.s32 %v1816, %v1818
      %v1820 = vrot.slane %v1792, %v1819
      %v1821 = vcombine.low %v1799, %v1806
      %v1822 = vcombine.low %v1813, %v1820
      %v1824 = vunpack.c.l.s4 1966171168
      %v1825 = vunpack.c.0.s8 %v1824
      %v1826 = vlaneseq
      %v1827 = vshrl.u32 %v1826, 7
      %v1828 = vsub.s32 %v1825, %v1827
      %v1829 = vrot.slane %v1821, %v1828
      %v1831 = vunpack.c.l.s4 1966171168
      %v1832 = vunpack.c.0.s8 %v1831
      %v1833 = vlaneseq
      %v1834 = vshrl.u32 %v1833, 7
      %v1835 = vsub.s32 %v1832, %v1834
      %v1836 = vrot.slane %v1822, %v1835
      %v1837 = vcombine.low %v1829, %v1836
      %v1838 = vcombine.low %v1482, %v1496
      %v1839 = vcombine.low %v1498, %v1500
      %v1840 = vcombine.low %v1514, %v1538
      %v1841 = vcombine.low %v1552, %v1560
      %v1843 = vunpack.c.l.s4 1966171168
      %v1844 = vunpack.c.0.s8 %v1843
      %v1845 = vlaneseq
      %v1846 = vshrl.u32 %v1845, 7
      %v1847 = vsub.s32 %v1844, %v1846
      %v1848 = vrot.slane %v1838, %v1847
      %v1850 = vunpack.c.l.s4 1966171168
      %v1851 = vunpack.c.0.s8 %v1850
      %v1852 = vlaneseq
      %v1853 = vshrl.u32 %v1852, 7
      %v1854 = vsub.s32 %v1851, %v1853
      %v1855 = vrot.slane %v1839, %v1854
      %v1857 = vunpack.c.l.s4 1966171168
      %v1858 = vunpack.c.0.s8 %v1857
      %v1859 = vlaneseq
      %v1860 = vshrl.u32 %v1859, 7
      %v1861 = vsub.s32 %v1858, %v1860
      %v1862 = vrot.slane %v1840, %v1861
      %v1864 = vunpack.c.l.s4 1966171168
      %v1865 = vunpack.c.0.s8 %v1864
      %v1866 = vlaneseq
      %v1867 = vshrl.u32 %v1866, 7
      %v1868 = vsub.s32 %v1865, %v1867
      %v1869 = vrot.slane %v1841, %v1868
      %v1870 = vcombine.low %v1848, %v1855
      %v1871 = vcombine.low %v1862, %v1869
      %v1873 = vunpack.c.l.s4 1966171168
      %v1874 = vunpack.c.0.s8 %v1873
      %v1875 = vlaneseq
      %v1876 = vshrl.u32 %v1875, 7
      %v1877 = vsub.s32 %v1874, %v1876
      %v1878 = vrot.slane %v1870, %v1877
      %v1880 = vunpack.c.l.s4 1966171168
      %v1881 = vunpack.c.0.s8 %v1880
      %v1882 = vlaneseq
      %v1883 = vshrl.u32 %v1882, 7
      %v1884 = vsub.s32 %v1881, %v1883
      %v1885 = vrot.slane %v1871, %v1884
      %v1886 = vcombine.low %v1878, %v1885
      %v1887 = vcombine.low %v1562, %v1545
      %v1888 = vcombine.low %v1559, %v1561
      %v1889 = vcombine.low %v1563, %v1577
      %v1891 = vunpack.c.l.s4 1966171168
      %v1892 = vunpack.c.0.s8 %v1891
      %v1893 = vlaneseq
      %v1894 = vshrl.u32 %v1893, 7
      %v1895 = vsub.s32 %v1892, %v1894
      %v1896 = vrot.slane %v1887, %v1895
      %v1898 = vunpack.c.l.s4 1966171168
      %v1899 = vunpack.c.0.s8 %v1898
      %v1900 = vlaneseq
      %v1901 = vshrl.u32 %v1900, 7
      %v1902 = vsub.s32 %v1899, %v1901
      %v1903 = vrot.slane %v1888, %v1902
      %v1905 = vunpack.c.l.s4 1966171168
      %v1906 = vunpack.c.0.s8 %v1905
      %v1907 = vlaneseq
      %v1908 = vshrl.u32 %v1907, 7
      %v1909 = vsub.s32 %v1906, %v1908
      %v1910 = vrot.slane %v1889, %v1909
      %v1911 = vcombine.low %v1896, %v1903
      %v1913 = vunpack.c.l.s4 1966171168
      %v1914 = vunpack.c.0.s8 %v1913
      %v1915 = vlaneseq
      %v1916 = vshrl.u32 %v1915, 7
      %v1917 = vsub.s32 %v1914, %v1916
      %v1918 = vrot.slane %v1911, %v1917
      %v1920 = vunpack.c.l.s4 1966171168
      %v1921 = vunpack.c.0.s8 %v1920
      %v1922 = vlaneseq
      %v1923 = vshrl.u32 %v1922, 7
      %v1924 = vsub.s32 %v1921, %v1923
      %v1925 = vrot.slane %v1910, %v1924
      %v1926 = vcombine.low %v1918, %v1925
      %v1935 = vunpack.c.l.b16 %v1578
      %v1936 = vunpack.c.l.b16 %v1579
      %v1937 = vunpack.c.l.b16 %v1580
      %v1938 = vunpack.c.l.b16 %v1581
      %v1939 = vunpack.c.l.b16 %v1582
      %v1940 = vunpack.c.l.b16 %v1583
      %v1941 = vunpack.c.l.b16 %v1584
      %v1942 = vunpack.c.l.b16 %v1585
      %v1943 = vpack.c.b16 %v1936, %v1935
      %v1944 = vpack.c.b16 %v1938, %v1937
      %v1945 = vpack.c.b16 %v1940, %v1939
      %v1946 = vpack.c.b16 %v1942, %v1941
      %vm1951 = vcmask 523264
      %v1953 = vsel %vm1951, %v1641, 0
      %v1956 = vsel %vm1951, %v1690, 0
      %v1959 = vsel %vm1951, %v1739, 0
      %v1962 = vsel %vm1951, %v1788, 0
      %v1965 = vsel %vm1951, %v1837, 0
      %v1968 = vsel %vm1951, %v1886, 0
      %v1971 = vsel %vm1951, %v1926, 0
      %1973 = vmatprep.subr.bf16.mxu0 0
      %1974 = vmatpush1.bf16.msra.mxu0 %v1943
      %1975 = vmatprep.subr.bf16.mxu0 0
      %1976 = vmatpush1.bf16.msra.mxu0 %v1944
      %1977 = vmatprep.subr.bf16.mxu0 0
      %1978 = vmatpush1.bf16.msra.mxu0 %v1945
      %1979 = vmatprep.subr.bf16.mxu0 0
      %1980 = vmatpush1.bf16.msra.mxu0 %v1946
      %1981 = vmatprep.subr.bf16.mxu0 0
      %1982 = vmatpush1.bf16.msra.mxu0 0
      %1983 = vmatprep.subr.bf16.mxu0 0
      %1984 = vmatpush1.bf16.msra.mxu0 0
      %1985 = vmatprep.subr.bf16.mxu0 0
      %1986 = vmatpush1.bf16.msra.mxu0 0
      %1987 = vmatprep.subr.bf16.mxu0 0
      %1988 = vmatpush1.bf16.msra.mxu0 0
      %1989 = vmatprep.subr.bf16.mxu0 0
      %1990 = vmatpush1.bf16.msra.mxu0 0
      %1991 = vmatprep.subr.bf16.mxu0 0
      %1992 = vmatpush1.bf16.msra.mxu0 0
      %1993 = vmatprep.subr.bf16.mxu0 0
      %1994 = vmatpush1.bf16.msra.mxu0 0
      %1995 = vmatprep.subr.bf16.mxu0 0
      %1996 = vmatpush1.bf16.msra.mxu0 0
      %1997 = vmatprep.subr.bf16.mxu0 0
      %1998 = vmatpush1.bf16.msra.mxu0 0
      %1999 = vmatprep.subr.bf16.mxu0 0
      %2000 = vmatpush1.bf16.msra.mxu0 0
      %2001 = vmatprep.subr.bf16.mxu0 0
      %2002 = vmatpush1.bf16.msra.mxu0 0
      %2003 = vmatprep.subr.bf16.mxu0 0
      %2004 = vmatpush1.bf16.msra.mxu0 0
      %2005 = vmatprep.mubr.bf16.mxu0 0
      %2006 = vmatmul.mubr.bf16.gmra.mrb[0].mxu0 %v1953
      %v2007 = vpop.f32.mrb[0].mxu0
      %v2008 = vadd.f32 %v1591, %v2007
      %v2009 = vpop.f32.mrb[0].mxu0
      %v2010 = vpop.f32.mrb[0].mxu0
      %v2011 = vadd.f32 %v1591, %v2010
      %v2012 = vpop.f32.mrb[0].mxu0
      %2013 = vmatprep.mubr.bf16.mxu0 0
      %2014 = vmatmul.mubr.bf16.gmra.mrb[0].mxu0 %v1956
      %v2015 = vpop.f32.mrb[0].mxu0
      %v2016 = vadd.f32 %v1591, %v2015
      %v2017 = vpop.f32.mrb[0].mxu0
      %v2018 = vpop.f32.mrb[0].mxu0
      %v2019 = vadd.f32 %v1591, %v2018
      %v2020 = vpop.f32.mrb[0].mxu0
      %2021 = vmatprep.mubr.bf16.mxu0 0
      %2022 = vmatmul.mubr.bf16.gmra.mrb[0].mxu0 %v1959
      %v2023 = vpop.f32.mrb[0].mxu0
      %v2024 = vadd.f32 %v1591, %v2023
      %v2025 = vpop.f32.mrb[0].mxu0
      %v2026 = vpop.f32.mrb[0].mxu0
      %v2027 = vadd.f32 %v1591, %v2026
      %v2028 = vpop.f32.mrb[0].mxu0
      %2029 = vmatprep.mubr.bf16.mxu0 0
      %2030 = vmatmul.mubr.bf16.gmra.mrb[0].mxu0 %v1962
      %v2031 = vpop.f32.mrb[0].mxu0
      %v2032 = vadd.f32 %v1591, %v2031
      %v2033 = vpop.f32.mrb[0].mxu0
      %v2034 = vpop.f32.mrb[0].mxu0
      %v2035 = vadd.f32 %v1591, %v2034
      %v2036 = vpop.f32.mrb[0].mxu0
      %2037 = vmatprep.mubr.bf16.mxu0 0
      %2038 = vmatmul.mubr.bf16.gmra.mrb[0].mxu0 %v1965
      %v2039 = vpop.f32.mrb[0].mxu0
      %v2040 = vadd.f32 %v1591, %v2039
      %v2041 = vpop.f32.mrb[0].mxu0
      %v2042 = vpop.f32.mrb[0].mxu0
      %v2043 = vadd.f32 %v1591, %v2042
      %v2044 = vpop.f32.mrb[0].mxu0
      %2045 = vmatprep.mubr.bf16.mxu0 0
      %2046 = vmatmul.mubr.bf16.gmra.mrb[0].mxu0 %v1968
      %v2047 = vpop.f32.mrb[0].mxu0
      %v2048 = vadd.f32 %v1591, %v2047
      %v2049 = vpop.f32.mrb[0].mxu0
      %v2050 = vpop.f32.mrb[0].mxu0
      %v2051 = vadd.f32 %v1591, %v2050
      %v2052 = vpop.f32.mrb[0].mxu0
      %2053 = vmatprep.mubr.bf16.mxu0 0
      %2054 = vmatmul.mubr.bf16.gmra.mrb[0].mxu0 %v1971
      %v2055 = vpop.f32.mrb[0].mxu0
      %v2056 = vadd.f32 %v1591, %v2055
      %v2057 = vpop.f32.mrb[0].mxu0
      %v2058 = vpop.f32.mrb[0].mxu0
      %v2059 = vadd.f32 %v1591, %v2058
      %v2060 = vpop.f32.mrb[0].mxu0
      %2061 = vdwg.mxu0
      %v2062 = vmax.f32 %v2008, 0.0
      %v2063 = vmax.f32 %v2011, 0.0
      %v2064 = vmax.f32 %v2016, 0.0
      %v2065 = vmax.f32 %v2019, 0.0
      %v2066 = vmax.f32 %v2024, 0.0
      %v2067 = vmax.f32 %v2027, 0.0
      %v2068 = vmax.f32 %v2032, 0.0
      %v2069 = vmax.f32 %v2035, 0.0
      %v2070 = vmax.f32 %v2040, 0.0
      %v2071 = vmax.f32 %v2043, 0.0
      %v2072 = vmax.f32 %v2048, 0.0
      %v2073 = vmax.f32 %v2051, 0.0
      %v2074 = vmax.f32 %v2056, 0.0
      %v2075 = vmax.f32 %v2059, 0.0
      %v2076 = vlaneseq
      %v2077 = vshrl.u32 %v2076, 7
      %v2078 = vadd.s32 %v2077, 8
      %v2079 = vadd.s32 %v2077, 16
      %v2080 = vstv %s278
      %v2081 = vadd.s32 %v2080, 1
      %v2082 = vadd.s32 %v2080, 2
      %v2083 = vadd.s32 %v2080, 3
      %v2084 = vadd.s32 %v2080, 4
      %v2085 = vadd.s32 %v2080, 5
      %vm2086 = vcmp.ge.s32.totalorder %v2080, 1
      %vm2087 = vcmp.ge.s32.totalorder %v2081, 1
      %vm2088 = vcmp.ge.s32.totalorder %v2082, 1
      %vm2089 = vcmp.ge.s32.totalorder %v2083, 1
      %vm2090 = vcmp.ge.s32.totalorder %v2084, 1
      %vm2091 = vcmp.ge.s32.totalorder %v2085, 1
      %vm2092 = vcmp.le.s32.totalorder %v2080, 16
      %vm2093 = vcmp.le.s32.totalorder %v2081, 16
      %vm2094 = vcmp.le.s32.totalorder %v2082, 16
      %vm2095 = vcmp.le.s32.totalorder %v2083, 16
      %vm2096 = vcmp.le.s32.totalorder %v2084, 16
      %vm2097 = vcmp.le.s32.totalorder %v2085, 16
      %vm2098 = vmand %vm2086, %vm2092
      %vm2099 = vmand %vm2087, %vm2093
      %vm2100 = vmand %vm2088, %vm2094
      %vm2101 = vmand %vm2089, %vm2095
      %vm2102 = vmand %vm2090, %vm2096
      %vm2103 = vmand %vm2091, %vm2097
      %vm2104 = vcmp.ge.s32.totalorder %v2077, 1
      %vm2105 = vcmp.ge.s32.totalorder %v2078, 1
      %vm2106 = vcmp.ge.s32.totalorder %v2079, 1
      %vm2107 = vmand %vm2098, %vm2104
      %vm2108 = vmand %vm2098, %vm2105
      %vm2109 = vmand %vm2098, %vm2106
      %vm2110 = vmand %vm2099, %vm2104
      %vm2111 = vmand %vm2099, %vm2105
      %vm2112 = vmand %vm2099, %vm2106
      %vm2113 = vmand %vm2100, %vm2104
      %vm2114 = vmand %vm2100, %vm2105
      %vm2115 = vmand %vm2100, %vm2106
      %vm2116 = vmand %vm2101, %vm2104
      %vm2117 = vmand %vm2101, %vm2105
      %vm2118 = vmand %vm2101, %vm2106
      %vm2119 = vmand %vm2102, %vm2104
      %vm2120 = vmand %vm2102, %vm2105
      %vm2121 = vmand %vm2102, %vm2106
      %vm2122 = vmand %vm2103, %vm2104
      %vm2123 = vmand %vm2103, %vm2105
      %vm2124 = vmand %vm2103, %vm2106
      %vm2125 = vcmp.le.s32.totalorder %v2077, 16
      %vm2126 = vcmp.le.s32.totalorder %v2078, 16
      %vm2127 = vcmp.le.s32.totalorder %v2079, 16
      %vm2128 = vmand %vm2107, %vm2125
      %vm2129 = vmand %vm2108, %vm2126
      %vm2130 = vmand %vm2109, %vm2127
      %vm2131 = vmand %vm2110, %vm2125
      %vm2132 = vmand %vm2111, %vm2126
      %vm2133 = vmand %vm2112, %vm2127
      %vm2134 = vmand %vm2113, %vm2125
      %vm2135 = vmand %vm2114, %vm2126
      %vm2136 = vmand %vm2115, %vm2127
      %vm2137 = vmand %vm2116, %vm2125
      %vm2138 = vmand %vm2117, %vm2126
      %vm2139 = vmand %vm2118, %vm2127
      %vm2140 = vmand %vm2119, %vm2125
      %vm2141 = vmand %vm2120, %vm2126
      %vm2142 = vmand %vm2121, %vm2127
      %vm2143 = vmand %vm2122, %vm2125
      %vm2144 = vmand %vm2123, %vm2126
      %vm2145 = vmand %vm2124, %vm2127
      %v2160 = vcombine.high %v2062, %v2062
      %v2162 = vunpack.c.l.s4 1983009808
      %v2163 = vunpack.c.0.s8 %v2162
      %v2164 = vlaneseq
      %v2165 = vshrl.u32 %v2164, 7
      %v2166 = vsub.s32 %v2163, %v2165
      %v2167 = vrot.slane %v2062, %v2166
      %v2169 = vunpack.c.l.s4 1983009808
      %v2170 = vunpack.c.0.s8 %v2169
      %v2171 = vlaneseq
      %v2172 = vshrl.u32 %v2171, 7
      %v2173 = vsub.s32 %v2170, %v2172
      %v2174 = vrot.slane %v2160, %v2173
      %v2175 = vcombine.high %v2167, %v2167
      %v2176 = vcombine.high %v2174, %v2174
      %v2177 = vcombine.high %v2063, %v2063
      %v2179 = vunpack.c.l.s4 1983009808
      %v2180 = vunpack.c.0.s8 %v2179
      %v2181 = vlaneseq
      %v2182 = vshrl.u32 %v2181, 7
      %v2183 = vsub.s32 %v2180, %v2182
      %v2184 = vrot.slane %v2063, %v2183
      %v2186 = vunpack.c.l.s4 1983009808
      %v2187 = vunpack.c.0.s8 %v2186
      %v2188 = vlaneseq
      %v2189 = vshrl.u32 %v2188, 7
      %v2190 = vsub.s32 %v2187, %v2189
      %v2191 = vrot.slane %v2177, %v2190
      %v2192 = vcombine.high %v2184, %v2184
      %v2193 = vcombine.high %v2191, %v2191
      %v2194 = vcombine.high %v2064, %v2064
      %v2196 = vunpack.c.l.s4 1983009808
      %v2197 = vunpack.c.0.s8 %v2196
      %v2198 = vlaneseq
      %v2199 = vshrl.u32 %v2198, 7
      %v2200 = vsub.s32 %v2197, %v2199
      %v2201 = vrot.slane %v2064, %v2200
      %v2203 = vunpack.c.l.s4 1983009808
      %v2204 = vunpack.c.0.s8 %v2203
      %v2205 = vlaneseq
      %v2206 = vshrl.u32 %v2205, 7
      %v2207 = vsub.s32 %v2204, %v2206
      %v2208 = vrot.slane %v2194, %v2207
      %v2209 = vcombine.high %v2201, %v2201
      %v2210 = vcombine.high %v2208, %v2208
      %v2211 = vcombine.high %v2065, %v2065
      %v2213 = vunpack.c.l.s4 1983009808
      %v2214 = vunpack.c.0.s8 %v2213
      %v2215 = vlaneseq
      %v2216 = vshrl.u32 %v2215, 7
      %v2217 = vsub.s32 %v2214, %v2216
      %v2218 = vrot.slane %v2065, %v2217
      %v2220 = vunpack.c.l.s4 1983009808
      %v2221 = vunpack.c.0.s8 %v2220
      %v2222 = vlaneseq
      %v2223 = vshrl.u32 %v2222, 7
      %v2224 = vsub.s32 %v2221, %v2223
      %v2225 = vrot.slane %v2211, %v2224
      %v2226 = vcombine.high %v2218, %v2218
      %v2227 = vcombine.high %v2225, %v2225
      %v2228 = vcombine.high %v2066, %v2066
      %v2230 = vunpack.c.l.s4 1983009808
      %v2231 = vunpack.c.0.s8 %v2230
      %v2232 = vlaneseq
      %v2233 = vshrl.u32 %v2232, 7
      %v2234 = vsub.s32 %v2231, %v2233
      %v2235 = vrot.slane %v2066, %v2234
      %v2237 = vunpack.c.l.s4 1983009808
      %v2238 = vunpack.c.0.s8 %v2237
      %v2239 = vlaneseq
      %v2240 = vshrl.u32 %v2239, 7
      %v2241 = vsub.s32 %v2238, %v2240
      %v2242 = vrot.slane %v2228, %v2241
      %v2243 = vcombine.high %v2235, %v2235
      %v2244 = vcombine.high %v2242, %v2242
      %v2245 = vcombine.high %v2067, %v2067
      %v2247 = vunpack.c.l.s4 1983009808
      %v2248 = vunpack.c.0.s8 %v2247
      %v2249 = vlaneseq
      %v2250 = vshrl.u32 %v2249, 7
      %v2251 = vsub.s32 %v2248, %v2250
      %v2252 = vrot.slane %v2067, %v2251
      %v2254 = vunpack.c.l.s4 1983009808
      %v2255 = vunpack.c.0.s8 %v2254
      %v2256 = vlaneseq
      %v2257 = vshrl.u32 %v2256, 7
      %v2258 = vsub.s32 %v2255, %v2257
      %v2259 = vrot.slane %v2245, %v2258
      %v2260 = vcombine.high %v2252, %v2252
      %v2261 = vcombine.high %v2259, %v2259
      %v2262 = vcombine.high %v2068, %v2068
      %v2264 = vunpack.c.l.s4 1983009808
      %v2265 = vunpack.c.0.s8 %v2264
      %v2266 = vlaneseq
      %v2267 = vshrl.u32 %v2266, 7
      %v2268 = vsub.s32 %v2265, %v2267
      %v2269 = vrot.slane %v2068, %v2268
      %v2271 = vunpack.c.l.s4 1983009808
      %v2272 = vunpack.c.0.s8 %v2271
      %v2273 = vlaneseq
      %v2274 = vshrl.u32 %v2273, 7
      %v2275 = vsub.s32 %v2272, %v2274
      %v2276 = vrot.slane %v2262, %v2275
      %v2277 = vcombine.high %v2269, %v2269
      %v2278 = vcombine.high %v2276, %v2276
      %v2279 = vcombine.high %v2069, %v2069
      %v2281 = vunpack.c.l.s4 1983009808
      %v2282 = vunpack.c.0.s8 %v2281
      %v2283 = vlaneseq
      %v2284 = vshrl.u32 %v2283, 7
      %v2285 = vsub.s32 %v2282, %v2284
      %v2286 = vrot.slane %v2069, %v2285
      %v2288 = vunpack.c.l.s4 1983009808
      %v2289 = vunpack.c.0.s8 %v2288
      %v2290 = vlaneseq
      %v2291 = vshrl.u32 %v2290, 7
      %v2292 = vsub.s32 %v2289, %v2291
      %v2293 = vrot.slane %v2279, %v2292
      %v2294 = vcombine.high %v2286, %v2286
      %v2295 = vcombine.high %v2293, %v2293
      %v2296 = vcombine.high %v2070, %v2070
      %v2298 = vunpack.c.l.s4 1983009808
      %v2299 = vunpack.c.0.s8 %v2298
      %v2300 = vlaneseq
      %v2301 = vshrl.u32 %v2300, 7
      %v2302 = vsub.s32 %v2299, %v2301
      %v2303 = vrot.slane %v2070, %v2302
      %v2305 = vunpack.c.l.s4 1983009808
      %v2306 = vunpack.c.0.s8 %v2305
      %v2307 = vlaneseq
      %v2308 = vshrl.u32 %v2307, 7
      %v2309 = vsub.s32 %v2306, %v2308
      %v2310 = vrot.slane %v2296, %v2309
      %v2311 = vcombine.high %v2303, %v2303
      %v2312 = vcombine.high %v2310, %v2310
      %v2313 = vcombine.high %v2071, %v2071
      %v2315 = vunpack.c.l.s4 1983009808
      %v2316 = vunpack.c.0.s8 %v2315
      %v2317 = vlaneseq
      %v2318 = vshrl.u32 %v2317, 7
      %v2319 = vsub.s32 %v2316, %v2318
      %v2320 = vrot.slane %v2071, %v2319
      %v2322 = vunpack.c.l.s4 1983009808
      %v2323 = vunpack.c.0.s8 %v2322
      %v2324 = vlaneseq
      %v2325 = vshrl.u32 %v2324, 7
      %v2326 = vsub.s32 %v2323, %v2325
      %v2327 = vrot.slane %v2313, %v2326
      %v2328 = vcombine.high %v2320, %v2320
      %v2329 = vcombine.high %v2327, %v2327
      %v2330 = vcombine.high %v2072, %v2072
      %v2332 = vunpack.c.l.s4 1983009808
      %v2333 = vunpack.c.0.s8 %v2332
      %v2334 = vlaneseq
      %v2335 = vshrl.u32 %v2334, 7
      %v2336 = vsub.s32 %v2333, %v2335
      %v2337 = vrot.slane %v2072, %v2336
      %v2339 = vunpack.c.l.s4 1983009808
      %v2340 = vunpack.c.0.s8 %v2339
      %v2341 = vlaneseq
      %v2342 = vshrl.u32 %v2341, 7
      %v2343 = vsub.s32 %v2340, %v2342
      %v2344 = vrot.slane %v2330, %v2343
      %v2345 = vcombine.high %v2337, %v2337
      %v2346 = vcombine.high %v2344, %v2344
      %v2347 = vcombine.high %v2073, %v2073
      %v2349 = vunpack.c.l.s4 1983009808
      %v2350 = vunpack.c.0.s8 %v2349
      %v2351 = vlaneseq
      %v2352 = vshrl.u32 %v2351, 7
      %v2353 = vsub.s32 %v2350, %v2352
      %v2354 = vrot.slane %v2073, %v2353
      %v2356 = vunpack.c.l.s4 1983009808
      %v2357 = vunpack.c.0.s8 %v2356
      %v2358 = vlaneseq
      %v2359 = vshrl.u32 %v2358, 7
      %v2360 = vsub.s32 %v2357, %v2359
      %v2361 = vrot.slane %v2347, %v2360
      %v2362 = vcombine.high %v2354, %v2354
      %v2363 = vcombine.high %v2361, %v2361
      %v2364 = vcombine.high %v2074, %v2074
      %v2366 = vunpack.c.l.s4 1983009808
      %v2367 = vunpack.c.0.s8 %v2366
      %v2368 = vlaneseq
      %v2369 = vshrl.u32 %v2368, 7
      %v2370 = vsub.s32 %v2367, %v2369
      %v2371 = vrot.slane %v2074, %v2370
      %v2373 = vunpack.c.l.s4 1983009808
      %v2374 = vunpack.c.0.s8 %v2373
      %v2375 = vlaneseq
      %v2376 = vshrl.u32 %v2375, 7
      %v2377 = vsub.s32 %v2374, %v2376
      %v2378 = vrot.slane %v2364, %v2377
      %v2379 = vcombine.high %v2371, %v2371
      %v2380 = vcombine.high %v2378, %v2378
      %v2382 = vunpack.c.l.s4 1983009808
      %v2383 = vunpack.c.0.s8 %v2382
      %v2384 = vlaneseq
      %v2385 = vshrl.u32 %v2384, 7
      %v2386 = vsub.s32 %v2383, %v2385
      %v2387 = vrot.slane %v2075, %v2386
      %v2388 = vcombine.high %v2387, %v2387
      %v2389 = vsel %vm2128, 1, 0
      %v2390 = vsel %vm2129, 1, 0
      %v2391 = vsel %vm2130, 1, 0
      %v2392 = vsel %vm2131, 1, 0
      %v2393 = vsel %vm2132, 1, 0
      %v2394 = vsel %vm2133, 1, 0
      %v2395 = vsel %vm2134, 1, 0
      %v2396 = vsel %vm2135, 1, 0
      %v2397 = vsel %vm2136, 1, 0
      %v2398 = vsel %vm2137, 1, 0
      %v2399 = vsel %vm2138, 1, 0
      %v2400 = vsel %vm2139, 1, 0
      %v2401 = vsel %vm2140, 1, 0
      %v2402 = vsel %vm2141, 1, 0
      %v2403 = vsel %vm2142, 1, 0
      %v2404 = vsel %vm2143, 1, 0
      %v2405 = vsel %vm2144, 1, 0
      %v2406 = vsel %vm2145, 1, 0
      %vm2407 = vcmp.eq.s32.totalorder %v2389, 1
      %vm2408 = vcmp.eq.s32.totalorder %v2390, 1
      %vm2409 = vcmp.eq.s32.totalorder %v2391, 1
      %vm2410 = vcmp.eq.s32.totalorder %v2392, 1
      %vm2411 = vcmp.eq.s32.totalorder %v2393, 1
      %vm2412 = vcmp.eq.s32.totalorder %v2394, 1
      %vm2413 = vcmp.eq.s32.totalorder %v2395, 1
      %vm2414 = vcmp.eq.s32.totalorder %v2396, 1
      %vm2415 = vcmp.eq.s32.totalorder %v2397, 1
      %vm2416 = vcmp.eq.s32.totalorder %v2398, 1
      %vm2417 = vcmp.eq.s32.totalorder %v2399, 1
      %vm2418 = vcmp.eq.s32.totalorder %v2400, 1
      %vm2419 = vcmp.eq.s32.totalorder %v2401, 1
      %vm2420 = vcmp.eq.s32.totalorder %v2402, 1
      %vm2421 = vcmp.eq.s32.totalorder %v2403, 1
      %vm2422 = vcmp.eq.s32.totalorder %v2404, 1
      %vm2423 = vcmp.eq.s32.totalorder %v2405, 1
      %vm2424 = vcmp.eq.s32.totalorder %v2406, 1
      %v2425 = vcombine.low %v2167, %v2175
      %v2426 = vcombine.low %v2174, %v2176
      %v2428 = vunpack.c.l.s4 1983009808
      %v2429 = vunpack.c.0.s8 %v2428
      %v2430 = vlaneseq
      %v2431 = vshrl.u32 %v2430, 7
      %v2432 = vsub.s32 %v2429, %v2431
      %v2433 = vrot.slane %v2425, %v2432
      %v2435 = vunpack.c.l.s4 1983009808
      %v2436 = vunpack.c.0.s8 %v2435
      %v2437 = vlaneseq
      %v2438 = vshrl.u32 %v2437, 7
      %v2439 = vsub.s32 %v2436, %v2438
      %v2440 = vrot.slane %v2426, %v2439
      %v2441 = vcombine.low %v2433, %v2440
      %v2442 = vcombine.low %v2184, %v2192
      %v2443 = vcombine.low %v2191, %v2193
      %v2445 = vunpack.c.l.s4 1983009808
      %v2446 = vunpack.c.0.s8 %v2445
      %v2447 = vlaneseq
      %v2448 = vshrl.u32 %v2447, 7
      %v2449 = vsub.s32 %v2446, %v2448
      %v2450 = vrot.slane %v2442, %v2449
      %v2452 = vunpack.c.l.s4 1983009808
      %v2453 = vunpack.c.0.s8 %v2452
      %v2454 = vlaneseq
      %v2455 = vshrl.u32 %v2454, 7
      %v2456 = vsub.s32 %v2453, %v2455
      %v2457 = vrot.slane %v2443, %v2456
      %v2458 = vcombine.low %v2450, %v2457
      %v2460 = vunpack.c.l.s4 1983009808
      %v2461 = vunpack.c.0.s8 %v2460
      %v2462 = vlaneseq
      %v2463 = vshrl.u32 %v2462, 7
      %v2464 = vsub.s32 %v2461, %v2463
      %v2465 = vrot.slane %v2201, %v2464
      %v2466 = vcombine.low %v2209, %v2208
      %v2467 = vcombine.low %v2210, %v2218
      %v2469 = vunpack.c.l.s4 1983009808
      %v2470 = vunpack.c.0.s8 %v2469
      %v2471 = vlaneseq
      %v2472 = vshrl.u32 %v2471, 7
      %v2473 = vsub.s32 %v2470, %v2472
      %v2474 = vrot.slane %v2466, %v2473
      %v2476 = vunpack.c.l.s4 1983009808
      %v2477 = vunpack.c.0.s8 %v2476
      %v2478 = vlaneseq
      %v2479 = vshrl.u32 %v2478, 7
      %v2480 = vsub.s32 %v2477, %v2479
      %v2481 = vrot.slane %v2467, %v2480
      %v2482 = vcombine.low %v2474, %v2481
      %v2483 = vcombine.low %v2226, %v2225
      %v2484 = vcombine.low %v2227, %v2235
      %v2486 = vunpack.c.l.s4 1983009808
      %v2487 = vunpack.c.0.s8 %v2486
      %v2488 = vlaneseq
      %v2489 = vshrl.u32 %v2488, 7
      %v2490 = vsub.s32 %v2487, %v2489
      %v2491 = vrot.slane %v2483, %v2490
      %v2493 = vunpack.c.l.s4 1983009808
      %v2494 = vunpack.c.0.s8 %v2493
      %v2495 = vlaneseq
      %v2496 = vshrl.u32 %v2495, 7
      %v2497 = vsub.s32 %v2494, %v2496
      %v2498 = vrot.slane %v2484, %v2497
      %v2499 = vcombine.low %v2491, %v2498
      %v2501 = vunpack.c.l.s4 1983009808
      %v2502 = vunpack.c.0.s8 %v2501
      %v2503 = vlaneseq
      %v2504 = vshrl.u32 %v2503, 7
      %v2505 = vsub.s32 %v2502, %v2504
      %v2506 = vrot.slane %v2243, %v2505
      %v2507 = vcombine.low %v2242, %v2244
      %v2508 = vcombine.low %v2252, %v2260
      %v2510 = vunpack.c.l.s4 1983009808
      %v2511 = vunpack.c.0.s8 %v2510
      %v2512 = vlaneseq
      %v2513 = vshrl.u32 %v2512, 7
      %v2514 = vsub.s32 %v2511, %v2513
      %v2515 = vrot.slane %v2507, %v2514
      %v2517 = vunpack.c.l.s4 1983009808
      %v2518 = vunpack.c.0.s8 %v2517
      %v2519 = vlaneseq
      %v2520 = vshrl.u32 %v2519, 7
      %v2521 = vsub.s32 %v2518, %v2520
      %v2522 = vrot.slane %v2508, %v2521
      %v2523 = vcombine.low %v2515, %v2522
      %v2524 = vcombine.low %v2259, %v2261
      %v2525 = vcombine.low %v2269, %v2277
      %v2527 = vunpack.c.l.s4 1983009808
      %v2528 = vunpack.c.0.s8 %v2527
      %v2529 = vlaneseq
      %v2530 = vshrl.u32 %v2529, 7
      %v2531 = vsub.s32 %v2528, %v2530
      %v2532 = vrot.slane %v2524, %v2531
      %v2534 = vunpack.c.l.s4 1983009808
      %v2535 = vunpack.c.0.s8 %v2534
      %v2536 = vlaneseq
      %v2537 = vshrl.u32 %v2536, 7
      %v2538 = vsub.s32 %v2535, %v2537
      %v2539 = vrot.slane %v2525, %v2538
      %v2540 = vcombine.low %v2532, %v2539
      %v2542 = vunpack.c.l.s4 1983009808
      %v2543 = vunpack.c.0.s8 %v2542
      %v2544 = vlaneseq
      %v2545 = vshrl.u32 %v2544, 7
      %v2546 = vsub.s32 %v2543, %v2545
      %v2547 = vrot.slane %v2276, %v2546
      %v2548 = vcombine.low %v2278, %v2286
      %v2549 = vcombine.low %v2294, %v2293
      %v2551 = vunpack.c.l.s4 1983009808
      %v2552 = vunpack.c.0.s8 %v2551
      %v2553 = vlaneseq
      %v2554 = vshrl.u32 %v2553, 7
      %v2555 = vsub.s32 %v2552, %v2554
      %v2556 = vrot.slane %v2548, %v2555
      %v2558 = vunpack.c.l.s4 1983009808
      %v2559 = vunpack.c.0.s8 %v2558
      %v2560 = vlaneseq
      %v2561 = vshrl.u32 %v2560, 7
      %v2562 = vsub.s32 %v2559, %v2561
      %v2563 = vrot.slane %v2549, %v2562
      %v2564 = vcombine.low %v2556, %v2563
      %v2565 = vcombine.low %v2295, %v2303
      %v2566 = vcombine.low %v2311, %v2310
      %v2568 = vunpack.c.l.s4 1983009808
      %v2569 = vunpack.c.0.s8 %v2568
      %v2570 = vlaneseq
      %v2571 = vshrl.u32 %v2570, 7
      %v2572 = vsub.s32 %v2569, %v2571
      %v2573 = vrot.slane %v2565, %v2572
      %v2575 = vunpack.c.l.s4 1983009808
      %v2576 = vunpack.c.0.s8 %v2575
      %v2577 = vlaneseq
      %v2578 = vshrl.u32 %v2577, 7
      %v2579 = vsub.s32 %v2576, %v2578
      %v2580 = vrot.slane %v2566, %v2579
      %v2581 = vcombine.low %v2573, %v2580
      %v2583 = vunpack.c.l.s4 1983009808
      %v2584 = vunpack.c.0.s8 %v2583
      %v2585 = vlaneseq
      %v2586 = vshrl.u32 %v2585, 7
      %v2587 = vsub.s32 %v2584, %v2586
      %v2588 = vrot.slane %v2312, %v2587
      %v2589 = vcombine.low %v2320, %v2328
      %v2590 = vcombine.low %v2327, %v2329
      %v2592 = vunpack.c.l.s4 1983009808
      %v2593 = vunpack.c.0.s8 %v2592
      %v2594 = vlaneseq
      %v2595 = vshrl.u32 %v2594, 7
      %v2596 = vsub.s32 %v2593, %v2595
      %v2597 = vrot.slane %v2589, %v2596
      %v2599 = vunpack.c.l.s4 1983009808
      %v2600 = vunpack.c.0.s8 %v2599
      %v2601 = vlaneseq
      %v2602 = vshrl.u32 %v2601, 7
      %v2603 = vsub.s32 %v2600, %v2602
      %v2604 = vrot.slane %v2590, %v2603
      %v2605 = vcombine.low %v2597, %v2604
      %v2606 = vcombine.low %v2337, %v2345
      %v2607 = vcombine.low %v2344, %v2346
      %v2609 = vunpack.c.l.s4 1983009808
      %v2610 = vunpack.c.0.s8 %v2609
      %v2611 = vlaneseq
      %v2612 = vshrl.u32 %v2611, 7
      %v2613 = vsub.s32 %v2610, %v2612
      %v2614 = vrot.slane %v2606, %v2613
      %v2616 = vunpack.c.l.s4 1983009808
      %v2617 = vunpack.c.0.s8 %v2616
      %v2618 = vlaneseq
      %v2619 = vshrl.u32 %v2618, 7
      %v2620 = vsub.s32 %v2617, %v2619
      %v2621 = vrot.slane %v2607, %v2620
      %v2622 = vcombine.low %v2614, %v2621
      %v2624 = vunpack.c.l.s4 1983009808
      %v2625 = vunpack.c.0.s8 %v2624
      %v2626 = vlaneseq
      %v2627 = vshrl.u32 %v2626, 7
      %v2628 = vsub.s32 %v2625, %v2627
      %v2629 = vrot.slane %v2354, %v2628
      %v2630 = vcombine.low %v2362, %v2361
      %v2631 = vcombine.low %v2363, %v2371
      %v2633 = vunpack.c.l.s4 1983009808
      %v2634 = vunpack.c.0.s8 %v2633
      %v2635 = vlaneseq
      %v2636 = vshrl.u32 %v2635, 7
      %v2637 = vsub.s32 %v2634, %v2636
      %v2638 = vrot.slane %v2630, %v2637
      %v2640 = vunpack.c.l.s4 1983009808
      %v2641 = vunpack.c.0.s8 %v2640
      %v2642 = vlaneseq
      %v2643 = vshrl.u32 %v2642, 7
      %v2644 = vsub.s32 %v2641, %v2643
      %v2645 = vrot.slane %v2631, %v2644
      %v2646 = vcombine.low %v2638, %v2645
      %v2647 = vcombine.low %v2379, %v2378
      %v2648 = vcombine.low %v2380, %v2387
      %v2650 = vunpack.c.l.s4 1983009808
      %v2651 = vunpack.c.0.s8 %v2650
      %v2652 = vlaneseq
      %v2653 = vshrl.u32 %v2652, 7
      %v2654 = vsub.s32 %v2651, %v2653
      %v2655 = vrot.slane %v2647, %v2654
      %v2657 = vunpack.c.l.s4 1983009808
      %v2658 = vunpack.c.0.s8 %v2657
      %v2659 = vlaneseq
      %v2660 = vshrl.u32 %v2659, 7
      %v2661 = vsub.s32 %v2658, %v2660
      %v2662 = vrot.slane %v2648, %v2661
      %v2663 = vcombine.low %v2655, %v2662
      %v2665 = vunpack.c.l.s4 1983009808
      %v2666 = vunpack.c.0.s8 %v2665
      %v2667 = vlaneseq
      %v2668 = vshrl.u32 %v2667, 7
      %v2669 = vsub.s32 %v2666, %v2668
      %v2670 = vrot.slane %v2388, %v2669
      %v2689 = vsel %vm2407, %v2441, 0.0
      %v2690 = vsel %vm2408, %v2458, 0.0
      %v2691 = vsel %vm2409, %v2465, 0.0
      %v2692 = vsel %vm2410, %v2482, 0.0
      %v2693 = vsel %vm2411, %v2499, 0.0
      %v2694 = vsel %vm2412, %v2506, 0.0
      %v2695 = vsel %vm2413, %v2523, 0.0
      %v2696 = vsel %vm2414, %v2540, 0.0
      %v2697 = vsel %vm2415, %v2547, 0.0
      %v2698 = vsel %vm2416, %v2564, 0.0
      %v2699 = vsel %vm2417, %v2581, 0.0
      %v2700 = vsel %vm2418, %v2588, 0.0
      %v2701 = vsel %vm2419, %v2605, 0.0
      %v2702 = vsel %vm2420, %v2622, 0.0
      %v2703 = vsel %vm2421, %v2629, 0.0
      %v2704 = vsel %vm2422, %v2646, 0.0
      %v2705 = vsel %vm2423, %v2663, 0.0
      %v2706 = vsel %vm2424, %v2670, 0.0
      %v2707 = vpack.c.bf16 %v2690, %v2689
      %v2708 = vpack.c.bf16 %v2691, %v2691
      %v2709 = vpack.c.bf16 %v2693, %v2692
      %v2710 = vpack.c.bf16 %v2694, %v2694
      %v2711 = vpack.c.bf16 %v2696, %v2695
      %v2712 = vpack.c.bf16 %v2697, %v2697
      %v2713 = vpack.c.bf16 %v2699, %v2698
      %v2714 = vpack.c.bf16 %v2700, %v2700
      %v2715 = vpack.c.bf16 %v2702, %v2701
      %v2716 = vpack.c.bf16 %v2703, %v2703
      %v2717 = vpack.c.bf16 %v2705, %v2704
      %v2718 = vpack.c.bf16 %v2706, %v2706
      %2723 = vrot.lane.b32.xlu0 %v2707, 96
      %v2724 = vpop.permute.xlu0 %2723
      %2725 = vrot.lane.b32.xlu0 %v2709, 96
      %v2726 = vpop.permute.xlu0 %2725
      %2727 = vrot.lane.b32.xlu0 %v2711, 96
      %v2728 = vpop.permute.xlu0 %2727
      %2729 = vrot.lane.b32.xlu0 %v2713, 96
      %v2730 = vpop.permute.xlu0 %2729
      %v2732 = vshrl.u32 %v2707, 16
      %v2734 = vshll.u32 %v2707, 16
      %v2736 = vrot.slane %v2734, 1
      %v2737 = vor.u32 %v2732, %v2736
      %v2739 = vshll.u32 %v2708, 16
      %v2741 = vrot.slane %v2739, 1
      %v2742 = vsel %vm927, %v2737, %v2741
      %v2744 = vshrl.u32 %v2709, 16
      %v2746 = vshll.u32 %v2709, 16
      %v2748 = vrot.slane %v2746, 1
      %v2749 = vor.u32 %v2744, %v2748
      %v2751 = vshll.u32 %v2710, 16
      %v2753 = vrot.slane %v2751, 1
      %v2754 = vsel %vm927, %v2749, %v2753
      %v2756 = vshrl.u32 %v2711, 16
      %v2758 = vshll.u32 %v2711, 16
      %v2760 = vrot.slane %v2758, 1
      %v2761 = vor.u32 %v2756, %v2760
      %v2763 = vshll.u32 %v2712, 16
      %v2765 = vrot.slane %v2763, 1
      %v2766 = vsel %vm927, %v2761, %v2765
      %v2768 = vshrl.u32 %v2713, 16
      %v2770 = vshll.u32 %v2713, 16
      %v2772 = vrot.slane %v2770, 1
      %v2773 = vor.u32 %v2768, %v2772
      %v2775 = vshll.u32 %v2714, 16
      %v2777 = vrot.slane %v2775, 1
      %v2778 = vsel %vm927, %v2773, %v2777
      %vm2783 = vcmask 1046528
      %v2784 = vrot.slane %v2707, 1
      %v2785 = vrot.slane %v2708, 1
      %v2786 = vsel %vm2783, %v2784, %v2785
      %v2787 = vrot.slane %v2709, 1
      %v2788 = vrot.slane %v2710, 1
      %v2789 = vsel %vm2783, %v2787, %v2788
      %v2790 = vrot.slane %v2711, 1
      %v2791 = vrot.slane %v2712, 1
      %v2792 = vsel %vm2783, %v2790, %v2791
      %v2793 = vrot.slane %v2713, 1
      %v2794 = vrot.slane %v2714, 1
      %v2795 = vsel %vm2783, %v2793, %v2794
      %2796 = vrot.lane.b32.xlu0 %v2786, 32
      %v2797 = vpop.permute.xlu0 %2796
      %2798 = vrot.lane.b32.xlu0 %v2789, 32
      %v2799 = vpop.permute.xlu0 %2798
      %2800 = vrot.lane.b32.xlu0 %v2792, 32
      %v2801 = vpop.permute.xlu0 %2800
      %2802 = vrot.lane.b32.xlu0 %v2795, 32
      %v2803 = vpop.permute.xlu0 %2802
      %v2806 = vsel %vm1138, %v2724, %v2742
      %v2809 = vsel %vm1138, %v2726, %v2754
      %v2812 = vsel %vm1138, %v2728, %v2766
      %v2815 = vsel %vm1138, %v2730, %v2778
      %v2817 = vsel %vm1951, %v2806, %v2797
      %v2819 = vsel %vm1951, %v2809, %v2799
      %v2821 = vsel %vm1951, %v2812, %v2801
      %v2823 = vsel %vm1951, %v2815, %v2803
      %v2825 = vshrl.u32 %v2715, 16
      %v2827 = vshll.u32 %v2715, 16
      %v2829 = vrot.slane %v2827, 1
      %v2830 = vor.u32 %v2825, %v2829
      %v2832 = vshll.u32 %v2716, 16
      %v2834 = vrot.slane %v2832, 1
      %v2835 = vsel %vm927, %v2830, %v2834
      %2836 = vrot.lane.b32.xlu0 %v2754, 32
      %v2837 = vpop.permute.xlu0 %2836
      %2838 = vrot.lane.b32.xlu0 %v2766, 32
      %v2839 = vpop.permute.xlu0 %2838
      %2840 = vrot.lane.b32.xlu0 %v2778, 32
      %v2841 = vpop.permute.xlu0 %2840
      %2842 = vrot.lane.b32.xlu0 %v2835, 32
      %v2843 = vpop.permute.xlu0 %2842
      %v2846 = vrot.slane %v2715, 1
      %v2847 = vrot.slane %v2716, 1
      %v2848 = vsel %vm2783, %v2846, %v2847
      %2849 = vrot.lane.b32.xlu0 %v2789, 64
      %v2850 = vpop.permute.xlu0 %2849
      %2851 = vrot.lane.b32.xlu0 %v2792, 64
      %v2852 = vpop.permute.xlu0 %2851
      %2853 = vrot.lane.b32.xlu0 %v2795, 64
      %v2854 = vpop.permute.xlu0 %2853
      %2855 = vrot.lane.b32.xlu0 %v2848, 64
      %v2856 = vpop.permute.xlu0 %2855
      %v2858 = vsel %vm1138, %v2709, %v2837
      %v2860 = vsel %vm1138, %v2711, %v2839
      %v2862 = vsel %vm1138, %v2713, %v2841
      %v2864 = vsel %vm1138, %v2715, %v2843
      %v2866 = vsel %vm1951, %v2858, %v2850
      %v2868 = vsel %vm1951, %v2860, %v2852
      %v2870 = vsel %vm1951, %v2862, %v2854
      %v2872 = vsel %vm1951, %v2864, %v2856
      %2873 = vrot.lane.b32.xlu0 %v2715, 96
      %v2874 = vpop.permute.xlu0 %2873
      %2875 = vrot.lane.b32.xlu0 %v2848, 32
      %v2876 = vpop.permute.xlu0 %2875
      %v2879 = vsel %vm1138, %v2874, %v2835
      %v2881 = vsel %vm1951, %v2879, %v2876
      %2886 = vrot.lane.b32.xlu0 %v2866, 96
      %v2887 = vpop.permute.xlu0 %2886
      %2888 = vrot.lane.b32.xlu0 %v2868, 96
      %v2889 = vpop.permute.xlu0 %2888
      %2890 = vrot.lane.b32.xlu0 %v2870, 96
      %v2891 = vpop.permute.xlu0 %2890
      %2892 = vrot.lane.b32.xlu0 %v2872, 96
      %v2893 = vpop.permute.xlu0 %2892
      %2898 = vrot.lane.b32.xlu0 %v2819, 64
      %v2899 = vpop.permute.xlu0 %2898
      %2900 = vrot.lane.b32.xlu0 %v2821, 64
      %v2901 = vpop.permute.xlu0 %2900
      %2902 = vrot.lane.b32.xlu0 %v2823, 64
      %v2903 = vpop.permute.xlu0 %2902
      %2904 = vrot.lane.b32.xlu0 %v2881, 64
      %v2905 = vpop.permute.xlu0 %2904
      %vm2906 = vcmask 785408
      %v2908 = vsel %vm2906, %v2817, %v2887
      %v2911 = vsel %vm2906, %v2819, %v2889
      %v2914 = vsel %vm2906, %v2821, %v2891
      %v2917 = vsel %vm2906, %v2823, %v2893
      %v2920 = vsel %vm1951, %v2887, %v2899
      %v2923 = vsel %vm1951, %v2889, %v2901
      %v2926 = vsel %vm1951, %v2891, %v2903
      %v2929 = vsel %vm1951, %v2893, %v2905
      %v2932 = vshrl.u32 %v2717, 16
      %v2934 = vshll.u32 %v2717, 16
      %v2936 = vrot.slane %v2934, 1
      %v2937 = vor.u32 %v2932, %v2936
      %v2939 = vshll.u32 %v2718, 16
      %v2941 = vrot.slane %v2939, 1
      %v2942 = vsel %vm927, %v2937, %v2941
      %2943 = vrot.lane.b32.xlu0 %v2942, 32
      %v2944 = vpop.permute.xlu0 %2943
      %v2947 = vrot.slane %v2717, 1
      %v2948 = vrot.slane %v2718, 1
      %v2949 = vsel %vm2783, %v2947, %v2948
      %2950 = vrot.lane.b32.xlu0 %v2949, 64
      %v2951 = vpop.permute.xlu0 %2950
      %v2953 = vsel %vm1138, %v2717, %v2944
      %v2955 = vsel %vm1951, %v2953, %v2951
      %2956 = vrot.lane.b32.xlu0 %v2819, 96
      %v2957 = vpop.permute.xlu0 %2956
      %2958 = vrot.lane.b32.xlu0 %v2821, 96
      %v2959 = vpop.permute.xlu0 %2958
      %2960 = vrot.lane.b32.xlu0 %v2823, 96
      %v2961 = vpop.permute.xlu0 %2960
      %2962 = vrot.lane.b32.xlu0 %v2881, 96
      %v2963 = vpop.permute.xlu0 %2962
      %2965 = vrot.lane.b32.xlu0 %v2868, 64
      %v2966 = vpop.permute.xlu0 %2965
      %2967 = vrot.lane.b32.xlu0 %v2870, 64
      %v2968 = vpop.permute.xlu0 %2967
      %2969 = vrot.lane.b32.xlu0 %v2872, 64
      %v2970 = vpop.permute.xlu0 %2969
      %2971 = vrot.lane.b32.xlu0 %v2955, 64
      %v2972 = vpop.permute.xlu0 %2971
      %v2974 = vsel %vm2906, %v2866, %v2957
      %v2977 = vsel %vm2906, %v2868, %v2959
      %v2980 = vsel %vm2906, %v2870, %v2961
      %v2983 = vsel %vm2906, %v2872, %v2963
      %v2986 = vsel %vm1951, %v2957, %v2966
      %v2989 = vsel %vm1951, %v2959, %v2968
      %v2992 = vsel %vm1951, %v2961, %v2970
      %v2995 = vsel %vm1951, %v2963, %v2972
      %v2997 = vld [vmem:[%s3] sm:$0xf]
      %v2998 = vld [vmem:[%s3 + $0x4] sm:$0xf]
      %v2999 = vld [vmem:[%s3 + $0x8] sm:$0xf]
      %v3000 = vld [vmem:[%s3 + $0xc] sm:$0xf]
      %v3001 = vld [vmem:[%s3 + $0x10] sm:$0xf]
      %v3002 = vld [vmem:[%s3 + $0x14] sm:$0xf]
      %v3003 = vld [vmem:[%s3 + $0x18] sm:$0xf]
      %v3004 = vld [vmem:[%s3 + $0x1c] sm:$0xf]
      %v3005 = vld [vmem:[%s3 + $0x20] sm:$0xf]
      %v3006 = vld [vmem:[%s3 + $0x24] sm:$0xf]
      %v3007 = vld [vmem:[%s3 + $0x28] sm:$0xf]
      %v3008 = vld [vmem:[%s3 + $0x2c] sm:$0xf]
      %v3009 = vld [vmem:[%s3 + $0x30] sm:$0xf]
      %v3010 = vld [vmem:[%s3 + $0x34] sm:$0xf]
      %v3011 = vld [vmem:[%s3 + $0x38] sm:$0xf]
      %v3012 = vld [vmem:[%s3 + $0x3c] sm:$0xf]
      %v3013 = vld [vmem:[%s3 + $0x40] sm:$0xf]
      %v3014 = vld [vmem:[%s3 + $0x44] sm:$0xf]
      %v3015 = vld [vmem:[%s3 + $0x48] sm:$0xf]
      %v3016 = vld [vmem:[%s3 + $0x4c] sm:$0xf]
      %v3017 = vld [vmem:[%s3 + $0x50] sm:$0xf]
      %v3018 = vld [vmem:[%s3 + $0x54] sm:$0xf]
      %v3019 = vld [vmem:[%s3 + $0x58] sm:$0xf]
      %v3020 = vld [vmem:[%s3 + $0x5c] sm:$0xf]
      %v3021 = vld [vmem:[%s3 + $0x60] sm:$0xf]
      %v3022 = vld [vmem:[%s3 + $0x64] sm:$0xf]
      %v3023 = vld [vmem:[%s3 + $0x68] sm:$0xf]
      %v3024 = vld [vmem:[%s3 + $0x6c] sm:$0xf]
      %v3025 = vld [vmem:[%s3 + $0x70] sm:$0xf]
      %v3026 = vld [vmem:[%s3 + $0x74] sm:$0xf]
      %v3027 = vld [vmem:[%s3 + $0x78] sm:$0xf]
      %v3028 = vld [vmem:[%s3 + $0x7c] sm:$0xf]
      %v3029 = vld [vmem:[%s3 + $0x80] sm:$0xf]
      %v3030 = vld [vmem:[%s3 + $0x84] sm:$0xf]
      %v3031 = vld [vmem:[%s3 + $0x88] sm:$0xf]
      %v3032 = vld [vmem:[%s3 + $0x8c] sm:$0xf]
      %v3069 = vunpack.c.l.b16 %v2997
      %v3070 = vunpack.c.l.b16 %v2998
      %v3071 = vunpack.c.l.b16 %v2999
      %v3072 = vunpack.c.l.b16 %v3000
      %v3073 = vunpack.c.l.b16 %v3001
      %v3074 = vunpack.c.l.b16 %v3002
      %v3075 = vunpack.c.l.b16 %v3003
      %v3076 = vunpack.c.l.b16 %v3004
      %v3077 = vunpack.c.l.b16 %v3005
      %v3078 = vunpack.c.l.b16 %v3006
      %v3079 = vunpack.c.l.b16 %v3007
      %v3080 = vunpack.c.l.b16 %v3008
      %v3081 = vunpack.c.l.b16 %v3009
      %v3082 = vunpack.c.l.b16 %v3010
      %v3083 = vunpack.c.l.b16 %v3011
      %v3084 = vunpack.c.l.b16 %v3012
      %v3085 = vunpack.c.l.b16 %v3013
      %v3086 = vunpack.c.l.b16 %v3014
      %v3087 = vunpack.c.l.b16 %v3015
      %v3088 = vunpack.c.l.b16 %v3016
      %v3089 = vunpack.c.l.b16 %v3017
      %v3090 = vunpack.c.l.b16 %v3018
      %v3091 = vunpack.c.l.b16 %v3019
      %v3092 = vunpack.c.l.b16 %v3020
      %v3093 = vunpack.c.l.b16 %v3021
      %v3094 = vunpack.c.l.b16 %v3022
      %v3095 = vunpack.c.l.b16 %v3023
      %v3096 = vunpack.c.l.b16 %v3024
      %v3097 = vunpack.c.l.b16 %v3025
      %v3098 = vunpack.c.l.b16 %v3026
      %v3099 = vunpack.c.l.b16 %v3027
      %v3100 = vunpack.c.l.b16 %v3028
      %v3101 = vunpack.c.l.b16 %v3029
      %v3102 = vunpack.c.l.b16 %v3030
      %v3103 = vunpack.c.l.b16 %v3031
      %v3104 = vunpack.c.l.b16 %v3032
      %v3105 = vpack.c.b16 %v3070, %v3069
      %v3106 = vpack.c.b16 %v3072, %v3071
      %v3107 = vpack.c.b16 %v3074, %v3073
      %v3108 = vpack.c.b16 %v3076, %v3075
      %v3109 = vpack.c.b16 %v3078, %v3077
      %v3110 = vpack.c.b16 %v3080, %v3079
      %v3111 = vpack.c.b16 %v3082, %v3081
      %v3112 = vpack.c.b16 %v3084, %v3083
      %v3113 = vpack.c.b16 %v3086, %v3085
      %v3114 = vpack.c.b16 %v3088, %v3087
      %v3115 = vpack.c.b16 %v3090, %v3089
      %v3116 = vpack.c.b16 %v3092, %v3091
      %v3117 = vpack.c.b16 %v3094, %v3093
      %v3118 = vpack.c.b16 %v3096, %v3095
      %v3119 = vpack.c.b16 %v3098, %v3097
      %v3120 = vpack.c.b16 %v3100, %v3099
      %v3121 = vpack.c.b16 %v3102, %v3101
      %v3122 = vpack.c.b16 %v3104, %v3103
      %v3141 = vsel %vm1138, %v2899, 0
      %v3143 = vsel %vm1138, %v2901, 0
      %v3145 = vsel %vm1138, %v2903, 0
      %v3147 = vsel %vm1138, %v2905, 0
      %3149 = vmatprep.subr.bf16.mxu0 0
      %3150 = vmatpush1.bf16.msra.mxu0 %v3105
      %3151 = vmatprep.subr.bf16.mxu0 0
      %3152 = vmatpush1.bf16.msra.mxu0 %v3106
      %3153 = vmatprep.subr.bf16.mxu0 0
      %3154 = vmatpush1.bf16.msra.mxu0 %v3107
      %3155 = vmatprep.subr.bf16.mxu0 0
      %3156 = vmatpush1.bf16.msra.mxu0 %v3108
      %3157 = vmatprep.subr.bf16.mxu0 0
      %3158 = vmatpush1.bf16.msra.mxu0 %v3109
      %3159 = vmatprep.subr.bf16.mxu0 0
      %3160 = vmatpush1.bf16.msra.mxu0 %v3110
      %3161 = vmatprep.subr.bf16.mxu0 0
      %3162 = vmatpush1.bf16.msra.mxu0 %v3111
      %3163 = vmatprep.subr.bf16.mxu0 0
      %3164 = vmatpush1.bf16.msra.mxu0 %v3112
      %3165 = vmatprep.subr.bf16.mxu0 0
      %3166 = vmatpush1.bf16.msra.mxu0 %v3113
      %3167 = vmatprep.subr.bf16.mxu0 0
      %3168 = vmatpush1.bf16.msra.mxu0 %v3114
      %3169 = vmatprep.subr.bf16.mxu0 0
      %3170 = vmatpush1.bf16.msra.mxu0 %v3115
      %3171 = vmatprep.subr.bf16.mxu0 0
      %3172 = vmatpush1.bf16.msra.mxu0 %v3116
      %3173 = vmatprep.subr.bf16.mxu0 0
      %3174 = vmatpush1.bf16.msra.mxu0 %v3117
      %3175 = vmatprep.subr.bf16.mxu0 0
      %3176 = vmatpush1.bf16.msra.mxu0 %v3118
      %3177 = vmatprep.subr.bf16.mxu0 0
      %3178 = vmatpush1.bf16.msra.mxu0 %v3119
      %3179 = vmatprep.subr.bf16.mxu0 0
      %3180 = vmatpush1.bf16.msra.mxu0 %v3120
      %3181 = vmatprep.mubr.bf16.mxu0 %v2920
      %3182 = vmatmul.mubr.bf16.gmra.mrb[0].mxu0 %v2908
      %v3183 = vpop.f32.mrb[0].mxu0
      %v3184 = vadd.f32 0.0, %v3183
      %v3185 = vpop.f32.mrb[0].mxu0
      %v3186 = vpop.f32.mrb[0].mxu0
      %v3187 = vadd.f32 0.0, %v3186
      %v3188 = vpop.f32.mrb[0].mxu0
      %3189 = vmatprep.mubr.bf16.mxu0 %v2923
      %3190 = vmatmul.mubr.bf16.gmra.mrb[0].mxu0 %v2911
      %v3191 = vpop.f32.mrb[0].mxu0
      %v3192 = vadd.f32 0.0, %v3191
      %v3193 = vpop.f32.mrb[0].mxu0
      %v3194 = vpop.f32.mrb[0].mxu0
      %v3195 = vadd.f32 0.0, %v3194
      %v3196 = vpop.f32.mrb[0].mxu0
      %3197 = vmatprep.mubr.bf16.mxu0 %v2926
      %3198 = vmatmul.mubr.bf16.gmra.mrb[0].mxu0 %v2914
      %v3199 = vpop.f32.mrb[0].mxu0
      %v3200 = vadd.f32 0.0, %v3199
      %v3201 = vpop.f32.mrb[0].mxu0
      %v3202 = vpop.f32.mrb[0].mxu0
      %v3203 = vadd.f32 0.0, %v3202
      %v3204 = vpop.f32.mrb[0].mxu0
      %3205 = vmatprep.mubr.bf16.mxu0 %v2929
      %3206 = vmatmul.mubr.bf16.gmra.mrb[0].mxu0 %v2917
      %v3207 = vpop.f32.mrb[0].mxu0
      %v3208 = vadd.f32 0.0, %v3207
      %v3209 = vpop.f32.mrb[0].mxu0
      %v3210 = vpop.f32.mrb[0].mxu0
      %v3211 = vadd.f32 0.0, %v3210
      %v3212 = vpop.f32.mrb[0].mxu0
      %3213 = vdwg.mxu0
      %3214 = vmatprep.subr.bf16.mxu0 0
      %3215 = vmatpush1.bf16.msra.mxu0 %v3121
      %3216 = vmatprep.subr.bf16.mxu0 0
      %3217 = vmatpush1.bf16.msra.mxu0 %v3122
      %3218 = vmatprep.subr.bf16.mxu0 0
      %3219 = vmatpush1.bf16.msra.mxu0 0
      %3220 = vmatprep.subr.bf16.mxu0 0
      %3221 = vmatpush1.bf16.msra.mxu0 0
      %3222 = vmatprep.subr.bf16.mxu0 0
      %3223 = vmatpush1.bf16.msra.mxu0 0
      %3224 = vmatprep.subr.bf16.mxu0 0
      %3225 = vmatpush1.bf16.msra.mxu0 0
      %3226 = vmatprep.subr.bf16.mxu0 0
      %3227 = vmatpush1.bf16.msra.mxu0 0
      %3228 = vmatprep.subr.bf16.mxu0 0
      %3229 = vmatpush1.bf16.msra.mxu0 0
      %3230 = vmatprep.subr.bf16.mxu0 0
      %3231 = vmatpush1.bf16.msra.mxu0 0
      %3232 = vmatprep.subr.bf16.mxu0 0
      %3233 = vmatpush1.bf16.msra.mxu0 0
      %3234 = vmatprep.subr.bf16.mxu0 0
      %3235 = vmatpush1.bf16.msra.mxu0 0
      %3236 = vmatprep.subr.bf16.mxu0 0
      %3237 = vmatpush1.bf16.msra.mxu0 0
      %3238 = vmatprep.subr.bf16.mxu0 0
      %3239 = vmatpush1.bf16.msra.mxu0 0
      %3240 = vmatprep.subr.bf16.mxu0 0
      %3241 = vmatpush1.bf16.msra.mxu0 0
      %3242 = vmatprep.subr.bf16.mxu0 0
      %3243 = vmatpush1.bf16.msra.mxu0 0
      %3244 = vmatprep.subr.bf16.mxu0 0
      %3245 = vmatpush1.bf16.msra.mxu0 0
      %3246 = vmatprep.mubr.bf16.mxu0 0
      %3247 = vmatmul.mubr.bf16.gmra.mrb[0].mxu0 %v3141
      %v3248 = vpop.f32.mrb[0].mxu0
      %v3249 = vadd.f32 %v3184, %v3248
      %v3250 = vpop.f32.mrb[0].mxu0
      %v3251 = vpop.f32.mrb[0].mxu0
      %v3252 = vadd.f32 %v3187, %v3251
      %v3253 = vpop.f32.mrb[0].mxu0
      %3254 = vmatprep.mubr.bf16.mxu0 0
      %3255 = vmatmul.mubr.bf16.gmra.mrb[0].mxu0 %v3143
      %v3256 = vpop.f32.mrb[0].mxu0
      %v3257 = vadd.f32 %v3192, %v3256
      %v3258 = vpop.f32.mrb[0].mxu0
      %v3259 = vpop.f32.mrb[0].mxu0
      %v3260 = vadd.f32 %v3195, %v3259
      %v3261 = vpop.f32.mrb[0].mxu0
      %3262 = vmatprep.mubr.bf16.mxu0 0
      %3263 = vmatmul.mubr.bf16.gmra.mrb[0].mxu0 %v3145
      %v3264 = vpop.f32.mrb[0].mxu0
      %v3265 = vadd.f32 %v3200, %v3264
      %v3266 = vpop.f32.mrb[0].mxu0
      %v3267 = vpop.f32.mrb[0].mxu0
      %v3268 = vadd.f32 %v3203, %v3267
      %v3269 = vpop.f32.mrb[0].mxu0
      %3270 = vmatprep.mubr.bf16.mxu0 0
      %3271 = vmatmul.mubr.bf16.gmra.mrb[0].mxu0 %v3147
      %v3272 = vpop.f32.mrb[0].mxu0
      %v3273 = vadd.f32 %v3208, %v3272
      %v3274 = vpop.f32.mrb[0].mxu0
      %v3275 = vpop.f32.mrb[0].mxu0
      %v3276 = vadd.f32 %v3211, %v3275
      %v3277 = vpop.f32.mrb[0].mxu0
      %3278 = vdwg.mxu0
      %v3279 = vsel %vm1138, %v2966, 0
      %v3281 = vsel %vm1138, %v2968, 0
      %v3283 = vsel %vm1138, %v2970, 0
      %v3285 = vsel %vm1138, %v2972, 0
      %3287 = vmatprep.subr.bf16.mxu0 0
      %3288 = vmatpush1.bf16.msra.mxu0 %v3105
      %3289 = vmatprep.subr.bf16.mxu0 0
      %3290 = vmatpush1.bf16.msra.mxu0 %v3106
      %3291 = vmatprep.subr.bf16.mxu0 0
      %3292 = vmatpush1.bf16.msra.mxu0 %v3107
      %3293 = vmatprep.subr.bf16.mxu0 0
      %3294 = vmatpush1.bf16.msra.mxu0 %v3108
      %3295 = vmatprep.subr.bf16.mxu0 0
      %3296 = vmatpush1.bf16.msra.mxu0 %v3109
      %3297 = vmatprep.subr.bf16.mxu0 0
      %3298 = vmatpush1.bf16.msra.mxu0 %v3110
      %3299 = vmatprep.subr.bf16.mxu0 0
      %3300 = vmatpush1.bf16.msra.mxu0 %v3111
      %3301 = vmatprep.subr.bf16.mxu0 0
      %3302 = vmatpush1.bf16.msra.mxu0 %v3112
      %3303 = vmatprep.subr.bf16.mxu0 0
      %3304 = vmatpush1.bf16.msra.mxu0 %v3113
      %3305 = vmatprep.subr.bf16.mxu0 0
      %3306 = vmatpush1.bf16.msra.mxu0 %v3114
      %3307 = vmatprep.subr.bf16.mxu0 0
      %3308 = vmatpush1.bf16.msra.mxu0 %v3115
      %3309 = vmatprep.subr.bf16.mxu0 0
      %3310 = vmatpush1.bf16.msra.mxu0 %v3116
      %3311 = vmatprep.subr.bf16.mxu0 0
      %3312 = vmatpush1.bf16.msra.mxu0 %v3117
      %3313 = vmatprep.subr.bf16.mxu0 0
      %3314 = vmatpush1.bf16.msra.mxu0 %v3118
      %3315 = vmatprep.subr.bf16.mxu0 0
      %3316 = vmatpush1.bf16.msra.mxu0 %v3119
      %3317 = vmatprep.subr.bf16.mxu0 0
      %3318 = vmatpush1.bf16.msra.mxu0 %v3120
      %3319 = vmatprep.mubr.bf16.mxu0 %v2986
      %3320 = vmatmul.mubr.bf16.gmra.mrb[0].mxu0 %v2974
      %v3321 = vpop.f32.mrb[0].mxu0
      %v3322 = vadd.f32 0.0, %v3321
      %v3323 = vpop.f32.mrb[0].mxu0
      %v3324 = vpop.f32.mrb[0].mxu0
      %v3325 = vadd.f32 0.0, %v3324
      %v3326 = vpop.f32.mrb[0].mxu0
      %3327 = vmatprep.mubr.bf16.mxu0 %v2989
      %3328 = vmatmul.mubr.bf16.gmra.mrb[0].mxu0 %v2977
      %v3329 = vpop.f32.mrb[0].mxu0
      %v3330 = vadd.f32 0.0, %v3329
      %v3331 = vpop.f32.mrb[0].mxu0
      %v3332 = vpop.f32.mrb[0].mxu0
      %v3333 = vadd.f32 0.0, %v3332
      %v3334 = vpop.f32.mrb[0].mxu0
      %3335 = vmatprep.mubr.bf16.mxu0 %v2992
      %3336 = vmatmul.mubr.bf16.gmra.mrb[0].mxu0 %v2980
      %v3337 = vpop.f32.mrb[0].mxu0
      %v3338 = vadd.f32 0.0, %v3337
      %v3339 = vpop.f32.mrb[0].mxu0
      %v3340 = vpop.f32.mrb[0].mxu0
      %v3341 = vadd.f32 0.0, %v3340
      %v3342 = vpop.f32.mrb[0].mxu0
      %3343 = vmatprep.mubr.bf16.mxu0 %v2995
      %3344 = vmatmul.mubr.bf16.gmra.mrb[0].mxu0 %v2983
      %v3345 = vpop.f32.mrb[0].mxu0
      %v3346 = vadd.f32 0.0, %v3345
      %v3347 = vpop.f32.mrb[0].mxu0
      %v3348 = vpop.f32.mrb[0].mxu0
      %v3349 = vadd.f32 0.0, %v3348
      %v3350 = vpop.f32.mrb[0].mxu0
      %3351 = vdwg.mxu0
      %3352 = vmatprep.subr.bf16.mxu0 0
      %3353 = vmatpush1.bf16.msra.mxu0 %v3121
      %3354 = vmatprep.subr.bf16.mxu0 0
      %3355 = vmatpush1.bf16.msra.mxu0 %v3122
      %3356 = vmatprep.subr.bf16.mxu0 0
      %3357 = vmatpush1.bf16.msra.mxu0 0
      %3358 = vmatprep.subr.bf16.mxu0 0
      %3359 = vmatpush1.bf16.msra.mxu0 0
      %3360 = vmatprep.subr.bf16.mxu0 0
      %3361 = vmatpush1.bf16.msra.mxu0 0
      %3362 = vmatprep.subr.bf16.mxu0 0
      %3363 = vmatpush1.bf16.msra.mxu0 0
      %3364 = vmatprep.subr.bf16.mxu0 0
      %3365 = vmatpush1.bf16.msra.mxu0 0
      %3366 = vmatprep.subr.bf16.mxu0 0
      %3367 = vmatpush1.bf16.msra.mxu0 0
      %3368 = vmatprep.subr.bf16.mxu0 0
      %3369 = vmatpush1.bf16.msra.mxu0 0
      %3370 = vmatprep.subr.bf16.mxu0 0
      %3371 = vmatpush1.bf16.msra.mxu0 0
      %3372 = vmatprep.subr.bf16.mxu0 0
      %3373 = vmatpush1.bf16.msra.mxu0 0
      %3374 = vmatprep.subr.bf16.mxu0 0
      %3375 = vmatpush1.bf16.msra.mxu0 0
      %3376 = vmatprep.subr.bf16.mxu0 0
      %3377 = vmatpush1.bf16.msra.mxu0 0
      %3378 = vmatprep.subr.bf16.mxu0 0
      %3379 = vmatpush1.bf16.msra.mxu0 0
      %3380 = vmatprep.subr.bf16.mxu0 0
      %3381 = vmatpush1.bf16.msra.mxu0 0
      %3382 = vmatprep.subr.bf16.mxu0 0
      %3383 = vmatpush1.bf16.msra.mxu0 0
      %3384 = vmatprep.mubr.bf16.mxu0 0
      %3385 = vmatmul.mubr.bf16.gmra.mrb[0].mxu0 %v3279
      %v3386 = vpop.f32.mrb[0].mxu0
      %v3387 = vadd.f32 %v3322, %v3386
      %v3388 = vpop.f32.mrb[0].mxu0
      %v3389 = vpop.f32.mrb[0].mxu0
      %v3390 = vadd.f32 %v3325, %v3389
      %v3391 = vpop.f32.mrb[0].mxu0
      %3392 = vmatprep.mubr.bf16.mxu0 0
      %3393 = vmatmul.mubr.bf16.gmra.mrb[0].mxu0 %v3281
      %v3394 = vpop.f32.mrb[0].mxu0
      %v3395 = vadd.f32 %v3330, %v3394
      %v3396 = vpop.f32.mrb[0].mxu0
      %v3397 = vpop.f32.mrb[0].mxu0
      %v3398 = vadd.f32 %v3333, %v3397
      %v3399 = vpop.f32.mrb[0].mxu0
      %3400 = vmatprep.mubr.bf16.mxu0 0
      %3401 = vmatmul.mubr.bf16.gmra.mrb[0].mxu0 %v3283
      %v3402 = vpop.f32.mrb[0].mxu0
      %v3403 = vadd.f32 %v3338, %v3402
      %v3404 = vpop.f32.mrb[0].mxu0
      %v3405 = vpop.f32.mrb[0].mxu0
      %v3406 = vadd.f32 %v3341, %v3405
      %v3407 = vpop.f32.mrb[0].mxu0
      %3408 = vmatprep.mubr.bf16.mxu0 0
      %3409 = vmatmul.mubr.bf16.gmra.mrb[0].mxu0 %v3285
      %v3410 = vpop.f32.mrb[0].mxu0
      %v3411 = vadd.f32 %v3346, %v3410
      %v3412 = vpop.f32.mrb[0].mxu0
      %v3413 = vpop.f32.mrb[0].mxu0
      %v3414 = vadd.f32 %v3349, %v3413
      %v3415 = vpop.f32.mrb[0].mxu0
      %3416 = vdwg.mxu0
      %v3417 = vld [vmem:[%s4] sm:$0x1]
      %v3419 = vlaneseq
      %v3420 = vshrl.u32 %v3419, 7
      %v3421 = vsub.s32 0, %v3420
      %v3422 = vrot.slane %v3417, %v3421
      %v3424 = vmul.f32 %v3249, %v3422
      %v3425 = vmul.f32 %v3252, %v3422
      %v3426 = vmul.f32 %v3257, %v3422
      %v3427 = vmul.f32 %v3260, %v3422
      %v3428 = vmul.f32 %v3265, %v3422
      %v3429 = vmul.f32 %v3268, %v3422
      %v3430 = vmul.f32 %v3273, %v3422
      %v3431 = vmul.f32 %v3276, %v3422
      %v3432 = vld [vmem:[%s5] sm:$0x1]
      %v3434 = vlaneseq
      %v3435 = vshrl.u32 %v3434, 7
      %v3436 = vsub.s32 0, %v3435
      %v3437 = vrot.slane %v3432, %v3436
      %v3439 = vadd.f32 %v3424, %v3437
      %v3440 = vadd.f32 %v3425, %v3437
      %v3441 = vadd.f32 %v3426, %v3437
      %v3442 = vadd.f32 %v3427, %v3437
      %v3443 = vadd.f32 %v3428, %v3437
      %v3444 = vadd.f32 %v3429, %v3437
      %v3445 = vadd.f32 %v3430, %v3437
      %v3446 = vadd.f32 %v3431, %v3437
      %v3447 = vmul.f32 %v3387, %v3422
      %v3448 = vmul.f32 %v3390, %v3422
      %v3449 = vmul.f32 %v3395, %v3422
      %v3450 = vmul.f32 %v3398, %v3422
      %v3451 = vmul.f32 %v3403, %v3422
      %v3452 = vmul.f32 %v3406, %v3422
      %v3453 = vmul.f32 %v3411, %v3422
      %v3454 = vmul.f32 %v3414, %v3422
      %v3455 = vadd.f32 %v3447, %v3437
      %v3456 = vadd.f32 %v3448, %v3437
      %v3457 = vadd.f32 %v3449, %v3437
      %v3458 = vadd.f32 %v3450, %v3437
      %v3459 = vadd.f32 %v3451, %v3437
      %v3460 = vadd.f32 %v3452, %v3437
      %v3461 = vadd.f32 %v3453, %v3437
      %v3462 = vadd.f32 %v3454, %v3437
      %3463 = vst.msk [vmem:[%s275] sm:$0xff] %vm1138, %v3439
      %3464 = vst.msk [vmem:[%s275 + $0x8] sm:$0xff] %vm1138, %v3440
      %3465 = vst.msk [vmem:[%s275 + $0x10] sm:$0xff] %vm1138, %v3455
      %3466 = vst.msk [vmem:[%s275 + $0x18] sm:$0xff] %vm1138, %v3456
      %3467 = vst.msk [vmem:[%s275 + $0x20] sm:$0xff] %vm1138, %v3441
      %3468 = vst.msk [vmem:[%s275 + $0x28] sm:$0xff] %vm1138, %v3442
      %3469 = vst.msk [vmem:[%s275 + $0x30] sm:$0xff] %vm1138, %v3457
      %3470 = vst.msk [vmem:[%s275 + $0x38] sm:$0xff] %vm1138, %v3458
      %3471 = vst.msk [vmem:[%s275 + $0x40] sm:$0xff] %vm1138, %v3443
      %3472 = vst.msk [vmem:[%s275 + $0x48] sm:$0xff] %vm1138, %v3444
      %3473 = vst.msk [vmem:[%s275 + $0x50] sm:$0xff] %vm1138, %v3459
      %3474 = vst.msk [vmem:[%s275 + $0x58] sm:$0xff] %vm1138, %v3460
      %3475 = vst.msk [vmem:[%s275 + $0x60] sm:$0xff] %vm1138, %v3445
      %3476 = vst.msk [vmem:[%s275 + $0x68] sm:$0xff] %vm1138, %v3446
      %3477 = vst.msk [vmem:[%s275 + $0x70] sm:$0xff] %vm1138, %v3461
      %3478 = vst.msk [vmem:[%s275 + $0x78] sm:$0xff] %vm1138, %v3462
      %s3479 = smul.u32 8, %s22
      %p3480 = scmp.lt.s32.totalorder %s21, 1
      %s3481 = scalar_select %p3480, %s21, 1
      %p3482 = scmp.lt.s32.totalorder %s3479, 31
      %s3483 = scalar_select %p3482, %s3479, 31
      %s3484 = smul.addr %s3483, 2
      %s3485 = smul.addr %s3481, 64
      %s3486 = sadd.s32 %s3484, %s3485
      %s3487 = smul.addr %s3486, 8
      %s3488 = scalar_lea.vmem %s6, %s3487
      // Predicated region
      $region49: #{upsampling_module_forward.2} parent=43 // pred_check
        %p3489 = pneg %p180
      $region50: #{upsampling_module_forward.2} parent=43 // pred_check_branch
        %3491 = sbr.rel (%p3489) target = $region52
      $region51: #{upsampling_module_forward.2} parent=43 // pred_region
        %s3492 = smul.u32 8, %s22
      $region52: #{upsampling_module_forward.2} parent=43 // pred_fallthru
        _
    $region44: #{upsampling_module_forward.2} parent=5 // pred_fallthru
      _
    %p3493 = scmp.le.s32.totalorder 2, %s12
    // Predicated region
    $region53: #{upsampling_module_forward.2} parent=5 // pred_check
      %p3494 = pneg %p3493
    $region54: #{upsampling_module_forward.2} parent=5 // pred_check_branch
      %3496 = sbr.rel (%p3494) target = $region56
    $region55: #{upsampling_module_forward.2} parent=5 // pred_region
      %s3497 = ssub.s32 %s12, 2
      // Predicated region
      $region57: #{upsampling_module_forward.2} parent=55 // pred_check
        %p3498 = pneg %p186
      $region58: #{upsampling_module_forward.2} parent=55 // pred_check_branch
        %3500 = sbr.rel (%p3498) target = $region60
      $region59: #{upsampling_module_forward.2} parent=55 // pred_region
        %s3501 = smul.u32 8, %s24
        %p3502 = scmp.lt.s32.totalorder %s23, 1
        %s3503 = scalar_select %p3502, %s23, 1
        %p3504 = scmp.lt.s32.totalorder %s3501, 31
        %s3505 = scalar_select %p3504, %s3501, 31
        %s3506 = smul.addr %s3505, 2
        %s3507 = smul.addr %s3503, 64
        %s3508 = sadd.s32 %s3506, %s3507
        %s3509 = smul.addr %s3508, 8
        %s3510 = scalar_lea.vmem %s6, %s3509
      $region60: #{upsampling_module_forward.2} parent=55 // pred_fallthru
        _
    $region56: #{upsampling_module_forward.2} parent=5 // pred_fallthru
      _
  $region6: #{upsampling_module_forward.2} parent=0 // loop_footer
    %s16 = sadd.s32 1, %s12
  $region7: #{upsampling_module_forward.2} parent=0 // loop_footer_branch
    %11 = sbr.rel target = $region3
  $region8: #{upsampling_module_forward.2} parent=0 // loop_exit
    _

// kernel: upsampling_module_forward.3
$region0: #{upsampling_module_forward.3}
  #allocation0 [shape = 'u32[]', space=smem, size = 0x4, offset = 0x4, fixed_abs, tag = 'smem constant byte address 0x4 - core index']
  #allocation1 [shape = 'u32[144,128]{1,0:T(1,128)}', space=vmem, size = 0x12000, scoped, tag = 'internal scratch']
  #allocation2 [shape = 'f32[40,40,16]{2,1,0:T(8,128)}', space=vmem, size = 0xc8000, scoped, tag = 'scratch operand']
  #allocation3 [shape = 'f32[40,40,16]{2,1,0:T(8,128)}', space=vmem, size = 0xc8000, scoped, tag = 'scratch operand']
  %s0 = inlined_call_operand.vmem [shape: f32[2,32,32,16], index: 0, kind: input, shape index: {}]
  %s1 = inlined_call_operand.vmem [shape: f32[2,32,32,16], index: 1, kind: input, shape index: {}]
  %s2 = inlined_call_operand.vmem [shape: f32[2,32,32,16], index: 2, kind: output, shape index: {}]
  %s3 = sld [smem:[#allocation0]]
  $region45: #{upsampling_module_forward.3} parent=0
    _
  %s5 = ssub.s32 1, %s3
  %s6 = scalar_select 0, %s5, %s3
  loop: start=0, step=1, limit=10
  $region2: #{upsampling_module_forward.3} parent=0 // loop_pre_header
    _
  $region3: #{upsampling_module_forward.3} parent=0 // loop_header
    %s8 = sphi 0, %s12
    %p9 = scmp.ge.s32.totalorder %s8, 10
    %s15 = sphi 0, %s27
    %s16 = sphi 0, %s23
    %s17 = sphi 0, %s15
    %s18 = sphi 0, %s16
    %s19 = sphi 0, %s17
    %s20 = sphi 0, %s18
    %s30 = sphi 0, %s32
    %s33 = sphi 0, %s30
    %s34 = sphi 0, %s33
    %s50 = sphi 0, %s34
    %s56 = sphi 0, %s58
    %s59 = sphi 0, %s56
    %s60 = sphi 0, %s59
    %s76 = sphi 0, %s60
    %s84 = sphi 0, %s86
    %s87 = sphi 0, %s84
    %s88 = sphi 0, %s87
    %s104 = sphi 0, %s88
  $region4: #{upsampling_module_forward.3} parent=0 // loop_header_branch
    %11 = sbr.rel (%p9) target = $region8
  $region5: #{upsampling_module_forward.3} parent=0 // loop_body
    %s13 = ssub.s32 %s8, 1
    %s14 = ssub.s32 %s8, 2
    %s21 = sadd.s32 1, %s16
    %p22 = scmp.ge.s32.totalorder %s21, 4
    %s23 = scalar_select %p22, 0, %s21
    %s24 = sadd.s32 1, %s15
    %s25 = scalar_select %p22, %s24, %s15
    %p26 = scmp.ge.s32.totalorder %s25, 2
    %s27 = scalar_select %p26, 0, %s25
    %s28 = ssub.s32 %s15, %s27
    %p29 = scmp.eq.s32.totalorder %s28, 0
    %s31 = sadd.s32 %s30, 1
    %s32 = scalar_select %p29, %s30, %s31
    %p35 = pneg %p29
    %p36 = scmp.eq.s32.totalorder %s8, 7
    %p37 = por %p35, %p36
    %p38 = scmp.ne.s32.totalorder %s30, %s33
    %p39 = scmp.eq.s32.totalorder %s8, 0
    %p40 = por %p38, %p39
    %p41 = scmp.ne.s32.totalorder %s30, %s33
    %p42 = scmp.eq.s32.totalorder %s13, 7
    %p43 = por %p41, %p42
    %p44 = scmp.ne.s32.totalorder %s33, %s34
    %p45 = scmp.eq.s32.totalorder %s13, 0
    %p46 = por %p44, %p45
    %p47 = scmp.ne.s32.totalorder %s33, %s34
    %p48 = scmp.eq.s32.totalorder %s14, 7
    %p49 = por %p47, %p48
    %p51 = scmp.ne.s32.totalorder %s34, %s50
    %p52 = scmp.eq.s32.totalorder %s14, 0
    %p53 = por %p51, %p52
    %s54 = ssub.s32 %s15, %s27
    %p55 = scmp.eq.s32.totalorder %s54, 0
    %s57 = sadd.s32 %s56, 1
    %s58 = scalar_select %p55, %s56, %s57
    %p61 = pneg %p55
    %p62 = scmp.eq.s32.totalorder %s8, 7
    %p63 = por %p61, %p62
    %p64 = scmp.ne.s32.totalorder %s56, %s59
    %p65 = scmp.eq.s32.totalorder %s8, 0
    %p66 = por %p64, %p65
    %p67 = scmp.ne.s32.totalorder %s56, %s59
    %p68 = scmp.eq.s32.totalorder %s13, 7
    %p69 = por %p67, %p68
    %p70 = scmp.ne.s32.totalorder %s59, %s60
    %p71 = scmp.eq.s32.totalorder %s13, 0
    %p72 = por %p70, %p71
    %p73 = scmp.ne.s32.totalorder %s59, %s60
    %p74 = scmp.eq.s32.totalorder %s14, 7
    %p75 = por %p73, %p74
    %p77 = scmp.ne.s32.totalorder %s60, %s76
    %p78 = scmp.eq.s32.totalorder %s14, 0
    %p79 = por %p77, %p78
    %s80 = ssub.s32 %s15, %s27
    %s81 = ssub.s32 %s16, %s23
    %s82 = sor.u32 %s80, %s81
    %p83 = scmp.eq.s32.totalorder %s82, 0
    %s85 = sadd.s32 %s84, 1
    %s86 = scalar_select %p83, %s84, %s85
    %p89 = pneg %p83
    %p90 = scmp.eq.s32.totalorder %s8, 7
    %p91 = por %p89, %p90
    %p92 = scmp.ne.s32.totalorder %s84, %s87
    %p93 = scmp.eq.s32.totalorder %s8, 0
    %p94 = por %p92, %p93
    %p95 = scmp.ne.s32.totalorder %s84, %s87
    %p96 = scmp.eq.s32.totalorder %s13, 7
    %p97 = por %p95, %p96
    %p98 = scmp.ne.s32.totalorder %s87, %s88
    %p99 = scmp.eq.s32.totalorder %s13, 0
    %p100 = por %p98, %p99
    %p101 = scmp.ne.s32.totalorder %s87, %s88
    %p102 = scmp.eq.s32.totalorder %s14, 7
    %p103 = por %p101, %p102
    %p105 = scmp.ne.s32.totalorder %s88, %s104
    %p106 = scmp.eq.s32.totalorder %s14, 0
    %p107 = por %p105, %p106
    %p108 = scmp.le.s32.totalorder 1, %s8
    %p109 = scmp.lt.s32.totalorder %s8, 9
    %p110 = pnand %p108, %p109
    %p111 = pneg %p110
    // Predicated region
    $region9: #{upsampling_module_forward.3} parent=5 // pred_check
      _
    $region10: #{upsampling_module_forward.3} parent=5 // pred_check_branch
      %113 = sbr.rel (%p110) target = $region12
    $region11: #{upsampling_module_forward.3} parent=5 // pred_region
      %s114 = ssub.s32 %s8, 1
    $region12: #{upsampling_module_forward.3} parent=5 // pred_fallthru
      _
    %p115 = scmp.lt.s32.totalorder %s8, 8
    // Predicated region
    $region13: #{upsampling_module_forward.3} parent=5 // pred_check
      %p116 = pneg %p115
    $region14: #{upsampling_module_forward.3} parent=5 // pred_check_branch
      %118 = sbr.rel (%p116) target = $region16
    $region15: #{upsampling_module_forward.3} parent=5 // pred_region
      // Predicated region
      $region17: #{upsampling_module_forward.3} parent=15 // pred_check
        %p119 = pneg %p40
      $region18: #{upsampling_module_forward.3} parent=15 // pred_check_branch
        %121 = sbr.rel (%p119) target = $region20
      $region19: #{upsampling_module_forward.3} parent=15 // pred_region
        %p122 = scmp.lt.s32.totalorder %s15, 1
        %s123 = scalar_select %p122, %s15, 1
        %s124 = smul.addr %s123, 128
        %s125 = smul.addr %s124, 8
        %s126 = scalar_lea.vmem %s0, %s125
      $region20: #{upsampling_module_forward.3} parent=15 // pred_fallthru
        _
      // Predicated region
      $region21: #{upsampling_module_forward.3} parent=15 // pred_check
        %p127 = pneg %p66
      $region22: #{upsampling_module_forward.3} parent=15 // pred_check_branch
        %129 = sbr.rel (%p127) target = $region24
      $region23: #{upsampling_module_forward.3} parent=15 // pred_region
        %p130 = scmp.lt.s32.totalorder %s15, 1
        %s131 = scalar_select %p130, %s15, 1
        %s132 = smul.addr %s131, 128
        %s133 = smul.addr %s132, 8
        %s134 = scalar_lea.vmem %s1, %s133
      $region24: #{upsampling_module_forward.3} parent=15 // pred_fallthru
        _
    $region16: #{upsampling_module_forward.3} parent=5 // pred_fallthru
      _
    %p135 = scmp.le.s32.totalorder 1, %s8
    %p136 = scmp.lt.s32.totalorder %s8, 9
    %p137 = pnand %p135, %p136
    %p138 = pneg %p137
    // Predicated region
    $region25: #{upsampling_module_forward.3} parent=5 // pred_check
      _
    $region26: #{upsampling_module_forward.3} parent=5 // pred_check_branch
      %140 = sbr.rel (%p137) target = $region28
    $region27: #{upsampling_module_forward.3} parent=5 // pred_region
      %s141 = ssub.s32 %s8, 1
      %p142 = scmp.lt.s32.totalorder %s17, 1
      %s143 = scalar_select %p142, %s17, 1
      %s144 = smul.addr %s143, 128
      %s145 = smul.addr %s144, 8
      %s146 = scalar_lea.vmem %s0, %s145
      %p147 = pneg %p46
      %p148 = pneg %p43
      %p149 = scmp.lt.s32.totalorder %s17, 1
      %s150 = scalar_select %p149, %s17, 1
      %s151 = smul.addr %s150, 128
      %s152 = smul.addr %s151, 8
      %s153 = scalar_lea.vmem %s1, %s152
      %p154 = pneg %p72
      %p155 = pneg %p69
      %p156 = pneg %p100
      %p157 = pneg %p97
      %s158 = smul.u32 8, %s18
      %p159 = scmp.lt.s32.totalorder %s17, 1
      %s160 = scalar_select %p159, %s17, 1
      %p161 = scmp.lt.s32.totalorder %s158, 31
      %s162 = scalar_select %p161, %s158, 31
      %s163 = smul.addr %s162, 4
      %s164 = smul.addr %s160, 128
      %s165 = sadd.s32 %s163, %s164
      %s166 = smul.addr %s165, 8
      %s167 = scalar_lea.vmem %s2, %s166
      %p168 = scmp.lt.s32.totalorder %s17, 1
      %s169 = scalar_select %p168, %s17, 1
      %s170 = smul.addr %s169, 128
      %s171 = smul.addr %s170, 8
      %s172 = scalar_lea.vmem %s0, %s171
      %p173 = scmp.lt.s32.totalorder %s17, 1
      %s174 = scalar_select %p173, %s17, 1
      %s175 = smul.addr %s174, 128
      %s176 = smul.addr %s175, 8
      %s177 = scalar_lea.vmem %s1, %s176
      %s178 = smul.u32 8, %s18
      %p179 = scmp.lt.s32.totalorder %s17, 1
      %s180 = scalar_select %p179, %s17, 1
      %p181 = scmp.lt.s32.totalorder %s178, 31
      %s182 = scalar_select %p181, %s178, 31
      %s183 = smul.addr %s182, 4
      %s184 = smul.addr %s180, 128
      %s185 = sadd.s32 %s183, %s184
      %s186 = smul.addr %s185, 8
      %s187 = scalar_lea.vmem %s2, %s186
      %s188 = smul.u32 8, %s18
      %p189 = scmp.eq.s32.totalorder %s18, 0
      // Predicated region
      $region29: #{upsampling_module_forward.3} parent=27 // pred_check
        %p190 = pneg %p189
      $region30: #{upsampling_module_forward.3} parent=27 // pred_check_branch
        %192 = sbr.rel (%p190) target = $region32
      $region31: #{upsampling_module_forward.3} parent=27 // pred_region
        %vm193 = vcmask 130048
        %194 = vst.msk [vmem:[#allocation2] sm:$0xff] %vm193, 0.0
        %195 = vst.msk [vmem:[#allocation2 + $0x8] sm:$0xff] %vm193, 0.0
        %196 = vst.msk [vmem:[#allocation2 + $0x10] sm:$0xff] %vm193, 0.0
        %197 = vst.msk [vmem:[#allocation2 + $0x18] sm:$0xff] %vm193, 0.0
        %198 = vst.msk [vmem:[#allocation2 + $0x20] sm:$0xff] %vm193, 0.0
        %199 = vst.msk [vmem:[#allocation2 + $0x28] sm:$0xff] %vm193, 0.0
        %200 = vst.msk [vmem:[#allocation2 + $0x30] sm:$0xff] %vm193, 0.0
        %201 = vst.msk [vmem:[#allocation2 + $0x38] sm:$0xff] %vm193, 0.0
        %202 = vst.msk [vmem:[#allocation2 + $0x40] sm:$0xff] %vm193, 0.0
        %203 = vst.msk [vmem:[#allocation2 + $0x48] sm:$0xff] %vm193, 0.0
        %204 = vst.msk [vmem:[#allocation2 + $0x50] sm:$0xff] %vm193, 0.0
        %205 = vst.msk [vmem:[#allocation2 + $0x58] sm:$0xff] %vm193, 0.0
        %206 = vst.msk [vmem:[#allocation2 + $0x60] sm:$0xff] %vm193, 0.0
        %207 = vst.msk [vmem:[#allocation2 + $0x68] sm:$0xff] %vm193, 0.0
        %208 = vst.msk [vmem:[#allocation2 + $0x70] sm:$0xff] %vm193, 0.0
        %209 = vst.msk [vmem:[#allocation2 + $0x78] sm:$0xff] %vm193, 0.0
        %210 = vst.msk [vmem:[#allocation2 + $0x80] sm:$0xff] %vm193, 0.0
        %211 = vst.msk [vmem:[#allocation2 + $0x88] sm:$0xff] %vm193, 0.0
        %212 = vst.msk [vmem:[#allocation2 + $0x90] sm:$0xff] %vm193, 0.0
        %213 = vst.msk [vmem:[#allocation2 + $0x98] sm:$0xff] %vm193, 0.0
        %214 = vst.msk [vmem:[#allocation2 + $0xa0] sm:$0xff] %vm193, 0.0
        %215 = vst.msk [vmem:[#allocation2 + $0xa8] sm:$0xff] %vm193, 0.0
        %216 = vst.msk [vmem:[#allocation2 + $0xb0] sm:$0xff] %vm193, 0.0
        %217 = vst.msk [vmem:[#allocation2 + $0xb8] sm:$0xff] %vm193, 0.0
        %218 = vst.msk [vmem:[#allocation2 + $0xc0] sm:$0xff] %vm193, 0.0
        %219 = vst.msk [vmem:[#allocation2 + $0xc8] sm:$0xff] %vm193, 0.0
        %220 = vst.msk [vmem:[#allocation2 + $0xd0] sm:$0xff] %vm193, 0.0
        %221 = vst.msk [vmem:[#allocation2 + $0xd8] sm:$0xff] %vm193, 0.0
        %222 = vst.msk [vmem:[#allocation2 + $0xe0] sm:$0xff] %vm193, 0.0
        %223 = vst.msk [vmem:[#allocation2 + $0xe8] sm:$0xff] %vm193, 0.0
        %224 = vst.msk [vmem:[#allocation2 + $0xf0] sm:$0xff] %vm193, 0.0
        %225 = vst.msk [vmem:[#allocation2 + $0xf8] sm:$0xff] %vm193, 0.0
        %226 = vst.msk [vmem:[#allocation2 + $0x100] sm:$0xff] %vm193, 0.0
        %227 = vst.msk [vmem:[#allocation2 + $0x108] sm:$0xff] %vm193, 0.0
        %228 = vst.msk [vmem:[#allocation2 + $0x110] sm:$0xff] %vm193, 0.0
        %229 = vst.msk [vmem:[#allocation2 + $0x118] sm:$0xff] %vm193, 0.0
        %230 = vst.msk [vmem:[#allocation2 + $0x120] sm:$0xff] %vm193, 0.0
        %231 = vst.msk [vmem:[#allocation2 + $0x128] sm:$0xff] %vm193, 0.0
        %232 = vst.msk [vmem:[#allocation2 + $0x130] sm:$0xff] %vm193, 0.0
        %233 = vst.msk [vmem:[#allocation2 + $0x138] sm:$0xff] %vm193, 0.0
        %234 = vst.msk [vmem:[#allocation2 + $0x140] sm:$0xff] %vm193, 0.0
        %235 = vst.msk [vmem:[#allocation2 + $0x148] sm:$0xff] %vm193, 0.0
        %236 = vst.msk [vmem:[#allocation2 + $0x150] sm:$0xff] %vm193, 0.0
        %237 = vst.msk [vmem:[#allocation2 + $0x158] sm:$0xff] %vm193, 0.0
        %238 = vst.msk [vmem:[#allocation2 + $0x160] sm:$0xff] %vm193, 0.0
        %239 = vst.msk [vmem:[#allocation2 + $0x168] sm:$0xff] %vm193, 0.0
        %240 = vst.msk [vmem:[#allocation2 + $0x170] sm:$0xff] %vm193, 0.0
        %241 = vst.msk [vmem:[#allocation2 + $0x178] sm:$0xff] %vm193, 0.0
        %242 = vst.msk [vmem:[#allocation2 + $0x180] sm:$0xff] %vm193, 0.0
        %243 = vst.msk [vmem:[#allocation2 + $0x188] sm:$0xff] %vm193, 0.0
        %244 = vst.msk [vmem:[#allocation2 + $0x190] sm:$0xff] %vm193, 0.0
        %245 = vst.msk [vmem:[#allocation2 + $0x198] sm:$0xff] %vm193, 0.0
        %246 = vst.msk [vmem:[#allocation2 + $0x1a0] sm:$0xff] %vm193, 0.0
        %247 = vst.msk [vmem:[#allocation2 + $0x1a8] sm:$0xff] %vm193, 0.0
        %248 = vst.msk [vmem:[#allocation2 + $0x1b0] sm:$0xff] %vm193, 0.0
        %249 = vst.msk [vmem:[#allocation2 + $0x1b8] sm:$0xff] %vm193, 0.0
        %250 = vst.msk [vmem:[#allocation2 + $0x1c0] sm:$0xff] %vm193, 0.0
        %251 = vst.msk [vmem:[#allocation2 + $0x1c8] sm:$0xff] %vm193, 0.0
        %252 = vst.msk [vmem:[#allocation2 + $0x1d0] sm:$0xff] %vm193, 0.0
        %253 = vst.msk [vmem:[#allocation2 + $0x1d8] sm:$0xff] %vm193, 0.0
        %254 = vst.msk [vmem:[#allocation2 + $0x1e0] sm:$0xff] %vm193, 0.0
        %255 = vst.msk [vmem:[#allocation2 + $0x1e8] sm:$0xff] %vm193, 0.0
        %256 = vst.msk [vmem:[#allocation2 + $0x1f0] sm:$0xff] %vm193, 0.0
        %257 = vst.msk [vmem:[#allocation2 + $0x1f8] sm:$0xff] %vm193, 0.0
        %258 = vst.msk [vmem:[#allocation2 + $0x200] sm:$0xff] %vm193, 0.0
        %259 = vst.msk [vmem:[#allocation2 + $0x208] sm:$0xff] %vm193, 0.0
        %260 = vst.msk [vmem:[#allocation2 + $0x210] sm:$0xff] %vm193, 0.0
        %261 = vst.msk [vmem:[#allocation2 + $0x218] sm:$0xff] %vm193, 0.0
        %262 = vst.msk [vmem:[#allocation2 + $0x220] sm:$0xff] %vm193, 0.0
        %263 = vst.msk [vmem:[#allocation2 + $0x228] sm:$0xff] %vm193, 0.0
        %264 = vst.msk [vmem:[#allocation2 + $0x230] sm:$0xff] %vm193, 0.0
        %265 = vst.msk [vmem:[#allocation2 + $0x238] sm:$0xff] %vm193, 0.0
        %266 = vst.msk [vmem:[#allocation2 + $0x240] sm:$0xff] %vm193, 0.0
        %267 = vst.msk [vmem:[#allocation2 + $0x248] sm:$0xff] %vm193, 0.0
        %268 = vst.msk [vmem:[#allocation2 + $0x250] sm:$0xff] %vm193, 0.0
        %269 = vst.msk [vmem:[#allocation2 + $0x258] sm:$0xff] %vm193, 0.0
        %270 = vst.msk [vmem:[#allocation2 + $0x260] sm:$0xff] %vm193, 0.0
        %271 = vst.msk [vmem:[#allocation2 + $0x268] sm:$0xff] %vm193, 0.0
        %272 = vst.msk [vmem:[#allocation2 + $0x270] sm:$0xff] %vm193, 0.0
        %273 = vst.msk [vmem:[#allocation2 + $0x278] sm:$0xff] %vm193, 0.0
        %274 = vst.msk [vmem:[#allocation2 + $0x280] sm:$0xff] %vm193, 0.0
        %275 = vst.msk [vmem:[#allocation2 + $0x288] sm:$0xff] %vm193, 0.0
        %276 = vst.msk [vmem:[#allocation2 + $0x290] sm:$0xff] %vm193, 0.0
        %277 = vst.msk [vmem:[#allocation2 + $0x298] sm:$0xff] %vm193, 0.0
        %278 = vst.msk [vmem:[#allocation2 + $0x2a0] sm:$0xff] %vm193, 0.0
        %279 = vst.msk [vmem:[#allocation2 + $0x2a8] sm:$0xff] %vm193, 0.0
        %280 = vst.msk [vmem:[#allocation2 + $0x2b0] sm:$0xff] %vm193, 0.0
        %281 = vst.msk [vmem:[#allocation2 + $0x2b8] sm:$0xff] %vm193, 0.0
        %282 = vst.msk [vmem:[#allocation2 + $0x2c0] sm:$0xff] %vm193, 0.0
        %283 = vst.msk [vmem:[#allocation2 + $0x2c8] sm:$0xff] %vm193, 0.0
        %284 = vst.msk [vmem:[#allocation2 + $0x2d0] sm:$0xff] %vm193, 0.0
        %285 = vst.msk [vmem:[#allocation2 + $0x2d8] sm:$0xff] %vm193, 0.0
        %286 = vst.msk [vmem:[#allocation2 + $0x2e0] sm:$0xff] %vm193, 0.0
        %287 = vst.msk [vmem:[#allocation2 + $0x2e8] sm:$0xff] %vm193, 0.0
        %288 = vst.msk [vmem:[#allocation2 + $0x2f0] sm:$0xff] %vm193, 0.0
        %289 = vst.msk [vmem:[#allocation2 + $0x2f8] sm:$0xff] %vm193, 0.0
        %290 = vst.msk [vmem:[#allocation2 + $0x300] sm:$0xff] %vm193, 0.0
        %291 = vst.msk [vmem:[#allocation2 + $0x308] sm:$0xff] %vm193, 0.0
        %292 = vst.msk [vmem:[#allocation2 + $0x310] sm:$0xff] %vm193, 0.0
        %293 = vst.msk [vmem:[#allocation2 + $0x318] sm:$0xff] %vm193, 0.0
        %294 = vst.msk [vmem:[#allocation2 + $0x320] sm:$0xff] %vm193, 0.0
        %295 = vst.msk [vmem:[#allocation2 + $0x328] sm:$0xff] %vm193, 0.0
        %296 = vst.msk [vmem:[#allocation2 + $0x330] sm:$0xff] %vm193, 0.0
        %297 = vst.msk [vmem:[#allocation2 + $0x338] sm:$0xff] %vm193, 0.0
        %298 = vst.msk [vmem:[#allocation2 + $0x340] sm:$0xff] %vm193, 0.0
        %299 = vst.msk [vmem:[#allocation2 + $0x348] sm:$0xff] %vm193, 0.0
        %300 = vst.msk [vmem:[#allocation2 + $0x350] sm:$0xff] %vm193, 0.0
        %301 = vst.msk [vmem:[#allocation2 + $0x358] sm:$0xff] %vm193, 0.0
        %302 = vst.msk [vmem:[#allocation2 + $0x360] sm:$0xff] %vm193, 0.0
        %303 = vst.msk [vmem:[#allocation2 + $0x368] sm:$0xff] %vm193, 0.0
        %304 = vst.msk [vmem:[#allocation2 + $0x370] sm:$0xff] %vm193, 0.0
        %305 = vst.msk [vmem:[#allocation2 + $0x378] sm:$0xff] %vm193, 0.0
        %306 = vst.msk [vmem:[#allocation2 + $0x380] sm:$0xff] %vm193, 0.0
        %307 = vst.msk [vmem:[#allocation2 + $0x388] sm:$0xff] %vm193, 0.0
        %308 = vst.msk [vmem:[#allocation2 + $0x390] sm:$0xff] %vm193, 0.0
        %309 = vst.msk [vmem:[#allocation2 + $0x398] sm:$0xff] %vm193, 0.0
        %310 = vst.msk [vmem:[#allocation2 + $0x3a0] sm:$0xff] %vm193, 0.0
        %311 = vst.msk [vmem:[#allocation2 + $0x3a8] sm:$0xff] %vm193, 0.0
        %312 = vst.msk [vmem:[#allocation2 + $0x3b0] sm:$0xff] %vm193, 0.0
        %313 = vst.msk [vmem:[#allocation2 + $0x3b8] sm:$0xff] %vm193, 0.0
        %314 = vst.msk [vmem:[#allocation2 + $0x3c0] sm:$0xff] %vm193, 0.0
        %315 = vst.msk [vmem:[#allocation2 + $0x3c8] sm:$0xff] %vm193, 0.0
        %316 = vst.msk [vmem:[#allocation2 + $0x3d0] sm:$0xff] %vm193, 0.0
        %317 = vst.msk [vmem:[#allocation2 + $0x3d8] sm:$0xff] %vm193, 0.0
        %318 = vst.msk [vmem:[#allocation2 + $0x3e0] sm:$0xff] %vm193, 0.0
        %319 = vst.msk [vmem:[#allocation2 + $0x3e8] sm:$0xff] %vm193, 0.0
        %320 = vst.msk [vmem:[#allocation2 + $0x3f0] sm:$0xff] %vm193, 0.0
        %321 = vst.msk [vmem:[#allocation2 + $0x3f8] sm:$0xff] %vm193, 0.0
        %322 = vst.msk [vmem:[#allocation2 + $0x400] sm:$0xff] %vm193, 0.0
        %323 = vst.msk [vmem:[#allocation2 + $0x408] sm:$0xff] %vm193, 0.0
        %324 = vst.msk [vmem:[#allocation2 + $0x410] sm:$0xff] %vm193, 0.0
        %325 = vst.msk [vmem:[#allocation2 + $0x418] sm:$0xff] %vm193, 0.0
        %326 = vst.msk [vmem:[#allocation2 + $0x420] sm:$0xff] %vm193, 0.0
        %327 = vst.msk [vmem:[#allocation2 + $0x428] sm:$0xff] %vm193, 0.0
        %328 = vst.msk [vmem:[#allocation2 + $0x430] sm:$0xff] %vm193, 0.0
        %329 = vst.msk [vmem:[#allocation2 + $0x438] sm:$0xff] %vm193, 0.0
        %330 = vst.msk [vmem:[#allocation2 + $0x440] sm:$0xff] %vm193, 0.0
        %331 = vst.msk [vmem:[#allocation2 + $0x448] sm:$0xff] %vm193, 0.0
        %332 = vst.msk [vmem:[#allocation2 + $0x450] sm:$0xff] %vm193, 0.0
        %333 = vst.msk [vmem:[#allocation2 + $0x458] sm:$0xff] %vm193, 0.0
        %334 = vst.msk [vmem:[#allocation2 + $0x460] sm:$0xff] %vm193, 0.0
        %335 = vst.msk [vmem:[#allocation2 + $0x468] sm:$0xff] %vm193, 0.0
        %336 = vst.msk [vmem:[#allocation2 + $0x470] sm:$0xff] %vm193, 0.0
        %337 = vst.msk [vmem:[#allocation2 + $0x478] sm:$0xff] %vm193, 0.0
        %338 = vst.msk [vmem:[#allocation2 + $0x480] sm:$0xff] %vm193, 0.0
        %339 = vst.msk [vmem:[#allocation2 + $0x488] sm:$0xff] %vm193, 0.0
        %340 = vst.msk [vmem:[#allocation2 + $0x490] sm:$0xff] %vm193, 0.0
        %341 = vst.msk [vmem:[#allocation2 + $0x498] sm:$0xff] %vm193, 0.0
        %342 = vst.msk [vmem:[#allocation2 + $0x4a0] sm:$0xff] %vm193, 0.0
        %343 = vst.msk [vmem:[#allocation2 + $0x4a8] sm:$0xff] %vm193, 0.0
        %344 = vst.msk [vmem:[#allocation2 + $0x4b0] sm:$0xff] %vm193, 0.0
        %345 = vst.msk [vmem:[#allocation2 + $0x4b8] sm:$0xff] %vm193, 0.0
        %346 = vst.msk [vmem:[#allocation2 + $0x4c0] sm:$0xff] %vm193, 0.0
        %347 = vst.msk [vmem:[#allocation2 + $0x4c8] sm:$0xff] %vm193, 0.0
        %348 = vst.msk [vmem:[#allocation2 + $0x4d0] sm:$0xff] %vm193, 0.0
        %349 = vst.msk [vmem:[#allocation2 + $0x4d8] sm:$0xff] %vm193, 0.0
        %350 = vst.msk [vmem:[#allocation2 + $0x4e0] sm:$0xff] %vm193, 0.0
        %351 = vst.msk [vmem:[#allocation2 + $0x4e8] sm:$0xff] %vm193, 0.0
        %352 = vst.msk [vmem:[#allocation2 + $0x4f0] sm:$0xff] %vm193, 0.0
        %353 = vst.msk [vmem:[#allocation2 + $0x4f8] sm:$0xff] %vm193, 0.0
        %354 = vst.msk [vmem:[#allocation2 + $0x500] sm:$0xff] %vm193, 0.0
        %355 = vst.msk [vmem:[#allocation2 + $0x508] sm:$0xff] %vm193, 0.0
        %356 = vst.msk [vmem:[#allocation2 + $0x510] sm:$0xff] %vm193, 0.0
        %357 = vst.msk [vmem:[#allocation2 + $0x518] sm:$0xff] %vm193, 0.0
        %358 = vst.msk [vmem:[#allocation2 + $0x520] sm:$0xff] %vm193, 0.0
        %359 = vst.msk [vmem:[#allocation2 + $0x528] sm:$0xff] %vm193, 0.0
        %360 = vst.msk [vmem:[#allocation2 + $0x530] sm:$0xff] %vm193, 0.0
        %361 = vst.msk [vmem:[#allocation2 + $0x538] sm:$0xff] %vm193, 0.0
        %362 = vst.msk [vmem:[#allocation2 + $0x540] sm:$0xff] %vm193, 0.0
        %363 = vst.msk [vmem:[#allocation2 + $0x548] sm:$0xff] %vm193, 0.0
        %364 = vst.msk [vmem:[#allocation2 + $0x550] sm:$0xff] %vm193, 0.0
        %365 = vst.msk [vmem:[#allocation2 + $0x558] sm:$0xff] %vm193, 0.0
        %366 = vst.msk [vmem:[#allocation2 + $0x560] sm:$0xff] %vm193, 0.0
        %367 = vst.msk [vmem:[#allocation2 + $0x568] sm:$0xff] %vm193, 0.0
        %368 = vst.msk [vmem:[#allocation2 + $0x570] sm:$0xff] %vm193, 0.0
        %369 = vst.msk [vmem:[#allocation2 + $0x578] sm:$0xff] %vm193, 0.0
        %370 = vst.msk [vmem:[#allocation2 + $0x580] sm:$0xff] %vm193, 0.0
        %371 = vst.msk [vmem:[#allocation2 + $0x588] sm:$0xff] %vm193, 0.0
        %372 = vst.msk [vmem:[#allocation2 + $0x590] sm:$0xff] %vm193, 0.0
        %373 = vst.msk [vmem:[#allocation2 + $0x598] sm:$0xff] %vm193, 0.0
        %374 = vst.msk [vmem:[#allocation2 + $0x5a0] sm:$0xff] %vm193, 0.0
        %375 = vst.msk [vmem:[#allocation2 + $0x5a8] sm:$0xff] %vm193, 0.0
        %376 = vst.msk [vmem:[#allocation2 + $0x5b0] sm:$0xff] %vm193, 0.0
        %377 = vst.msk [vmem:[#allocation2 + $0x5b8] sm:$0xff] %vm193, 0.0
        %378 = vst.msk [vmem:[#allocation2 + $0x5c0] sm:$0xff] %vm193, 0.0
        %379 = vst.msk [vmem:[#allocation2 + $0x5c8] sm:$0xff] %vm193, 0.0
        %380 = vst.msk [vmem:[#allocation2 + $0x5d0] sm:$0xff] %vm193, 0.0
        %381 = vst.msk [vmem:[#allocation2 + $0x5d8] sm:$0xff] %vm193, 0.0
        %382 = vst.msk [vmem:[#allocation2 + $0x5e0] sm:$0xff] %vm193, 0.0
        %383 = vst.msk [vmem:[#allocation2 + $0x5e8] sm:$0xff] %vm193, 0.0
        %384 = vst.msk [vmem:[#allocation2 + $0x5f0] sm:$0xff] %vm193, 0.0
        %385 = vst.msk [vmem:[#allocation2 + $0x5f8] sm:$0xff] %vm193, 0.0
        %386 = vst.msk [vmem:[#allocation2 + $0x600] sm:$0xff] %vm193, 0.0
        %387 = vst.msk [vmem:[#allocation2 + $0x608] sm:$0xff] %vm193, 0.0
        %388 = vst.msk [vmem:[#allocation2 + $0x610] sm:$0xff] %vm193, 0.0
        %389 = vst.msk [vmem:[#allocation2 + $0x618] sm:$0xff] %vm193, 0.0
        %390 = vst.msk [vmem:[#allocation2 + $0x620] sm:$0xff] %vm193, 0.0
        %391 = vst.msk [vmem:[#allocation2 + $0x628] sm:$0xff] %vm193, 0.0
        %392 = vst.msk [vmem:[#allocation2 + $0x630] sm:$0xff] %vm193, 0.0
        %393 = vst.msk [vmem:[#allocation2 + $0x638] sm:$0xff] %vm193, 0.0
        %394 = vst.msk [vmem:[#allocation3] sm:$0xff] %vm193, 0.0
        %395 = vst.msk [vmem:[#allocation3 + $0x8] sm:$0xff] %vm193, 0.0
        %396 = vst.msk [vmem:[#allocation3 + $0x10] sm:$0xff] %vm193, 0.0
        %397 = vst.msk [vmem:[#allocation3 + $0x18] sm:$0xff] %vm193, 0.0
        %398 = vst.msk [vmem:[#allocation3 + $0x20] sm:$0xff] %vm193, 0.0
        %399 = vst.msk [vmem:[#allocation3 + $0x28] sm:$0xff] %vm193, 0.0
        %400 = vst.msk [vmem:[#allocation3 + $0x30] sm:$0xff] %vm193, 0.0
        %401 = vst.msk [vmem:[#allocation3 + $0x38] sm:$0xff] %vm193, 0.0
        %402 = vst.msk [vmem:[#allocation3 + $0x40] sm:$0xff] %vm193, 0.0
        %403 = vst.msk [vmem:[#allocation3 + $0x48] sm:$0xff] %vm193, 0.0
        %404 = vst.msk [vmem:[#allocation3 + $0x50] sm:$0xff] %vm193, 0.0
        %405 = vst.msk [vmem:[#allocation3 + $0x58] sm:$0xff] %vm193, 0.0
        %406 = vst.msk [vmem:[#allocation3 + $0x60] sm:$0xff] %vm193, 0.0
        %407 = vst.msk [vmem:[#allocation3 + $0x68] sm:$0xff] %vm193, 0.0
        %408 = vst.msk [vmem:[#allocation3 + $0x70] sm:$0xff] %vm193, 0.0
        %409 = vst.msk [vmem:[#allocation3 + $0x78] sm:$0xff] %vm193, 0.0
        %410 = vst.msk [vmem:[#allocation3 + $0x80] sm:$0xff] %vm193, 0.0
        %411 = vst.msk [vmem:[#allocation3 + $0x88] sm:$0xff] %vm193, 0.0
        %412 = vst.msk [vmem:[#allocation3 + $0x90] sm:$0xff] %vm193, 0.0
        %413 = vst.msk [vmem:[#allocation3 + $0x98] sm:$0xff] %vm193, 0.0
        %414 = vst.msk [vmem:[#allocation3 + $0xa0] sm:$0xff] %vm193, 0.0
        %415 = vst.msk [vmem:[#allocation3 + $0xa8] sm:$0xff] %vm193, 0.0
        %416 = vst.msk [vmem:[#allocation3 + $0xb0] sm:$0xff] %vm193, 0.0
        %417 = vst.msk [vmem:[#allocation3 + $0xb8] sm:$0xff] %vm193, 0.0
        %418 = vst.msk [vmem:[#allocation3 + $0xc0] sm:$0xff] %vm193, 0.0
        %419 = vst.msk [vmem:[#allocation3 + $0xc8] sm:$0xff] %vm193, 0.0
        %420 = vst.msk [vmem:[#allocation3 + $0xd0] sm:$0xff] %vm193, 0.0
        %421 = vst.msk [vmem:[#allocation3 + $0xd8] sm:$0xff] %vm193, 0.0
        %422 = vst.msk [vmem:[#allocation3 + $0xe0] sm:$0xff] %vm193, 0.0
        %423 = vst.msk [vmem:[#allocation3 + $0xe8] sm:$0xff] %vm193, 0.0
        %424 = vst.msk [vmem:[#allocation3 + $0xf0] sm:$0xff] %vm193, 0.0
        %425 = vst.msk [vmem:[#allocation3 + $0xf8] sm:$0xff] %vm193, 0.0
        %426 = vst.msk [vmem:[#allocation3 + $0x100] sm:$0xff] %vm193, 0.0
        %427 = vst.msk [vmem:[#allocation3 + $0x108] sm:$0xff] %vm193, 0.0
        %428 = vst.msk [vmem:[#allocation3 + $0x110] sm:$0xff] %vm193, 0.0
        %429 = vst.msk [vmem:[#allocation3 + $0x118] sm:$0xff] %vm193, 0.0
        %430 = vst.msk [vmem:[#allocation3 + $0x120] sm:$0xff] %vm193, 0.0
        %431 = vst.msk [vmem:[#allocation3 + $0x128] sm:$0xff] %vm193, 0.0
        %432 = vst.msk [vmem:[#allocation3 + $0x130] sm:$0xff] %vm193, 0.0
        %433 = vst.msk [vmem:[#allocation3 + $0x138] sm:$0xff] %vm193, 0.0
        %434 = vst.msk [vmem:[#allocation3 + $0x140] sm:$0xff] %vm193, 0.0
        %435 = vst.msk [vmem:[#allocation3 + $0x148] sm:$0xff] %vm193, 0.0
        %436 = vst.msk [vmem:[#allocation3 + $0x150] sm:$0xff] %vm193, 0.0
        %437 = vst.msk [vmem:[#allocation3 + $0x158] sm:$0xff] %vm193, 0.0
        %438 = vst.msk [vmem:[#allocation3 + $0x160] sm:$0xff] %vm193, 0.0
        %439 = vst.msk [vmem:[#allocation3 + $0x168] sm:$0xff] %vm193, 0.0
        %440 = vst.msk [vmem:[#allocation3 + $0x170] sm:$0xff] %vm193, 0.0
        %441 = vst.msk [vmem:[#allocation3 + $0x178] sm:$0xff] %vm193, 0.0
        %442 = vst.msk [vmem:[#allocation3 + $0x180] sm:$0xff] %vm193, 0.0
        %443 = vst.msk [vmem:[#allocation3 + $0x188] sm:$0xff] %vm193, 0.0
        %444 = vst.msk [vmem:[#allocation3 + $0x190] sm:$0xff] %vm193, 0.0
        %445 = vst.msk [vmem:[#allocation3 + $0x198] sm:$0xff] %vm193, 0.0
        %446 = vst.msk [vmem:[#allocation3 + $0x1a0] sm:$0xff] %vm193, 0.0
        %447 = vst.msk [vmem:[#allocation3 + $0x1a8] sm:$0xff] %vm193, 0.0
        %448 = vst.msk [vmem:[#allocation3 + $0x1b0] sm:$0xff] %vm193, 0.0
        %449 = vst.msk [vmem:[#allocation3 + $0x1b8] sm:$0xff] %vm193, 0.0
        %450 = vst.msk [vmem:[#allocation3 + $0x1c0] sm:$0xff] %vm193, 0.0
        %451 = vst.msk [vmem:[#allocation3 + $0x1c8] sm:$0xff] %vm193, 0.0
        %452 = vst.msk [vmem:[#allocation3 + $0x1d0] sm:$0xff] %vm193, 0.0
        %453 = vst.msk [vmem:[#allocation3 + $0x1d8] sm:$0xff] %vm193, 0.0
        %454 = vst.msk [vmem:[#allocation3 + $0x1e0] sm:$0xff] %vm193, 0.0
        %455 = vst.msk [vmem:[#allocation3 + $0x1e8] sm:$0xff] %vm193, 0.0
        %456 = vst.msk [vmem:[#allocation3 + $0x1f0] sm:$0xff] %vm193, 0.0
        %457 = vst.msk [vmem:[#allocation3 + $0x1f8] sm:$0xff] %vm193, 0.0
        %458 = vst.msk [vmem:[#allocation3 + $0x200] sm:$0xff] %vm193, 0.0
        %459 = vst.msk [vmem:[#allocation3 + $0x208] sm:$0xff] %vm193, 0.0
        %460 = vst.msk [vmem:[#allocation3 + $0x210] sm:$0xff] %vm193, 0.0
        %461 = vst.msk [vmem:[#allocation3 + $0x218] sm:$0xff] %vm193, 0.0
        %462 = vst.msk [vmem:[#allocation3 + $0x220] sm:$0xff] %vm193, 0.0
        %463 = vst.msk [vmem:[#allocation3 + $0x228] sm:$0xff] %vm193, 0.0
        %464 = vst.msk [vmem:[#allocation3 + $0x230] sm:$0xff] %vm193, 0.0
        %465 = vst.msk [vmem:[#allocation3 + $0x238] sm:$0xff] %vm193, 0.0
        %466 = vst.msk [vmem:[#allocation3 + $0x240] sm:$0xff] %vm193, 0.0
        %467 = vst.msk [vmem:[#allocation3 + $0x248] sm:$0xff] %vm193, 0.0
        %468 = vst.msk [vmem:[#allocation3 + $0x250] sm:$0xff] %vm193, 0.0
        %469 = vst.msk [vmem:[#allocation3 + $0x258] sm:$0xff] %vm193, 0.0
        %470 = vst.msk [vmem:[#allocation3 + $0x260] sm:$0xff] %vm193, 0.0
        %471 = vst.msk [vmem:[#allocation3 + $0x268] sm:$0xff] %vm193, 0.0
        %472 = vst.msk [vmem:[#allocation3 + $0x270] sm:$0xff] %vm193, 0.0
        %473 = vst.msk [vmem:[#allocation3 + $0x278] sm:$0xff] %vm193, 0.0
        %474 = vst.msk [vmem:[#allocation3 + $0x280] sm:$0xff] %vm193, 0.0
        %475 = vst.msk [vmem:[#allocation3 + $0x288] sm:$0xff] %vm193, 0.0
        %476 = vst.msk [vmem:[#allocation3 + $0x290] sm:$0xff] %vm193, 0.0
        %477 = vst.msk [vmem:[#allocation3 + $0x298] sm:$0xff] %vm193, 0.0
        %478 = vst.msk [vmem:[#allocation3 + $0x2a0] sm:$0xff] %vm193, 0.0
        %479 = vst.msk [vmem:[#allocation3 + $0x2a8] sm:$0xff] %vm193, 0.0
        %480 = vst.msk [vmem:[#allocation3 + $0x2b0] sm:$0xff] %vm193, 0.0
        %481 = vst.msk [vmem:[#allocation3 + $0x2b8] sm:$0xff] %vm193, 0.0
        %482 = vst.msk [vmem:[#allocation3 + $0x2c0] sm:$0xff] %vm193, 0.0
        %483 = vst.msk [vmem:[#allocation3 + $0x2c8] sm:$0xff] %vm193, 0.0
        %484 = vst.msk [vmem:[#allocation3 + $0x2d0] sm:$0xff] %vm193, 0.0
        %485 = vst.msk [vmem:[#allocation3 + $0x2d8] sm:$0xff] %vm193, 0.0
        %486 = vst.msk [vmem:[#allocation3 + $0x2e0] sm:$0xff] %vm193, 0.0
        %487 = vst.msk [vmem:[#allocation3 + $0x2e8] sm:$0xff] %vm193, 0.0
        %488 = vst.msk [vmem:[#allocation3 + $0x2f0] sm:$0xff] %vm193, 0.0
        %489 = vst.msk [vmem:[#allocation3 + $0x2f8] sm:$0xff] %vm193, 0.0
        %490 = vst.msk [vmem:[#allocation3 + $0x300] sm:$0xff] %vm193, 0.0
        %491 = vst.msk [vmem:[#allocation3 + $0x308] sm:$0xff] %vm193, 0.0
        %492 = vst.msk [vmem:[#allocation3 + $0x310] sm:$0xff] %vm193, 0.0
        %493 = vst.msk [vmem:[#allocation3 + $0x318] sm:$0xff] %vm193, 0.0
        %494 = vst.msk [vmem:[#allocation3 + $0x320] sm:$0xff] %vm193, 0.0
        %495 = vst.msk [vmem:[#allocation3 + $0x328] sm:$0xff] %vm193, 0.0
        %496 = vst.msk [vmem:[#allocation3 + $0x330] sm:$0xff] %vm193, 0.0
        %497 = vst.msk [vmem:[#allocation3 + $0x338] sm:$0xff] %vm193, 0.0
        %498 = vst.msk [vmem:[#allocation3 + $0x340] sm:$0xff] %vm193, 0.0
        %499 = vst.msk [vmem:[#allocation3 + $0x348] sm:$0xff] %vm193, 0.0
        %500 = vst.msk [vmem:[#allocation3 + $0x350] sm:$0xff] %vm193, 0.0
        %501 = vst.msk [vmem:[#allocation3 + $0x358] sm:$0xff] %vm193, 0.0
        %502 = vst.msk [vmem:[#allocation3 + $0x360] sm:$0xff] %vm193, 0.0
        %503 = vst.msk [vmem:[#allocation3 + $0x368] sm:$0xff] %vm193, 0.0
        %504 = vst.msk [vmem:[#allocation3 + $0x370] sm:$0xff] %vm193, 0.0
        %505 = vst.msk [vmem:[#allocation3 + $0x378] sm:$0xff] %vm193, 0.0
        %506 = vst.msk [vmem:[#allocation3 + $0x380] sm:$0xff] %vm193, 0.0
        %507 = vst.msk [vmem:[#allocation3 + $0x388] sm:$0xff] %vm193, 0.0
        %508 = vst.msk [vmem:[#allocation3 + $0x390] sm:$0xff] %vm193, 0.0
        %509 = vst.msk [vmem:[#allocation3 + $0x398] sm:$0xff] %vm193, 0.0
        %510 = vst.msk [vmem:[#allocation3 + $0x3a0] sm:$0xff] %vm193, 0.0
        %511 = vst.msk [vmem:[#allocation3 + $0x3a8] sm:$0xff] %vm193, 0.0
        %512 = vst.msk [vmem:[#allocation3 + $0x3b0] sm:$0xff] %vm193, 0.0
        %513 = vst.msk [vmem:[#allocation3 + $0x3b8] sm:$0xff] %vm193, 0.0
        %514 = vst.msk [vmem:[#allocation3 + $0x3c0] sm:$0xff] %vm193, 0.0
        %515 = vst.msk [vmem:[#allocation3 + $0x3c8] sm:$0xff] %vm193, 0.0
        %516 = vst.msk [vmem:[#allocation3 + $0x3d0] sm:$0xff] %vm193, 0.0
        %517 = vst.msk [vmem:[#allocation3 + $0x3d8] sm:$0xff] %vm193, 0.0
        %518 = vst.msk [vmem:[#allocation3 + $0x3e0] sm:$0xff] %vm193, 0.0
        %519 = vst.msk [vmem:[#allocation3 + $0x3e8] sm:$0xff] %vm193, 0.0
        %520 = vst.msk [vmem:[#allocation3 + $0x3f0] sm:$0xff] %vm193, 0.0
        %521 = vst.msk [vmem:[#allocation3 + $0x3f8] sm:$0xff] %vm193, 0.0
        %522 = vst.msk [vmem:[#allocation3 + $0x400] sm:$0xff] %vm193, 0.0
        %523 = vst.msk [vmem:[#allocation3 + $0x408] sm:$0xff] %vm193, 0.0
        %524 = vst.msk [vmem:[#allocation3 + $0x410] sm:$0xff] %vm193, 0.0
        %525 = vst.msk [vmem:[#allocation3 + $0x418] sm:$0xff] %vm193, 0.0
        %526 = vst.msk [vmem:[#allocation3 + $0x420] sm:$0xff] %vm193, 0.0
        %527 = vst.msk [vmem:[#allocation3 + $0x428] sm:$0xff] %vm193, 0.0
        %528 = vst.msk [vmem:[#allocation3 + $0x430] sm:$0xff] %vm193, 0.0
        %529 = vst.msk [vmem:[#allocation3 + $0x438] sm:$0xff] %vm193, 0.0
        %530 = vst.msk [vmem:[#allocation3 + $0x440] sm:$0xff] %vm193, 0.0
        %531 = vst.msk [vmem:[#allocation3 + $0x448] sm:$0xff] %vm193, 0.0
        %532 = vst.msk [vmem:[#allocation3 + $0x450] sm:$0xff] %vm193, 0.0
        %533 = vst.msk [vmem:[#allocation3 + $0x458] sm:$0xff] %vm193, 0.0
        %534 = vst.msk [vmem:[#allocation3 + $0x460] sm:$0xff] %vm193, 0.0
        %535 = vst.msk [vmem:[#allocation3 + $0x468] sm:$0xff] %vm193, 0.0
        %536 = vst.msk [vmem:[#allocation3 + $0x470] sm:$0xff] %vm193, 0.0
        %537 = vst.msk [vmem:[#allocation3 + $0x478] sm:$0xff] %vm193, 0.0
        %538 = vst.msk [vmem:[#allocation3 + $0x480] sm:$0xff] %vm193, 0.0
        %539 = vst.msk [vmem:[#allocation3 + $0x488] sm:$0xff] %vm193, 0.0
        %540 = vst.msk [vmem:[#allocation3 + $0x490] sm:$0xff] %vm193, 0.0
        %541 = vst.msk [vmem:[#allocation3 + $0x498] sm:$0xff] %vm193, 0.0
        %542 = vst.msk [vmem:[#allocation3 + $0x4a0] sm:$0xff] %vm193, 0.0
        %543 = vst.msk [vmem:[#allocation3 + $0x4a8] sm:$0xff] %vm193, 0.0
        %544 = vst.msk [vmem:[#allocation3 + $0x4b0] sm:$0xff] %vm193, 0.0
        %545 = vst.msk [vmem:[#allocation3 + $0x4b8] sm:$0xff] %vm193, 0.0
        %546 = vst.msk [vmem:[#allocation3 + $0x4c0] sm:$0xff] %vm193, 0.0
        %547 = vst.msk [vmem:[#allocation3 + $0x4c8] sm:$0xff] %vm193, 0.0
        %548 = vst.msk [vmem:[#allocation3 + $0x4d0] sm:$0xff] %vm193, 0.0
        %549 = vst.msk [vmem:[#allocation3 + $0x4d8] sm:$0xff] %vm193, 0.0
        %550 = vst.msk [vmem:[#allocation3 + $0x4e0] sm:$0xff] %vm193, 0.0
        %551 = vst.msk [vmem:[#allocation3 + $0x4e8] sm:$0xff] %vm193, 0.0
        %552 = vst.msk [vmem:[#allocation3 + $0x4f0] sm:$0xff] %vm193, 0.0
        %553 = vst.msk [vmem:[#allocation3 + $0x4f8] sm:$0xff] %vm193, 0.0
        %554 = vst.msk [vmem:[#allocation3 + $0x500] sm:$0xff] %vm193, 0.0
        %555 = vst.msk [vmem:[#allocation3 + $0x508] sm:$0xff] %vm193, 0.0
        %556 = vst.msk [vmem:[#allocation3 + $0x510] sm:$0xff] %vm193, 0.0
        %557 = vst.msk [vmem:[#allocation3 + $0x518] sm:$0xff] %vm193, 0.0
        %558 = vst.msk [vmem:[#allocation3 + $0x520] sm:$0xff] %vm193, 0.0
        %559 = vst.msk [vmem:[#allocation3 + $0x528] sm:$0xff] %vm193, 0.0
        %560 = vst.msk [vmem:[#allocation3 + $0x530] sm:$0xff] %vm193, 0.0
        %561 = vst.msk [vmem:[#allocation3 + $0x538] sm:$0xff] %vm193, 0.0
        %562 = vst.msk [vmem:[#allocation3 + $0x540] sm:$0xff] %vm193, 0.0
        %563 = vst.msk [vmem:[#allocation3 + $0x548] sm:$0xff] %vm193, 0.0
        %564 = vst.msk [vmem:[#allocation3 + $0x550] sm:$0xff] %vm193, 0.0
        %565 = vst.msk [vmem:[#allocation3 + $0x558] sm:$0xff] %vm193, 0.0
        %566 = vst.msk [vmem:[#allocation3 + $0x560] sm:$0xff] %vm193, 0.0
        %567 = vst.msk [vmem:[#allocation3 + $0x568] sm:$0xff] %vm193, 0.0
        %568 = vst.msk [vmem:[#allocation3 + $0x570] sm:$0xff] %vm193, 0.0
        %569 = vst.msk [vmem:[#allocation3 + $0x578] sm:$0xff] %vm193, 0.0
        %570 = vst.msk [vmem:[#allocation3 + $0x580] sm:$0xff] %vm193, 0.0
        %571 = vst.msk [vmem:[#allocation3 + $0x588] sm:$0xff] %vm193, 0.0
        %572 = vst.msk [vmem:[#allocation3 + $0x590] sm:$0xff] %vm193, 0.0
        %573 = vst.msk [vmem:[#allocation3 + $0x598] sm:$0xff] %vm193, 0.0
        %574 = vst.msk [vmem:[#allocation3 + $0x5a0] sm:$0xff] %vm193, 0.0
        %575 = vst.msk [vmem:[#allocation3 + $0x5a8] sm:$0xff] %vm193, 0.0
        %576 = vst.msk [vmem:[#allocation3 + $0x5b0] sm:$0xff] %vm193, 0.0
        %577 = vst.msk [vmem:[#allocation3 + $0x5b8] sm:$0xff] %vm193, 0.0
        %578 = vst.msk [vmem:[#allocation3 + $0x5c0] sm:$0xff] %vm193, 0.0
        %579 = vst.msk [vmem:[#allocation3 + $0x5c8] sm:$0xff] %vm193, 0.0
        %580 = vst.msk [vmem:[#allocation3 + $0x5d0] sm:$0xff] %vm193, 0.0
        %581 = vst.msk [vmem:[#allocation3 + $0x5d8] sm:$0xff] %vm193, 0.0
        %582 = vst.msk [vmem:[#allocation3 + $0x5e0] sm:$0xff] %vm193, 0.0
        %583 = vst.msk [vmem:[#allocation3 + $0x5e8] sm:$0xff] %vm193, 0.0
        %584 = vst.msk [vmem:[#allocation3 + $0x5f0] sm:$0xff] %vm193, 0.0
        %585 = vst.msk [vmem:[#allocation3 + $0x5f8] sm:$0xff] %vm193, 0.0
        %586 = vst.msk [vmem:[#allocation3 + $0x600] sm:$0xff] %vm193, 0.0
        %587 = vst.msk [vmem:[#allocation3 + $0x608] sm:$0xff] %vm193, 0.0
        %588 = vst.msk [vmem:[#allocation3 + $0x610] sm:$0xff] %vm193, 0.0
        %589 = vst.msk [vmem:[#allocation3 + $0x618] sm:$0xff] %vm193, 0.0
        %590 = vst.msk [vmem:[#allocation3 + $0x620] sm:$0xff] %vm193, 0.0
        %591 = vst.msk [vmem:[#allocation3 + $0x628] sm:$0xff] %vm193, 0.0
        %592 = vst.msk [vmem:[#allocation3 + $0x630] sm:$0xff] %vm193, 0.0
        %593 = vst.msk [vmem:[#allocation3 + $0x638] sm:$0xff] %vm193, 0.0
        %v594 = vld [vmem:[%s172] sm:$0xff]
        %v595 = vld [vmem:[%s172 + $0x8] sm:$0xff]
        %v596 = vld [vmem:[%s172 + $0x10] sm:$0xff]
        %v597 = vld [vmem:[%s172 + $0x18] sm:$0xff]
        %v598 = vld [vmem:[%s172 + $0x20] sm:$0xff]
        %v599 = vld [vmem:[%s172 + $0x28] sm:$0xff]
        %v600 = vld [vmem:[%s172 + $0x30] sm:$0xff]
        %v601 = vld [vmem:[%s172 + $0x38] sm:$0xff]
        %v602 = vld [vmem:[%s172 + $0x40] sm:$0xff]
        %v603 = vld [vmem:[%s172 + $0x48] sm:$0xff]
        %v604 = vld [vmem:[%s172 + $0x50] sm:$0xff]
        %v605 = vld [vmem:[%s172 + $0x58] sm:$0xff]
        %v606 = vld [vmem:[%s172 + $0x60] sm:$0xff]
        %v607 = vld [vmem:[%s172 + $0x68] sm:$0xff]
        %v608 = vld [vmem:[%s172 + $0x70] sm:$0xff]
        %v609 = vld [vmem:[%s172 + $0x78] sm:$0xff]
        %v610 = vld [vmem:[%s172 + $0x80] sm:$0xff]
        %v611 = vld [vmem:[%s172 + $0x88] sm:$0xff]
        %v612 = vld [vmem:[%s172 + $0x90] sm:$0xff]
        %v613 = vld [vmem:[%s172 + $0x98] sm:$0xff]
        %v614 = vld [vmem:[%s172 + $0xa0] sm:$0xff]
        %v615 = vld [vmem:[%s172 + $0xa8] sm:$0xff]
        %v616 = vld [vmem:[%s172 + $0xb0] sm:$0xff]
        %v617 = vld [vmem:[%s172 + $0xb8] sm:$0xff]
        %v618 = vld [vmem:[%s172 + $0xc0] sm:$0xff]
        %v619 = vld [vmem:[%s172 + $0xc8] sm:$0xff]
        %v620 = vld [vmem:[%s172 + $0xd0] sm:$0xff]
        %v621 = vld [vmem:[%s172 + $0xd8] sm:$0xff]
        %v622 = vld [vmem:[%s172 + $0xe0] sm:$0xff]
        %v623 = vld [vmem:[%s172 + $0xe8] sm:$0xff]
        %v624 = vld [vmem:[%s172 + $0xf0] sm:$0xff]
        %v625 = vld [vmem:[%s172 + $0xf8] sm:$0xff]
        %v626 = vld [vmem:[%s172 + $0x100] sm:$0xff]
        %v627 = vld [vmem:[%s172 + $0x108] sm:$0xff]
        %v628 = vld [vmem:[%s172 + $0x110] sm:$0xff]
        %v629 = vld [vmem:[%s172 + $0x118] sm:$0xff]
        %v630 = vld [vmem:[%s172 + $0x120] sm:$0xff]
        %v631 = vld [vmem:[%s172 + $0x128] sm:$0xff]
        %v632 = vld [vmem:[%s172 + $0x130] sm:$0xff]
        %v633 = vld [vmem:[%s172 + $0x138] sm:$0xff]
        %v634 = vld [vmem:[%s172 + $0x140] sm:$0xff]
        %v635 = vld [vmem:[%s172 + $0x148] sm:$0xff]
        %v636 = vld [vmem:[%s172 + $0x150] sm:$0xff]
        %v637 = vld [vmem:[%s172 + $0x158] sm:$0xff]
        %v638 = vld [vmem:[%s172 + $0x160] sm:$0xff]
        %v639 = vld [vmem:[%s172 + $0x168] sm:$0xff]
        %v640 = vld [vmem:[%s172 + $0x170] sm:$0xff]
        %v641 = vld [vmem:[%s172 + $0x178] sm:$0xff]
        %v642 = vld [vmem:[%s172 + $0x180] sm:$0xff]
        %v643 = vld [vmem:[%s172 + $0x188] sm:$0xff]
        %v644 = vld [vmem:[%s172 + $0x190] sm:$0xff]
        %v645 = vld [vmem:[%s172 + $0x198] sm:$0xff]
        %v646 = vld [vmem:[%s172 + $0x1a0] sm:$0xff]
        %v647 = vld [vmem:[%s172 + $0x1a8] sm:$0xff]
        %v648 = vld [vmem:[%s172 + $0x1b0] sm:$0xff]
        %v649 = vld [vmem:[%s172 + $0x1b8] sm:$0xff]
        %v650 = vld [vmem:[%s172 + $0x1c0] sm:$0xff]
        %v651 = vld [vmem:[%s172 + $0x1c8] sm:$0xff]
        %v652 = vld [vmem:[%s172 + $0x1d0] sm:$0xff]
        %v653 = vld [vmem:[%s172 + $0x1d8] sm:$0xff]
        %v654 = vld [vmem:[%s172 + $0x1e0] sm:$0xff]
        %v655 = vld [vmem:[%s172 + $0x1e8] sm:$0xff]
        %v656 = vld [vmem:[%s172 + $0x1f0] sm:$0xff]
        %v657 = vld [vmem:[%s172 + $0x1f8] sm:$0xff]
        %v658 = vld [vmem:[%s172 + $0x200] sm:$0xff]
        %v659 = vld [vmem:[%s172 + $0x208] sm:$0xff]
        %v660 = vld [vmem:[%s172 + $0x210] sm:$0xff]
        %v661 = vld [vmem:[%s172 + $0x218] sm:$0xff]
        %v662 = vld [vmem:[%s172 + $0x220] sm:$0xff]
        %v663 = vld [vmem:[%s172 + $0x228] sm:$0xff]
        %v664 = vld [vmem:[%s172 + $0x230] sm:$0xff]
        %v665 = vld [vmem:[%s172 + $0x238] sm:$0xff]
        %v666 = vld [vmem:[%s172 + $0x240] sm:$0xff]
        %v667 = vld [vmem:[%s172 + $0x248] sm:$0xff]
        %v668 = vld [vmem:[%s172 + $0x250] sm:$0xff]
        %v669 = vld [vmem:[%s172 + $0x258] sm:$0xff]
        %v670 = vld [vmem:[%s172 + $0x260] sm:$0xff]
        %v671 = vld [vmem:[%s172 + $0x268] sm:$0xff]
        %v672 = vld [vmem:[%s172 + $0x270] sm:$0xff]
        %v673 = vld [vmem:[%s172 + $0x278] sm:$0xff]
        %v674 = vld [vmem:[%s172 + $0x280] sm:$0xff]
        %v675 = vld [vmem:[%s172 + $0x288] sm:$0xff]
        %v676 = vld [vmem:[%s172 + $0x290] sm:$0xff]
        %v677 = vld [vmem:[%s172 + $0x298] sm:$0xff]
        %v678 = vld [vmem:[%s172 + $0x2a0] sm:$0xff]
        %v679 = vld [vmem:[%s172 + $0x2a8] sm:$0xff]
        %v680 = vld [vmem:[%s172 + $0x2b0] sm:$0xff]
        %v681 = vld [vmem:[%s172 + $0x2b8] sm:$0xff]
        %v682 = vld [vmem:[%s172 + $0x2c0] sm:$0xff]
        %v683 = vld [vmem:[%s172 + $0x2c8] sm:$0xff]
        %v684 = vld [vmem:[%s172 + $0x2d0] sm:$0xff]
        %v685 = vld [vmem:[%s172 + $0x2d8] sm:$0xff]
        %v686 = vld [vmem:[%s172 + $0x2e0] sm:$0xff]
        %v687 = vld [vmem:[%s172 + $0x2e8] sm:$0xff]
        %v688 = vld [vmem:[%s172 + $0x2f0] sm:$0xff]
        %v689 = vld [vmem:[%s172 + $0x2f8] sm:$0xff]
        %v690 = vld [vmem:[%s172 + $0x300] sm:$0xff]
        %v691 = vld [vmem:[%s172 + $0x308] sm:$0xff]
        %v692 = vld [vmem:[%s172 + $0x310] sm:$0xff]
        %v693 = vld [vmem:[%s172 + $0x318] sm:$0xff]
        %v694 = vld [vmem:[%s172 + $0x320] sm:$0xff]
        %v695 = vld [vmem:[%s172 + $0x328] sm:$0xff]
        %v696 = vld [vmem:[%s172 + $0x330] sm:$0xff]
        %v697 = vld [vmem:[%s172 + $0x338] sm:$0xff]
        %v698 = vld [vmem:[%s172 + $0x340] sm:$0xff]
        %v699 = vld [vmem:[%s172 + $0x348] sm:$0xff]
        %v700 = vld [vmem:[%s172 + $0x350] sm:$0xff]
        %v701 = vld [vmem:[%s172 + $0x358] sm:$0xff]
        %v702 = vld [vmem:[%s172 + $0x360] sm:$0xff]
        %v703 = vld [vmem:[%s172 + $0x368] sm:$0xff]
        %v704 = vld [vmem:[%s172 + $0x370] sm:$0xff]
        %v705 = vld [vmem:[%s172 + $0x378] sm:$0xff]
        %v706 = vld [vmem:[%s172 + $0x380] sm:$0xff]
        %v707 = vld [vmem:[%s172 + $0x388] sm:$0xff]
        %v708 = vld [vmem:[%s172 + $0x390] sm:$0xff]
        %v709 = vld [vmem:[%s172 + $0x398] sm:$0xff]
        %v710 = vld [vmem:[%s172 + $0x3a0] sm:$0xff]
        %v711 = vld [vmem:[%s172 + $0x3a8] sm:$0xff]
        %v712 = vld [vmem:[%s172 + $0x3b0] sm:$0xff]
        %v713 = vld [vmem:[%s172 + $0x3b8] sm:$0xff]
        %v714 = vld [vmem:[%s172 + $0x3c0] sm:$0xff]
        %v715 = vld [vmem:[%s172 + $0x3c8] sm:$0xff]
        %v716 = vld [vmem:[%s172 + $0x3d0] sm:$0xff]
        %v717 = vld [vmem:[%s172 + $0x3d8] sm:$0xff]
        %v718 = vld [vmem:[%s172 + $0x3e0] sm:$0xff]
        %v719 = vld [vmem:[%s172 + $0x3e8] sm:$0xff]
        %v720 = vld [vmem:[%s172 + $0x3f0] sm:$0xff]
        %v721 = vld [vmem:[%s172 + $0x3f8] sm:$0xff]
        %s722 = scalar_lea.vmem [#allocation2], 160
        %723 = vst.msk [vmem:[%s722 + $0x4] sm:$0xff] %vm193, %v594
        %724 = vst.msk [vmem:[%s722 + $0xc] sm:$0xff] %vm193, %v595
        %725 = vst.msk [vmem:[%s722 + $0x14] sm:$0xff] %vm193, %v596
        %726 = vst.msk [vmem:[%s722 + $0x1c] sm:$0xff] %vm193, %v597
        %727 = vst.msk [vmem:[%s722 + $0x2c] sm:$0xff] %vm193, %v598
        %728 = vst.msk [vmem:[%s722 + $0x34] sm:$0xff] %vm193, %v599
        %729 = vst.msk [vmem:[%s722 + $0x3c] sm:$0xff] %vm193, %v600
        %730 = vst.msk [vmem:[%s722 + $0x44] sm:$0xff] %vm193, %v601
        %731 = vst.msk [vmem:[%s722 + $0x54] sm:$0xff] %vm193, %v602
        %732 = vst.msk [vmem:[%s722 + $0x5c] sm:$0xff] %vm193, %v603
        %733 = vst.msk [vmem:[%s722 + $0x64] sm:$0xff] %vm193, %v604
        %734 = vst.msk [vmem:[%s722 + $0x6c] sm:$0xff] %vm193, %v605
        %735 = vst.msk [vmem:[%s722 + $0x7c] sm:$0xff] %vm193, %v606
        %736 = vst.msk [vmem:[%s722 + $0x84] sm:$0xff] %vm193, %v607
        %737 = vst.msk [vmem:[%s722 + $0x8c] sm:$0xff] %vm193, %v608
        %738 = vst.msk [vmem:[%s722 + $0x94] sm:$0xff] %vm193, %v609
        %739 = vst.msk [vmem:[%s722 + $0xa4] sm:$0xff] %vm193, %v610
        %740 = vst.msk [vmem:[%s722 + $0xac] sm:$0xff] %vm193, %v611
        %741 = vst.msk [vmem:[%s722 + $0xb4] sm:$0xff] %vm193, %v612
        %742 = vst.msk [vmem:[%s722 + $0xbc] sm:$0xff] %vm193, %v613
        %743 = vst.msk [vmem:[%s722 + $0xcc] sm:$0xff] %vm193, %v614
        %744 = vst.msk [vmem:[%s722 + $0xd4] sm:$0xff] %vm193, %v615
        %745 = vst.msk [vmem:[%s722 + $0xdc] sm:$0xff] %vm193, %v616
        %746 = vst.msk [vmem:[%s722 + $0xe4] sm:$0xff] %vm193, %v617
        %747 = vst.msk [vmem:[%s722 + $0xf4] sm:$0xff] %vm193, %v618
        %748 = vst.msk [vmem:[%s722 + $0xfc] sm:$0xff] %vm193, %v619
        %749 = vst.msk [vmem:[%s722 + $0x104] sm:$0xff] %vm193, %v620
        %750 = vst.msk [vmem:[%s722 + $0x10c] sm:$0xff] %vm193, %v621
        %751 = vst.msk [vmem:[%s722 + $0x11c] sm:$0xff] %vm193, %v622
        %752 = vst.msk [vmem:[%s722 + $0x124] sm:$0xff] %vm193, %v623
        %753 = vst.msk [vmem:[%s722 + $0x12c] sm:$0xff] %vm193, %v624
        %754 = vst.msk [vmem:[%s722 + $0x134] sm:$0xff] %vm193, %v625
        %755 = vst.msk [vmem:[%s722 + $0x144] sm:$0xff] %vm193, %v626
        %756 = vst.msk [vmem:[%s722 + $0x14c] sm:$0xff] %vm193, %v627
        %757 = vst.msk [vmem:[%s722 + $0x154] sm:$0xff] %vm193, %v628
        %758 = vst.msk [vmem:[%s722 + $0x15c] sm:$0xff] %vm193, %v629
        %759 = vst.msk [vmem:[%s722 + $0x16c] sm:$0xff] %vm193, %v630
        %760 = vst.msk [vmem:[%s722 + $0x174] sm:$0xff] %vm193, %v631
        %761 = vst.msk [vmem:[%s722 + $0x17c] sm:$0xff] %vm193, %v632
        %762 = vst.msk [vmem:[%s722 + $0x184] sm:$0xff] %vm193, %v633
        %763 = vst.msk [vmem:[%s722 + $0x194] sm:$0xff] %vm193, %v634
        %764 = vst.msk [vmem:[%s722 + $0x19c] sm:$0xff] %vm193, %v635
        %765 = vst.msk [vmem:[%s722 + $0x1a4] sm:$0xff] %vm193, %v636
        %766 = vst.msk [vmem:[%s722 + $0x1ac] sm:$0xff] %vm193, %v637
        %767 = vst.msk [vmem:[%s722 + $0x1bc] sm:$0xff] %vm193, %v638
        %768 = vst.msk [vmem:[%s722 + $0x1c4] sm:$0xff] %vm193, %v639
        %769 = vst.msk [vmem:[%s722 + $0x1cc] sm:$0xff] %vm193, %v640
        %770 = vst.msk [vmem:[%s722 + $0x1d4] sm:$0xff] %vm193, %v641
        %771 = vst.msk [vmem:[%s722 + $0x1e4] sm:$0xff] %vm193, %v642
        %772 = vst.msk [vmem:[%s722 + $0x1ec] sm:$0xff] %vm193, %v643
        %773 = vst.msk [vmem:[%s722 + $0x1f4] sm:$0xff] %vm193, %v644
        %774 = vst.msk [vmem:[%s722 + $0x1fc] sm:$0xff] %vm193, %v645
        %775 = vst.msk [vmem:[%s722 + $0x20c] sm:$0xff] %vm193, %v646
        %776 = vst.msk [vmem:[%s722 + $0x214] sm:$0xff] %vm193, %v647
        %777 = vst.msk [vmem:[%s722 + $0x21c] sm:$0xff] %vm193, %v648
        %778 = vst.msk [vmem:[%s722 + $0x224] sm:$0xff] %vm193, %v649
        %779 = vst.msk [vmem:[%s722 + $0x234] sm:$0xff] %vm193, %v650
        %780 = vst.msk [vmem:[%s722 + $0x23c] sm:$0xff] %vm193, %v651
        %781 = vst.msk [vmem:[%s722 + $0x244] sm:$0xff] %vm193, %v652
        %782 = vst.msk [vmem:[%s722 + $0x24c] sm:$0xff] %vm193, %v653
        %783 = vst.msk [vmem:[%s722 + $0x25c] sm:$0xff] %vm193, %v654
        %784 = vst.msk [vmem:[%s722 + $0x264] sm:$0xff] %vm193, %v655
        %785 = vst.msk [vmem:[%s722 + $0x26c] sm:$0xff] %vm193, %v656
        %786 = vst.msk [vmem:[%s722 + $0x274] sm:$0xff] %vm193, %v657
        %787 = vst.msk [vmem:[%s722 + $0x284] sm:$0xff] %vm193, %v658
        %788 = vst.msk [vmem:[%s722 + $0x28c] sm:$0xff] %vm193, %v659
        %789 = vst.msk [vmem:[%s722 + $0x294] sm:$0xff] %vm193, %v660
        %790 = vst.msk [vmem:[%s722 + $0x29c] sm:$0xff] %vm193, %v661
        %791 = vst.msk [vmem:[%s722 + $0x2ac] sm:$0xff] %vm193, %v662
        %792 = vst.msk [vmem:[%s722 + $0x2b4] sm:$0xff] %vm193, %v663
        %793 = vst.msk [vmem:[%s722 + $0x2bc] sm:$0xff] %vm193, %v664
        %794 = vst.msk [vmem:[%s722 + $0x2c4] sm:$0xff] %vm193, %v665
        %795 = vst.msk [vmem:[%s722 + $0x2d4] sm:$0xff] %vm193, %v666
        %796 = vst.msk [vmem:[%s722 + $0x2dc] sm:$0xff] %vm193, %v667
        %797 = vst.msk [vmem:[%s722 + $0x2e4] sm:$0xff] %vm193, %v668
        %798 = vst.msk [vmem:[%s722 + $0x2ec] sm:$0xff] %vm193, %v669
        %799 = vst.msk [vmem:[%s722 + $0x2fc] sm:$0xff] %vm193, %v670
        %800 = vst.msk [vmem:[%s722 + $0x304] sm:$0xff] %vm193, %v671
        %801 = vst.msk [vmem:[%s722 + $0x30c] sm:$0xff] %vm193, %v672
        %802 = vst.msk [vmem:[%s722 + $0x314] sm:$0xff] %vm193, %v673
        %803 = vst.msk [vmem:[%s722 + $0x324] sm:$0xff] %vm193, %v674
        %804 = vst.msk [vmem:[%s722 + $0x32c] sm:$0xff] %vm193, %v675
        %805 = vst.msk [vmem:[%s722 + $0x334] sm:$0xff] %vm193, %v676
        %806 = vst.msk [vmem:[%s722 + $0x33c] sm:$0xff] %vm193, %v677
        %807 = vst.msk [vmem:[%s722 + $0x34c] sm:$0xff] %vm193, %v678
        %808 = vst.msk [vmem:[%s722 + $0x354] sm:$0xff] %vm193, %v679
        %809 = vst.msk [vmem:[%s722 + $0x35c] sm:$0xff] %vm193, %v680
        %810 = vst.msk [vmem:[%s722 + $0x364] sm:$0xff] %vm193, %v681
        %811 = vst.msk [vmem:[%s722 + $0x374] sm:$0xff] %vm193, %v682
        %812 = vst.msk [vmem:[%s722 + $0x37c] sm:$0xff] %vm193, %v683
        %813 = vst.msk [vmem:[%s722 + $0x384] sm:$0xff] %vm193, %v684
        %814 = vst.msk [vmem:[%s722 + $0x38c] sm:$0xff] %vm193, %v685
        %815 = vst.msk [vmem:[%s722 + $0x39c] sm:$0xff] %vm193, %v686
        %816 = vst.msk [vmem:[%s722 + $0x3a4] sm:$0xff] %vm193, %v687
        %817 = vst.msk [vmem:[%s722 + $0x3ac] sm:$0xff] %vm193, %v688
        %818 = vst.msk [vmem:[%s722 + $0x3b4] sm:$0xff] %vm193, %v689
        %819 = vst.msk [vmem:[%s722 + $0x3c4] sm:$0xff] %vm193, %v690
        %820 = vst.msk [vmem:[%s722 + $0x3cc] sm:$0xff] %vm193, %v691
        %821 = vst.msk [vmem:[%s722 + $0x3d4] sm:$0xff] %vm193, %v692
        %822 = vst.msk [vmem:[%s722 + $0x3dc] sm:$0xff] %vm193, %v693
        %823 = vst.msk [vmem:[%s722 + $0x3ec] sm:$0xff] %vm193, %v694
        %824 = vst.msk [vmem:[%s722 + $0x3f4] sm:$0xff] %vm193, %v695
        %825 = vst.msk [vmem:[%s722 + $0x3fc] sm:$0xff] %vm193, %v696
        %826 = vst.msk [vmem:[%s722 + $0x404] sm:$0xff] %vm193, %v697
        %827 = vst.msk [vmem:[%s722 + $0x414] sm:$0xff] %vm193, %v698
        %828 = vst.msk [vmem:[%s722 + $0x41c] sm:$0xff] %vm193, %v699
        %829 = vst.msk [vmem:[%s722 + $0x424] sm:$0xff] %vm193, %v700
        %830 = vst.msk [vmem:[%s722 + $0x42c] sm:$0xff] %vm193, %v701
        %831 = vst.msk [vmem:[%s722 + $0x43c] sm:$0xff] %vm193, %v702
        %832 = vst.msk [vmem:[%s722 + $0x444] sm:$0xff] %vm193, %v703
        %833 = vst.msk [vmem:[%s722 + $0x44c] sm:$0xff] %vm193, %v704
        %834 = vst.msk [vmem:[%s722 + $0x454] sm:$0xff] %vm193, %v705
        %835 = vst.msk [vmem:[%s722 + $0x464] sm:$0xff] %vm193, %v706
        %836 = vst.msk [vmem:[%s722 + $0x46c] sm:$0xff] %vm193, %v707
        %837 = vst.msk [vmem:[%s722 + $0x474] sm:$0xff] %vm193, %v708
        %838 = vst.msk [vmem:[%s722 + $0x47c] sm:$0xff] %vm193, %v709
        %839 = vst.msk [vmem:[%s722 + $0x48c] sm:$0xff] %vm193, %v710
        %840 = vst.msk [vmem:[%s722 + $0x494] sm:$0xff] %vm193, %v711
        %841 = vst.msk [vmem:[%s722 + $0x49c] sm:$0xff] %vm193, %v712
        %842 = vst.msk [vmem:[%s722 + $0x4a4] sm:$0xff] %vm193, %v713
        %843 = vst.msk [vmem:[%s722 + $0x4b4] sm:$0xff] %vm193, %v714
        %844 = vst.msk [vmem:[%s722 + $0x4bc] sm:$0xff] %vm193, %v715
        %845 = vst.msk [vmem:[%s722 + $0x4c4] sm:$0xff] %vm193, %v716
        %846 = vst.msk [vmem:[%s722 + $0x4cc] sm:$0xff] %vm193, %v717
        %847 = vst.msk [vmem:[%s722 + $0x4dc] sm:$0xff] %vm193, %v718
        %848 = vst.msk [vmem:[%s722 + $0x4e4] sm:$0xff] %vm193, %v719
        %849 = vst.msk [vmem:[%s722 + $0x4ec] sm:$0xff] %vm193, %v720
        %850 = vst.msk [vmem:[%s722 + $0x4f4] sm:$0xff] %vm193, %v721
        %v851 = vld [vmem:[%s177] sm:$0xff]
        %v852 = vld [vmem:[%s177 + $0x8] sm:$0xff]
        %v853 = vld [vmem:[%s177 + $0x10] sm:$0xff]
        %v854 = vld [vmem:[%s177 + $0x18] sm:$0xff]
        %v855 = vld [vmem:[%s177 + $0x20] sm:$0xff]
        %v856 = vld [vmem:[%s177 + $0x28] sm:$0xff]
        %v857 = vld [vmem:[%s177 + $0x30] sm:$0xff]
        %v858 = vld [vmem:[%s177 + $0x38] sm:$0xff]
        %v859 = vld [vmem:[%s177 + $0x40] sm:$0xff]
        %v860 = vld [vmem:[%s177 + $0x48] sm:$0xff]
        %v861 = vld [vmem:[%s177 + $0x50] sm:$0xff]
        %v862 = vld [vmem:[%s177 + $0x58] sm:$0xff]
        %v863 = vld [vmem:[%s177 + $0x60] sm:$0xff]
        %v864 = vld [vmem:[%s177 + $0x68] sm:$0xff]
        %v865 = vld [vmem:[%s177 + $0x70] sm:$0xff]
        %v866 = vld [vmem:[%s177 + $0x78] sm:$0xff]
        %v867 = vld [vmem:[%s177 + $0x80] sm:$0xff]
        %v868 = vld [vmem:[%s177 + $0x88] sm:$0xff]
        %v869 = vld [vmem:[%s177 + $0x90] sm:$0xff]
        %v870 = vld [vmem:[%s177 + $0x98] sm:$0xff]
        %v871 = vld [vmem:[%s177 + $0xa0] sm:$0xff]
        %v872 = vld [vmem:[%s177 + $0xa8] sm:$0xff]
        %v873 = vld [vmem:[%s177 + $0xb0] sm:$0xff]
        %v874 = vld [vmem:[%s177 + $0xb8] sm:$0xff]
        %v875 = vld [vmem:[%s177 + $0xc0] sm:$0xff]
        %v876 = vld [vmem:[%s177 + $0xc8] sm:$0xff]
        %v877 = vld [vmem:[%s177 + $0xd0] sm:$0xff]
        %v878 = vld [vmem:[%s177 + $0xd8] sm:$0xff]
        %v879 = vld [vmem:[%s177 + $0xe0] sm:$0xff]
        %v880 = vld [vmem:[%s177 + $0xe8] sm:$0xff]
        %v881 = vld [vmem:[%s177 + $0xf0] sm:$0xff]
        %v882 = vld [vmem:[%s177 + $0xf8] sm:$0xff]
        %v883 = vld [vmem:[%s177 + $0x100] sm:$0xff]
        %v884 = vld [vmem:[%s177 + $0x108] sm:$0xff]
        %v885 = vld [vmem:[%s177 + $0x110] sm:$0xff]
        %v886 = vld [vmem:[%s177 + $0x118] sm:$0xff]
        %v887 = vld [vmem:[%s177 + $0x120] sm:$0xff]
        %v888 = vld [vmem:[%s177 + $0x128] sm:$0xff]
        %v889 = vld [vmem:[%s177 + $0x130] sm:$0xff]
        %v890 = vld [vmem:[%s177 + $0x138] sm:$0xff]
        %v891 = vld [vmem:[%s177 + $0x140] sm:$0xff]
        %v892 = vld [vmem:[%s177 + $0x148] sm:$0xff]
        %v893 = vld [vmem:[%s177 + $0x150] sm:$0xff]
        %v894 = vld [vmem:[%s177 + $0x158] sm:$0xff]
        %v895 = vld [vmem:[%s177 + $0x160] sm:$0xff]
        %v896 = vld [vmem:[%s177 + $0x168] sm:$0xff]
        %v897 = vld [vmem:[%s177 + $0x170] sm:$0xff]
        %v898 = vld [vmem:[%s177 + $0x178] sm:$0xff]
        %v899 = vld [vmem:[%s177 + $0x180] sm:$0xff]
        %v900 = vld [vmem:[%s177 + $0x188] sm:$0xff]
        %v901 = vld [vmem:[%s177 + $0x190] sm:$0xff]
        %v902 = vld [vmem:[%s177 + $0x198] sm:$0xff]
        %v903 = vld [vmem:[%s177 + $0x1a0] sm:$0xff]
        %v904 = vld [vmem:[%s177 + $0x1a8] sm:$0xff]
        %v905 = vld [vmem:[%s177 + $0x1b0] sm:$0xff]
        %v906 = vld [vmem:[%s177 + $0x1b8] sm:$0xff]
        %v907 = vld [vmem:[%s177 + $0x1c0] sm:$0xff]
        %v908 = vld [vmem:[%s177 + $0x1c8] sm:$0xff]
        %v909 = vld [vmem:[%s177 + $0x1d0] sm:$0xff]
        %v910 = vld [vmem:[%s177 + $0x1d8] sm:$0xff]
        %v911 = vld [vmem:[%s177 + $0x1e0] sm:$0xff]
        %v912 = vld [vmem:[%s177 + $0x1e8] sm:$0xff]
        %v913 = vld [vmem:[%s177 + $0x1f0] sm:$0xff]
        %v914 = vld [vmem:[%s177 + $0x1f8] sm:$0xff]
        %v915 = vld [vmem:[%s177 + $0x200] sm:$0xff]
        %v916 = vld [vmem:[%s177 + $0x208] sm:$0xff]
        %v917 = vld [vmem:[%s177 + $0x210] sm:$0xff]
        %v918 = vld [vmem:[%s177 + $0x218] sm:$0xff]
        %v919 = vld [vmem:[%s177 + $0x220] sm:$0xff]
        %v920 = vld [vmem:[%s177 + $0x228] sm:$0xff]
        %v921 = vld [vmem:[%s177 + $0x230] sm:$0xff]
        %v922 = vld [vmem:[%s177 + $0x238] sm:$0xff]
        %v923 = vld [vmem:[%s177 + $0x240] sm:$0xff]
        %v924 = vld [vmem:[%s177 + $0x248] sm:$0xff]
        %v925 = vld [vmem:[%s177 + $0x250] sm:$0xff]
        %v926 = vld [vmem:[%s177 + $0x258] sm:$0xff]
        %v927 = vld [vmem:[%s177 + $0x260] sm:$0xff]
        %v928 = vld [vmem:[%s177 + $0x268] sm:$0xff]
        %v929 = vld [vmem:[%s177 + $0x270] sm:$0xff]
        %v930 = vld [vmem:[%s177 + $0x278] sm:$0xff]
        %v931 = vld [vmem:[%s177 + $0x280] sm:$0xff]
        %v932 = vld [vmem:[%s177 + $0x288] sm:$0xff]
        %v933 = vld [vmem:[%s177 + $0x290] sm:$0xff]
        %v934 = vld [vmem:[%s177 + $0x298] sm:$0xff]
        %v935 = vld [vmem:[%s177 + $0x2a0] sm:$0xff]
        %v936 = vld [vmem:[%s177 + $0x2a8] sm:$0xff]
        %v937 = vld [vmem:[%s177 + $0x2b0] sm:$0xff]
        %v938 = vld [vmem:[%s177 + $0x2b8] sm:$0xff]
        %v939 = vld [vmem:[%s177 + $0x2c0] sm:$0xff]
        %v940 = vld [vmem:[%s177 + $0x2c8] sm:$0xff]
        %v941 = vld [vmem:[%s177 + $0x2d0] sm:$0xff]
        %v942 = vld [vmem:[%s177 + $0x2d8] sm:$0xff]
        %v943 = vld [vmem:[%s177 + $0x2e0] sm:$0xff]
        %v944 = vld [vmem:[%s177 + $0x2e8] sm:$0xff]
        %v945 = vld [vmem:[%s177 + $0x2f0] sm:$0xff]
        %v946 = vld [vmem:[%s177 + $0x2f8] sm:$0xff]
        %v947 = vld [vmem:[%s177 + $0x300] sm:$0xff]
        %v948 = vld [vmem:[%s177 + $0x308] sm:$0xff]
        %v949 = vld [vmem:[%s177 + $0x310] sm:$0xff]
        %v950 = vld [vmem:[%s177 + $0x318] sm:$0xff]
        %v951 = vld [vmem:[%s177 + $0x320] sm:$0xff]
        %v952 = vld [vmem:[%s177 + $0x328] sm:$0xff]
        %v953 = vld [vmem:[%s177 + $0x330] sm:$0xff]
        %v954 = vld [vmem:[%s177 + $0x338] sm:$0xff]
        %v955 = vld [vmem:[%s177 + $0x340] sm:$0xff]
        %v956 = vld [vmem:[%s177 + $0x348] sm:$0xff]
        %v957 = vld [vmem:[%s177 + $0x350] sm:$0xff]
        %v958 = vld [vmem:[%s177 + $0x358] sm:$0xff]
        %v959 = vld [vmem:[%s177 + $0x360] sm:$0xff]
        %v960 = vld [vmem:[%s177 + $0x368] sm:$0xff]
        %v961 = vld [vmem:[%s177 + $0x370] sm:$0xff]
        %v962 = vld [vmem:[%s177 + $0x378] sm:$0xff]
        %v963 = vld [vmem:[%s177 + $0x380] sm:$0xff]
        %v964 = vld [vmem:[%s177 + $0x388] sm:$0xff]
        %v965 = vld [vmem:[%s177 + $0x390] sm:$0xff]
        %v966 = vld [vmem:[%s177 + $0x398] sm:$0xff]
        %v967 = vld [vmem:[%s177 + $0x3a0] sm:$0xff]
        %v968 = vld [vmem:[%s177 + $0x3a8] sm:$0xff]
        %v969 = vld [vmem:[%s177 + $0x3b0] sm:$0xff]
        %v970 = vld [vmem:[%s177 + $0x3b8] sm:$0xff]
        %v971 = vld [vmem:[%s177 + $0x3c0] sm:$0xff]
        %v972 = vld [vmem:[%s177 + $0x3c8] sm:$0xff]
        %v973 = vld [vmem:[%s177 + $0x3d0] sm:$0xff]
        %v974 = vld [vmem:[%s177 + $0x3d8] sm:$0xff]
        %v975 = vld [vmem:[%s177 + $0x3e0] sm:$0xff]
        %v976 = vld [vmem:[%s177 + $0x3e8] sm:$0xff]
        %v977 = vld [vmem:[%s177 + $0x3f0] sm:$0xff]
        %v978 = vld [vmem:[%s177 + $0x3f8] sm:$0xff]
        %s979 = scalar_lea.vmem [#allocation3], 160
        %980 = vst.msk [vmem:[%s979 + $0x4] sm:$0xff] %vm193, %v851
        %981 = vst.msk [vmem:[%s979 + $0xc] sm:$0xff] %vm193, %v852
        %982 = vst.msk [vmem:[%s979 + $0x14] sm:$0xff] %vm193, %v853
        %983 = vst.msk [vmem:[%s979 + $0x1c] sm:$0xff] %vm193, %v854
        %984 = vst.msk [vmem:[%s979 + $0x2c] sm:$0xff] %vm193, %v855
        %985 = vst.msk [vmem:[%s979 + $0x34] sm:$0xff] %vm193, %v856
        %986 = vst.msk [vmem:[%s979 + $0x3c] sm:$0xff] %vm193, %v857
        %987 = vst.msk [vmem:[%s979 + $0x44] sm:$0xff] %vm193, %v858
        %988 = vst.msk [vmem:[%s979 + $0x54] sm:$0xff] %vm193, %v859
        %989 = vst.msk [vmem:[%s979 + $0x5c] sm:$0xff] %vm193, %v860
        %990 = vst.msk [vmem:[%s979 + $0x64] sm:$0xff] %vm193, %v861
        %991 = vst.msk [vmem:[%s979 + $0x6c] sm:$0xff] %vm193, %v862
        %992 = vst.msk [vmem:[%s979 + $0x7c] sm:$0xff] %vm193, %v863
        %993 = vst.msk [vmem:[%s979 + $0x84] sm:$0xff] %vm193, %v864
        %994 = vst.msk [vmem:[%s979 + $0x8c] sm:$0xff] %vm193, %v865
        %995 = vst.msk [vmem:[%s979 + $0x94] sm:$0xff] %vm193, %v866
        %996 = vst.msk [vmem:[%s979 + $0xa4] sm:$0xff] %vm193, %v867
        %997 = vst.msk [vmem:[%s979 + $0xac] sm:$0xff] %vm193, %v868
        %998 = vst.msk [vmem:[%s979 + $0xb4] sm:$0xff] %vm193, %v869
        %999 = vst.msk [vmem:[%s979 + $0xbc] sm:$0xff] %vm193, %v870
        %1000 = vst.msk [vmem:[%s979 + $0xcc] sm:$0xff] %vm193, %v871
        %1001 = vst.msk [vmem:[%s979 + $0xd4] sm:$0xff] %vm193, %v872
        %1002 = vst.msk [vmem:[%s979 + $0xdc] sm:$0xff] %vm193, %v873
        %1003 = vst.msk [vmem:[%s979 + $0xe4] sm:$0xff] %vm193, %v874
        %1004 = vst.msk [vmem:[%s979 + $0xf4] sm:$0xff] %vm193, %v875
        %1005 = vst.msk [vmem:[%s979 + $0xfc] sm:$0xff] %vm193, %v876
        %1006 = vst.msk [vmem:[%s979 + $0x104] sm:$0xff] %vm193, %v877
        %1007 = vst.msk [vmem:[%s979 + $0x10c] sm:$0xff] %vm193, %v878
        %1008 = vst.msk [vmem:[%s979 + $0x11c] sm:$0xff] %vm193, %v879
        %1009 = vst.msk [vmem:[%s979 + $0x124] sm:$0xff] %vm193, %v880
        %1010 = vst.msk [vmem:[%s979 + $0x12c] sm:$0xff] %vm193, %v881
        %1011 = vst.msk [vmem:[%s979 + $0x134] sm:$0xff] %vm193, %v882
        %1012 = vst.msk [vmem:[%s979 + $0x144] sm:$0xff] %vm193, %v883
        %1013 = vst.msk [vmem:[%s979 + $0x14c] sm:$0xff] %vm193, %v884
        %1014 = vst.msk [vmem:[%s979 + $0x154] sm:$0xff] %vm193, %v885
        %1015 = vst.msk [vmem:[%s979 + $0x15c] sm:$0xff] %vm193, %v886
        %1016 = vst.msk [vmem:[%s979 + $0x16c] sm:$0xff] %vm193, %v887
        %1017 = vst.msk [vmem:[%s979 + $0x174] sm:$0xff] %vm193, %v888
        %1018 = vst.msk [vmem:[%s979 + $0x17c] sm:$0xff] %vm193, %v889
        %1019 = vst.msk [vmem:[%s979 + $0x184] sm:$0xff] %vm193, %v890
        %1020 = vst.msk [vmem:[%s979 + $0x194] sm:$0xff] %vm193, %v891
        %1021 = vst.msk [vmem:[%s979 + $0x19c] sm:$0xff] %vm193, %v892
        %1022 = vst.msk [vmem:[%s979 + $0x1a4] sm:$0xff] %vm193, %v893
        %1023 = vst.msk [vmem:[%s979 + $0x1ac] sm:$0xff] %vm193, %v894
        %1024 = vst.msk [vmem:[%s979 + $0x1bc] sm:$0xff] %vm193, %v895
        %1025 = vst.msk [vmem:[%s979 + $0x1c4] sm:$0xff] %vm193, %v896
        %1026 = vst.msk [vmem:[%s979 + $0x1cc] sm:$0xff] %vm193, %v897
        %1027 = vst.msk [vmem:[%s979 + $0x1d4] sm:$0xff] %vm193, %v898
        %1028 = vst.msk [vmem:[%s979 + $0x1e4] sm:$0xff] %vm193, %v899
        %1029 = vst.msk [vmem:[%s979 + $0x1ec] sm:$0xff] %vm193, %v900
        %1030 = vst.msk [vmem:[%s979 + $0x1f4] sm:$0xff] %vm193, %v901
        %1031 = vst.msk [vmem:[%s979 + $0x1fc] sm:$0xff] %vm193, %v902
        %1032 = vst.msk [vmem:[%s979 + $0x20c] sm:$0xff] %vm193, %v903
        %1033 = vst.msk [vmem:[%s979 + $0x214] sm:$0xff] %vm193, %v904
        %1034 = vst.msk [vmem:[%s979 + $0x21c] sm:$0xff] %vm193, %v905
        %1035 = vst.msk [vmem:[%s979 + $0x224] sm:$0xff] %vm193, %v906
        %1036 = vst.msk [vmem:[%s979 + $0x234] sm:$0xff] %vm193, %v907
        %1037 = vst.msk [vmem:[%s979 + $0x23c] sm:$0xff] %vm193, %v908
        %1038 = vst.msk [vmem:[%s979 + $0x244] sm:$0xff] %vm193, %v909
        %1039 = vst.msk [vmem:[%s979 + $0x24c] sm:$0xff] %vm193, %v910
        %1040 = vst.msk [vmem:[%s979 + $0x25c] sm:$0xff] %vm193, %v911
        %1041 = vst.msk [vmem:[%s979 + $0x264] sm:$0xff] %vm193, %v912
        %1042 = vst.msk [vmem:[%s979 + $0x26c] sm:$0xff] %vm193, %v913
        %1043 = vst.msk [vmem:[%s979 + $0x274] sm:$0xff] %vm193, %v914
        %1044 = vst.msk [vmem:[%s979 + $0x284] sm:$0xff] %vm193, %v915
        %1045 = vst.msk [vmem:[%s979 + $0x28c] sm:$0xff] %vm193, %v916
        %1046 = vst.msk [vmem:[%s979 + $0x294] sm:$0xff] %vm193, %v917
        %1047 = vst.msk [vmem:[%s979 + $0x29c] sm:$0xff] %vm193, %v918
        %1048 = vst.msk [vmem:[%s979 + $0x2ac] sm:$0xff] %vm193, %v919
        %1049 = vst.msk [vmem:[%s979 + $0x2b4] sm:$0xff] %vm193, %v920
        %1050 = vst.msk [vmem:[%s979 + $0x2bc] sm:$0xff] %vm193, %v921
        %1051 = vst.msk [vmem:[%s979 + $0x2c4] sm:$0xff] %vm193, %v922
        %1052 = vst.msk [vmem:[%s979 + $0x2d4] sm:$0xff] %vm193, %v923
        %1053 = vst.msk [vmem:[%s979 + $0x2dc] sm:$0xff] %vm193, %v924
        %1054 = vst.msk [vmem:[%s979 + $0x2e4] sm:$0xff] %vm193, %v925
        %1055 = vst.msk [vmem:[%s979 + $0x2ec] sm:$0xff] %vm193, %v926
        %1056 = vst.msk [vmem:[%s979 + $0x2fc] sm:$0xff] %vm193, %v927
        %1057 = vst.msk [vmem:[%s979 + $0x304] sm:$0xff] %vm193, %v928
        %1058 = vst.msk [vmem:[%s979 + $0x30c] sm:$0xff] %vm193, %v929
        %1059 = vst.msk [vmem:[%s979 + $0x314] sm:$0xff] %vm193, %v930
        %1060 = vst.msk [vmem:[%s979 + $0x324] sm:$0xff] %vm193, %v931
        %1061 = vst.msk [vmem:[%s979 + $0x32c] sm:$0xff] %vm193, %v932
        %1062 = vst.msk [vmem:[%s979 + $0x334] sm:$0xff] %vm193, %v933
        %1063 = vst.msk [vmem:[%s979 + $0x33c] sm:$0xff] %vm193, %v934
        %1064 = vst.msk [vmem:[%s979 + $0x34c] sm:$0xff] %vm193, %v935
        %1065 = vst.msk [vmem:[%s979 + $0x354] sm:$0xff] %vm193, %v936
        %1066 = vst.msk [vmem:[%s979 + $0x35c] sm:$0xff] %vm193, %v937
        %1067 = vst.msk [vmem:[%s979 + $0x364] sm:$0xff] %vm193, %v938
        %1068 = vst.msk [vmem:[%s979 + $0x374] sm:$0xff] %vm193, %v939
        %1069 = vst.msk [vmem:[%s979 + $0x37c] sm:$0xff] %vm193, %v940
        %1070 = vst.msk [vmem:[%s979 + $0x384] sm:$0xff] %vm193, %v941
        %1071 = vst.msk [vmem:[%s979 + $0x38c] sm:$0xff] %vm193, %v942
        %1072 = vst.msk [vmem:[%s979 + $0x39c] sm:$0xff] %vm193, %v943
        %1073 = vst.msk [vmem:[%s979 + $0x3a4] sm:$0xff] %vm193, %v944
        %1074 = vst.msk [vmem:[%s979 + $0x3ac] sm:$0xff] %vm193, %v945
        %1075 = vst.msk [vmem:[%s979 + $0x3b4] sm:$0xff] %vm193, %v946
        %1076 = vst.msk [vmem:[%s979 + $0x3c4] sm:$0xff] %vm193, %v947
        %1077 = vst.msk [vmem:[%s979 + $0x3cc] sm:$0xff] %vm193, %v948
        %1078 = vst.msk [vmem:[%s979 + $0x3d4] sm:$0xff] %vm193, %v949
        %1079 = vst.msk [vmem:[%s979 + $0x3dc] sm:$0xff] %vm193, %v950
        %1080 = vst.msk [vmem:[%s979 + $0x3ec] sm:$0xff] %vm193, %v951
        %1081 = vst.msk [vmem:[%s979 + $0x3f4] sm:$0xff] %vm193, %v952
        %1082 = vst.msk [vmem:[%s979 + $0x3fc] sm:$0xff] %vm193, %v953
        %1083 = vst.msk [vmem:[%s979 + $0x404] sm:$0xff] %vm193, %v954
        %1084 = vst.msk [vmem:[%s979 + $0x414] sm:$0xff] %vm193, %v955
        %1085 = vst.msk [vmem:[%s979 + $0x41c] sm:$0xff] %vm193, %v956
        %1086 = vst.msk [vmem:[%s979 + $0x424] sm:$0xff] %vm193, %v957
        %1087 = vst.msk [vmem:[%s979 + $0x42c] sm:$0xff] %vm193, %v958
        %1088 = vst.msk [vmem:[%s979 + $0x43c] sm:$0xff] %vm193, %v959
        %1089 = vst.msk [vmem:[%s979 + $0x444] sm:$0xff] %vm193, %v960
        %1090 = vst.msk [vmem:[%s979 + $0x44c] sm:$0xff] %vm193, %v961
        %1091 = vst.msk [vmem:[%s979 + $0x454] sm:$0xff] %vm193, %v962
        %1092 = vst.msk [vmem:[%s979 + $0x464] sm:$0xff] %vm193, %v963
        %1093 = vst.msk [vmem:[%s979 + $0x46c] sm:$0xff] %vm193, %v964
        %1094 = vst.msk [vmem:[%s979 + $0x474] sm:$0xff] %vm193, %v965
        %1095 = vst.msk [vmem:[%s979 + $0x47c] sm:$0xff] %vm193, %v966
        %1096 = vst.msk [vmem:[%s979 + $0x48c] sm:$0xff] %vm193, %v967
        %1097 = vst.msk [vmem:[%s979 + $0x494] sm:$0xff] %vm193, %v968
        %1098 = vst.msk [vmem:[%s979 + $0x49c] sm:$0xff] %vm193, %v969
        %1099 = vst.msk [vmem:[%s979 + $0x4a4] sm:$0xff] %vm193, %v970
        %1100 = vst.msk [vmem:[%s979 + $0x4b4] sm:$0xff] %vm193, %v971
        %1101 = vst.msk [vmem:[%s979 + $0x4bc] sm:$0xff] %vm193, %v972
        %1102 = vst.msk [vmem:[%s979 + $0x4c4] sm:$0xff] %vm193, %v973
        %1103 = vst.msk [vmem:[%s979 + $0x4cc] sm:$0xff] %vm193, %v974
        %1104 = vst.msk [vmem:[%s979 + $0x4dc] sm:$0xff] %vm193, %v975
        %1105 = vst.msk [vmem:[%s979 + $0x4e4] sm:$0xff] %vm193, %v976
        %1106 = vst.msk [vmem:[%s979 + $0x4ec] sm:$0xff] %vm193, %v977
        %1107 = vst.msk [vmem:[%s979 + $0x4f4] sm:$0xff] %vm193, %v978
      $region32: #{upsampling_module_forward.3} parent=27 // pred_fallthru
        _
      %s1108 = smul.u32 %s18, 8
      %s1109 = smul.u32 %s1108, 40
      %s1110 = scalar_lea.vmem [#allocation2], %s1109
      %v1111 = vld [vmem:[%s1110] sm:$0xff]
      %v1112 = vld [vmem:[%s1110 + $0x8] sm:$0xff]
      %v1113 = vld [vmem:[%s1110 + $0x10] sm:$0xff]
      %v1114 = vld [vmem:[%s1110 + $0x18] sm:$0xff]
      %v1115 = vld [vmem:[%s1110 + $0x20] sm:$0xff]
      %v1116 = vld [vmem:[%s1110 + $0x28] sm:$0xff]
      %v1117 = vld [vmem:[%s1110 + $0x30] sm:$0xff]
      %v1118 = vld [vmem:[%s1110 + $0x38] sm:$0xff]
      %v1119 = vld [vmem:[%s1110 + $0x40] sm:$0xff]
      %v1120 = vld [vmem:[%s1110 + $0x48] sm:$0xff]
      %v1121 = vld [vmem:[%s1110 + $0x50] sm:$0xff]
      %v1122 = vld [vmem:[%s1110 + $0x58] sm:$0xff]
      %v1123 = vld [vmem:[%s1110 + $0x60] sm:$0xff]
      %v1124 = vld [vmem:[%s1110 + $0x68] sm:$0xff]
      %v1125 = vld [vmem:[%s1110 + $0x70] sm:$0xff]
      %v1126 = vld [vmem:[%s1110 + $0x78] sm:$0xff]
      %v1127 = vld [vmem:[%s1110 + $0x80] sm:$0xff]
      %v1128 = vld [vmem:[%s1110 + $0x88] sm:$0xff]
      %v1129 = vld [vmem:[%s1110 + $0x90] sm:$0xff]
      %v1130 = vld [vmem:[%s1110 + $0x98] sm:$0xff]
      %v1131 = vld [vmem:[%s1110 + $0xa0] sm:$0xff]
      %v1132 = vld [vmem:[%s1110 + $0xa8] sm:$0xff]
      %v1133 = vld [vmem:[%s1110 + $0xb0] sm:$0xff]
      %v1134 = vld [vmem:[%s1110 + $0xb8] sm:$0xff]
      %v1135 = vld [vmem:[%s1110 + $0xc0] sm:$0xff]
      %v1136 = vld [vmem:[%s1110 + $0xc8] sm:$0xff]
      %v1137 = vld [vmem:[%s1110 + $0xd0] sm:$0xff]
      %v1138 = vld [vmem:[%s1110 + $0xd8] sm:$0xff]
      %v1139 = vld [vmem:[%s1110 + $0xe0] sm:$0xff]
      %v1140 = vld [vmem:[%s1110 + $0xe8] sm:$0xff]
      %v1141 = vld [vmem:[%s1110 + $0xf0] sm:$0xff]
      %v1142 = vld [vmem:[%s1110 + $0xf8] sm:$0xff]
      %v1143 = vld [vmem:[%s1110 + $0x100] sm:$0xff]
      %v1144 = vld [vmem:[%s1110 + $0x108] sm:$0xff]
      %v1145 = vld [vmem:[%s1110 + $0x110] sm:$0xff]
      %v1146 = vld [vmem:[%s1110 + $0x118] sm:$0xff]
      %v1147 = vld [vmem:[%s1110 + $0x120] sm:$0xff]
      %v1148 = vld [vmem:[%s1110 + $0x128] sm:$0xff]
      %v1149 = vld [vmem:[%s1110 + $0x130] sm:$0xff]
      %v1150 = vld [vmem:[%s1110 + $0x138] sm:$0xff]
      %v1151 = vld [vmem:[%s1110 + $0x140] sm:$0xff]
      %v1152 = vld [vmem:[%s1110 + $0x148] sm:$0xff]
      %v1153 = vld [vmem:[%s1110 + $0x150] sm:$0xff]
      %v1154 = vld [vmem:[%s1110 + $0x158] sm:$0xff]
      %v1155 = vld [vmem:[%s1110 + $0x160] sm:$0xff]
      %v1156 = vld [vmem:[%s1110 + $0x168] sm:$0xff]
      %v1157 = vld [vmem:[%s1110 + $0x170] sm:$0xff]
      %v1158 = vld [vmem:[%s1110 + $0x178] sm:$0xff]
      %v1159 = vld [vmem:[%s1110 + $0x180] sm:$0xff]
      %v1160 = vld [vmem:[%s1110 + $0x188] sm:$0xff]
      %v1161 = vld [vmem:[%s1110 + $0x190] sm:$0xff]
      %v1162 = vld [vmem:[%s1110 + $0x198] sm:$0xff]
      %v1163 = vld [vmem:[%s1110 + $0x1a0] sm:$0xff]
      %v1164 = vld [vmem:[%s1110 + $0x1a8] sm:$0xff]
      %v1165 = vld [vmem:[%s1110 + $0x1b0] sm:$0xff]
      %v1166 = vld [vmem:[%s1110 + $0x1b8] sm:$0xff]
      %v1167 = vld [vmem:[%s1110 + $0x1c0] sm:$0xff]
      %v1168 = vld [vmem:[%s1110 + $0x1c8] sm:$0xff]
      %v1169 = vld [vmem:[%s1110 + $0x1d0] sm:$0xff]
      %v1170 = vld [vmem:[%s1110 + $0x1d8] sm:$0xff]
      %v1171 = vld [vmem:[%s1110 + $0x1e0] sm:$0xff]
      %v1172 = vld [vmem:[%s1110 + $0x1e8] sm:$0xff]
      %v1173 = vld [vmem:[%s1110 + $0x1f0] sm:$0xff]
      %v1174 = vld [vmem:[%s1110 + $0x1f8] sm:$0xff]
      %v1175 = vld [vmem:[%s1110 + $0x200] sm:$0xff]
      %v1176 = vld [vmem:[%s1110 + $0x208] sm:$0xff]
      %v1177 = vld [vmem:[%s1110 + $0x210] sm:$0xff]
      %v1178 = vld [vmem:[%s1110 + $0x218] sm:$0xff]
      %v1179 = vld [vmem:[%s1110 + $0x220] sm:$0xff]
      %v1180 = vld [vmem:[%s1110 + $0x228] sm:$0xff]
      %v1181 = vld [vmem:[%s1110 + $0x230] sm:$0xff]
      %v1182 = vld [vmem:[%s1110 + $0x238] sm:$0xff]
      %v1183 = vld [vmem:[%s1110 + $0x240] sm:$0xff]
      %v1184 = vld [vmem:[%s1110 + $0x248] sm:$0xff]
      %v1185 = vld [vmem:[%s1110 + $0x250] sm:$0xff]
      %v1186 = vld [vmem:[%s1110 + $0x258] sm:$0xff]
      %v1187 = vld [vmem:[%s1110 + $0x260] sm:$0xff]
      %v1188 = vld [vmem:[%s1110 + $0x268] sm:$0xff]
      %v1189 = vld [vmem:[%s1110 + $0x270] sm:$0xff]
      %v1190 = vld [vmem:[%s1110 + $0x278] sm:$0xff]
      %s1191 = scalar_lea.vmem [#allocation3], %s1109
      %v1192 = vld [vmem:[%s1191] sm:$0xff]
      %v1193 = vld [vmem:[%s1191 + $0x8] sm:$0xff]
      %v1194 = vld [vmem:[%s1191 + $0x10] sm:$0xff]
      %v1195 = vld [vmem:[%s1191 + $0x18] sm:$0xff]
      %v1196 = vld [vmem:[%s1191 + $0x20] sm:$0xff]
      %v1197 = vld [vmem:[%s1191 + $0x28] sm:$0xff]
      %v1198 = vld [vmem:[%s1191 + $0x30] sm:$0xff]
      %v1199 = vld [vmem:[%s1191 + $0x38] sm:$0xff]
      %v1200 = vld [vmem:[%s1191 + $0x40] sm:$0xff]
      %v1201 = vld [vmem:[%s1191 + $0x48] sm:$0xff]
      %v1202 = vld [vmem:[%s1191 + $0x50] sm:$0xff]
      %v1203 = vld [vmem:[%s1191 + $0x58] sm:$0xff]
      %v1204 = vld [vmem:[%s1191 + $0x60] sm:$0xff]
      %v1205 = vld [vmem:[%s1191 + $0x68] sm:$0xff]
      %v1206 = vld [vmem:[%s1191 + $0x70] sm:$0xff]
      %v1207 = vld [vmem:[%s1191 + $0x78] sm:$0xff]
      %v1208 = vld [vmem:[%s1191 + $0x80] sm:$0xff]
      %v1209 = vld [vmem:[%s1191 + $0x88] sm:$0xff]
      %v1210 = vld [vmem:[%s1191 + $0x90] sm:$0xff]
      %v1211 = vld [vmem:[%s1191 + $0x98] sm:$0xff]
      %v1212 = vld [vmem:[%s1191 + $0xa0] sm:$0xff]
      %v1213 = vld [vmem:[%s1191 + $0xa8] sm:$0xff]
      %v1214 = vld [vmem:[%s1191 + $0xb0] sm:$0xff]
      %v1215 = vld [vmem:[%s1191 + $0xb8] sm:$0xff]
      %v1216 = vld [vmem:[%s1191 + $0xc0] sm:$0xff]
      %v1217 = vld [vmem:[%s1191 + $0xc8] sm:$0xff]
      %v1218 = vld [vmem:[%s1191 + $0xd0] sm:$0xff]
      %v1219 = vld [vmem:[%s1191 + $0xd8] sm:$0xff]
      %v1220 = vld [vmem:[%s1191 + $0xe0] sm:$0xff]
      %v1221 = vld [vmem:[%s1191 + $0xe8] sm:$0xff]
      %v1222 = vld [vmem:[%s1191 + $0xf0] sm:$0xff]
      %v1223 = vld [vmem:[%s1191 + $0xf8] sm:$0xff]
      %v1224 = vld [vmem:[%s1191 + $0x100] sm:$0xff]
      %v1225 = vld [vmem:[%s1191 + $0x108] sm:$0xff]
      %v1226 = vld [vmem:[%s1191 + $0x110] sm:$0xff]
      %v1227 = vld [vmem:[%s1191 + $0x118] sm:$0xff]
      %v1228 = vld [vmem:[%s1191 + $0x120] sm:$0xff]
      %v1229 = vld [vmem:[%s1191 + $0x128] sm:$0xff]
      %v1230 = vld [vmem:[%s1191 + $0x130] sm:$0xff]
      %v1231 = vld [vmem:[%s1191 + $0x138] sm:$0xff]
      %v1232 = vld [vmem:[%s1191 + $0x140] sm:$0xff]
      %v1233 = vld [vmem:[%s1191 + $0x148] sm:$0xff]
      %v1234 = vld [vmem:[%s1191 + $0x150] sm:$0xff]
      %v1235 = vld [vmem:[%s1191 + $0x158] sm:$0xff]
      %v1236 = vld [vmem:[%s1191 + $0x160] sm:$0xff]
      %v1237 = vld [vmem:[%s1191 + $0x168] sm:$0xff]
      %v1238 = vld [vmem:[%s1191 + $0x170] sm:$0xff]
      %v1239 = vld [vmem:[%s1191 + $0x178] sm:$0xff]
      %v1240 = vld [vmem:[%s1191 + $0x180] sm:$0xff]
      %v1241 = vld [vmem:[%s1191 + $0x188] sm:$0xff]
      %v1242 = vld [vmem:[%s1191 + $0x190] sm:$0xff]
      %v1243 = vld [vmem:[%s1191 + $0x198] sm:$0xff]
      %v1244 = vld [vmem:[%s1191 + $0x1a0] sm:$0xff]
      %v1245 = vld [vmem:[%s1191 + $0x1a8] sm:$0xff]
      %v1246 = vld [vmem:[%s1191 + $0x1b0] sm:$0xff]
      %v1247 = vld [vmem:[%s1191 + $0x1b8] sm:$0xff]
      %v1248 = vld [vmem:[%s1191 + $0x1c0] sm:$0xff]
      %v1249 = vld [vmem:[%s1191 + $0x1c8] sm:$0xff]
      %v1250 = vld [vmem:[%s1191 + $0x1d0] sm:$0xff]
      %v1251 = vld [vmem:[%s1191 + $0x1d8] sm:$0xff]
      %v1252 = vld [vmem:[%s1191 + $0x1e0] sm:$0xff]
      %v1253 = vld [vmem:[%s1191 + $0x1e8] sm:$0xff]
      %v1254 = vld [vmem:[%s1191 + $0x1f0] sm:$0xff]
      %v1255 = vld [vmem:[%s1191 + $0x1f8] sm:$0xff]
      %v1256 = vld [vmem:[%s1191 + $0x200] sm:$0xff]
      %v1257 = vld [vmem:[%s1191 + $0x208] sm:$0xff]
      %v1258 = vld [vmem:[%s1191 + $0x210] sm:$0xff]
      %v1259 = vld [vmem:[%s1191 + $0x218] sm:$0xff]
      %v1260 = vld [vmem:[%s1191 + $0x220] sm:$0xff]
      %v1261 = vld [vmem:[%s1191 + $0x228] sm:$0xff]
      %v1262 = vld [vmem:[%s1191 + $0x230] sm:$0xff]
      %v1263 = vld [vmem:[%s1191 + $0x238] sm:$0xff]
      %v1264 = vld [vmem:[%s1191 + $0x240] sm:$0xff]
      %v1265 = vld [vmem:[%s1191 + $0x248] sm:$0xff]
      %v1266 = vld [vmem:[%s1191 + $0x250] sm:$0xff]
      %v1267 = vld [vmem:[%s1191 + $0x258] sm:$0xff]
      %v1268 = vld [vmem:[%s1191 + $0x260] sm:$0xff]
      %v1269 = vld [vmem:[%s1191 + $0x268] sm:$0xff]
      %v1270 = vld [vmem:[%s1191 + $0x270] sm:$0xff]
      %v1271 = vld [vmem:[%s1191 + $0x278] sm:$0xff]
      %v1272 = vmul.f32 %v1111, %v1111
      %v1273 = vmul.f32 %v1112, %v1112
      %v1274 = vmul.f32 %v1113, %v1113
      %v1275 = vmul.f32 %v1114, %v1114
      %v1276 = vmul.f32 %v1115, %v1115
      %v1277 = vmul.f32 %v1116, %v1116
      %v1278 = vmul.f32 %v1117, %v1117
      %v1279 = vmul.f32 %v1118, %v1118
      %v1280 = vmul.f32 %v1119, %v1119
      %v1281 = vmul.f32 %v1120, %v1120
      %v1282 = vmul.f32 %v1121, %v1121
      %v1283 = vmul.f32 %v1122, %v1122
      %v1284 = vmul.f32 %v1123, %v1123
      %v1285 = vmul.f32 %v1124, %v1124
      %v1286 = vmul.f32 %v1125, %v1125
      %v1287 = vmul.f32 %v1126, %v1126
      %v1288 = vmul.f32 %v1127, %v1127
      %v1289 = vmul.f32 %v1128, %v1128
      %v1290 = vmul.f32 %v1129, %v1129
      %v1291 = vmul.f32 %v1130, %v1130
      %v1292 = vmul.f32 %v1131, %v1131
      %v1293 = vmul.f32 %v1132, %v1132
      %v1294 = vmul.f32 %v1133, %v1133
      %v1295 = vmul.f32 %v1134, %v1134
      %v1296 = vmul.f32 %v1135, %v1135
      %v1297 = vmul.f32 %v1136, %v1136
      %v1298 = vmul.f32 %v1137, %v1137
      %v1299 = vmul.f32 %v1138, %v1138
      %v1300 = vmul.f32 %v1139, %v1139
      %v1301 = vmul.f32 %v1140, %v1140
      %v1302 = vmul.f32 %v1141, %v1141
      %v1303 = vmul.f32 %v1142, %v1142
      %v1304 = vmul.f32 %v1143, %v1143
      %v1305 = vmul.f32 %v1144, %v1144
      %v1306 = vmul.f32 %v1145, %v1145
      %v1307 = vmul.f32 %v1146, %v1146
      %v1308 = vmul.f32 %v1147, %v1147
      %v1309 = vmul.f32 %v1148, %v1148
      %v1310 = vmul.f32 %v1149, %v1149
      %v1311 = vmul.f32 %v1150, %v1150
      %v1312 = vmul.f32 %v1151, %v1151
      %v1313 = vmul.f32 %v1152, %v1152
      %v1314 = vmul.f32 %v1153, %v1153
      %v1315 = vmul.f32 %v1154, %v1154
      %v1316 = vmul.f32 %v1155, %v1155
      %v1317 = vmul.f32 %v1156, %v1156
      %v1318 = vmul.f32 %v1157, %v1157
      %v1319 = vmul.f32 %v1158, %v1158
      %v1320 = vmul.f32 %v1159, %v1159
      %v1321 = vmul.f32 %v1160, %v1160
      %v1322 = vmul.f32 %v1161, %v1161
      %v1323 = vmul.f32 %v1162, %v1162
      %v1324 = vmul.f32 %v1163, %v1163
      %v1325 = vmul.f32 %v1164, %v1164
      %v1326 = vmul.f32 %v1165, %v1165
      %v1327 = vmul.f32 %v1166, %v1166
      %v1328 = vmul.f32 %v1167, %v1167
      %v1329 = vmul.f32 %v1168, %v1168
      %v1330 = vmul.f32 %v1169, %v1169
      %v1331 = vmul.f32 %v1170, %v1170
      %v1332 = vmul.f32 %v1171, %v1171
      %v1333 = vmul.f32 %v1172, %v1172
      %v1334 = vmul.f32 %v1173, %v1173
      %v1335 = vmul.f32 %v1174, %v1174
      %v1336 = vmul.f32 %v1175, %v1175
      %v1337 = vmul.f32 %v1176, %v1176
      %v1338 = vmul.f32 %v1177, %v1177
      %v1339 = vmul.f32 %v1178, %v1178
      %v1340 = vmul.f32 %v1179, %v1179
      %v1341 = vmul.f32 %v1180, %v1180
      %v1342 = vmul.f32 %v1181, %v1181
      %v1343 = vmul.f32 %v1182, %v1182
      %v1344 = vmul.f32 %v1183, %v1183
      %v1345 = vmul.f32 %v1184, %v1184
      %v1346 = vmul.f32 %v1185, %v1185
      %v1347 = vmul.f32 %v1186, %v1186
      %v1348 = vmul.f32 %v1187, %v1187
      %v1349 = vmul.f32 %v1188, %v1188
      %v1350 = vmul.f32 %v1189, %v1189
      %v1351 = vmul.f32 %v1190, %v1190
      %v1352 = vmul.f32 %v1192, %v1192
      %v1353 = vmul.f32 %v1193, %v1193
      %v1354 = vmul.f32 %v1194, %v1194
      %v1355 = vmul.f32 %v1195, %v1195
      %v1356 = vmul.f32 %v1196, %v1196
      %v1357 = vmul.f32 %v1197, %v1197
      %v1358 = vmul.f32 %v1198, %v1198
      %v1359 = vmul.f32 %v1199, %v1199
      %v1360 = vmul.f32 %v1200, %v1200
      %v1361 = vmul.f32 %v1201, %v1201
      %v1362 = vmul.f32 %v1202, %v1202
      %v1363 = vmul.f32 %v1203, %v1203
      %v1364 = vmul.f32 %v1204, %v1204
      %v1365 = vmul.f32 %v1205, %v1205
      %v1366 = vmul.f32 %v1206, %v1206
      %v1367 = vmul.f32 %v1207, %v1207
      %v1368 = vmul.f32 %v1208, %v1208
      %v1369 = vmul.f32 %v1209, %v1209
      %v1370 = vmul.f32 %v1210, %v1210
      %v1371 = vmul.f32 %v1211, %v1211
      %v1372 = vmul.f32 %v1212, %v1212
      %v1373 = vmul.f32 %v1213, %v1213
      %v1374 = vmul.f32 %v1214, %v1214
      %v1375 = vmul.f32 %v1215, %v1215
      %v1376 = vmul.f32 %v1216, %v1216
      %v1377 = vmul.f32 %v1217, %v1217
      %v1378 = vmul.f32 %v1218, %v1218
      %v1379 = vmul.f32 %v1219, %v1219
      %v1380 = vmul.f32 %v1220, %v1220
      %v1381 = vmul.f32 %v1221, %v1221
      %v1382 = vmul.f32 %v1222, %v1222
      %v1383 = vmul.f32 %v1223, %v1223
      %v1384 = vmul.f32 %v1224, %v1224
      %v1385 = vmul.f32 %v1225, %v1225
      %v1386 = vmul.f32 %v1226, %v1226
      %v1387 = vmul.f32 %v1227, %v1227
      %v1388 = vmul.f32 %v1228, %v1228
      %v1389 = vmul.f32 %v1229, %v1229
      %v1390 = vmul.f32 %v1230, %v1230
      %v1391 = vmul.f32 %v1231, %v1231
      %v1392 = vmul.f32 %v1232, %v1232
      %v1393 = vmul.f32 %v1233, %v1233
      %v1394 = vmul.f32 %v1234, %v1234
      %v1395 = vmul.f32 %v1235, %v1235
      %v1396 = vmul.f32 %v1236, %v1236
      %v1397 = vmul.f32 %v1237, %v1237
      %v1398 = vmul.f32 %v1238, %v1238
      %v1399 = vmul.f32 %v1239, %v1239
      %v1400 = vmul.f32 %v1240, %v1240
      %v1401 = vmul.f32 %v1241, %v1241
      %v1402 = vmul.f32 %v1242, %v1242
      %v1403 = vmul.f32 %v1243, %v1243
      %v1404 = vmul.f32 %v1244, %v1244
      %v1405 = vmul.f32 %v1245, %v1245
      %v1406 = vmul.f32 %v1246, %v1246
      %v1407 = vmul.f32 %v1247, %v1247
      %v1408 = vmul.f32 %v1248, %v1248
      %v1409 = vmul.f32 %v1249, %v1249
      %v1410 = vmul.f32 %v1250, %v1250
      %v1411 = vmul.f32 %v1251, %v1251
      %v1412 = vmul.f32 %v1252, %v1252
      %v1413 = vmul.f32 %v1253, %v1253
      %v1414 = vmul.f32 %v1254, %v1254
      %v1415 = vmul.f32 %v1255, %v1255
      %v1416 = vmul.f32 %v1256, %v1256
      %v1417 = vmul.f32 %v1257, %v1257
      %v1418 = vmul.f32 %v1258, %v1258
      %v1419 = vmul.f32 %v1259, %v1259
      %v1420 = vmul.f32 %v1260, %v1260
      %v1421 = vmul.f32 %v1261, %v1261
      %v1422 = vmul.f32 %v1262, %v1262
      %v1423 = vmul.f32 %v1263, %v1263
      %v1424 = vmul.f32 %v1264, %v1264
      %v1425 = vmul.f32 %v1265, %v1265
      %v1426 = vmul.f32 %v1266, %v1266
      %v1427 = vmul.f32 %v1267, %v1267
      %v1428 = vmul.f32 %v1268, %v1268
      %v1429 = vmul.f32 %v1269, %v1269
      %v1430 = vmul.f32 %v1270, %v1270
      %v1431 = vmul.f32 %v1271, %v1271
      %v1432 = vmul.f32 %v1111, %v1192
      %v1433 = vmul.f32 %v1112, %v1193
      %v1434 = vmul.f32 %v1113, %v1194
      %v1435 = vmul.f32 %v1114, %v1195
      %v1436 = vmul.f32 %v1115, %v1196
      %v1437 = vmul.f32 %v1116, %v1197
      %v1438 = vmul.f32 %v1117, %v1198
      %v1439 = vmul.f32 %v1118, %v1199
      %v1440 = vmul.f32 %v1119, %v1200
      %v1441 = vmul.f32 %v1120, %v1201
      %v1442 = vmul.f32 %v1121, %v1202
      %v1443 = vmul.f32 %v1122, %v1203
      %v1444 = vmul.f32 %v1123, %v1204
      %v1445 = vmul.f32 %v1124, %v1205
      %v1446 = vmul.f32 %v1125, %v1206
      %v1447 = vmul.f32 %v1126, %v1207
      %v1448 = vmul.f32 %v1127, %v1208
      %v1449 = vmul.f32 %v1128, %v1209
      %v1450 = vmul.f32 %v1129, %v1210
      %v1451 = vmul.f32 %v1130, %v1211
      %v1452 = vmul.f32 %v1131, %v1212
      %v1453 = vmul.f32 %v1132, %v1213
      %v1454 = vmul.f32 %v1133, %v1214
      %v1455 = vmul.f32 %v1134, %v1215
      %v1456 = vmul.f32 %v1135, %v1216
      %v1457 = vmul.f32 %v1136, %v1217
      %v1458 = vmul.f32 %v1137, %v1218
      %v1459 = vmul.f32 %v1138, %v1219
      %v1460 = vmul.f32 %v1139, %v1220
      %v1461 = vmul.f32 %v1140, %v1221
      %v1462 = vmul.f32 %v1141, %v1222
      %v1463 = vmul.f32 %v1142, %v1223
      %v1464 = vmul.f32 %v1143, %v1224
      %v1465 = vmul.f32 %v1144, %v1225
      %v1466 = vmul.f32 %v1145, %v1226
      %v1467 = vmul.f32 %v1146, %v1227
      %v1468 = vmul.f32 %v1147, %v1228
      %v1469 = vmul.f32 %v1148, %v1229
      %v1470 = vmul.f32 %v1149, %v1230
      %v1471 = vmul.f32 %v1150, %v1231
      %v1472 = vmul.f32 %v1151, %v1232
      %v1473 = vmul.f32 %v1152, %v1233
      %v1474 = vmul.f32 %v1153, %v1234
      %v1475 = vmul.f32 %v1154, %v1235
      %v1476 = vmul.f32 %v1155, %v1236
      %v1477 = vmul.f32 %v1156, %v1237
      %v1478 = vmul.f32 %v1157, %v1238
      %v1479 = vmul.f32 %v1158, %v1239
      %v1480 = vmul.f32 %v1159, %v1240
      %v1481 = vmul.f32 %v1160, %v1241
      %v1482 = vmul.f32 %v1161, %v1242
      %v1483 = vmul.f32 %v1162, %v1243
      %v1484 = vmul.f32 %v1163, %v1244
      %v1485 = vmul.f32 %v1164, %v1245
      %v1486 = vmul.f32 %v1165, %v1246
      %v1487 = vmul.f32 %v1166, %v1247
      %v1488 = vmul.f32 %v1167, %v1248
      %v1489 = vmul.f32 %v1168, %v1249
      %v1490 = vmul.f32 %v1169, %v1250
      %v1491 = vmul.f32 %v1170, %v1251
      %v1492 = vmul.f32 %v1171, %v1252
      %v1493 = vmul.f32 %v1172, %v1253
      %v1494 = vmul.f32 %v1173, %v1254
      %v1495 = vmul.f32 %v1174, %v1255
      %v1496 = vmul.f32 %v1175, %v1256
      %v1497 = vmul.f32 %v1176, %v1257
      %v1498 = vmul.f32 %v1177, %v1258
      %v1499 = vmul.f32 %v1178, %v1259
      %v1500 = vmul.f32 %v1179, %v1260
      %v1501 = vmul.f32 %v1180, %v1261
      %v1502 = vmul.f32 %v1181, %v1262
      %v1503 = vmul.f32 %v1182, %v1263
      %v1504 = vmul.f32 %v1183, %v1264
      %v1505 = vmul.f32 %v1184, %v1265
      %v1506 = vmul.f32 %v1185, %v1266
      %v1507 = vmul.f32 %v1186, %v1267
      %v1508 = vmul.f32 %v1187, %v1268
      %v1509 = vmul.f32 %v1188, %v1269
      %v1510 = vmul.f32 %v1189, %v1270
      %v1511 = vmul.f32 %v1190, %v1271
      %1592 = vrot.lane.b32.xlu0 %v1192, 16
      %v1593 = vpop.permute.xlu0 %1592
      %1594 = vrot.lane.b32.xlu0 %v1193, 16
      %v1595 = vpop.permute.xlu0 %1594
      %1596 = vrot.lane.b32.xlu0 %v1194, 16
      %v1597 = vpop.permute.xlu0 %1596
      %1598 = vrot.lane.b32.xlu0 %v1195, 16
      %v1599 = vpop.permute.xlu0 %1598
      %1600 = vrot.lane.b32.xlu0 %v1196, 16
      %v1601 = vpop.permute.xlu0 %1600
      %1602 = vrot.lane.b32.xlu0 %v1197, 16
      %v1603 = vpop.permute.xlu0 %1602
      %1604 = vrot.lane.b32.xlu0 %v1198, 16
      %v1605 = vpop.permute.xlu0 %1604
      %1606 = vrot.lane.b32.xlu0 %v1199, 16
      %v1607 = vpop.permute.xlu0 %1606
      %1608 = vrot.lane.b32.xlu0 %v1200, 16
      %v1609 = vpop.permute.xlu0 %1608
      %1610 = vrot.lane.b32.xlu0 %v1201, 16
      %v1611 = vpop.permute.xlu0 %1610
      %1612 = vrot.lane.b32.xlu0 %v1202, 16
      %v1613 = vpop.permute.xlu0 %1612
      %1614 = vrot.lane.b32.xlu0 %v1203, 16
      %v1615 = vpop.permute.xlu0 %1614
      %1616 = vrot.lane.b32.xlu0 %v1204, 16
      %v1617 = vpop.permute.xlu0 %1616
      %1618 = vrot.lane.b32.xlu0 %v1205, 16
      %v1619 = vpop.permute.xlu0 %1618
      %1620 = vrot.lane.b32.xlu0 %v1206, 16
      %v1621 = vpop.permute.xlu0 %1620
      %1622 = vrot.lane.b32.xlu0 %v1207, 16
      %v1623 = vpop.permute.xlu0 %1622
      %1624 = vrot.lane.b32.xlu0 %v1208, 16
      %v1625 = vpop.permute.xlu0 %1624
      %1626 = vrot.lane.b32.xlu0 %v1209, 16
      %v1627 = vpop.permute.xlu0 %1626
      %1628 = vrot.lane.b32.xlu0 %v1210, 16
      %v1629 = vpop.permute.xlu0 %1628
      %1630 = vrot.lane.b32.xlu0 %v1211, 16
      %v1631 = vpop.permute.xlu0 %1630
      %1632 = vrot.lane.b32.xlu0 %v1212, 16
      %v1633 = vpop.permute.xlu0 %1632
      %1634 = vrot.lane.b32.xlu0 %v1213, 16
      %v1635 = vpop.permute.xlu0 %1634
      %1636 = vrot.lane.b32.xlu0 %v1214, 16
      %v1637 = vpop.permute.xlu0 %1636
      %1638 = vrot.lane.b32.xlu0 %v1215, 16
      %v1639 = vpop.permute.xlu0 %1638
      %1640 = vrot.lane.b32.xlu0 %v1216, 16
      %v1641 = vpop.permute.xlu0 %1640
      %1642 = vrot.lane.b32.xlu0 %v1217, 16
      %v1643 = vpop.permute.xlu0 %1642
      %1644 = vrot.lane.b32.xlu0 %v1218, 16
      %v1645 = vpop.permute.xlu0 %1644
      %1646 = vrot.lane.b32.xlu0 %v1219, 16
      %v1647 = vpop.permute.xlu0 %1646
      %1648 = vrot.lane.b32.xlu0 %v1220, 16
      %v1649 = vpop.permute.xlu0 %1648
      %1650 = vrot.lane.b32.xlu0 %v1221, 16
      %v1651 = vpop.permute.xlu0 %1650
      %1652 = vrot.lane.b32.xlu0 %v1222, 16
      %v1653 = vpop.permute.xlu0 %1652
      %1654 = vrot.lane.b32.xlu0 %v1223, 16
      %v1655 = vpop.permute.xlu0 %1654
      %1656 = vrot.lane.b32.xlu0 %v1224, 16
      %v1657 = vpop.permute.xlu0 %1656
      %1658 = vrot.lane.b32.xlu0 %v1225, 16
      %v1659 = vpop.permute.xlu0 %1658
      %1660 = vrot.lane.b32.xlu0 %v1226, 16
      %v1661 = vpop.permute.xlu0 %1660
      %1662 = vrot.lane.b32.xlu0 %v1227, 16
      %v1663 = vpop.permute.xlu0 %1662
      %1664 = vrot.lane.b32.xlu0 %v1228, 16
      %v1665 = vpop.permute.xlu0 %1664
      %1666 = vrot.lane.b32.xlu0 %v1229, 16
      %v1667 = vpop.permute.xlu0 %1666
      %1668 = vrot.lane.b32.xlu0 %v1230, 16
      %v1669 = vpop.permute.xlu0 %1668
      %1670 = vrot.lane.b32.xlu0 %v1231, 16
      %v1671 = vpop.permute.xlu0 %1670
      %1672 = vrot.lane.b32.xlu0 %v1232, 16
      %v1673 = vpop.permute.xlu0 %1672
      %1674 = vrot.lane.b32.xlu0 %v1233, 16
      %v1675 = vpop.permute.xlu0 %1674
      %1676 = vrot.lane.b32.xlu0 %v1234, 16
      %v1677 = vpop.permute.xlu0 %1676
      %1678 = vrot.lane.b32.xlu0 %v1235, 16
      %v1679 = vpop.permute.xlu0 %1678
      %1680 = vrot.lane.b32.xlu0 %v1236, 16
      %v1681 = vpop.permute.xlu0 %1680
      %1682 = vrot.lane.b32.xlu0 %v1237, 16
      %v1683 = vpop.permute.xlu0 %1682
      %1684 = vrot.lane.b32.xlu0 %v1238, 16
      %v1685 = vpop.permute.xlu0 %1684
      %1686 = vrot.lane.b32.xlu0 %v1239, 16
      %v1687 = vpop.permute.xlu0 %1686
      %1688 = vrot.lane.b32.xlu0 %v1240, 16
      %v1689 = vpop.permute.xlu0 %1688
      %1690 = vrot.lane.b32.xlu0 %v1241, 16
      %v1691 = vpop.permute.xlu0 %1690
      %1692 = vrot.lane.b32.xlu0 %v1242, 16
      %v1693 = vpop.permute.xlu0 %1692
      %1694 = vrot.lane.b32.xlu0 %v1243, 16
      %v1695 = vpop.permute.xlu0 %1694
      %1696 = vrot.lane.b32.xlu0 %v1244, 16
      %v1697 = vpop.permute.xlu0 %1696
      %1698 = vrot.lane.b32.xlu0 %v1245, 16
      %v1699 = vpop.permute.xlu0 %1698
      %1700 = vrot.lane.b32.xlu0 %v1246, 16
      %v1701 = vpop.permute.xlu0 %1700
      %1702 = vrot.lane.b32.xlu0 %v1247, 16
      %v1703 = vpop.permute.xlu0 %1702
      %1704 = vrot.lane.b32.xlu0 %v1248, 16
      %v1705 = vpop.permute.xlu0 %1704
      %1706 = vrot.lane.b32.xlu0 %v1249, 16
      %v1707 = vpop.permute.xlu0 %1706
      %1708 = vrot.lane.b32.xlu0 %v1250, 16
      %v1709 = vpop.permute.xlu0 %1708
      %1710 = vrot.lane.b32.xlu0 %v1251, 16
      %v1711 = vpop.permute.xlu0 %1710
      %1712 = vrot.lane.b32.xlu0 %v1252, 16
      %v1713 = vpop.permute.xlu0 %1712
      %1714 = vrot.lane.b32.xlu0 %v1253, 16
      %v1715 = vpop.permute.xlu0 %1714
      %1716 = vrot.lane.b32.xlu0 %v1254, 16
      %v1717 = vpop.permute.xlu0 %1716
      %1718 = vrot.lane.b32.xlu0 %v1255, 16
      %v1719 = vpop.permute.xlu0 %1718
      %1720 = vrot.lane.b32.xlu0 %v1256, 16
      %v1721 = vpop.permute.xlu0 %1720
      %1722 = vrot.lane.b32.xlu0 %v1257, 16
      %v1723 = vpop.permute.xlu0 %1722
      %1724 = vrot.lane.b32.xlu0 %v1258, 16
      %v1725 = vpop.permute.xlu0 %1724
      %1726 = vrot.lane.b32.xlu0 %v1259, 16
      %v1727 = vpop.permute.xlu0 %1726
      %1728 = vrot.lane.b32.xlu0 %v1260, 16
      %v1729 = vpop.permute.xlu0 %1728
      %1730 = vrot.lane.b32.xlu0 %v1261, 16
      %v1731 = vpop.permute.xlu0 %1730
      %1732 = vrot.lane.b32.xlu0 %v1262, 16
      %v1733 = vpop.permute.xlu0 %1732
      %1734 = vrot.lane.b32.xlu0 %v1263, 16
      %v1735 = vpop.permute.xlu0 %1734
      %1736 = vrot.lane.b32.xlu0 %v1264, 16
      %v1737 = vpop.permute.xlu0 %1736
      %1738 = vrot.lane.b32.xlu0 %v1265, 16
      %v1739 = vpop.permute.xlu0 %1738
      %1740 = vrot.lane.b32.xlu0 %v1266, 16
      %v1741 = vpop.permute.xlu0 %1740
      %1742 = vrot.lane.b32.xlu0 %v1267, 16
      %v1743 = vpop.permute.xlu0 %1742
      %1744 = vrot.lane.b32.xlu0 %v1268, 16
      %v1745 = vpop.permute.xlu0 %1744
      %1746 = vrot.lane.b32.xlu0 %v1269, 16
      %v1747 = vpop.permute.xlu0 %1746
      %1748 = vrot.lane.b32.xlu0 %v1270, 16
      %v1749 = vpop.permute.xlu0 %1748
      %1750 = vrot.lane.b32.xlu0 %v1271, 16
      %v1751 = vpop.permute.xlu0 %1750
      %1912 = vrot.lane.b32.xlu0 %v1272, 32
      %v1913 = vpop.permute.xlu0 %1912
      %1914 = vrot.lane.b32.xlu0 %v1273, 32
      %v1915 = vpop.permute.xlu0 %1914
      %1916 = vrot.lane.b32.xlu0 %v1274, 32
      %v1917 = vpop.permute.xlu0 %1916
      %1918 = vrot.lane.b32.xlu0 %v1275, 32
      %v1919 = vpop.permute.xlu0 %1918
      %1920 = vrot.lane.b32.xlu0 %v1276, 32
      %v1921 = vpop.permute.xlu0 %1920
      %1922 = vrot.lane.b32.xlu0 %v1277, 32
      %v1923 = vpop.permute.xlu0 %1922
      %1924 = vrot.lane.b32.xlu0 %v1278, 32
      %v1925 = vpop.permute.xlu0 %1924
      %1926 = vrot.lane.b32.xlu0 %v1279, 32
      %v1927 = vpop.permute.xlu0 %1926
      %1928 = vrot.lane.b32.xlu0 %v1280, 32
      %v1929 = vpop.permute.xlu0 %1928
      %1930 = vrot.lane.b32.xlu0 %v1281, 32
      %v1931 = vpop.permute.xlu0 %1930
      %1932 = vrot.lane.b32.xlu0 %v1282, 32
      %v1933 = vpop.permute.xlu0 %1932
      %1934 = vrot.lane.b32.xlu0 %v1283, 32
      %v1935 = vpop.permute.xlu0 %1934
      %1936 = vrot.lane.b32.xlu0 %v1284, 32
      %v1937 = vpop.permute.xlu0 %1936
      %1938 = vrot.lane.b32.xlu0 %v1285, 32
      %v1939 = vpop.permute.xlu0 %1938
      %1940 = vrot.lane.b32.xlu0 %v1286, 32
      %v1941 = vpop.permute.xlu0 %1940
      %1942 = vrot.lane.b32.xlu0 %v1287, 32
      %v1943 = vpop.permute.xlu0 %1942
      %1944 = vrot.lane.b32.xlu0 %v1288, 32
      %v1945 = vpop.permute.xlu0 %1944
      %1946 = vrot.lane.b32.xlu0 %v1289, 32
      %v1947 = vpop.permute.xlu0 %1946
      %1948 = vrot.lane.b32.xlu0 %v1290, 32
      %v1949 = vpop.permute.xlu0 %1948
      %1950 = vrot.lane.b32.xlu0 %v1291, 32
      %v1951 = vpop.permute.xlu0 %1950
      %1952 = vrot.lane.b32.xlu0 %v1292, 32
      %v1953 = vpop.permute.xlu0 %1952
      %1954 = vrot.lane.b32.xlu0 %v1293, 32
      %v1955 = vpop.permute.xlu0 %1954
      %1956 = vrot.lane.b32.xlu0 %v1294, 32
      %v1957 = vpop.permute.xlu0 %1956
      %1958 = vrot.lane.b32.xlu0 %v1295, 32
      %v1959 = vpop.permute.xlu0 %1958
      %1960 = vrot.lane.b32.xlu0 %v1296, 32
      %v1961 = vpop.permute.xlu0 %1960
      %1962 = vrot.lane.b32.xlu0 %v1297, 32
      %v1963 = vpop.permute.xlu0 %1962
      %1964 = vrot.lane.b32.xlu0 %v1298, 32
      %v1965 = vpop.permute.xlu0 %1964
      %1966 = vrot.lane.b32.xlu0 %v1299, 32
      %v1967 = vpop.permute.xlu0 %1966
      %1968 = vrot.lane.b32.xlu0 %v1300, 32
      %v1969 = vpop.permute.xlu0 %1968
      %1970 = vrot.lane.b32.xlu0 %v1301, 32
      %v1971 = vpop.permute.xlu0 %1970
      %1972 = vrot.lane.b32.xlu0 %v1302, 32
      %v1973 = vpop.permute.xlu0 %1972
      %1974 = vrot.lane.b32.xlu0 %v1303, 32
      %v1975 = vpop.permute.xlu0 %1974
      %1976 = vrot.lane.b32.xlu0 %v1304, 32
      %v1977 = vpop.permute.xlu0 %1976
      %1978 = vrot.lane.b32.xlu0 %v1305, 32
      %v1979 = vpop.permute.xlu0 %1978
      %1980 = vrot.lane.b32.xlu0 %v1306, 32
      %v1981 = vpop.permute.xlu0 %1980
      %1982 = vrot.lane.b32.xlu0 %v1307, 32
      %v1983 = vpop.permute.xlu0 %1982
      %1984 = vrot.lane.b32.xlu0 %v1308, 32
      %v1985 = vpop.permute.xlu0 %1984
      %1986 = vrot.lane.b32.xlu0 %v1309, 32
      %v1987 = vpop.permute.xlu0 %1986
      %1988 = vrot.lane.b32.xlu0 %v1310, 32
      %v1989 = vpop.permute.xlu0 %1988
      %1990 = vrot.lane.b32.xlu0 %v1311, 32
      %v1991 = vpop.permute.xlu0 %1990
      %1992 = vrot.lane.b32.xlu0 %v1312, 32
      %v1993 = vpop.permute.xlu0 %1992
      %1994 = vrot.lane.b32.xlu0 %v1313, 32
      %v1995 = vpop.permute.xlu0 %1994
      %1996 = vrot.lane.b32.xlu0 %v1314, 32
      %v1997 = vpop.permute.xlu0 %1996
      %1998 = vrot.lane.b32.xlu0 %v1315, 32
      %v1999 = vpop.permute.xlu0 %1998
      %2000 = vrot.lane.b32.xlu0 %v1316, 32
      %v2001 = vpop.permute.xlu0 %2000
      %2002 = vrot.lane.b32.xlu0 %v1317, 32
      %v2003 = vpop.permute.xlu0 %2002
      %2004 = vrot.lane.b32.xlu0 %v1318, 32
      %v2005 = vpop.permute.xlu0 %2004
      %2006 = vrot.lane.b32.xlu0 %v1319, 32
      %v2007 = vpop.permute.xlu0 %2006
      %2008 = vrot.lane.b32.xlu0 %v1320, 32
      %v2009 = vpop.permute.xlu0 %2008
      %2010 = vrot.lane.b32.xlu0 %v1321, 32
      %v2011 = vpop.permute.xlu0 %2010
      %2012 = vrot.lane.b32.xlu0 %v1322, 32
      %v2013 = vpop.permute.xlu0 %2012
      %2014 = vrot.lane.b32.xlu0 %v1323, 32
      %v2015 = vpop.permute.xlu0 %2014
      %2016 = vrot.lane.b32.xlu0 %v1324, 32
      %v2017 = vpop.permute.xlu0 %2016
      %2018 = vrot.lane.b32.xlu0 %v1325, 32
      %v2019 = vpop.permute.xlu0 %2018
      %2020 = vrot.lane.b32.xlu0 %v1326, 32
      %v2021 = vpop.permute.xlu0 %2020
      %2022 = vrot.lane.b32.xlu0 %v1327, 32
      %v2023 = vpop.permute.xlu0 %2022
      %2024 = vrot.lane.b32.xlu0 %v1328, 32
      %v2025 = vpop.permute.xlu0 %2024
      %2026 = vrot.lane.b32.xlu0 %v1329, 32
      %v2027 = vpop.permute.xlu0 %2026
      %2028 = vrot.lane.b32.xlu0 %v1330, 32
      %v2029 = vpop.permute.xlu0 %2028
      %2030 = vrot.lane.b32.xlu0 %v1331, 32
      %v2031 = vpop.permute.xlu0 %2030
      %2032 = vrot.lane.b32.xlu0 %v1332, 32
      %v2033 = vpop.permute.xlu0 %2032
      %2034 = vrot.lane.b32.xlu0 %v1333, 32
      %v2035 = vpop.permute.xlu0 %2034
      %2036 = vrot.lane.b32.xlu0 %v1334, 32
      %v2037 = vpop.permute.xlu0 %2036
      %2038 = vrot.lane.b32.xlu0 %v1335, 32
      %v2039 = vpop.permute.xlu0 %2038
      %2040 = vrot.lane.b32.xlu0 %v1336, 32
      %v2041 = vpop.permute.xlu0 %2040
      %2042 = vrot.lane.b32.xlu0 %v1337, 32
      %v2043 = vpop.permute.xlu0 %2042
      %2044 = vrot.lane.b32.xlu0 %v1338, 32
      %v2045 = vpop.permute.xlu0 %2044
      %2046 = vrot.lane.b32.xlu0 %v1339, 32
      %v2047 = vpop.permute.xlu0 %2046
      %2048 = vrot.lane.b32.xlu0 %v1340, 32
      %v2049 = vpop.permute.xlu0 %2048
      %2050 = vrot.lane.b32.xlu0 %v1341, 32
      %v2051 = vpop.permute.xlu0 %2050
      %2052 = vrot.lane.b32.xlu0 %v1342, 32
      %v2053 = vpop.permute.xlu0 %2052
      %2054 = vrot.lane.b32.xlu0 %v1343, 32
      %v2055 = vpop.permute.xlu0 %2054
      %2056 = vrot.lane.b32.xlu0 %v1344, 32
      %v2057 = vpop.permute.xlu0 %2056
      %2058 = vrot.lane.b32.xlu0 %v1345, 32
      %v2059 = vpop.permute.xlu0 %2058
      %2060 = vrot.lane.b32.xlu0 %v1346, 32
      %v2061 = vpop.permute.xlu0 %2060
      %2062 = vrot.lane.b32.xlu0 %v1347, 32
      %v2063 = vpop.permute.xlu0 %2062
      %2064 = vrot.lane.b32.xlu0 %v1348, 32
      %v2065 = vpop.permute.xlu0 %2064
      %2066 = vrot.lane.b32.xlu0 %v1349, 32
      %v2067 = vpop.permute.xlu0 %2066
      %2068 = vrot.lane.b32.xlu0 %v1350, 32
      %v2069 = vpop.permute.xlu0 %2068
      %2070 = vrot.lane.b32.xlu0 %v1351, 32
      %v2071 = vpop.permute.xlu0 %2070
      %2232 = vrot.lane.b32.xlu0 %v1352, 48
      %v2233 = vpop.permute.xlu0 %2232
      %2234 = vrot.lane.b32.xlu0 %v1353, 48
      %v2235 = vpop.permute.xlu0 %2234
      %2236 = vrot.lane.b32.xlu0 %v1354, 48
      %v2237 = vpop.permute.xlu0 %2236
      %2238 = vrot.lane.b32.xlu0 %v1355, 48
      %v2239 = vpop.permute.xlu0 %2238
      %2240 = vrot.lane.b32.xlu0 %v1356, 48
      %v2241 = vpop.permute.xlu0 %2240
      %2242 = vrot.lane.b32.xlu0 %v1357, 48
      %v2243 = vpop.permute.xlu0 %2242
      %2244 = vrot.lane.b32.xlu0 %v1358, 48
      %v2245 = vpop.permute.xlu0 %2244
      %2246 = vrot.lane.b32.xlu0 %v1359, 48
      %v2247 = vpop.permute.xlu0 %2246
      %2248 = vrot.lane.b32.xlu0 %v1360, 48
      %v2249 = vpop.permute.xlu0 %2248
      %2250 = vrot.lane.b32.xlu0 %v1361, 48
      %v2251 = vpop.permute.xlu0 %2250
      %2252 = vrot.lane.b32.xlu0 %v1362, 48
      %v2253 = vpop.permute.xlu0 %2252
      %2254 = vrot.lane.b32.xlu0 %v1363, 48
      %v2255 = vpop.permute.xlu0 %2254
      %2256 = vrot.lane.b32.xlu0 %v1364, 48
      %v2257 = vpop.permute.xlu0 %2256
      %2258 = vrot.lane.b32.xlu0 %v1365, 48
      %v2259 = vpop.permute.xlu0 %2258
      %2260 = vrot.lane.b32.xlu0 %v1366, 48
      %v2261 = vpop.permute.xlu0 %2260
      %2262 = vrot.lane.b32.xlu0 %v1367, 48
      %v2263 = vpop.permute.xlu0 %2262
      %2264 = vrot.lane.b32.xlu0 %v1368, 48
      %v2265 = vpop.permute.xlu0 %2264
      %2266 = vrot.lane.b32.xlu0 %v1369, 48
      %v2267 = vpop.permute.xlu0 %2266
      %2268 = vrot.lane.b32.xlu0 %v1370, 48
      %v2269 = vpop.permute.xlu0 %2268
      %2270 = vrot.lane.b32.xlu0 %v1371, 48
      %v2271 = vpop.permute.xlu0 %2270
      %2272 = vrot.lane.b32.xlu0 %v1372, 48
      %v2273 = vpop.permute.xlu0 %2272
      %2274 = vrot.lane.b32.xlu0 %v1373, 48
      %v2275 = vpop.permute.xlu0 %2274
      %2276 = vrot.lane.b32.xlu0 %v1374, 48
      %v2277 = vpop.permute.xlu0 %2276
      %2278 = vrot.lane.b32.xlu0 %v1375, 48
      %v2279 = vpop.permute.xlu0 %2278
      %2280 = vrot.lane.b32.xlu0 %v1376, 48
      %v2281 = vpop.permute.xlu0 %2280
      %2282 = vrot.lane.b32.xlu0 %v1377, 48
      %v2283 = vpop.permute.xlu0 %2282
      %2284 = vrot.lane.b32.xlu0 %v1378, 48
      %v2285 = vpop.permute.xlu0 %2284
      %2286 = vrot.lane.b32.xlu0 %v1379, 48
      %v2287 = vpop.permute.xlu0 %2286
      %2288 = vrot.lane.b32.xlu0 %v1380, 48
      %v2289 = vpop.permute.xlu0 %2288
      %2290 = vrot.lane.b32.xlu0 %v1381, 48
      %v2291 = vpop.permute.xlu0 %2290
      %2292 = vrot.lane.b32.xlu0 %v1382, 48
      %v2293 = vpop.permute.xlu0 %2292
      %2294 = vrot.lane.b32.xlu0 %v1383, 48
      %v2295 = vpop.permute.xlu0 %2294
      %2296 = vrot.lane.b32.xlu0 %v1384, 48
      %v2297 = vpop.permute.xlu0 %2296
      %2298 = vrot.lane.b32.xlu0 %v1385, 48
      %v2299 = vpop.permute.xlu0 %2298
      %2300 = vrot.lane.b32.xlu0 %v1386, 48
      %v2301 = vpop.permute.xlu0 %2300
      %2302 = vrot.lane.b32.xlu0 %v1387, 48
      %v2303 = vpop.permute.xlu0 %2302
      %2304 = vrot.lane.b32.xlu0 %v1388, 48
      %v2305 = vpop.permute.xlu0 %2304
      %2306 = vrot.lane.b32.xlu0 %v1389, 48
      %v2307 = vpop.permute.xlu0 %2306
      %2308 = vrot.lane.b32.xlu0 %v1390, 48
      %v2309 = vpop.permute.xlu0 %2308
      %2310 = vrot.lane.b32.xlu0 %v1391, 48
      %v2311 = vpop.permute.xlu0 %2310
      %2312 = vrot.lane.b32.xlu0 %v1392, 48
      %v2313 = vpop.permute.xlu0 %2312
      %2314 = vrot.lane.b32.xlu0 %v1393, 48
      %v2315 = vpop.permute.xlu0 %2314
      %2316 = vrot.lane.b32.xlu0 %v1394, 48
      %v2317 = vpop.permute.xlu0 %2316
      %2318 = vrot.lane.b32.xlu0 %v1395, 48
      %v2319 = vpop.permute.xlu0 %2318
      %2320 = vrot.lane.b32.xlu0 %v1396, 48
      %v2321 = vpop.permute.xlu0 %2320
      %2322 = vrot.lane.b32.xlu0 %v1397, 48
      %v2323 = vpop.permute.xlu0 %2322
      %2324 = vrot.lane.b32.xlu0 %v1398, 48
      %v2325 = vpop.permute.xlu0 %2324
      %2326 = vrot.lane.b32.xlu0 %v1399, 48
      %v2327 = vpop.permute.xlu0 %2326
      %2328 = vrot.lane.b32.xlu0 %v1400, 48
      %v2329 = vpop.permute.xlu0 %2328
      %2330 = vrot.lane.b32.xlu0 %v1401, 48
      %v2331 = vpop.permute.xlu0 %2330
      %2332 = vrot.lane.b32.xlu0 %v1402, 48
      %v2333 = vpop.permute.xlu0 %2332
      %2334 = vrot.lane.b32.xlu0 %v1403, 48
      %v2335 = vpop.permute.xlu0 %2334
      %2336 = vrot.lane.b32.xlu0 %v1404, 48
      %v2337 = vpop.permute.xlu0 %2336
      %2338 = vrot.lane.b32.xlu0 %v1405, 48
      %v2339 = vpop.permute.xlu0 %2338
      %2340 = vrot.lane.b32.xlu0 %v1406, 48
      %v2341 = vpop.permute.xlu0 %2340
      %2342 = vrot.lane.b32.xlu0 %v1407, 48
      %v2343 = vpop.permute.xlu0 %2342
      %2344 = vrot.lane.b32.xlu0 %v1408, 48
      %v2345 = vpop.permute.xlu0 %2344
      %2346 = vrot.lane.b32.xlu0 %v1409, 48
      %v2347 = vpop.permute.xlu0 %2346
      %2348 = vrot.lane.b32.xlu0 %v1410, 48
      %v2349 = vpop.permute.xlu0 %2348
      %2350 = vrot.lane.b32.xlu0 %v1411, 48
      %v2351 = vpop.permute.xlu0 %2350
      %2352 = vrot.lane.b32.xlu0 %v1412, 48
      %v2353 = vpop.permute.xlu0 %2352
      %2354 = vrot.lane.b32.xlu0 %v1413, 48
      %v2355 = vpop.permute.xlu0 %2354
      %2356 = vrot.lane.b32.xlu0 %v1414, 48
      %v2357 = vpop.permute.xlu0 %2356
      %2358 = vrot.lane.b32.xlu0 %v1415, 48
      %v2359 = vpop.permute.xlu0 %2358
      %2360 = vrot.lane.b32.xlu0 %v1416, 48
      %v2361 = vpop.permute.xlu0 %2360
      %2362 = vrot.lane.b32.xlu0 %v1417, 48
      %v2363 = vpop.permute.xlu0 %2362
      %2364 = vrot.lane.b32.xlu0 %v1418, 48
      %v2365 = vpop.permute.xlu0 %2364
      %2366 = vrot.lane.b32.xlu0 %v1419, 48
      %v2367 = vpop.permute.xlu0 %2366
      %2368 = vrot.lane.b32.xlu0 %v1420, 48
      %v2369 = vpop.permute.xlu0 %2368
      %2370 = vrot.lane.b32.xlu0 %v1421, 48
      %v2371 = vpop.permute.xlu0 %2370
      %2372 = vrot.lane.b32.xlu0 %v1422, 48
      %v2373 = vpop.permute.xlu0 %2372
      %2374 = vrot.lane.b32.xlu0 %v1423, 48
      %v2375 = vpop.permute.xlu0 %2374
      %2376 = vrot.lane.b32.xlu0 %v1424, 48
      %v2377 = vpop.permute.xlu0 %2376
      %2378 = vrot.lane.b32.xlu0 %v1425, 48
      %v2379 = vpop.permute.xlu0 %2378
      %2380 = vrot.lane.b32.xlu0 %v1426, 48
      %v2381 = vpop.permute.xlu0 %2380
      %2382 = vrot.lane.b32.xlu0 %v1427, 48
      %v2383 = vpop.permute.xlu0 %2382
      %2384 = vrot.lane.b32.xlu0 %v1428, 48
      %v2385 = vpop.permute.xlu0 %2384
      %2386 = vrot.lane.b32.xlu0 %v1429, 48
      %v2387 = vpop.permute.xlu0 %2386
      %2388 = vrot.lane.b32.xlu0 %v1430, 48
      %v2389 = vpop.permute.xlu0 %2388
      %2390 = vrot.lane.b32.xlu0 %v1431, 48
      %v2391 = vpop.permute.xlu0 %2390
      %2552 = vrot.lane.b32.xlu0 %v1432, 64
      %v2553 = vpop.permute.xlu0 %2552
      %2554 = vrot.lane.b32.xlu0 %v1433, 64
      %v2555 = vpop.permute.xlu0 %2554
      %2556 = vrot.lane.b32.xlu0 %v1434, 64
      %v2557 = vpop.permute.xlu0 %2556
      %2558 = vrot.lane.b32.xlu0 %v1435, 64
      %v2559 = vpop.permute.xlu0 %2558
      %2560 = vrot.lane.b32.xlu0 %v1436, 64
      %v2561 = vpop.permute.xlu0 %2560
      %2562 = vrot.lane.b32.xlu0 %v1437, 64
      %v2563 = vpop.permute.xlu0 %2562
      %2564 = vrot.lane.b32.xlu0 %v1438, 64
      %v2565 = vpop.permute.xlu0 %2564
      %2566 = vrot.lane.b32.xlu0 %v1439, 64
      %v2567 = vpop.permute.xlu0 %2566
      %2568 = vrot.lane.b32.xlu0 %v1440, 64
      %v2569 = vpop.permute.xlu0 %2568
      %2570 = vrot.lane.b32.xlu0 %v1441, 64
      %v2571 = vpop.permute.xlu0 %2570
      %2572 = vrot.lane.b32.xlu0 %v1442, 64
      %v2573 = vpop.permute.xlu0 %2572
      %2574 = vrot.lane.b32.xlu0 %v1443, 64
      %v2575 = vpop.permute.xlu0 %2574
      %2576 = vrot.lane.b32.xlu0 %v1444, 64
      %v2577 = vpop.permute.xlu0 %2576
      %2578 = vrot.lane.b32.xlu0 %v1445, 64
      %v2579 = vpop.permute.xlu0 %2578
      %2580 = vrot.lane.b32.xlu0 %v1446, 64
      %v2581 = vpop.permute.xlu0 %2580
      %2582 = vrot.lane.b32.xlu0 %v1447, 64
      %v2583 = vpop.permute.xlu0 %2582
      %2584 = vrot.lane.b32.xlu0 %v1448, 64
      %v2585 = vpop.permute.xlu0 %2584
      %2586 = vrot.lane.b32.xlu0 %v1449, 64
      %v2587 = vpop.permute.xlu0 %2586
      %2588 = vrot.lane.b32.xlu0 %v1450, 64
      %v2589 = vpop.permute.xlu0 %2588
      %2590 = vrot.lane.b32.xlu0 %v1451, 64
      %v2591 = vpop.permute.xlu0 %2590
      %2592 = vrot.lane.b32.xlu0 %v1452, 64
      %v2593 = vpop.permute.xlu0 %2592
      %2594 = vrot.lane.b32.xlu0 %v1453, 64
      %v2595 = vpop.permute.xlu0 %2594
      %2596 = vrot.lane.b32.xlu0 %v1454, 64
      %v2597 = vpop.permute.xlu0 %2596
      %2598 = vrot.lane.b32.xlu0 %v1455, 64
      %v2599 = vpop.permute.xlu0 %2598
      %2600 = vrot.lane.b32.xlu0 %v1456, 64
      %v2601 = vpop.permute.xlu0 %2600
      %2602 = vrot.lane.b32.xlu0 %v1457, 64
      %v2603 = vpop.permute.xlu0 %2602
      %2604 = vrot.lane.b32.xlu0 %v1458, 64
      %v2605 = vpop.permute.xlu0 %2604
      %2606 = vrot.lane.b32.xlu0 %v1459, 64
      %v2607 = vpop.permute.xlu0 %2606
      %2608 = vrot.lane.b32.xlu0 %v1460, 64
      %v2609 = vpop.permute.xlu0 %2608
      %2610 = vrot.lane.b32.xlu0 %v1461, 64
      %v2611 = vpop.permute.xlu0 %2610
      %2612 = vrot.lane.b32.xlu0 %v1462, 64
      %v2613 = vpop.permute.xlu0 %2612
      %2614 = vrot.lane.b32.xlu0 %v1463, 64
      %v2615 = vpop.permute.xlu0 %2614
      %2616 = vrot.lane.b32.xlu0 %v1464, 64
      %v2617 = vpop.permute.xlu0 %2616
      %2618 = vrot.lane.b32.xlu0 %v1465, 64
      %v2619 = vpop.permute.xlu0 %2618
      %2620 = vrot.lane.b32.xlu0 %v1466, 64
      %v2621 = vpop.permute.xlu0 %2620
      %2622 = vrot.lane.b32.xlu0 %v1467, 64
      %v2623 = vpop.permute.xlu0 %2622
      %2624 = vrot.lane.b32.xlu0 %v1468, 64
      %v2625 = vpop.permute.xlu0 %2624
      %2626 = vrot.lane.b32.xlu0 %v1469, 64
      %v2627 = vpop.permute.xlu0 %2626
      %2628 = vrot.lane.b32.xlu0 %v1470, 64
      %v2629 = vpop.permute.xlu0 %2628
      %2630 = vrot.lane.b32.xlu0 %v1471, 64
      %v2631 = vpop.permute.xlu0 %2630
      %2632 = vrot.lane.b32.xlu0 %v1472, 64
      %v2633 = vpop.permute.xlu0 %2632
      %2634 = vrot.lane.b32.xlu0 %v1473, 64
      %v2635 = vpop.permute.xlu0 %2634
      %2636 = vrot.lane.b32.xlu0 %v1474, 64
      %v2637 = vpop.permute.xlu0 %2636
      %2638 = vrot.lane.b32.xlu0 %v1475, 64
      %v2639 = vpop.permute.xlu0 %2638
      %2640 = vrot.lane.b32.xlu0 %v1476, 64
      %v2641 = vpop.permute.xlu0 %2640
      %2642 = vrot.lane.b32.xlu0 %v1477, 64
      %v2643 = vpop.permute.xlu0 %2642
      %2644 = vrot.lane.b32.xlu0 %v1478, 64
      %v2645 = vpop.permute.xlu0 %2644
      %2646 = vrot.lane.b32.xlu0 %v1479, 64
      %v2647 = vpop.permute.xlu0 %2646
      %2648 = vrot.lane.b32.xlu0 %v1480, 64
      %v2649 = vpop.permute.xlu0 %2648
      %2650 = vrot.lane.b32.xlu0 %v1481, 64
      %v2651 = vpop.permute.xlu0 %2650
      %2652 = vrot.lane.b32.xlu0 %v1482, 64
      %v2653 = vpop.permute.xlu0 %2652
      %2654 = vrot.lane.b32.xlu0 %v1483, 64
      %v2655 = vpop.permute.xlu0 %2654
      %2656 = vrot.lane.b32.xlu0 %v1484, 64
      %v2657 = vpop.permute.xlu0 %2656
      %2658 = vrot.lane.b32.xlu0 %v1485, 64
      %v2659 = vpop.permute.xlu0 %2658
      %2660 = vrot.lane.b32.xlu0 %v1486, 64
      %v2661 = vpop.permute.xlu0 %2660
      %2662 = vrot.lane.b32.xlu0 %v1487, 64
      %v2663 = vpop.permute.xlu0 %2662
      %2664 = vrot.lane.b32.xlu0 %v1488, 64
      %v2665 = vpop.permute.xlu0 %2664
      %2666 = vrot.lane.b32.xlu0 %v1489, 64
      %v2667 = vpop.permute.xlu0 %2666
      %2668 = vrot.lane.b32.xlu0 %v1490, 64
      %v2669 = vpop.permute.xlu0 %2668
      %2670 = vrot.lane.b32.xlu0 %v1491, 64
      %v2671 = vpop.permute.xlu0 %2670
      %2672 = vrot.lane.b32.xlu0 %v1492, 64
      %v2673 = vpop.permute.xlu0 %2672
      %2674 = vrot.lane.b32.xlu0 %v1493, 64
      %v2675 = vpop.permute.xlu0 %2674
      %2676 = vrot.lane.b32.xlu0 %v1494, 64
      %v2677 = vpop.permute.xlu0 %2676
      %2678 = vrot.lane.b32.xlu0 %v1495, 64
      %v2679 = vpop.permute.xlu0 %2678
      %2680 = vrot.lane.b32.xlu0 %v1496, 64
      %v2681 = vpop.permute.xlu0 %2680
      %2682 = vrot.lane.b32.xlu0 %v1497, 64
      %v2683 = vpop.permute.xlu0 %2682
      %2684 = vrot.lane.b32.xlu0 %v1498, 64
      %v2685 = vpop.permute.xlu0 %2684
      %2686 = vrot.lane.b32.xlu0 %v1499, 64
      %v2687 = vpop.permute.xlu0 %2686
      %2688 = vrot.lane.b32.xlu0 %v1500, 64
      %v2689 = vpop.permute.xlu0 %2688
      %2690 = vrot.lane.b32.xlu0 %v1501, 64
      %v2691 = vpop.permute.xlu0 %2690
      %2692 = vrot.lane.b32.xlu0 %v1502, 64
      %v2693 = vpop.permute.xlu0 %2692
      %2694 = vrot.lane.b32.xlu0 %v1503, 64
      %v2695 = vpop.permute.xlu0 %2694
      %2696 = vrot.lane.b32.xlu0 %v1504, 64
      %v2697 = vpop.permute.xlu0 %2696
      %2698 = vrot.lane.b32.xlu0 %v1505, 64
      %v2699 = vpop.permute.xlu0 %2698
      %2700 = vrot.lane.b32.xlu0 %v1506, 64
      %v2701 = vpop.permute.xlu0 %2700
      %2702 = vrot.lane.b32.xlu0 %v1507, 64
      %v2703 = vpop.permute.xlu0 %2702
      %2704 = vrot.lane.b32.xlu0 %v1508, 64
      %v2705 = vpop.permute.xlu0 %2704
      %2706 = vrot.lane.b32.xlu0 %v1509, 64
      %v2707 = vpop.permute.xlu0 %2706
      %2708 = vrot.lane.b32.xlu0 %v1510, 64
      %v2709 = vpop.permute.xlu0 %2708
      %2710 = vrot.lane.b32.xlu0 %v1511, 64
      %v2711 = vpop.permute.xlu0 %2710
      %vm2792 = vcmask 130048
      %v2793 = vsel %vm2792, %v1111, %v1593
      %v2794 = vsel %vm2792, %v1112, %v1595
      %v2795 = vsel %vm2792, %v1113, %v1597
      %v2796 = vsel %vm2792, %v1114, %v1599
      %v2797 = vsel %vm2792, %v1115, %v1601
      %v2798 = vsel %vm2792, %v1116, %v1603
      %v2799 = vsel %vm2792, %v1117, %v1605
      %v2800 = vsel %vm2792, %v1118, %v1607
      %v2801 = vsel %vm2792, %v1119, %v1609
      %v2802 = vsel %vm2792, %v1120, %v1611
      %v2803 = vsel %vm2792, %v1121, %v1613
      %v2804 = vsel %vm2792, %v1122, %v1615
      %v2805 = vsel %vm2792, %v1123, %v1617
      %v2806 = vsel %vm2792, %v1124, %v1619
      %v2807 = vsel %vm2792, %v1125, %v1621
      %v2808 = vsel %vm2792, %v1126, %v1623
      %v2809 = vsel %vm2792, %v1127, %v1625
      %v2810 = vsel %vm2792, %v1128, %v1627
      %v2811 = vsel %vm2792, %v1129, %v1629
      %v2812 = vsel %vm2792, %v1130, %v1631
      %v2813 = vsel %vm2792, %v1131, %v1633
      %v2814 = vsel %vm2792, %v1132, %v1635
      %v2815 = vsel %vm2792, %v1133, %v1637
      %v2816 = vsel %vm2792, %v1134, %v1639
      %v2817 = vsel %vm2792, %v1135, %v1641
      %v2818 = vsel %vm2792, %v1136, %v1643
      %v2819 = vsel %vm2792, %v1137, %v1645
      %v2820 = vsel %vm2792, %v1138, %v1647
      %v2821 = vsel %vm2792, %v1139, %v1649
      %v2822 = vsel %vm2792, %v1140, %v1651
      %v2823 = vsel %vm2792, %v1141, %v1653
      %v2824 = vsel %vm2792, %v1142, %v1655
      %v2825 = vsel %vm2792, %v1143, %v1657
      %v2826 = vsel %vm2792, %v1144, %v1659
      %v2827 = vsel %vm2792, %v1145, %v1661
      %v2828 = vsel %vm2792, %v1146, %v1663
      %v2829 = vsel %vm2792, %v1147, %v1665
      %v2830 = vsel %vm2792, %v1148, %v1667
      %v2831 = vsel %vm2792, %v1149, %v1669
      %v2832 = vsel %vm2792, %v1150, %v1671
      %v2833 = vsel %vm2792, %v1151, %v1673
      %v2834 = vsel %vm2792, %v1152, %v1675
      %v2835 = vsel %vm2792, %v1153, %v1677
      %v2836 = vsel %vm2792, %v1154, %v1679
      %v2837 = vsel %vm2792, %v1155, %v1681
      %v2838 = vsel %vm2792, %v1156, %v1683
      %v2839 = vsel %vm2792, %v1157, %v1685
      %v2840 = vsel %vm2792, %v1158, %v1687
      %v2841 = vsel %vm2792, %v1159, %v1689
      %v2842 = vsel %vm2792, %v1160, %v1691
      %v2843 = vsel %vm2792, %v1161, %v1693
      %v2844 = vsel %vm2792, %v1162, %v1695
      %v2845 = vsel %vm2792, %v1163, %v1697
      %v2846 = vsel %vm2792, %v1164, %v1699
      %v2847 = vsel %vm2792, %v1165, %v1701
      %v2848 = vsel %vm2792, %v1166, %v1703
      %v2849 = vsel %vm2792, %v1167, %v1705
      %v2850 = vsel %vm2792, %v1168, %v1707
      %v2851 = vsel %vm2792, %v1169, %v1709
      %v2852 = vsel %vm2792, %v1170, %v1711
      %v2853 = vsel %vm2792, %v1171, %v1713
      %v2854 = vsel %vm2792, %v1172, %v1715
      %v2855 = vsel %vm2792, %v1173, %v1717
      %v2856 = vsel %vm2792, %v1174, %v1719
      %v2857 = vsel %vm2792, %v1175, %v1721
      %v2858 = vsel %vm2792, %v1176, %v1723
      %v2859 = vsel %vm2792, %v1177, %v1725
      %v2860 = vsel %vm2792, %v1178, %v1727
      %v2861 = vsel %vm2792, %v1179, %v1729
      %v2862 = vsel %vm2792, %v1180, %v1731
      %v2863 = vsel %vm2792, %v1181, %v1733
      %v2864 = vsel %vm2792, %v1182, %v1735
      %v2865 = vsel %vm2792, %v1183, %v1737
      %v2866 = vsel %vm2792, %v1184, %v1739
      %v2867 = vsel %vm2792, %v1185, %v1741
      %v2868 = vsel %vm2792, %v1186, %v1743
      %v2869 = vsel %vm2792, %v1187, %v1745
      %v2870 = vsel %vm2792, %v1188, %v1747
      %v2871 = vsel %vm2792, %v1189, %v1749
      %v2872 = vsel %vm2792, %v1190, %v1751
      %vm2873 = vcmask 261120
      %v2874 = vsel %vm2873, %v2793, %v1913
      %v2875 = vsel %vm2873, %v2794, %v1915
      %v2876 = vsel %vm2873, %v2795, %v1917
      %v2877 = vsel %vm2873, %v2796, %v1919
      %v2878 = vsel %vm2873, %v2797, %v1921
      %v2879 = vsel %vm2873, %v2798, %v1923
      %v2880 = vsel %vm2873, %v2799, %v1925
      %v2881 = vsel %vm2873, %v2800, %v1927
      %v2882 = vsel %vm2873, %v2801, %v1929
      %v2883 = vsel %vm2873, %v2802, %v1931
      %v2884 = vsel %vm2873, %v2803, %v1933
      %v2885 = vsel %vm2873, %v2804, %v1935
      %v2886 = vsel %vm2873, %v2805, %v1937
      %v2887 = vsel %vm2873, %v2806, %v1939
      %v2888 = vsel %vm2873, %v2807, %v1941
      %v2889 = vsel %vm2873, %v2808, %v1943
      %v2890 = vsel %vm2873, %v2809, %v1945
      %v2891 = vsel %vm2873, %v2810, %v1947
      %v2892 = vsel %vm2873, %v2811, %v1949
      %v2893 = vsel %vm2873, %v2812, %v1951
      %v2894 = vsel %vm2873, %v2813, %v1953
      %v2895 = vsel %vm2873, %v2814, %v1955
      %v2896 = vsel %vm2873, %v2815, %v1957
      %v2897 = vsel %vm2873, %v2816, %v1959
      %v2898 = vsel %vm2873, %v2817, %v1961
      %v2899 = vsel %vm2873, %v2818, %v1963
      %v2900 = vsel %vm2873, %v2819, %v1965
      %v2901 = vsel %vm2873, %v2820, %v1967
      %v2902 = vsel %vm2873, %v2821, %v1969
      %v2903 = vsel %vm2873, %v2822, %v1971
      %v2904 = vsel %vm2873, %v2823, %v1973
      %v2905 = vsel %vm2873, %v2824, %v1975
      %v2906 = vsel %vm2873, %v2825, %v1977
      %v2907 = vsel %vm2873, %v2826, %v1979
      %v2908 = vsel %vm2873, %v2827, %v1981
      %v2909 = vsel %vm2873, %v2828, %v1983
      %v2910 = vsel %vm2873, %v2829, %v1985
      %v2911 = vsel %vm2873, %v2830, %v1987
      %v2912 = vsel %vm2873, %v2831, %v1989
      %v2913 = vsel %vm2873, %v2832, %v1991
      %v2914 = vsel %vm2873, %v2833, %v1993
      %v2915 = vsel %vm2873, %v2834, %v1995
      %v2916 = vsel %vm2873, %v2835, %v1997
      %v2917 = vsel %vm2873, %v2836, %v1999
      %v2918 = vsel %vm2873, %v2837, %v2001
      %v2919 = vsel %vm2873, %v2838, %v2003
      %v2920 = vsel %vm2873, %v2839, %v2005
      %v2921 = vsel %vm2873, %v2840, %v2007
      %v2922 = vsel %vm2873, %v2841, %v2009
      %v2923 = vsel %vm2873, %v2842, %v2011
      %v2924 = vsel %vm2873, %v2843, %v2013
      %v2925 = vsel %vm2873, %v2844, %v2015
      %v2926 = vsel %vm2873, %v2845, %v2017
      %v2927 = vsel %vm2873, %v2846, %v2019
      %v2928 = vsel %vm2873, %v2847, %v2021
      %v2929 = vsel %vm2873, %v2848, %v2023
      %v2930 = vsel %vm2873, %v2849, %v2025
      %v2931 = vsel %vm2873, %v2850, %v2027
      %v2932 = vsel %vm2873, %v2851, %v2029
      %v2933 = vsel %vm2873, %v2852, %v2031
      %v2934 = vsel %vm2873, %v2853, %v2033
      %v2935 = vsel %vm2873, %v2854, %v2035
      %v2936 = vsel %vm2873, %v2855, %v2037
      %v2937 = vsel %vm2873, %v2856, %v2039
      %v2938 = vsel %vm2873, %v2857, %v2041
      %v2939 = vsel %vm2873, %v2858, %v2043
      %v2940 = vsel %vm2873, %v2859, %v2045
      %v2941 = vsel %vm2873, %v2860, %v2047
      %v2942 = vsel %vm2873, %v2861, %v2049
      %v2943 = vsel %vm2873, %v2862, %v2051
      %v2944 = vsel %vm2873, %v2863, %v2053
      %v2945 = vsel %vm2873, %v2864, %v2055
      %v2946 = vsel %vm2873, %v2865, %v2057
      %v2947 = vsel %vm2873, %v2866, %v2059
      %v2948 = vsel %vm2873, %v2867, %v2061
      %v2949 = vsel %vm2873, %v2868, %v2063
      %v2950 = vsel %vm2873, %v2869, %v2065
      %v2951 = vsel %vm2873, %v2870, %v2067
      %v2952 = vsel %vm2873, %v2871, %v2069
      %v2953 = vsel %vm2873, %v2872, %v2071
      %vm2954 = vcmask 392192
      %v2955 = vsel %vm2954, %v2874, %v2233
      %v2956 = vsel %vm2954, %v2875, %v2235
      %v2957 = vsel %vm2954, %v2876, %v2237
      %v2958 = vsel %vm2954, %v2877, %v2239
      %v2959 = vsel %vm2954, %v2878, %v2241
      %v2960 = vsel %vm2954, %v2879, %v2243
      %v2961 = vsel %vm2954, %v2880, %v2245
      %v2962 = vsel %vm2954, %v2881, %v2247
      %v2963 = vsel %vm2954, %v2882, %v2249
      %v2964 = vsel %vm2954, %v2883, %v2251
      %v2965 = vsel %vm2954, %v2884, %v2253
      %v2966 = vsel %vm2954, %v2885, %v2255
      %v2967 = vsel %vm2954, %v2886, %v2257
      %v2968 = vsel %vm2954, %v2887, %v2259
      %v2969 = vsel %vm2954, %v2888, %v2261
      %v2970 = vsel %vm2954, %v2889, %v2263
      %v2971 = vsel %vm2954, %v2890, %v2265
      %v2972 = vsel %vm2954, %v2891, %v2267
      %v2973 = vsel %vm2954, %v2892, %v2269
      %v2974 = vsel %vm2954, %v2893, %v2271
      %v2975 = vsel %vm2954, %v2894, %v2273
      %v2976 = vsel %vm2954, %v2895, %v2275
      %v2977 = vsel %vm2954, %v2896, %v2277
      %v2978 = vsel %vm2954, %v2897, %v2279
      %v2979 = vsel %vm2954, %v2898, %v2281
      %v2980 = vsel %vm2954, %v2899, %v2283
      %v2981 = vsel %vm2954, %v2900, %v2285
      %v2982 = vsel %vm2954, %v2901, %v2287
      %v2983 = vsel %vm2954, %v2902, %v2289
      %v2984 = vsel %vm2954, %v2903, %v2291
      %v2985 = vsel %vm2954, %v2904, %v2293
      %v2986 = vsel %vm2954, %v2905, %v2295
      %v2987 = vsel %vm2954, %v2906, %v2297
      %v2988 = vsel %vm2954, %v2907, %v2299
      %v2989 = vsel %vm2954, %v2908, %v2301
      %v2990 = vsel %vm2954, %v2909, %v2303
      %v2991 = vsel %vm2954, %v2910, %v2305
      %v2992 = vsel %vm2954, %v2911, %v2307
      %v2993 = vsel %vm2954, %v2912, %v2309
      %v2994 = vsel %vm2954, %v2913, %v2311
      %v2995 = vsel %vm2954, %v2914, %v2313
      %v2996 = vsel %vm2954, %v2915, %v2315
      %v2997 = vsel %vm2954, %v2916, %v2317
      %v2998 = vsel %vm2954, %v2917, %v2319
      %v2999 = vsel %vm2954, %v2918, %v2321
      %v3000 = vsel %vm2954, %v2919, %v2323
      %v3001 = vsel %vm2954, %v2920, %v2325
      %v3002 = vsel %vm2954, %v2921, %v2327
      %v3003 = vsel %vm2954, %v2922, %v2329
      %v3004 = vsel %vm2954, %v2923, %v2331
      %v3005 = vsel %vm2954, %v2924, %v2333
      %v3006 = vsel %vm2954, %v2925, %v2335
      %v3007 = vsel %vm2954, %v2926, %v2337
      %v3008 = vsel %vm2954, %v2927, %v2339
      %v3009 = vsel %vm2954, %v2928, %v2341
      %v3010 = vsel %vm2954, %v2929, %v2343
      %v3011 = vsel %vm2954, %v2930, %v2345
      %v3012 = vsel %vm2954, %v2931, %v2347
      %v3013 = vsel %vm2954, %v2932, %v2349
      %v3014 = vsel %vm2954, %v2933, %v2351
      %v3015 = vsel %vm2954, %v2934, %v2353
      %v3016 = vsel %vm2954, %v2935, %v2355
      %v3017 = vsel %vm2954, %v2936, %v2357
      %v3018 = vsel %vm2954, %v2937, %v2359
      %v3019 = vsel %vm2954, %v2938, %v2361
      %v3020 = vsel %vm2954, %v2939, %v2363
      %v3021 = vsel %vm2954, %v2940, %v2365
      %v3022 = vsel %vm2954, %v2941, %v2367
      %v3023 = vsel %vm2954, %v2942, %v2369
      %v3024 = vsel %vm2954, %v2943, %v2371
      %v3025 = vsel %vm2954, %v2944, %v2373
      %v3026 = vsel %vm2954, %v2945, %v2375
      %v3027 = vsel %vm2954, %v2946, %v2377
      %v3028 = vsel %vm2954, %v2947, %v2379
      %v3029 = vsel %vm2954, %v2948, %v2381
      %v3030 = vsel %vm2954, %v2949, %v2383
      %v3031 = vsel %vm2954, %v2950, %v2385
      %v3032 = vsel %vm2954, %v2951, %v2387
      %v3033 = vsel %vm2954, %v2952, %v2389
      %v3034 = vsel %vm2954, %v2953, %v2391
      %vm3035 = vcmask 523264
      %v3036 = vsel %vm3035, %v2955, %v2553
      %v3037 = vsel %vm3035, %v2956, %v2555
      %v3038 = vsel %vm3035, %v2957, %v2557
      %v3039 = vsel %vm3035, %v2958, %v2559
      %v3040 = vsel %vm3035, %v2959, %v2561
      %v3041 = vsel %vm3035, %v2960, %v2563
      %v3042 = vsel %vm3035, %v2961, %v2565
      %v3043 = vsel %vm3035, %v2962, %v2567
      %v3044 = vsel %vm3035, %v2963, %v2569
      %v3045 = vsel %vm3035, %v2964, %v2571
      %v3046 = vsel %vm3035, %v2965, %v2573
      %v3047 = vsel %vm3035, %v2966, %v2575
      %v3048 = vsel %vm3035, %v2967, %v2577
      %v3049 = vsel %vm3035, %v2968, %v2579
      %v3050 = vsel %vm3035, %v2969, %v2581
      %v3051 = vsel %vm3035, %v2970, %v2583
      %v3052 = vsel %vm3035, %v2971, %v2585
      %v3053 = vsel %vm3035, %v2972, %v2587
      %v3054 = vsel %vm3035, %v2973, %v2589
      %v3055 = vsel %vm3035, %v2974, %v2591
      %v3056 = vsel %vm3035, %v2975, %v2593
      %v3057 = vsel %vm3035, %v2976, %v2595
      %v3058 = vsel %vm3035, %v2977, %v2597
      %v3059 = vsel %vm3035, %v2978, %v2599
      %v3060 = vsel %vm3035, %v2979, %v2601
      %v3061 = vsel %vm3035, %v2980, %v2603
      %v3062 = vsel %vm3035, %v2981, %v2605
      %v3063 = vsel %vm3035, %v2982, %v2607
      %v3064 = vsel %vm3035, %v2983, %v2609
      %v3065 = vsel %vm3035, %v2984, %v2611
      %v3066 = vsel %vm3035, %v2985, %v2613
      %v3067 = vsel %vm3035, %v2986, %v2615
      %v3068 = vsel %vm3035, %v2987, %v2617
      %v3069 = vsel %vm3035, %v2988, %v2619
      %v3070 = vsel %vm3035, %v2989, %v2621
      %v3071 = vsel %vm3035, %v2990, %v2623
      %v3072 = vsel %vm3035, %v2991, %v2625
      %v3073 = vsel %vm3035, %v2992, %v2627
      %v3074 = vsel %vm3035, %v2993, %v2629
      %v3075 = vsel %vm3035, %v2994, %v2631
      %v3076 = vsel %vm3035, %v2995, %v2633
      %v3077 = vsel %vm3035, %v2996, %v2635
      %v3078 = vsel %vm3035, %v2997, %v2637
      %v3079 = vsel %vm3035, %v2998, %v2639
      %v3080 = vsel %vm3035, %v2999, %v2641
      %v3081 = vsel %vm3035, %v3000, %v2643
      %v3082 = vsel %vm3035, %v3001, %v2645
      %v3083 = vsel %vm3035, %v3002, %v2647
      %v3084 = vsel %vm3035, %v3003, %v2649
      %v3085 = vsel %vm3035, %v3004, %v2651
      %v3086 = vsel %vm3035, %v3005, %v2653
      %v3087 = vsel %vm3035, %v3006, %v2655
      %v3088 = vsel %vm3035, %v3007, %v2657
      %v3089 = vsel %vm3035, %v3008, %v2659
      %v3090 = vsel %vm3035, %v3009, %v2661
      %v3091 = vsel %vm3035, %v3010, %v2663
      %v3092 = vsel %vm3035, %v3011, %v2665
      %v3093 = vsel %vm3035, %v3012, %v2667
      %v3094 = vsel %vm3035, %v3013, %v2669
      %v3095 = vsel %vm3035, %v3014, %v2671
      %v3096 = vsel %vm3035, %v3015, %v2673
      %v3097 = vsel %vm3035, %v3016, %v2675
      %v3098 = vsel %vm3035, %v3017, %v2677
      %v3099 = vsel %vm3035, %v3018, %v2679
      %v3100 = vsel %vm3035, %v3019, %v2681
      %v3101 = vsel %vm3035, %v3020, %v2683
      %v3102 = vsel %vm3035, %v3021, %v2685
      %v3103 = vsel %vm3035, %v3022, %v2687
      %v3104 = vsel %vm3035, %v3023, %v2689
      %v3105 = vsel %vm3035, %v3024, %v2691
      %v3106 = vsel %vm3035, %v3025, %v2693
      %v3107 = vsel %vm3035, %v3026, %v2695
      %v3108 = vsel %vm3035, %v3027, %v2697
      %v3109 = vsel %vm3035, %v3028, %v2699
      %v3110 = vsel %vm3035, %v3029, %v2701
      %v3111 = vsel %vm3035, %v3030, %v2703
      %v3112 = vsel %vm3035, %v3031, %v2705
      %v3113 = vsel %vm3035, %v3032, %v2707
      %v3114 = vsel %vm3035, %v3033, %v2709
      %v3115 = vsel %vm3035, %v3034, %v2711
      %v3116 = vmul.f32 %v3036, 0.0076144193
      %v3117 = vmul.f32 %v3037, 0.0076144193
      %v3118 = vmul.f32 %v3038, 0.0076144193
      %v3119 = vmul.f32 %v3039, 0.0076144193
      %v3120 = vmul.f32 %v3041, 0.0076144193
      %v3121 = vmul.f32 %v3042, 0.0076144193
      %v3122 = vmul.f32 %v3043, 0.0076144193
      %v3123 = vmul.f32 %v3044, 0.0076144193
      %v3124 = vmul.f32 %v3046, 0.0076144193
      %v3125 = vmul.f32 %v3047, 0.0076144193
      %v3126 = vmul.f32 %v3048, 0.0076144193
      %v3127 = vmul.f32 %v3049, 0.0076144193
      %v3128 = vmul.f32 %v3051, 0.0076144193
      %v3129 = vmul.f32 %v3052, 0.0076144193
      %v3130 = vmul.f32 %v3053, 0.0076144193
      %v3131 = vmul.f32 %v3054, 0.0076144193
      %v3132 = vmul.f32 %v3056, 0.0076144193
      %v3133 = vmul.f32 %v3057, 0.0076144193
      %v3134 = vmul.f32 %v3058, 0.0076144193
      %v3135 = vmul.f32 %v3059, 0.0076144193
      %v3136 = vmul.f32 %v3061, 0.0076144193
      %v3137 = vmul.f32 %v3062, 0.0076144193
      %v3138 = vmul.f32 %v3063, 0.0076144193
      %v3139 = vmul.f32 %v3064, 0.0076144193
      %v3140 = vmul.f32 %v3066, 0.0076144193
      %v3141 = vmul.f32 %v3067, 0.0076144193
      %v3142 = vmul.f32 %v3068, 0.0076144193
      %v3143 = vmul.f32 %v3069, 0.0076144193
      %v3144 = vmul.f32 %v3071, 0.0076144193
      %v3145 = vmul.f32 %v3072, 0.0076144193
      %v3146 = vmul.f32 %v3073, 0.0076144193
      %v3147 = vmul.f32 %v3074, 0.0076144193
      %v3148 = vmul.f32 %v3076, 0.0076144193
      %v3149 = vmul.f32 %v3077, 0.0076144193
      %v3150 = vmul.f32 %v3078, 0.0076144193
      %v3151 = vmul.f32 %v3079, 0.0076144193
      %v3152 = vmul.f32 %v3081, 0.0076144193
      %v3153 = vmul.f32 %v3082, 0.0076144193
      %v3154 = vmul.f32 %v3083, 0.0076144193
      %v3155 = vmul.f32 %v3084, 0.0076144193
      %v3156 = vmul.f32 %v3086, 0.0076144193
      %v3157 = vmul.f32 %v3087, 0.0076144193
      %v3158 = vmul.f32 %v3088, 0.0076144193
      %v3159 = vmul.f32 %v3089, 0.0076144193
      %v3160 = vmul.f32 %v3091, 0.0076144193
      %v3161 = vmul.f32 %v3092, 0.0076144193
      %v3162 = vmul.f32 %v3093, 0.0076144193
      %v3163 = vmul.f32 %v3094, 0.0076144193
      %v3164 = vmul.f32 %v3096, 0.0076144193
      %v3165 = vmul.f32 %v3097, 0.0076144193
      %v3166 = vmul.f32 %v3098, 0.0076144193
      %v3167 = vmul.f32 %v3099, 0.0076144193
      %v3168 = vmul.f32 %v3101, 0.0076144193
      %v3169 = vmul.f32 %v3102, 0.0076144193
      %v3170 = vmul.f32 %v3103, 0.0076144193
      %v3171 = vmul.f32 %v3104, 0.0076144193
      %v3172 = vmul.f32 %v3106, 0.0076144193
      %v3173 = vmul.f32 %v3107, 0.0076144193
      %v3174 = vmul.f32 %v3108, 0.0076144193
      %v3175 = vmul.f32 %v3109, 0.0076144193
      %v3176 = vmul.f32 %v3111, 0.0076144193
      %v3177 = vmul.f32 %v3112, 0.0076144193
      %v3178 = vmul.f32 %v3113, 0.0076144193
      %v3179 = vmul.f32 %v3114, 0.0076144193
      %v3180 = vmul.f32 %v3036, 0.03607497
      %v3181 = vmul.f32 %v3037, 0.03607497
      %v3182 = vmul.f32 %v3038, 0.03607497
      %v3183 = vmul.f32 %v3039, 0.03607497
      %v3184 = vmul.f32 %v3040, 0.03607497
      %v3185 = vmul.f32 %v3041, 0.03607497
      %v3186 = vmul.f32 %v3042, 0.03607497
      %v3187 = vmul.f32 %v3043, 0.03607497
      %v3188 = vmul.f32 %v3044, 0.03607497
      %v3189 = vmul.f32 %v3045, 0.03607497
      %v3190 = vmul.f32 %v3046, 0.03607497
      %v3191 = vmul.f32 %v3047, 0.03607497
      %v3192 = vmul.f32 %v3048, 0.03607497
      %v3193 = vmul.f32 %v3049, 0.03607497
      %v3194 = vmul.f32 %v3050, 0.03607497
      %v3195 = vmul.f32 %v3051, 0.03607497
      %v3196 = vmul.f32 %v3052, 0.03607497
      %v3197 = vmul.f32 %v3053, 0.03607497
      %v3198 = vmul.f32 %v3054, 0.03607497
      %v3199 = vmul.f32 %v3055, 0.03607497
      %v3200 = vmul.f32 %v3056, 0.03607497
      %v3201 = vmul.f32 %v3057, 0.03607497
      %v3202 = vmul.f32 %v3058, 0.03607497
      %v3203 = vmul.f32 %v3059, 0.03607497
      %v3204 = vmul.f32 %v3060, 0.03607497
      %v3205 = vmul.f32 %v3061, 0.03607497
      %v3206 = vmul.f32 %v3062, 0.03607497
      %v3207 = vmul.f32 %v3063, 0.03607497
      %v3208 = vmul.f32 %v3064, 0.03607497
      %v3209 = vmul.f32 %v3065, 0.03607497
      %v3210 = vmul.f32 %v3066, 0.03607497
      %v3211 = vmul.f32 %v3067, 0.03607497
      %v3212 = vmul.f32 %v3068, 0.03607497
      %v3213 = vmul.f32 %v3069, 0.03607497
      %v3214 = vmul.f32 %v3070, 0.03607497
      %v3215 = vmul.f32 %v3071, 0.03607497
      %v3216 = vmul.f32 %v3072, 0.03607497
      %v3217 = vmul.f32 %v3073, 0.03607497
      %v3218 = vmul.f32 %v3074, 0.03607497
      %v3219 = vmul.f32 %v3075, 0.03607497
      %v3220 = vmul.f32 %v3076, 0.03607497
      %v3221 = vmul.f32 %v3077, 0.03607497
      %v3222 = vmul.f32 %v3078, 0.03607497
      %v3223 = vmul.f32 %v3079, 0.03607497
      %v3224 = vmul.f32 %v3080, 0.03607497
      %v3225 = vmul.f32 %v3081, 0.03607497
      %v3226 = vmul.f32 %v3082, 0.03607497
      %v3227 = vmul.f32 %v3083, 0.03607497
      %v3228 = vmul.f32 %v3084, 0.03607497
      %v3229 = vmul.f32 %v3085, 0.03607497
      %v3230 = vmul.f32 %v3086, 0.03607497
      %v3231 = vmul.f32 %v3087, 0.03607497
      %v3232 = vmul.f32 %v3088, 0.03607497
      %v3233 = vmul.f32 %v3089, 0.03607497
      %v3234 = vmul.f32 %v3090, 0.03607497
      %v3235 = vmul.f32 %v3091, 0.03607497
      %v3236 = vmul.f32 %v3092, 0.03607497
      %v3237 = vmul.f32 %v3093, 0.03607497
      %v3238 = vmul.f32 %v3094, 0.03607497
      %v3239 = vmul.f32 %v3095, 0.03607497
      %v3240 = vmul.f32 %v3096, 0.03607497
      %v3241 = vmul.f32 %v3097, 0.03607497
      %v3242 = vmul.f32 %v3098, 0.03607497
      %v3243 = vmul.f32 %v3099, 0.03607497
      %v3244 = vmul.f32 %v3100, 0.03607497
      %v3245 = vmul.f32 %v3101, 0.03607497
      %v3246 = vmul.f32 %v3102, 0.03607497
      %v3247 = vmul.f32 %v3103, 0.03607497
      %v3248 = vmul.f32 %v3104, 0.03607497
      %v3249 = vmul.f32 %v3105, 0.03607497
      %v3250 = vmul.f32 %v3106, 0.03607497
      %v3251 = vmul.f32 %v3107, 0.03607497
      %v3252 = vmul.f32 %v3108, 0.03607497
      %v3253 = vmul.f32 %v3109, 0.03607497
      %v3254 = vmul.f32 %v3110, 0.03607497
      %v3255 = vmul.f32 %v3111, 0.03607497
      %v3256 = vmul.f32 %v3112, 0.03607497
      %v3257 = vmul.f32 %v3113, 0.03607497
      %v3258 = vmul.f32 %v3114, 0.03607497
      %v3259 = vmul.f32 %v3115, 0.03607497
      %vm3340 = vcmask 1046528
      %v3341 = vrot.slane %v3180, 1
      %v3342 = vrot.slane %v3181, 1
      %v3343 = vsel %vm3340, %v3341, %v3342
      %v3344 = vrot.slane %v3182, 1
      %v3345 = vsel %vm3340, %v3342, %v3344
      %v3346 = vrot.slane %v3183, 1
      %v3347 = vsel %vm3340, %v3344, %v3346
      %v3348 = vrot.slane %v3184, 1
      %v3349 = vsel %vm3340, %v3346, %v3348
      %v3350 = vrot.slane %v3185, 1
      %v3351 = vrot.slane %v3186, 1
      %v3352 = vsel %vm3340, %v3350, %v3351
      %v3353 = vrot.slane %v3187, 1
      %v3354 = vsel %vm3340, %v3351, %v3353
      %v3355 = vrot.slane %v3188, 1
      %v3356 = vsel %vm3340, %v3353, %v3355
      %v3357 = vrot.slane %v3189, 1
      %v3358 = vsel %vm3340, %v3355, %v3357
      %v3359 = vrot.slane %v3190, 1
      %v3360 = vrot.slane %v3191, 1
      %v3361 = vsel %vm3340, %v3359, %v3360
      %v3362 = vrot.slane %v3192, 1
      %v3363 = vsel %vm3340, %v3360, %v3362
      %v3364 = vrot.slane %v3193, 1
      %v3365 = vsel %vm3340, %v3362, %v3364
      %v3366 = vrot.slane %v3194, 1
      %v3367 = vsel %vm3340, %v3364, %v3366
      %v3368 = vrot.slane %v3195, 1
      %v3369 = vrot.slane %v3196, 1
      %v3370 = vsel %vm3340, %v3368, %v3369
      %v3371 = vrot.slane %v3197, 1
      %v3372 = vsel %vm3340, %v3369, %v3371
      %v3373 = vrot.slane %v3198, 1
      %v3374 = vsel %vm3340, %v3371, %v3373
      %v3375 = vrot.slane %v3199, 1
      %v3376 = vsel %vm3340, %v3373, %v3375
      %v3377 = vrot.slane %v3200, 1
      %v3378 = vrot.slane %v3201, 1
      %v3379 = vsel %vm3340, %v3377, %v3378
      %v3380 = vrot.slane %v3202, 1
      %v3381 = vsel %vm3340, %v3378, %v3380
      %v3382 = vrot.slane %v3203, 1
      %v3383 = vsel %vm3340, %v3380, %v3382
      %v3384 = vrot.slane %v3204, 1
      %v3385 = vsel %vm3340, %v3382, %v3384
      %v3386 = vrot.slane %v3205, 1
      %v3387 = vrot.slane %v3206, 1
      %v3388 = vsel %vm3340, %v3386, %v3387
      %v3389 = vrot.slane %v3207, 1
      %v3390 = vsel %vm3340, %v3387, %v3389
      %v3391 = vrot.slane %v3208, 1
      %v3392 = vsel %vm3340, %v3389, %v3391
      %v3393 = vrot.slane %v3209, 1
      %v3394 = vsel %vm3340, %v3391, %v3393
      %v3395 = vrot.slane %v3210, 1
      %v3396 = vrot.slane %v3211, 1
      %v3397 = vsel %vm3340, %v3395, %v3396
      %v3398 = vrot.slane %v3212, 1
      %v3399 = vsel %vm3340, %v3396, %v3398
      %v3400 = vrot.slane %v3213, 1
      %v3401 = vsel %vm3340, %v3398, %v3400
      %v3402 = vrot.slane %v3214, 1
      %v3403 = vsel %vm3340, %v3400, %v3402
      %v3404 = vrot.slane %v3215, 1
      %v3405 = vrot.slane %v3216, 1
      %v3406 = vsel %vm3340, %v3404, %v3405
      %v3407 = vrot.slane %v3217, 1
      %v3408 = vsel %vm3340, %v3405, %v3407
      %v3409 = vrot.slane %v3218, 1
      %v3410 = vsel %vm3340, %v3407, %v3409
      %v3411 = vrot.slane %v3219, 1
      %v3412 = vsel %vm3340, %v3409, %v3411
      %v3413 = vrot.slane %v3220, 1
      %v3414 = vrot.slane %v3221, 1
      %v3415 = vsel %vm3340, %v3413, %v3414
      %v3416 = vrot.slane %v3222, 1
      %v3417 = vsel %vm3340, %v3414, %v3416
      %v3418 = vrot.slane %v3223, 1
      %v3419 = vsel %vm3340, %v3416, %v3418
      %v3420 = vrot.slane %v3224, 1
      %v3421 = vsel %vm3340, %v3418, %v3420
      %v3422 = vrot.slane %v3225, 1
      %v3423 = vrot.slane %v3226, 1
      %v3424 = vsel %vm3340, %v3422, %v3423
      %v3425 = vrot.slane %v3227, 1
      %v3426 = vsel %vm3340, %v3423, %v3425
      %v3427 = vrot.slane %v3228, 1
      %v3428 = vsel %vm3340, %v3425, %v3427
      %v3429 = vrot.slane %v3229, 1
      %v3430 = vsel %vm3340, %v3427, %v3429
      %v3431 = vrot.slane %v3230, 1
      %v3432 = vrot.slane %v3231, 1
      %v3433 = vsel %vm3340, %v3431, %v3432
      %v3434 = vrot.slane %v3232, 1
      %v3435 = vsel %vm3340, %v3432, %v3434
      %v3436 = vrot.slane %v3233, 1
      %v3437 = vsel %vm3340, %v3434, %v3436
      %v3438 = vrot.slane %v3234, 1
      %v3439 = vsel %vm3340, %v3436, %v3438
      %v3440 = vrot.slane %v3235, 1
      %v3441 = vrot.slane %v3236, 1
      %v3442 = vsel %vm3340, %v3440, %v3441
      %v3443 = vrot.slane %v3237, 1
      %v3444 = vsel %vm3340, %v3441, %v3443
      %v3445 = vrot.slane %v3238, 1
      %v3446 = vsel %vm3340, %v3443, %v3445
      %v3447 = vrot.slane %v3239, 1
      %v3448 = vsel %vm3340, %v3445, %v3447
      %v3449 = vrot.slane %v3240, 1
      %v3450 = vrot.slane %v3241, 1
      %v3451 = vsel %vm3340, %v3449, %v3450
      %v3452 = vrot.slane %v3242, 1
      %v3453 = vsel %vm3340, %v3450, %v3452
      %v3454 = vrot.slane %v3243, 1
      %v3455 = vsel %vm3340, %v3452, %v3454
      %v3456 = vrot.slane %v3244, 1
      %v3457 = vsel %vm3340, %v3454, %v3456
      %v3458 = vrot.slane %v3245, 1
      %v3459 = vrot.slane %v3246, 1
      %v3460 = vsel %vm3340, %v3458, %v3459
      %v3461 = vrot.slane %v3247, 1
      %v3462 = vsel %vm3340, %v3459, %v3461
      %v3463 = vrot.slane %v3248, 1
      %v3464 = vsel %vm3340, %v3461, %v3463
      %v3465 = vrot.slane %v3249, 1
      %v3466 = vsel %vm3340, %v3463, %v3465
      %v3467 = vrot.slane %v3250, 1
      %v3468 = vrot.slane %v3251, 1
      %v3469 = vsel %vm3340, %v3467, %v3468
      %v3470 = vrot.slane %v3252, 1
      %v3471 = vsel %vm3340, %v3468, %v3470
      %v3472 = vrot.slane %v3253, 1
      %v3473 = vsel %vm3340, %v3470, %v3472
      %v3474 = vrot.slane %v3254, 1
      %v3475 = vsel %vm3340, %v3472, %v3474
      %v3476 = vrot.slane %v3255, 1
      %v3477 = vrot.slane %v3256, 1
      %v3478 = vsel %vm3340, %v3476, %v3477
      %v3479 = vrot.slane %v3257, 1
      %v3480 = vsel %vm3340, %v3477, %v3479
      %v3481 = vrot.slane %v3258, 1
      %v3482 = vsel %vm3340, %v3479, %v3481
      %v3483 = vrot.slane %v3259, 1
      %v3484 = vsel %vm3340, %v3481, %v3483
      %v3549 = vadd.f32 %v3116, %v3343
      %v3550 = vadd.f32 %v3117, %v3345
      %v3551 = vadd.f32 %v3118, %v3347
      %v3552 = vadd.f32 %v3119, %v3349
      %v3553 = vadd.f32 %v3120, %v3352
      %v3554 = vadd.f32 %v3121, %v3354
      %v3555 = vadd.f32 %v3122, %v3356
      %v3556 = vadd.f32 %v3123, %v3358
      %v3557 = vadd.f32 %v3124, %v3361
      %v3558 = vadd.f32 %v3125, %v3363
      %v3559 = vadd.f32 %v3126, %v3365
      %v3560 = vadd.f32 %v3127, %v3367
      %v3561 = vadd.f32 %v3128, %v3370
      %v3562 = vadd.f32 %v3129, %v3372
      %v3563 = vadd.f32 %v3130, %v3374
      %v3564 = vadd.f32 %v3131, %v3376
      %v3565 = vadd.f32 %v3132, %v3379
      %v3566 = vadd.f32 %v3133, %v3381
      %v3567 = vadd.f32 %v3134, %v3383
      %v3568 = vadd.f32 %v3135, %v3385
      %v3569 = vadd.f32 %v3136, %v3388
      %v3570 = vadd.f32 %v3137, %v3390
      %v3571 = vadd.f32 %v3138, %v3392
      %v3572 = vadd.f32 %v3139, %v3394
      %v3573 = vadd.f32 %v3140, %v3397
      %v3574 = vadd.f32 %v3141, %v3399
      %v3575 = vadd.f32 %v3142, %v3401
      %v3576 = vadd.f32 %v3143, %v3403
      %v3577 = vadd.f32 %v3144, %v3406
      %v3578 = vadd.f32 %v3145, %v3408
      %v3579 = vadd.f32 %v3146, %v3410
      %v3580 = vadd.f32 %v3147, %v3412
      %v3581 = vadd.f32 %v3148, %v3415
      %v3582 = vadd.f32 %v3149, %v3417
      %v3583 = vadd.f32 %v3150, %v3419
      %v3584 = vadd.f32 %v3151, %v3421
      %v3585 = vadd.f32 %v3152, %v3424
      %v3586 = vadd.f32 %v3153, %v3426
      %v3587 = vadd.f32 %v3154, %v3428
      %v3588 = vadd.f32 %v3155, %v3430
      %v3589 = vadd.f32 %v3156, %v3433
      %v3590 = vadd.f32 %v3157, %v3435
      %v3591 = vadd.f32 %v3158, %v3437
      %v3592 = vadd.f32 %v3159, %v3439
      %v3593 = vadd.f32 %v3160, %v3442
      %v3594 = vadd.f32 %v3161, %v3444
      %v3595 = vadd.f32 %v3162, %v3446
      %v3596 = vadd.f32 %v3163, %v3448
      %v3597 = vadd.f32 %v3164, %v3451
      %v3598 = vadd.f32 %v3165, %v3453
      %v3599 = vadd.f32 %v3166, %v3455
      %v3600 = vadd.f32 %v3167, %v3457
      %v3601 = vadd.f32 %v3168, %v3460
      %v3602 = vadd.f32 %v3169, %v3462
      %v3603 = vadd.f32 %v3170, %v3464
      %v3604 = vadd.f32 %v3171, %v3466
      %v3605 = vadd.f32 %v3172, %v3469
      %v3606 = vadd.f32 %v3173, %v3471
      %v3607 = vadd.f32 %v3174, %v3473
      %v3608 = vadd.f32 %v3175, %v3475
      %v3609 = vadd.f32 %v3176, %v3478
      %v3610 = vadd.f32 %v3177, %v3480
      %v3611 = vadd.f32 %v3178, %v3482
      %v3612 = vadd.f32 %v3179, %v3484
      %v3613 = vmul.f32 %v3036, 0.10958608
      %v3614 = vmul.f32 %v3037, 0.10958608
      %v3615 = vmul.f32 %v3038, 0.10958608
      %v3616 = vmul.f32 %v3039, 0.10958608
      %v3617 = vmul.f32 %v3040, 0.10958608
      %v3618 = vmul.f32 %v3041, 0.10958608
      %v3619 = vmul.f32 %v3042, 0.10958608
      %v3620 = vmul.f32 %v3043, 0.10958608
      %v3621 = vmul.f32 %v3044, 0.10958608
      %v3622 = vmul.f32 %v3045, 0.10958608
      %v3623 = vmul.f32 %v3046, 0.10958608
      %v3624 = vmul.f32 %v3047, 0.10958608
      %v3625 = vmul.f32 %v3048, 0.10958608
      %v3626 = vmul.f32 %v3049, 0.10958608
      %v3627 = vmul.f32 %v3050, 0.10958608
      %v3628 = vmul.f32 %v3051, 0.10958608
      %v3629 = vmul.f32 %v3052, 0.10958608
      %v3630 = vmul.f32 %v3053, 0.10958608
      %v3631 = vmul.f32 %v3054, 0.10958608
      %v3632 = vmul.f32 %v3055, 0.10958608
      %v3633 = vmul.f32 %v3056, 0.10958608
      %v3634 = vmul.f32 %v3057, 0.10958608
      %v3635 = vmul.f32 %v3058, 0.10958608
      %v3636 = vmul.f32 %v3059, 0.10958608
      %v3637 = vmul.f32 %v3060, 0.10958608
      %v3638 = vmul.f32 %v3061, 0.10958608
      %v3639 = vmul.f32 %v3062, 0.10958608
      %v3640 = vmul.f32 %v3063, 0.10958608
      %v3641 = vmul.f32 %v3064, 0.10958608
      %v3642 = vmul.f32 %v3065, 0.10958608
      %v3643 = vmul.f32 %v3066, 0.10958608
      %v3644 = vmul.f32 %v3067, 0.10958608
      %v3645 = vmul.f32 %v3068, 0.10958608
      %v3646 = vmul.f32 %v3069, 0.10958608
      %v3647 = vmul.f32 %v3070, 0.10958608
      %v3648 = vmul.f32 %v3071, 0.10958608
      %v3649 = vmul.f32 %v3072, 0.10958608
      %v3650 = vmul.f32 %v3073, 0.10958608
      %v3651 = vmul.f32 %v3074, 0.10958608
      %v3652 = vmul.f32 %v3075, 0.10958608
      %v3653 = vmul.f32 %v3076, 0.10958608
      %v3654 = vmul.f32 %v3077, 0.10958608
      %v3655 = vmul.f32 %v3078, 0.10958608
      %v3656 = vmul.f32 %v3079, 0.10958608
      %v3657 = vmul.f32 %v3080, 0.10958608
      %v3658 = vmul.f32 %v3081, 0.10958608
      %v3659 = vmul.f32 %v3082, 0.10958608
      %v3660 = vmul.f32 %v3083, 0.10958608
      %v3661 = vmul.f32 %v3084, 0.10958608
      %v3662 = vmul.f32 %v3085, 0.10958608
      %v3663 = vmul.f32 %v3086, 0.10958608
      %v3664 = vmul.f32 %v3087, 0.10958608
      %v3665 = vmul.f32 %v3088, 0.10958608
      %v3666 = vmul.f32 %v3089, 0.10958608
      %v3667 = vmul.f32 %v3090, 0.10958608
      %v3668 = vmul.f32 %v3091, 0.10958608
      %v3669 = vmul.f32 %v3092, 0.10958608
      %v3670 = vmul.f32 %v3093, 0.10958608
      %v3671 = vmul.f32 %v3094, 0.10958608
      %v3672 = vmul.f32 %v3095, 0.10958608
      %v3673 = vmul.f32 %v3096, 0.10958608
      %v3674 = vmul.f32 %v3097, 0.10958608
      %v3675 = vmul.f32 %v3098, 0.10958608
      %v3676 = vmul.f32 %v3099, 0.10958608
      %v3677 = vmul.f32 %v3100, 0.10958608
      %v3678 = vmul.f32 %v3101, 0.10958608
      %v3679 = vmul.f32 %v3102, 0.10958608
      %v3680 = vmul.f32 %v3103, 0.10958608
      %v3681 = vmul.f32 %v3104, 0.10958608
      %v3682 = vmul.f32 %v3105, 0.10958608
      %v3683 = vmul.f32 %v3106, 0.10958608
      %v3684 = vmul.f32 %v3107, 0.10958608
      %v3685 = vmul.f32 %v3108, 0.10958608
      %v3686 = vmul.f32 %v3109, 0.10958608
      %v3687 = vmul.f32 %v3110, 0.10958608
      %v3688 = vmul.f32 %v3111, 0.10958608
      %v3689 = vmul.f32 %v3112, 0.10958608
      %v3690 = vmul.f32 %v3113, 0.10958608
      %v3691 = vmul.f32 %v3114, 0.10958608
      %v3692 = vmul.f32 %v3115, 0.10958608
      %vm3773 = vcmask 1045504
      %v3774 = vrot.slane %v3613, 2
      %v3775 = vrot.slane %v3614, 2
      %v3776 = vsel %vm3773, %v3774, %v3775
      %v3777 = vrot.slane %v3615, 2
      %v3778 = vsel %vm3773, %v3775, %v3777
      %v3779 = vrot.slane %v3616, 2
      %v3780 = vsel %vm3773, %v3777, %v3779
      %v3781 = vrot.slane %v3617, 2
      %v3782 = vsel %vm3773, %v3779, %v3781
      %v3783 = vrot.slane %v3618, 2
      %v3784 = vrot.slane %v3619, 2
      %v3785 = vsel %vm3773, %v3783, %v3784
      %v3786 = vrot.slane %v3620, 2
      %v3787 = vsel %vm3773, %v3784, %v3786
      %v3788 = vrot.slane %v3621, 2
      %v3789 = vsel %vm3773, %v3786, %v3788
      %v3790 = vrot.slane %v3622, 2
      %v3791 = vsel %vm3773, %v3788, %v3790
      %v3792 = vrot.slane %v3623, 2
      %v3793 = vrot.slane %v3624, 2
      %v3794 = vsel %vm3773, %v3792, %v3793
      %v3795 = vrot.slane %v3625, 2
      %v3796 = vsel %vm3773, %v3793, %v3795
      %v3797 = vrot.slane %v3626, 2
      %v3798 = vsel %vm3773, %v3795, %v3797
      %v3799 = vrot.slane %v3627, 2
      %v3800 = vsel %vm3773, %v3797, %v3799
      %v3801 = vrot.slane %v3628, 2
      %v3802 = vrot.slane %v3629, 2
      %v3803 = vsel %vm3773, %v3801, %v3802
      %v3804 = vrot.slane %v3630, 2
      %v3805 = vsel %vm3773, %v3802, %v3804
      %v3806 = vrot.slane %v3631, 2
      %v3807 = vsel %vm3773, %v3804, %v3806
      %v3808 = vrot.slane %v3632, 2
      %v3809 = vsel %vm3773, %v3806, %v3808
      %v3810 = vrot.slane %v3633, 2
      %v3811 = vrot.slane %v3634, 2
      %v3812 = vsel %vm3773, %v3810, %v3811
      %v3813 = vrot.slane %v3635, 2
      %v3814 = vsel %vm3773, %v3811, %v3813
      %v3815 = vrot.slane %v3636, 2
      %v3816 = vsel %vm3773, %v3813, %v3815
      %v3817 = vrot.slane %v3637, 2
      %v3818 = vsel %vm3773, %v3815, %v3817
      %v3819 = vrot.slane %v3638, 2
      %v3820 = vrot.slane %v3639, 2
      %v3821 = vsel %vm3773, %v3819, %v3820
      %v3822 = vrot.slane %v3640, 2
      %v3823 = vsel %vm3773, %v3820, %v3822
      %v3824 = vrot.slane %v3641, 2
      %v3825 = vsel %vm3773, %v3822, %v3824
      %v3826 = vrot.slane %v3642, 2
      %v3827 = vsel %vm3773, %v3824, %v3826
      %v3828 = vrot.slane %v3643, 2
      %v3829 = vrot.slane %v3644, 2
      %v3830 = vsel %vm3773, %v3828, %v3829
      %v3831 = vrot.slane %v3645, 2
      %v3832 = vsel %vm3773, %v3829, %v3831
      %v3833 = vrot.slane %v3646, 2
      %v3834 = vsel %vm3773, %v3831, %v3833
      %v3835 = vrot.slane %v3647, 2
      %v3836 = vsel %vm3773, %v3833, %v3835
      %v3837 = vrot.slane %v3648, 2
      %v3838 = vrot.slane %v3649, 2
      %v3839 = vsel %vm3773, %v3837, %v3838
      %v3840 = vrot.slane %v3650, 2
      %v3841 = vsel %vm3773, %v3838, %v3840
      %v3842 = vrot.slane %v3651, 2
      %v3843 = vsel %vm3773, %v3840, %v3842
      %v3844 = vrot.slane %v3652, 2
      %v3845 = vsel %vm3773, %v3842, %v3844
      %v3846 = vrot.slane %v3653, 2
      %v3847 = vrot.slane %v3654, 2
      %v3848 = vsel %vm3773, %v3846, %v3847
      %v3849 = vrot.slane %v3655, 2
      %v3850 = vsel %vm3773, %v3847, %v3849
      %v3851 = vrot.slane %v3656, 2
      %v3852 = vsel %vm3773, %v3849, %v3851
      %v3853 = vrot.slane %v3657, 2
      %v3854 = vsel %vm3773, %v3851, %v3853
      %v3855 = vrot.slane %v3658, 2
      %v3856 = vrot.slane %v3659, 2
      %v3857 = vsel %vm3773, %v3855, %v3856
      %v3858 = vrot.slane %v3660, 2
      %v3859 = vsel %vm3773, %v3856, %v3858
      %v3860 = vrot.slane %v3661, 2
      %v3861 = vsel %vm3773, %v3858, %v3860
      %v3862 = vrot.slane %v3662, 2
      %v3863 = vsel %vm3773, %v3860, %v3862
      %v3864 = vrot.slane %v3663, 2
      %v3865 = vrot.slane %v3664, 2
      %v3866 = vsel %vm3773, %v3864, %v3865
      %v3867 = vrot.slane %v3665, 2
      %v3868 = vsel %vm3773, %v3865, %v3867
      %v3869 = vrot.slane %v3666, 2
      %v3870 = vsel %vm3773, %v3867, %v3869
      %v3871 = vrot.slane %v3667, 2
      %v3872 = vsel %vm3773, %v3869, %v3871
      %v3873 = vrot.slane %v3668, 2
      %v3874 = vrot.slane %v3669, 2
      %v3875 = vsel %vm3773, %v3873, %v3874
      %v3876 = vrot.slane %v3670, 2
      %v3877 = vsel %vm3773, %v3874, %v3876
      %v3878 = vrot.slane %v3671, 2
      %v3879 = vsel %vm3773, %v3876, %v3878
      %v3880 = vrot.slane %v3672, 2
      %v3881 = vsel %vm3773, %v3878, %v3880
      %v3882 = vrot.slane %v3673, 2
      %v3883 = vrot.slane %v3674, 2
      %v3884 = vsel %vm3773, %v3882, %v3883
      %v3885 = vrot.slane %v3675, 2
      %v3886 = vsel %vm3773, %v3883, %v3885
      %v3887 = vrot.slane %v3676, 2
      %v3888 = vsel %vm3773, %v3885, %v3887
      %v3889 = vrot.slane %v3677, 2
      %v3890 = vsel %vm3773, %v3887, %v3889
      %v3891 = vrot.slane %v3678, 2
      %v3892 = vrot.slane %v3679, 2
      %v3893 = vsel %vm3773, %v3891, %v3892
      %v3894 = vrot.slane %v3680, 2
      %v3895 = vsel %vm3773, %v3892, %v3894
      %v3896 = vrot.slane %v3681, 2
      %v3897 = vsel %vm3773, %v3894, %v3896
      %v3898 = vrot.slane %v3682, 2
      %v3899 = vsel %vm3773, %v3896, %v3898
      %v3900 = vrot.slane %v3683, 2
      %v3901 = vrot.slane %v3684, 2
      %v3902 = vsel %vm3773, %v3900, %v3901
      %v3903 = vrot.slane %v3685, 2
      %v3904 = vsel %vm3773, %v3901, %v3903
      %v3905 = vrot.slane %v3686, 2
      %v3906 = vsel %vm3773, %v3903, %v3905
      %v3907 = vrot.slane %v3687, 2
      %v3908 = vsel %vm3773, %v3905, %v3907
      %v3909 = vrot.slane %v3688, 2
      %v3910 = vrot.slane %v3689, 2
      %v3911 = vsel %vm3773, %v3909, %v3910
      %v3912 = vrot.slane %v3690, 2
      %v3913 = vsel %vm3773, %v3910, %v3912
      %v3914 = vrot.slane %v3691, 2
      %v3915 = vsel %vm3773, %v3912, %v3914
      %v3916 = vrot.slane %v3692, 2
      %v3917 = vsel %vm3773, %v3914, %v3916
      %v3982 = vadd.f32 %v3549, %v3776
      %v3983 = vadd.f32 %v3550, %v3778
      %v3984 = vadd.f32 %v3551, %v3780
      %v3985 = vadd.f32 %v3552, %v3782
      %v3986 = vadd.f32 %v3553, %v3785
      %v3987 = vadd.f32 %v3554, %v3787
      %v3988 = vadd.f32 %v3555, %v3789
      %v3989 = vadd.f32 %v3556, %v3791
      %v3990 = vadd.f32 %v3557, %v3794
      %v3991 = vadd.f32 %v3558, %v3796
      %v3992 = vadd.f32 %v3559, %v3798
      %v3993 = vadd.f32 %v3560, %v3800
      %v3994 = vadd.f32 %v3561, %v3803
      %v3995 = vadd.f32 %v3562, %v3805
      %v3996 = vadd.f32 %v3563, %v3807
      %v3997 = vadd.f32 %v3564, %v3809
      %v3998 = vadd.f32 %v3565, %v3812
      %v3999 = vadd.f32 %v3566, %v3814
      %v4000 = vadd.f32 %v3567, %v3816
      %v4001 = vadd.f32 %v3568, %v3818
      %v4002 = vadd.f32 %v3569, %v3821
      %v4003 = vadd.f32 %v3570, %v3823
      %v4004 = vadd.f32 %v3571, %v3825
      %v4005 = vadd.f32 %v3572, %v3827
      %v4006 = vadd.f32 %v3573, %v3830
      %v4007 = vadd.f32 %v3574, %v3832
      %v4008 = vadd.f32 %v3575, %v3834
      %v4009 = vadd.f32 %v3576, %v3836
      %v4010 = vadd.f32 %v3577, %v3839
      %v4011 = vadd.f32 %v3578, %v3841
      %v4012 = vadd.f32 %v3579, %v3843
      %v4013 = vadd.f32 %v3580, %v3845
      %v4014 = vadd.f32 %v3581, %v3848
      %v4015 = vadd.f32 %v3582, %v3850
      %v4016 = vadd.f32 %v3583, %v3852
      %v4017 = vadd.f32 %v3584, %v3854
      %v4018 = vadd.f32 %v3585, %v3857
      %v4019 = vadd.f32 %v3586, %v3859
      %v4020 = vadd.f32 %v3587, %v3861
      %v4021 = vadd.f32 %v3588, %v3863
      %v4022 = vadd.f32 %v3589, %v3866
      %v4023 = vadd.f32 %v3590, %v3868
      %v4024 = vadd.f32 %v3591, %v3870
      %v4025 = vadd.f32 %v3592, %v3872
      %v4026 = vadd.f32 %v3593, %v3875
      %v4027 = vadd.f32 %v3594, %v3877
      %v4028 = vadd.f32 %v3595, %v3879
      %v4029 = vadd.f32 %v3596, %v3881
      %v4030 = vadd.f32 %v3597, %v3884
      %v4031 = vadd.f32 %v3598, %v3886
      %v4032 = vadd.f32 %v3599, %v3888
      %v4033 = vadd.f32 %v3600, %v3890
      %v4034 = vadd.f32 %v3601, %v3893
      %v4035 = vadd.f32 %v3602, %v3895
      %v4036 = vadd.f32 %v3603, %v3897
      %v4037 = vadd.f32 %v3604, %v3899
      %v4038 = vadd.f32 %v3605, %v3902
      %v4039 = vadd.f32 %v3606, %v3904
      %v4040 = vadd.f32 %v3607, %v3906
      %v4041 = vadd.f32 %v3608, %v3908
      %v4042 = vadd.f32 %v3609, %v3911
      %v4043 = vadd.f32 %v3610, %v3913
      %v4044 = vadd.f32 %v3611, %v3915
      %v4045 = vadd.f32 %v3612, %v3917
      %v4046 = vmul.f32 %v3036, 0.21344455
      %v4047 = vmul.f32 %v3037, 0.21344455
      %v4048 = vmul.f32 %v3038, 0.21344455
      %v4049 = vmul.f32 %v3039, 0.21344455
      %v4050 = vmul.f32 %v3040, 0.21344455
      %v4051 = vmul.f32 %v3041, 0.21344455
      %v4052 = vmul.f32 %v3042, 0.21344455
      %v4053 = vmul.f32 %v3043, 0.21344455
      %v4054 = vmul.f32 %v3044, 0.21344455
      %v4055 = vmul.f32 %v3045, 0.21344455
      %v4056 = vmul.f32 %v3046, 0.21344455
      %v4057 = vmul.f32 %v3047, 0.21344455
      %v4058 = vmul.f32 %v3048, 0.21344455
      %v4059 = vmul.f32 %v3049, 0.21344455
      %v4060 = vmul.f32 %v3050, 0.21344455
      %v4061 = vmul.f32 %v3051, 0.21344455
      %v4062 = vmul.f32 %v3052, 0.21344455
      %v4063 = vmul.f32 %v3053, 0.21344455
      %v4064 = vmul.f32 %v3054, 0.21344455
      %v4065 = vmul.f32 %v3055, 0.21344455
      %v4066 = vmul.f32 %v3056, 0.21344455
      %v4067 = vmul.f32 %v3057, 0.21344455
      %v4068 = vmul.f32 %v3058, 0.21344455
      %v4069 = vmul.f32 %v3059, 0.21344455
      %v4070 = vmul.f32 %v3060, 0.21344455
      %v4071 = vmul.f32 %v3061, 0.21344455
      %v4072 = vmul.f32 %v3062, 0.21344455
      %v4073 = vmul.f32 %v3063, 0.21344455
      %v4074 = vmul.f32 %v3064, 0.21344455
      %v4075 = vmul.f32 %v3065, 0.21344455
      %v4076 = vmul.f32 %v3066, 0.21344455
      %v4077 = vmul.f32 %v3067, 0.21344455
      %v4078 = vmul.f32 %v3068, 0.21344455
      %v4079 = vmul.f32 %v3069, 0.21344455
      %v4080 = vmul.f32 %v3070, 0.21344455
      %v4081 = vmul.f32 %v3071, 0.21344455
      %v4082 = vmul.f32 %v3072, 0.21344455
      %v4083 = vmul.f32 %v3073, 0.21344455
      %v4084 = vmul.f32 %v3074, 0.21344455
      %v4085 = vmul.f32 %v3075, 0.21344455
      %v4086 = vmul.f32 %v3076, 0.21344455
      %v4087 = vmul.f32 %v3077, 0.21344455
      %v4088 = vmul.f32 %v3078, 0.21344455
      %v4089 = vmul.f32 %v3079, 0.21344455
      %v4090 = vmul.f32 %v3080, 0.21344455
      %v4091 = vmul.f32 %v3081, 0.21344455
      %v4092 = vmul.f32 %v3082, 0.21344455
      %v4093 = vmul.f32 %v3083, 0.21344455
      %v4094 = vmul.f32 %v3084, 0.21344455
      %v4095 = vmul.f32 %v3085, 0.21344455
      %v4096 = vmul.f32 %v3086, 0.21344455
      %v4097 = vmul.f32 %v3087, 0.21344455
      %v4098 = vmul.f32 %v3088, 0.21344455
      %v4099 = vmul.f32 %v3089, 0.21344455
      %v4100 = vmul.f32 %v3090, 0.21344455
      %v4101 = vmul.f32 %v3091, 0.21344455
      %v4102 = vmul.f32 %v3092, 0.21344455
      %v4103 = vmul.f32 %v3093, 0.21344455
      %v4104 = vmul.f32 %v3094, 0.21344455
      %v4105 = vmul.f32 %v3095, 0.21344455
      %v4106 = vmul.f32 %v3096, 0.21344455
      %v4107 = vmul.f32 %v3097, 0.21344455
      %v4108 = vmul.f32 %v3098, 0.21344455
      %v4109 = vmul.f32 %v3099, 0.21344455
      %v4110 = vmul.f32 %v3100, 0.21344455
      %v4111 = vmul.f32 %v3101, 0.21344455
      %v4112 = vmul.f32 %v3102, 0.21344455
      %v4113 = vmul.f32 %v3103, 0.21344455
      %v4114 = vmul.f32 %v3104, 0.21344455
      %v4115 = vmul.f32 %v3105, 0.21344455
      %v4116 = vmul.f32 %v3106, 0.21344455
      %v4117 = vmul.f32 %v3107, 0.21344455
      %v4118 = vmul.f32 %v3108, 0.21344455
      %v4119 = vmul.f32 %v3109, 0.21344455
      %v4120 = vmul.f32 %v3110, 0.21344455
      %v4121 = vmul.f32 %v3111, 0.21344455
      %v4122 = vmul.f32 %v3112, 0.21344455
      %v4123 = vmul.f32 %v3113, 0.21344455
      %v4124 = vmul.f32 %v3114, 0.21344455
      %v4125 = vmul.f32 %v3115, 0.21344455
      %vm4206 = vcmask 1044480
      %v4207 = vrot.slane %v4046, 3
      %v4208 = vrot.slane %v4047, 3
      %v4209 = vsel %vm4206, %v4207, %v4208
      %v4210 = vrot.slane %v4048, 3
      %v4211 = vsel %vm4206, %v4208, %v4210
      %v4212 = vrot.slane %v4049, 3
      %v4213 = vsel %vm4206, %v4210, %v4212
      %v4214 = vrot.slane %v4050, 3
      %v4215 = vsel %vm4206, %v4212, %v4214
      %v4216 = vrot.slane %v4051, 3
      %v4217 = vrot.slane %v4052, 3
      %v4218 = vsel %vm4206, %v4216, %v4217
      %v4219 = vrot.slane %v4053, 3
      %v4220 = vsel %vm4206, %v4217, %v4219
      %v4221 = vrot.slane %v4054, 3
      %v4222 = vsel %vm4206, %v4219, %v4221
      %v4223 = vrot.slane %v4055, 3
      %v4224 = vsel %vm4206, %v4221, %v4223
      %v4225 = vrot.slane %v4056, 3
      %v4226 = vrot.slane %v4057, 3
      %v4227 = vsel %vm4206, %v4225, %v4226
      %v4228 = vrot.slane %v4058, 3
      %v4229 = vsel %vm4206, %v4226, %v4228
      %v4230 = vrot.slane %v4059, 3
      %v4231 = vsel %vm4206, %v4228, %v4230
      %v4232 = vrot.slane %v4060, 3
      %v4233 = vsel %vm4206, %v4230, %v4232
      %v4234 = vrot.slane %v4061, 3
      %v4235 = vrot.slane %v4062, 3
      %v4236 = vsel %vm4206, %v4234, %v4235
      %v4237 = vrot.slane %v4063, 3
      %v4238 = vsel %vm4206, %v4235, %v4237
      %v4239 = vrot.slane %v4064, 3
      %v4240 = vsel %vm4206, %v4237, %v4239
      %v4241 = vrot.slane %v4065, 3
      %v4242 = vsel %vm4206, %v4239, %v4241
      %v4243 = vrot.slane %v4066, 3
      %v4244 = vrot.slane %v4067, 3
      %v4245 = vsel %vm4206, %v4243, %v4244
      %v4246 = vrot.slane %v4068, 3
      %v4247 = vsel %vm4206, %v4244, %v4246
      %v4248 = vrot.slane %v4069, 3
      %v4249 = vsel %vm4206, %v4246, %v4248
      %v4250 = vrot.slane %v4070, 3
      %v4251 = vsel %vm4206, %v4248, %v4250
      %v4252 = vrot.slane %v4071, 3
      %v4253 = vrot.slane %v4072, 3
      %v4254 = vsel %vm4206, %v4252, %v4253
      %v4255 = vrot.slane %v4073, 3
      %v4256 = vsel %vm4206, %v4253, %v4255
      %v4257 = vrot.slane %v4074, 3
      %v4258 = vsel %vm4206, %v4255, %v4257
      %v4259 = vrot.slane %v4075, 3
      %v4260 = vsel %vm4206, %v4257, %v4259
      %v4261 = vrot.slane %v4076, 3
      %v4262 = vrot.slane %v4077, 3
      %v4263 = vsel %vm4206, %v4261, %v4262
      %v4264 = vrot.slane %v4078, 3
      %v4265 = vsel %vm4206, %v4262, %v4264
      %v4266 = vrot.slane %v4079, 3
      %v4267 = vsel %vm4206, %v4264, %v4266
      %v4268 = vrot.slane %v4080, 3
      %v4269 = vsel %vm4206, %v4266, %v4268
      %v4270 = vrot.slane %v4081, 3
      %v4271 = vrot.slane %v4082, 3
      %v4272 = vsel %vm4206, %v4270, %v4271
      %v4273 = vrot.slane %v4083, 3
      %v4274 = vsel %vm4206, %v4271, %v4273
      %v4275 = vrot.slane %v4084, 3
      %v4276 = vsel %vm4206, %v4273, %v4275
      %v4277 = vrot.slane %v4085, 3
      %v4278 = vsel %vm4206, %v4275, %v4277
      %v4279 = vrot.slane %v4086, 3
      %v4280 = vrot.slane %v4087, 3
      %v4281 = vsel %vm4206, %v4279, %v4280
      %v4282 = vrot.slane %v4088, 3
      %v4283 = vsel %vm4206, %v4280, %v4282
      %v4284 = vrot.slane %v4089, 3
      %v4285 = vsel %vm4206, %v4282, %v4284
      %v4286 = vrot.slane %v4090, 3
      %v4287 = vsel %vm4206, %v4284, %v4286
      %v4288 = vrot.slane %v4091, 3
      %v4289 = vrot.slane %v4092, 3
      %v4290 = vsel %vm4206, %v4288, %v4289
      %v4291 = vrot.slane %v4093, 3
      %v4292 = vsel %vm4206, %v4289, %v4291
      %v4293 = vrot.slane %v4094, 3
      %v4294 = vsel %vm4206, %v4291, %v4293
      %v4295 = vrot.slane %v4095, 3
      %v4296 = vsel %vm4206, %v4293, %v4295
      %v4297 = vrot.slane %v4096, 3
      %v4298 = vrot.slane %v4097, 3
      %v4299 = vsel %vm4206, %v4297, %v4298
      %v4300 = vrot.slane %v4098, 3
      %v4301 = vsel %vm4206, %v4298, %v4300
      %v4302 = vrot.slane %v4099, 3
      %v4303 = vsel %vm4206, %v4300, %v4302
      %v4304 = vrot.slane %v4100, 3
      %v4305 = vsel %vm4206, %v4302, %v4304
      %v4306 = vrot.slane %v4101, 3
      %v4307 = vrot.slane %v4102, 3
      %v4308 = vsel %vm4206, %v4306, %v4307
      %v4309 = vrot.slane %v4103, 3
      %v4310 = vsel %vm4206, %v4307, %v4309
      %v4311 = vrot.slane %v4104, 3
      %v4312 = vsel %vm4206, %v4309, %v4311
      %v4313 = vrot.slane %v4105, 3
      %v4314 = vsel %vm4206, %v4311, %v4313
      %v4315 = vrot.slane %v4106, 3
      %v4316 = vrot.slane %v4107, 3
      %v4317 = vsel %vm4206, %v4315, %v4316
      %v4318 = vrot.slane %v4108, 3
      %v4319 = vsel %vm4206, %v4316, %v4318
      %v4320 = vrot.slane %v4109, 3
      %v4321 = vsel %vm4206, %v4318, %v4320
      %v4322 = vrot.slane %v4110, 3
      %v4323 = vsel %vm4206, %v4320, %v4322
      %v4324 = vrot.slane %v4111, 3
      %v4325 = vrot.slane %v4112, 3
      %v4326 = vsel %vm4206, %v4324, %v4325
      %v4327 = vrot.slane %v4113, 3
      %v4328 = vsel %vm4206, %v4325, %v4327
      %v4329 = vrot.slane %v4114, 3
      %v4330 = vsel %vm4206, %v4327, %v4329
      %v4331 = vrot.slane %v4115, 3
      %v4332 = vsel %vm4206, %v4329, %v4331
      %v4333 = vrot.slane %v4116, 3
      %v4334 = vrot.slane %v4117, 3
      %v4335 = vsel %vm4206, %v4333, %v4334
      %v4336 = vrot.slane %v4118, 3
      %v4337 = vsel %vm4206, %v4334, %v4336
      %v4338 = vrot.slane %v4119, 3
      %v4339 = vsel %vm4206, %v4336, %v4338
      %v4340 = vrot.slane %v4120, 3
      %v4341 = vsel %vm4206, %v4338, %v4340
      %v4342 = vrot.slane %v4121, 3
      %v4343 = vrot.slane %v4122, 3
      %v4344 = vsel %vm4206, %v4342, %v4343
      %v4345 = vrot.slane %v4123, 3
      %v4346 = vsel %vm4206, %v4343, %v4345
      %v4347 = vrot.slane %v4124, 3
      %v4348 = vsel %vm4206, %v4345, %v4347
      %v4349 = vrot.slane %v4125, 3
      %v4350 = vsel %vm4206, %v4347, %v4349
      %v4415 = vadd.f32 %v3982, %v4209
      %v4416 = vadd.f32 %v3983, %v4211
      %v4417 = vadd.f32 %v3984, %v4213
      %v4418 = vadd.f32 %v3985, %v4215
      %v4419 = vadd.f32 %v3986, %v4218
      %v4420 = vadd.f32 %v3987, %v4220
      %v4421 = vadd.f32 %v3988, %v4222
      %v4422 = vadd.f32 %v3989, %v4224
      %v4423 = vadd.f32 %v3990, %v4227
      %v4424 = vadd.f32 %v3991, %v4229
      %v4425 = vadd.f32 %v3992, %v4231
      %v4426 = vadd.f32 %v3993, %v4233
      %v4427 = vadd.f32 %v3994, %v4236
      %v4428 = vadd.f32 %v3995, %v4238
      %v4429 = vadd.f32 %v3996, %v4240
      %v4430 = vadd.f32 %v3997, %v4242
      %v4431 = vadd.f32 %v3998, %v4245
      %v4432 = vadd.f32 %v3999, %v4247
      %v4433 = vadd.f32 %v4000, %v4249
      %v4434 = vadd.f32 %v4001, %v4251
      %v4435 = vadd.f32 %v4002, %v4254
      %v4436 = vadd.f32 %v4003, %v4256
      %v4437 = vadd.f32 %v4004, %v4258
      %v4438 = vadd.f32 %v4005, %v4260
      %v4439 = vadd.f32 %v4006, %v4263
      %v4440 = vadd.f32 %v4007, %v4265
      %v4441 = vadd.f32 %v4008, %v4267
      %v4442 = vadd.f32 %v4009, %v4269
      %v4443 = vadd.f32 %v4010, %v4272
      %v4444 = vadd.f32 %v4011, %v4274
      %v4445 = vadd.f32 %v4012, %v4276
      %v4446 = vadd.f32 %v4013, %v4278
      %v4447 = vadd.f32 %v4014, %v4281
      %v4448 = vadd.f32 %v4015, %v4283
      %v4449 = vadd.f32 %v4016, %v4285
      %v4450 = vadd.f32 %v4017, %v4287
      %v4451 = vadd.f32 %v4018, %v4290
      %v4452 = vadd.f32 %v4019, %v4292
      %v4453 = vadd.f32 %v4020, %v4294
      %v4454 = vadd.f32 %v4021, %v4296
      %v4455 = vadd.f32 %v4022, %v4299
      %v4456 = vadd.f32 %v4023, %v4301
      %v4457 = vadd.f32 %v4024, %v4303
      %v4458 = vadd.f32 %v4025, %v4305
      %v4459 = vadd.f32 %v4026, %v4308
      %v4460 = vadd.f32 %v4027, %v4310
      %v4461 = vadd.f32 %v4028, %v4312
      %v4462 = vadd.f32 %v4029, %v4314
      %v4463 = vadd.f32 %v4030, %v4317
      %v4464 = vadd.f32 %v4031, %v4319
      %v4465 = vadd.f32 %v4032, %v4321
      %v4466 = vadd.f32 %v4033, %v4323
      %v4467 = vadd.f32 %v4034, %v4326
      %v4468 = vadd.f32 %v4035, %v4328
      %v4469 = vadd.f32 %v4036, %v4330
      %v4470 = vadd.f32 %v4037, %v4332
      %v4471 = vadd.f32 %v4038, %v4335
      %v4472 = vadd.f32 %v4039, %v4337
      %v4473 = vadd.f32 %v4040, %v4339
      %v4474 = vadd.f32 %v4041, %v4341
      %v4475 = vadd.f32 %v4042, %v4344
      %v4476 = vadd.f32 %v4043, %v4346
      %v4477 = vadd.f32 %v4044, %v4348
      %v4478 = vadd.f32 %v4045, %v4350
      %v4479 = vmul.f32 %v3036, 0.26656
      %v4480 = vmul.f32 %v3037, 0.26656
      %v4481 = vmul.f32 %v3038, 0.26656
      %v4482 = vmul.f32 %v3039, 0.26656
      %v4483 = vmul.f32 %v3040, 0.26656
      %v4484 = vmul.f32 %v3041, 0.26656
      %v4485 = vmul.f32 %v3042, 0.26656
      %v4486 = vmul.f32 %v3043, 0.26656
      %v4487 = vmul.f32 %v3044, 0.26656
      %v4488 = vmul.f32 %v3045, 0.26656
      %v4489 = vmul.f32 %v3046, 0.26656
      %v4490 = vmul.f32 %v3047, 0.26656
      %v4491 = vmul.f32 %v3048, 0.26656
      %v4492 = vmul.f32 %v3049, 0.26656
      %v4493 = vmul.f32 %v3050, 0.26656
      %v4494 = vmul.f32 %v3051, 0.26656
      %v4495 = vmul.f32 %v3052, 0.26656
      %v4496 = vmul.f32 %v3053, 0.26656
      %v4497 = vmul.f32 %v3054, 0.26656
      %v4498 = vmul.f32 %v3055, 0.26656
      %v4499 = vmul.f32 %v3056, 0.26656
      %v4500 = vmul.f32 %v3057, 0.26656
      %v4501 = vmul.f32 %v3058, 0.26656
      %v4502 = vmul.f32 %v3059, 0.26656
      %v4503 = vmul.f32 %v3060, 0.26656
      %v4504 = vmul.f32 %v3061, 0.26656
      %v4505 = vmul.f32 %v3062, 0.26656
      %v4506 = vmul.f32 %v3063, 0.26656
      %v4507 = vmul.f32 %v3064, 0.26656
      %v4508 = vmul.f32 %v3065, 0.26656
      %v4509 = vmul.f32 %v3066, 0.26656
      %v4510 = vmul.f32 %v3067, 0.26656
      %v4511 = vmul.f32 %v3068, 0.26656
      %v4512 = vmul.f32 %v3069, 0.26656
      %v4513 = vmul.f32 %v3070, 0.26656
      %v4514 = vmul.f32 %v3071, 0.26656
      %v4515 = vmul.f32 %v3072, 0.26656
      %v4516 = vmul.f32 %v3073, 0.26656
      %v4517 = vmul.f32 %v3074, 0.26656
      %v4518 = vmul.f32 %v3075, 0.26656
      %v4519 = vmul.f32 %v3076, 0.26656
      %v4520 = vmul.f32 %v3077, 0.26656
      %v4521 = vmul.f32 %v3078, 0.26656
      %v4522 = vmul.f32 %v3079, 0.26656
      %v4523 = vmul.f32 %v3080, 0.26656
      %v4524 = vmul.f32 %v3081, 0.26656
      %v4525 = vmul.f32 %v3082, 0.26656
      %v4526 = vmul.f32 %v3083, 0.26656
      %v4527 = vmul.f32 %v3084, 0.26656
      %v4528 = vmul.f32 %v3085, 0.26656
      %v4529 = vmul.f32 %v3086, 0.26656
      %v4530 = vmul.f32 %v3087, 0.26656
      %v4531 = vmul.f32 %v3088, 0.26656
      %v4532 = vmul.f32 %v3089, 0.26656
      %v4533 = vmul.f32 %v3090, 0.26656
      %v4534 = vmul.f32 %v3091, 0.26656
      %v4535 = vmul.f32 %v3092, 0.26656
      %v4536 = vmul.f32 %v3093, 0.26656
      %v4537 = vmul.f32 %v3094, 0.26656
      %v4538 = vmul.f32 %v3095, 0.26656
      %v4539 = vmul.f32 %v3096, 0.26656
      %v4540 = vmul.f32 %v3097, 0.26656
      %v4541 = vmul.f32 %v3098, 0.26656
      %v4542 = vmul.f32 %v3099, 0.26656
      %v4543 = vmul.f32 %v3100, 0.26656
      %v4544 = vmul.f32 %v3101, 0.26656
      %v4545 = vmul.f32 %v3102, 0.26656
      %v4546 = vmul.f32 %v3103, 0.26656
      %v4547 = vmul.f32 %v3104, 0.26656
      %v4548 = vmul.f32 %v3105, 0.26656
      %v4549 = vmul.f32 %v3106, 0.26656
      %v4550 = vmul.f32 %v3107, 0.26656
      %v4551 = vmul.f32 %v3108, 0.26656
      %v4552 = vmul.f32 %v3109, 0.26656
      %v4553 = vmul.f32 %v3110, 0.26656
      %v4554 = vmul.f32 %v3111, 0.26656
      %v4555 = vmul.f32 %v3112, 0.26656
      %v4556 = vmul.f32 %v3113, 0.26656
      %v4557 = vmul.f32 %v3114, 0.26656
      %v4558 = vmul.f32 %v3115, 0.26656
      %vm4639 = vcmask 1043456
      %v4640 = vrot.slane %v4479, 4
      %v4641 = vrot.slane %v4480, 4
      %v4642 = vsel %vm4639, %v4640, %v4641
      %v4643 = vrot.slane %v4481, 4
      %v4644 = vsel %vm4639, %v4641, %v4643
      %v4645 = vrot.slane %v4482, 4
      %v4646 = vsel %vm4639, %v4643, %v4645
      %v4647 = vrot.slane %v4483, 4
      %v4648 = vsel %vm4639, %v4645, %v4647
      %v4649 = vrot.slane %v4484, 4
      %v4650 = vrot.slane %v4485, 4
      %v4651 = vsel %vm4639, %v4649, %v4650
      %v4652 = vrot.slane %v4486, 4
      %v4653 = vsel %vm4639, %v4650, %v4652
      %v4654 = vrot.slane %v4487, 4
      %v4655 = vsel %vm4639, %v4652, %v4654
      %v4656 = vrot.slane %v4488, 4
      %v4657 = vsel %vm4639, %v4654, %v4656
      %v4658 = vrot.slane %v4489, 4
      %v4659 = vrot.slane %v4490, 4
      %v4660 = vsel %vm4639, %v4658, %v4659
      %v4661 = vrot.slane %v4491, 4
      %v4662 = vsel %vm4639, %v4659, %v4661
      %v4663 = vrot.slane %v4492, 4
      %v4664 = vsel %vm4639, %v4661, %v4663
      %v4665 = vrot.slane %v4493, 4
      %v4666 = vsel %vm4639, %v4663, %v4665
      %v4667 = vrot.slane %v4494, 4
      %v4668 = vrot.slane %v4495, 4
      %v4669 = vsel %vm4639, %v4667, %v4668
      %v4670 = vrot.slane %v4496, 4
      %v4671 = vsel %vm4639, %v4668, %v4670
      %v4672 = vrot.slane %v4497, 4
      %v4673 = vsel %vm4639, %v4670, %v4672
      %v4674 = vrot.slane %v4498, 4
      %v4675 = vsel %vm4639, %v4672, %v4674
      %v4676 = vrot.slane %v4499, 4
      %v4677 = vrot.slane %v4500, 4
      %v4678 = vsel %vm4639, %v4676, %v4677
      %v4679 = vrot.slane %v4501, 4
      %v4680 = vsel %vm4639, %v4677, %v4679
      %v4681 = vrot.slane %v4502, 4
      %v4682 = vsel %vm4639, %v4679, %v4681
      %v4683 = vrot.slane %v4503, 4
      %v4684 = vsel %vm4639, %v4681, %v4683
      %v4685 = vrot.slane %v4504, 4
      %v4686 = vrot.slane %v4505, 4
      %v4687 = vsel %vm4639, %v4685, %v4686
      %v4688 = vrot.slane %v4506, 4
      %v4689 = vsel %vm4639, %v4686, %v4688
      %v4690 = vrot.slane %v4507, 4
      %v4691 = vsel %vm4639, %v4688, %v4690
      %v4692 = vrot.slane %v4508, 4
      %v4693 = vsel %vm4639, %v4690, %v4692
      %v4694 = vrot.slane %v4509, 4
      %v4695 = vrot.slane %v4510, 4
      %v4696 = vsel %vm4639, %v4694, %v4695
      %v4697 = vrot.slane %v4511, 4
      %v4698 = vsel %vm4639, %v4695, %v4697
      %v4699 = vrot.slane %v4512, 4
      %v4700 = vsel %vm4639, %v4697, %v4699
      %v4701 = vrot.slane %v4513, 4
      %v4702 = vsel %vm4639, %v4699, %v4701
      %v4703 = vrot.slane %v4514, 4
      %v4704 = vrot.slane %v4515, 4
      %v4705 = vsel %vm4639, %v4703, %v4704
      %v4706 = vrot.slane %v4516, 4
      %v4707 = vsel %vm4639, %v4704, %v4706
      %v4708 = vrot.slane %v4517, 4
      %v4709 = vsel %vm4639, %v4706, %v4708
      %v4710 = vrot.slane %v4518, 4
      %v4711 = vsel %vm4639, %v4708, %v4710
      %v4712 = vrot.slane %v4519, 4
      %v4713 = vrot.slane %v4520, 4
      %v4714 = vsel %vm4639, %v4712, %v4713
      %v4715 = vrot.slane %v4521, 4
      %v4716 = vsel %vm4639, %v4713, %v4715
      %v4717 = vrot.slane %v4522, 4
      %v4718 = vsel %vm4639, %v4715, %v4717
      %v4719 = vrot.slane %v4523, 4
      %v4720 = vsel %vm4639, %v4717, %v4719
      %v4721 = vrot.slane %v4524, 4
      %v4722 = vrot.slane %v4525, 4
      %v4723 = vsel %vm4639, %v4721, %v4722
      %v4724 = vrot.slane %v4526, 4
      %v4725 = vsel %vm4639, %v4722, %v4724
      %v4726 = vrot.slane %v4527, 4
      %v4727 = vsel %vm4639, %v4724, %v4726
      %v4728 = vrot.slane %v4528, 4
      %v4729 = vsel %vm4639, %v4726, %v4728
      %v4730 = vrot.slane %v4529, 4
      %v4731 = vrot.slane %v4530, 4
      %v4732 = vsel %vm4639, %v4730, %v4731
      %v4733 = vrot.slane %v4531, 4
      %v4734 = vsel %vm4639, %v4731, %v4733
      %v4735 = vrot.slane %v4532, 4
      %v4736 = vsel %vm4639, %v4733, %v4735
      %v4737 = vrot.slane %v4533, 4
      %v4738 = vsel %vm4639, %v4735, %v4737
      %v4739 = vrot.slane %v4534, 4
      %v4740 = vrot.slane %v4535, 4
      %v4741 = vsel %vm4639, %v4739, %v4740
      %v4742 = vrot.slane %v4536, 4
      %v4743 = vsel %vm4639, %v4740, %v4742
      %v4744 = vrot.slane %v4537, 4
      %v4745 = vsel %vm4639, %v4742, %v4744
      %v4746 = vrot.slane %v4538, 4
      %v4747 = vsel %vm4639, %v4744, %v4746
      %v4748 = vrot.slane %v4539, 4
      %v4749 = vrot.slane %v4540, 4
      %v4750 = vsel %vm4639, %v4748, %v4749
      %v4751 = vrot.slane %v4541, 4
      %v4752 = vsel %vm4639, %v4749, %v4751
      %v4753 = vrot.slane %v4542, 4
      %v4754 = vsel %vm4639, %v4751, %v4753
      %v4755 = vrot.slane %v4543, 4
      %v4756 = vsel %vm4639, %v4753, %v4755
      %v4757 = vrot.slane %v4544, 4
      %v4758 = vrot.slane %v4545, 4
      %v4759 = vsel %vm4639, %v4757, %v4758
      %v4760 = vrot.slane %v4546, 4
      %v4761 = vsel %vm4639, %v4758, %v4760
      %v4762 = vrot.slane %v4547, 4
      %v4763 = vsel %vm4639, %v4760, %v4762
      %v4764 = vrot.slane %v4548, 4
      %v4765 = vsel %vm4639, %v4762, %v4764
      %v4766 = vrot.slane %v4549, 4
      %v4767 = vrot.slane %v4550, 4
      %v4768 = vsel %vm4639, %v4766, %v4767
      %v4769 = vrot.slane %v4551, 4
      %v4770 = vsel %vm4639, %v4767, %v4769
      %v4771 = vrot.slane %v4552, 4
      %v4772 = vsel %vm4639, %v4769, %v4771
      %v4773 = vrot.slane %v4553, 4
      %v4774 = vsel %vm4639, %v4771, %v4773
      %v4775 = vrot.slane %v4554, 4
      %v4776 = vrot.slane %v4555, 4
      %v4777 = vsel %vm4639, %v4775, %v4776
      %v4778 = vrot.slane %v4556, 4
      %v4779 = vsel %vm4639, %v4776, %v4778
      %v4780 = vrot.slane %v4557, 4
      %v4781 = vsel %vm4639, %v4778, %v4780
      %v4782 = vrot.slane %v4558, 4
      %v4783 = vsel %vm4639, %v4780, %v4782
      %v4848 = vadd.f32 %v4415, %v4642
      %v4849 = vadd.f32 %v4416, %v4644
      %v4850 = vadd.f32 %v4417, %v4646
      %v4851 = vadd.f32 %v4418, %v4648
      %v4852 = vadd.f32 %v4419, %v4651
      %v4853 = vadd.f32 %v4420, %v4653
      %v4854 = vadd.f32 %v4421, %v4655
      %v4855 = vadd.f32 %v4422, %v4657
      %v4856 = vadd.f32 %v4423, %v4660
      %v4857 = vadd.f32 %v4424, %v4662
      %v4858 = vadd.f32 %v4425, %v4664
      %v4859 = vadd.f32 %v4426, %v4666
      %v4860 = vadd.f32 %v4427, %v4669
      %v4861 = vadd.f32 %v4428, %v4671
      %v4862 = vadd.f32 %v4429, %v4673
      %v4863 = vadd.f32 %v4430, %v4675
      %v4864 = vadd.f32 %v4431, %v4678
      %v4865 = vadd.f32 %v4432, %v4680
      %v4866 = vadd.f32 %v4433, %v4682
      %v4867 = vadd.f32 %v4434, %v4684
      %v4868 = vadd.f32 %v4435, %v4687
      %v4869 = vadd.f32 %v4436, %v4689
      %v4870 = vadd.f32 %v4437, %v4691
      %v4871 = vadd.f32 %v4438, %v4693
      %v4872 = vadd.f32 %v4439, %v4696
      %v4873 = vadd.f32 %v4440, %v4698
      %v4874 = vadd.f32 %v4441, %v4700
      %v4875 = vadd.f32 %v4442, %v4702
      %v4876 = vadd.f32 %v4443, %v4705
      %v4877 = vadd.f32 %v4444, %v4707
      %v4878 = vadd.f32 %v4445, %v4709
      %v4879 = vadd.f32 %v4446, %v4711
      %v4880 = vadd.f32 %v4447, %v4714
      %v4881 = vadd.f32 %v4448, %v4716
      %v4882 = vadd.f32 %v4449, %v4718
      %v4883 = vadd.f32 %v4450, %v4720
      %v4884 = vadd.f32 %v4451, %v4723
      %v4885 = vadd.f32 %v4452, %v4725
      %v4886 = vadd.f32 %v4453, %v4727
      %v4887 = vadd.f32 %v4454, %v4729
      %v4888 = vadd.f32 %v4455, %v4732
      %v4889 = vadd.f32 %v4456, %v4734
      %v4890 = vadd.f32 %v4457, %v4736
      %v4891 = vadd.f32 %v4458, %v4738
      %v4892 = vadd.f32 %v4459, %v4741
      %v4893 = vadd.f32 %v4460, %v4743
      %v4894 = vadd.f32 %v4461, %v4745
      %v4895 = vadd.f32 %v4462, %v4747
      %v4896 = vadd.f32 %v4463, %v4750
      %v4897 = vadd.f32 %v4464, %v4752
      %v4898 = vadd.f32 %v4465, %v4754
      %v4899 = vadd.f32 %v4466, %v4756
      %v4900 = vadd.f32 %v4467, %v4759
      %v4901 = vadd.f32 %v4468, %v4761
      %v4902 = vadd.f32 %v4469, %v4763
      %v4903 = vadd.f32 %v4470, %v4765
      %v4904 = vadd.f32 %v4471, %v4768
      %v4905 = vadd.f32 %v4472, %v4770
      %v4906 = vadd.f32 %v4473, %v4772
      %v4907 = vadd.f32 %v4474, %v4774
      %v4908 = vadd.f32 %v4475, %v4777
      %v4909 = vadd.f32 %v4476, %v4779
      %v4910 = vadd.f32 %v4477, %v4781
      %v4911 = vadd.f32 %v4478, %v4783
      %vm4912 = vcmask 1042432
      %v4913 = vrot.slane %v4046, 5
      %v4914 = vrot.slane %v4047, 5
      %v4915 = vsel %vm4912, %v4913, %v4914
      %v4916 = vrot.slane %v4048, 5
      %v4917 = vsel %vm4912, %v4914, %v4916
      %v4918 = vrot.slane %v4049, 5
      %v4919 = vsel %vm4912, %v4916, %v4918
      %v4920 = vrot.slane %v4050, 5
      %v4921 = vsel %vm4912, %v4918, %v4920
      %v4922 = vrot.slane %v4051, 5
      %v4923 = vrot.slane %v4052, 5
      %v4924 = vsel %vm4912, %v4922, %v4923
      %v4925 = vrot.slane %v4053, 5
      %v4926 = vsel %vm4912, %v4923, %v4925
      %v4927 = vrot.slane %v4054, 5
      %v4928 = vsel %vm4912, %v4925, %v4927
      %v4929 = vrot.slane %v4055, 5
      %v4930 = vsel %vm4912, %v4927, %v4929
      %v4931 = vrot.slane %v4056, 5
      %v4932 = vrot.slane %v4057, 5
      %v4933 = vsel %vm4912, %v4931, %v4932
      %v4934 = vrot.slane %v4058, 5
      %v4935 = vsel %vm4912, %v4932, %v4934
      %v4936 = vrot.slane %v4059, 5
      %v4937 = vsel %vm4912, %v4934, %v4936
      %v4938 = vrot.slane %v4060, 5
      %v4939 = vsel %vm4912, %v4936, %v4938
      %v4940 = vrot.slane %v4061, 5
      %v4941 = vrot.slane %v4062, 5
      %v4942 = vsel %vm4912, %v4940, %v4941
      %v4943 = vrot.slane %v4063, 5
      %v4944 = vsel %vm4912, %v4941, %v4943
      %v4945 = vrot.slane %v4064, 5
      %v4946 = vsel %vm4912, %v4943, %v4945
      %v4947 = vrot.slane %v4065, 5
      %v4948 = vsel %vm4912, %v4945, %v4947
      %v4949 = vrot.slane %v4066, 5
      %v4950 = vrot.slane %v4067, 5
      %v4951 = vsel %vm4912, %v4949, %v4950
      %v4952 = vrot.slane %v4068, 5
      %v4953 = vsel %vm4912, %v4950, %v4952
      %v4954 = vrot.slane %v4069, 5
      %v4955 = vsel %vm4912, %v4952, %v4954
      %v4956 = vrot.slane %v4070, 5
      %v4957 = vsel %vm4912, %v4954, %v4956
      %v4958 = vrot.slane %v4071, 5
      %v4959 = vrot.slane %v4072, 5
      %v4960 = vsel %vm4912, %v4958, %v4959
      %v4961 = vrot.slane %v4073, 5
      %v4962 = vsel %vm4912, %v4959, %v4961
      %v4963 = vrot.slane %v4074, 5
      %v4964 = vsel %vm4912, %v4961, %v4963
      %v4965 = vrot.slane %v4075, 5
      %v4966 = vsel %vm4912, %v4963, %v4965
      %v4967 = vrot.slane %v4076, 5
      %v4968 = vrot.slane %v4077, 5
      %v4969 = vsel %vm4912, %v4967, %v4968
      %v4970 = vrot.slane %v4078, 5
      %v4971 = vsel %vm4912, %v4968, %v4970
      %v4972 = vrot.slane %v4079, 5
      %v4973 = vsel %vm4912, %v4970, %v4972
      %v4974 = vrot.slane %v4080, 5
      %v4975 = vsel %vm4912, %v4972, %v4974
      %v4976 = vrot.slane %v4081, 5
      %v4977 = vrot.slane %v4082, 5
      %v4978 = vsel %vm4912, %v4976, %v4977
      %v4979 = vrot.slane %v4083, 5
      %v4980 = vsel %vm4912, %v4977, %v4979
      %v4981 = vrot.slane %v4084, 5
      %v4982 = vsel %vm4912, %v4979, %v4981
      %v4983 = vrot.slane %v4085, 5
      %v4984 = vsel %vm4912, %v4981, %v4983
      %v4985 = vrot.slane %v4086, 5
      %v4986 = vrot.slane %v4087, 5
      %v4987 = vsel %vm4912, %v4985, %v4986
      %v4988 = vrot.slane %v4088, 5
      %v4989 = vsel %vm4912, %v4986, %v4988
      %v4990 = vrot.slane %v4089, 5
      %v4991 = vsel %vm4912, %v4988, %v4990
      %v4992 = vrot.slane %v4090, 5
      %v4993 = vsel %vm4912, %v4990, %v4992
      %v4994 = vrot.slane %v4091, 5
      %v4995 = vrot.slane %v4092, 5
      %v4996 = vsel %vm4912, %v4994, %v4995
      %v4997 = vrot.slane %v4093, 5
      %v4998 = vsel %vm4912, %v4995, %v4997
      %v4999 = vrot.slane %v4094, 5
      %v5000 = vsel %vm4912, %v4997, %v4999
      %v5001 = vrot.slane %v4095, 5
      %v5002 = vsel %vm4912, %v4999, %v5001
      %v5003 = vrot.slane %v4096, 5
      %v5004 = vrot.slane %v4097, 5
      %v5005 = vsel %vm4912, %v5003, %v5004
      %v5006 = vrot.slane %v4098, 5
      %v5007 = vsel %vm4912, %v5004, %v5006
      %v5008 = vrot.slane %v4099, 5
      %v5009 = vsel %vm4912, %v5006, %v5008
      %v5010 = vrot.slane %v4100, 5
      %v5011 = vsel %vm4912, %v5008, %v5010
      %v5012 = vrot.slane %v4101, 5
      %v5013 = vrot.slane %v4102, 5
      %v5014 = vsel %vm4912, %v5012, %v5013
      %v5015 = vrot.slane %v4103, 5
      %v5016 = vsel %vm4912, %v5013, %v5015
      %v5017 = vrot.slane %v4104, 5
      %v5018 = vsel %vm4912, %v5015, %v5017
      %v5019 = vrot.slane %v4105, 5
      %v5020 = vsel %vm4912, %v5017, %v5019
      %v5021 = vrot.slane %v4106, 5
      %v5022 = vrot.slane %v4107, 5
      %v5023 = vsel %vm4912, %v5021, %v5022
      %v5024 = vrot.slane %v4108, 5
      %v5025 = vsel %vm4912, %v5022, %v5024
      %v5026 = vrot.slane %v4109, 5
      %v5027 = vsel %vm4912, %v5024, %v5026
      %v5028 = vrot.slane %v4110, 5
      %v5029 = vsel %vm4912, %v5026, %v5028
      %v5030 = vrot.slane %v4111, 5
      %v5031 = vrot.slane %v4112, 5
      %v5032 = vsel %vm4912, %v5030, %v5031
      %v5033 = vrot.slane %v4113, 5
      %v5034 = vsel %vm4912, %v5031, %v5033
      %v5035 = vrot.slane %v4114, 5
      %v5036 = vsel %vm4912, %v5033, %v5035
      %v5037 = vrot.slane %v4115, 5
      %v5038 = vsel %vm4912, %v5035, %v5037
      %v5039 = vrot.slane %v4116, 5
      %v5040 = vrot.slane %v4117, 5
      %v5041 = vsel %vm4912, %v5039, %v5040
      %v5042 = vrot.slane %v4118, 5
      %v5043 = vsel %vm4912, %v5040, %v5042
      %v5044 = vrot.slane %v4119, 5
      %v5045 = vsel %vm4912, %v5042, %v5044
      %v5046 = vrot.slane %v4120, 5
      %v5047 = vsel %vm4912, %v5044, %v5046
      %v5048 = vrot.slane %v4121, 5
      %v5049 = vrot.slane %v4122, 5
      %v5050 = vsel %vm4912, %v5048, %v5049
      %v5051 = vrot.slane %v4123, 5
      %v5052 = vsel %vm4912, %v5049, %v5051
      %v5053 = vrot.slane %v4124, 5
      %v5054 = vsel %vm4912, %v5051, %v5053
      %v5055 = vrot.slane %v4125, 5
      %v5056 = vsel %vm4912, %v5053, %v5055
      %v5121 = vadd.f32 %v4848, %v4915
      %v5122 = vadd.f32 %v4849, %v4917
      %v5123 = vadd.f32 %v4850, %v4919
      %v5124 = vadd.f32 %v4851, %v4921
      %v5125 = vadd.f32 %v4852, %v4924
      %v5126 = vadd.f32 %v4853, %v4926
      %v5127 = vadd.f32 %v4854, %v4928
      %v5128 = vadd.f32 %v4855, %v4930
      %v5129 = vadd.f32 %v4856, %v4933
      %v5130 = vadd.f32 %v4857, %v4935
      %v5131 = vadd.f32 %v4858, %v4937
      %v5132 = vadd.f32 %v4859, %v4939
      %v5133 = vadd.f32 %v4860, %v4942
      %v5134 = vadd.f32 %v4861, %v4944
      %v5135 = vadd.f32 %v4862, %v4946
      %v5136 = vadd.f32 %v4863, %v4948
      %v5137 = vadd.f32 %v4864, %v4951
      %v5138 = vadd.f32 %v4865, %v4953
      %v5139 = vadd.f32 %v4866, %v4955
      %v5140 = vadd.f32 %v4867, %v4957
      %v5141 = vadd.f32 %v4868, %v4960
      %v5142 = vadd.f32 %v4869, %v4962
      %v5143 = vadd.f32 %v4870, %v4964
      %v5144 = vadd.f32 %v4871, %v4966
      %v5145 = vadd.f32 %v4872, %v4969
      %v5146 = vadd.f32 %v4873, %v4971
      %v5147 = vadd.f32 %v4874, %v4973
      %v5148 = vadd.f32 %v4875, %v4975
      %v5149 = vadd.f32 %v4876, %v4978
      %v5150 = vadd.f32 %v4877, %v4980
      %v5151 = vadd.f32 %v4878, %v4982
      %v5152 = vadd.f32 %v4879, %v4984
      %v5153 = vadd.f32 %v4880, %v4987
      %v5154 = vadd.f32 %v4881, %v4989
      %v5155 = vadd.f32 %v4882, %v4991
      %v5156 = vadd.f32 %v4883, %v4993
      %v5157 = vadd.f32 %v4884, %v4996
      %v5158 = vadd.f32 %v4885, %v4998
      %v5159 = vadd.f32 %v4886, %v5000
      %v5160 = vadd.f32 %v4887, %v5002
      %v5161 = vadd.f32 %v4888, %v5005
      %v5162 = vadd.f32 %v4889, %v5007
      %v5163 = vadd.f32 %v4890, %v5009
      %v5164 = vadd.f32 %v4891, %v5011
      %v5165 = vadd.f32 %v4892, %v5014
      %v5166 = vadd.f32 %v4893, %v5016
      %v5167 = vadd.f32 %v4894, %v5018
      %v5168 = vadd.f32 %v4895, %v5020
      %v5169 = vadd.f32 %v4896, %v5023
      %v5170 = vadd.f32 %v4897, %v5025
      %v5171 = vadd.f32 %v4898, %v5027
      %v5172 = vadd.f32 %v4899, %v5029
      %v5173 = vadd.f32 %v4900, %v5032
      %v5174 = vadd.f32 %v4901, %v5034
      %v5175 = vadd.f32 %v4902, %v5036
      %v5176 = vadd.f32 %v4903, %v5038
      %v5177 = vadd.f32 %v4904, %v5041
      %v5178 = vadd.f32 %v4905, %v5043
      %v5179 = vadd.f32 %v4906, %v5045
      %v5180 = vadd.f32 %v4907, %v5047
      %v5181 = vadd.f32 %v4908, %v5050
      %v5182 = vadd.f32 %v4909, %v5052
      %v5183 = vadd.f32 %v4910, %v5054
      %v5184 = vadd.f32 %v4911, %v5056
      %vm5185 = vcmask 1041408
      %v5186 = vrot.slane %v3613, 6
      %v5187 = vrot.slane %v3614, 6
      %v5188 = vsel %vm5185, %v5186, %v5187
      %v5189 = vrot.slane %v3615, 6
      %v5190 = vsel %vm5185, %v5187, %v5189
      %v5191 = vrot.slane %v3616, 6
      %v5192 = vsel %vm5185, %v5189, %v5191
      %v5193 = vrot.slane %v3617, 6
      %v5194 = vsel %vm5185, %v5191, %v5193
      %v5195 = vrot.slane %v3618, 6
      %v5196 = vrot.slane %v3619, 6
      %v5197 = vsel %vm5185, %v5195, %v5196
      %v5198 = vrot.slane %v3620, 6
      %v5199 = vsel %vm5185, %v5196, %v5198
      %v5200 = vrot.slane %v3621, 6
      %v5201 = vsel %vm5185, %v5198, %v5200
      %v5202 = vrot.slane %v3622, 6
      %v5203 = vsel %vm5185, %v5200, %v5202
      %v5204 = vrot.slane %v3623, 6
      %v5205 = vrot.slane %v3624, 6
      %v5206 = vsel %vm5185, %v5204, %v5205
      %v5207 = vrot.slane %v3625, 6
      %v5208 = vsel %vm5185, %v5205, %v5207
      %v5209 = vrot.slane %v3626, 6
      %v5210 = vsel %vm5185, %v5207, %v5209
      %v5211 = vrot.slane %v3627, 6
      %v5212 = vsel %vm5185, %v5209, %v5211
      %v5213 = vrot.slane %v3628, 6
      %v5214 = vrot.slane %v3629, 6
      %v5215 = vsel %vm5185, %v5213, %v5214
      %v5216 = vrot.slane %v3630, 6
      %v5217 = vsel %vm5185, %v5214, %v5216
      %v5218 = vrot.slane %v3631, 6
      %v5219 = vsel %vm5185, %v5216, %v5218
      %v5220 = vrot.slane %v3632, 6
      %v5221 = vsel %vm5185, %v5218, %v5220
      %v5222 = vrot.slane %v3633, 6
      %v5223 = vrot.slane %v3634, 6
      %v5224 = vsel %vm5185, %v5222, %v5223
      %v5225 = vrot.slane %v3635, 6
      %v5226 = vsel %vm5185, %v5223, %v5225
      %v5227 = vrot.slane %v3636, 6
      %v5228 = vsel %vm5185, %v5225, %v5227
      %v5229 = vrot.slane %v3637, 6
      %v5230 = vsel %vm5185, %v5227, %v5229
      %v5231 = vrot.slane %v3638, 6
      %v5232 = vrot.slane %v3639, 6
      %v5233 = vsel %vm5185, %v5231, %v5232
      %v5234 = vrot.slane %v3640, 6
      %v5235 = vsel %vm5185, %v5232, %v5234
      %v5236 = vrot.slane %v3641, 6
      %v5237 = vsel %vm5185, %v5234, %v5236
      %v5238 = vrot.slane %v3642, 6
      %v5239 = vsel %vm5185, %v5236, %v5238
      %v5240 = vrot.slane %v3643, 6
      %v5241 = vrot.slane %v3644, 6
      %v5242 = vsel %vm5185, %v5240, %v5241
      %v5243 = vrot.slane %v3645, 6
      %v5244 = vsel %vm5185, %v5241, %v5243
      %v5245 = vrot.slane %v3646, 6
      %v5246 = vsel %vm5185, %v5243, %v5245
      %v5247 = vrot.slane %v3647, 6
      %v5248 = vsel %vm5185, %v5245, %v5247
      %v5249 = vrot.slane %v3648, 6
      %v5250 = vrot.slane %v3649, 6
      %v5251 = vsel %vm5185, %v5249, %v5250
      %v5252 = vrot.slane %v3650, 6
      %v5253 = vsel %vm5185, %v5250, %v5252
      %v5254 = vrot.slane %v3651, 6
      %v5255 = vsel %vm5185, %v5252, %v5254
      %v5256 = vrot.slane %v3652, 6
      %v5257 = vsel %vm5185, %v5254, %v5256
      %v5258 = vrot.slane %v3653, 6
      %v5259 = vrot.slane %v3654, 6
      %v5260 = vsel %vm5185, %v5258, %v5259
      %v5261 = vrot.slane %v3655, 6
      %v5262 = vsel %vm5185, %v5259, %v5261
      %v5263 = vrot.slane %v3656, 6
      %v5264 = vsel %vm5185, %v5261, %v5263
      %v5265 = vrot.slane %v3657, 6
      %v5266 = vsel %vm5185, %v5263, %v5265
      %v5267 = vrot.slane %v3658, 6
      %v5268 = vrot.slane %v3659, 6
      %v5269 = vsel %vm5185, %v5267, %v5268
      %v5270 = vrot.slane %v3660, 6
      %v5271 = vsel %vm5185, %v5268, %v5270
      %v5272 = vrot.slane %v3661, 6
      %v5273 = vsel %vm5185, %v5270, %v5272
      %v5274 = vrot.slane %v3662, 6
      %v5275 = vsel %vm5185, %v5272, %v5274
      %v5276 = vrot.slane %v3663, 6
      %v5277 = vrot.slane %v3664, 6
      %v5278 = vsel %vm5185, %v5276, %v5277
      %v5279 = vrot.slane %v3665, 6
      %v5280 = vsel %vm5185, %v5277, %v5279
      %v5281 = vrot.slane %v3666, 6
      %v5282 = vsel %vm5185, %v5279, %v5281
      %v5283 = vrot.slane %v3667, 6
      %v5284 = vsel %vm5185, %v5281, %v5283
      %v5285 = vrot.slane %v3668, 6
      %v5286 = vrot.slane %v3669, 6
      %v5287 = vsel %vm5185, %v5285, %v5286
      %v5288 = vrot.slane %v3670, 6
      %v5289 = vsel %vm5185, %v5286, %v5288
      %v5290 = vrot.slane %v3671, 6
      %v5291 = vsel %vm5185, %v5288, %v5290
      %v5292 = vrot.slane %v3672, 6
      %v5293 = vsel %vm5185, %v5290, %v5292
      %v5294 = vrot.slane %v3673, 6
      %v5295 = vrot.slane %v3674, 6
      %v5296 = vsel %vm5185, %v5294, %v5295
      %v5297 = vrot.slane %v3675, 6
      %v5298 = vsel %vm5185, %v5295, %v5297
      %v5299 = vrot.slane %v3676, 6
      %v5300 = vsel %vm5185, %v5297, %v5299
      %v5301 = vrot.slane %v3677, 6
      %v5302 = vsel %vm5185, %v5299, %v5301
      %v5303 = vrot.slane %v3678, 6
      %v5304 = vrot.slane %v3679, 6
      %v5305 = vsel %vm5185, %v5303, %v5304
      %v5306 = vrot.slane %v3680, 6
      %v5307 = vsel %vm5185, %v5304, %v5306
      %v5308 = vrot.slane %v3681, 6
      %v5309 = vsel %vm5185, %v5306, %v5308
      %v5310 = vrot.slane %v3682, 6
      %v5311 = vsel %vm5185, %v5308, %v5310
      %v5312 = vrot.slane %v3683, 6
      %v5313 = vrot.slane %v3684, 6
      %v5314 = vsel %vm5185, %v5312, %v5313
      %v5315 = vrot.slane %v3685, 6
      %v5316 = vsel %vm5185, %v5313, %v5315
      %v5317 = vrot.slane %v3686, 6
      %v5318 = vsel %vm5185, %v5315, %v5317
      %v5319 = vrot.slane %v3687, 6
      %v5320 = vsel %vm5185, %v5317, %v5319
      %v5321 = vrot.slane %v3688, 6
      %v5322 = vrot.slane %v3689, 6
      %v5323 = vsel %vm5185, %v5321, %v5322
      %v5324 = vrot.slane %v3690, 6
      %v5325 = vsel %vm5185, %v5322, %v5324
      %v5326 = vrot.slane %v3691, 6
      %v5327 = vsel %vm5185, %v5324, %v5326
      %v5328 = vrot.slane %v3692, 6
      %v5329 = vsel %vm5185, %v5326, %v5328
      %v5394 = vadd.f32 %v5121, %v5188
      %v5395 = vadd.f32 %v5122, %v5190
      %v5396 = vadd.f32 %v5123, %v5192
      %v5397 = vadd.f32 %v5124, %v5194
      %v5398 = vadd.f32 %v5125, %v5197
      %v5399 = vadd.f32 %v5126, %v5199
      %v5400 = vadd.f32 %v5127, %v5201
      %v5401 = vadd.f32 %v5128, %v5203
      %v5402 = vadd.f32 %v5129, %v5206
      %v5403 = vadd.f32 %v5130, %v5208
      %v5404 = vadd.f32 %v5131, %v5210
      %v5405 = vadd.f32 %v5132, %v5212
      %v5406 = vadd.f32 %v5133, %v5215
      %v5407 = vadd.f32 %v5134, %v5217
      %v5408 = vadd.f32 %v5135, %v5219
      %v5409 = vadd.f32 %v5136, %v5221
      %v5410 = vadd.f32 %v5137, %v5224
      %v5411 = vadd.f32 %v5138, %v5226
      %v5412 = vadd.f32 %v5139, %v5228
      %v5413 = vadd.f32 %v5140, %v5230
      %v5414 = vadd.f32 %v5141, %v5233
      %v5415 = vadd.f32 %v5142, %v5235
      %v5416 = vadd.f32 %v5143, %v5237
      %v5417 = vadd.f32 %v5144, %v5239
      %v5418 = vadd.f32 %v5145, %v5242
      %v5419 = vadd.f32 %v5146, %v5244
      %v5420 = vadd.f32 %v5147, %v5246
      %v5421 = vadd.f32 %v5148, %v5248
      %v5422 = vadd.f32 %v5149, %v5251
      %v5423 = vadd.f32 %v5150, %v5253
      %v5424 = vadd.f32 %v5151, %v5255
      %v5425 = vadd.f32 %v5152, %v5257
      %v5426 = vadd.f32 %v5153, %v5260
      %v5427 = vadd.f32 %v5154, %v5262
      %v5428 = vadd.f32 %v5155, %v5264
      %v5429 = vadd.f32 %v5156, %v5266
      %v5430 = vadd.f32 %v5157, %v5269
      %v5431 = vadd.f32 %v5158, %v5271
      %v5432 = vadd.f32 %v5159, %v5273
      %v5433 = vadd.f32 %v5160, %v5275
      %v5434 = vadd.f32 %v5161, %v5278
      %v5435 = vadd.f32 %v5162, %v5280
      %v5436 = vadd.f32 %v5163, %v5282
      %v5437 = vadd.f32 %v5164, %v5284
      %v5438 = vadd.f32 %v5165, %v5287
      %v5439 = vadd.f32 %v5166, %v5289
      %v5440 = vadd.f32 %v5167, %v5291
      %v5441 = vadd.f32 %v5168, %v5293
      %v5442 = vadd.f32 %v5169, %v5296
      %v5443 = vadd.f32 %v5170, %v5298
      %v5444 = vadd.f32 %v5171, %v5300
      %v5445 = vadd.f32 %v5172, %v5302
      %v5446 = vadd.f32 %v5173, %v5305
      %v5447 = vadd.f32 %v5174, %v5307
      %v5448 = vadd.f32 %v5175, %v5309
      %v5449 = vadd.f32 %v5176, %v5311
      %v5450 = vadd.f32 %v5177, %v5314
      %v5451 = vadd.f32 %v5178, %v5316
      %v5452 = vadd.f32 %v5179, %v5318
      %v5453 = vadd.f32 %v5180, %v5320
      %v5454 = vadd.f32 %v5181, %v5323
      %v5455 = vadd.f32 %v5182, %v5325
      %v5456 = vadd.f32 %v5183, %v5327
      %v5457 = vadd.f32 %v5184, %v5329
      %vm5458 = vcmask 1040384
      %v5459 = vrot.slane %v3180, 7
      %v5460 = vrot.slane %v3181, 7
      %v5461 = vsel %vm5458, %v5459, %v5460
      %v5462 = vrot.slane %v3182, 7
      %v5463 = vsel %vm5458, %v5460, %v5462
      %v5464 = vrot.slane %v3183, 7
      %v5465 = vsel %vm5458, %v5462, %v5464
      %v5466 = vrot.slane %v3184, 7
      %v5467 = vsel %vm5458, %v5464, %v5466
      %v5468 = vrot.slane %v3185, 7
      %v5469 = vrot.slane %v3186, 7
      %v5470 = vsel %vm5458, %v5468, %v5469
      %v5471 = vrot.slane %v3187, 7
      %v5472 = vsel %vm5458, %v5469, %v5471
      %v5473 = vrot.slane %v3188, 7
      %v5474 = vsel %vm5458, %v5471, %v5473
      %v5475 = vrot.slane %v3189, 7
      %v5476 = vsel %vm5458, %v5473, %v5475
      %v5477 = vrot.slane %v3190, 7
      %v5478 = vrot.slane %v3191, 7
      %v5479 = vsel %vm5458, %v5477, %v5478
      %v5480 = vrot.slane %v3192, 7
      %v5481 = vsel %vm5458, %v5478, %v5480
      %v5482 = vrot.slane %v3193, 7
      %v5483 = vsel %vm5458, %v5480, %v5482
      %v5484 = vrot.slane %v3194, 7
      %v5485 = vsel %vm5458, %v5482, %v5484
      %v5486 = vrot.slane %v3195, 7
      %v5487 = vrot.slane %v3196, 7
      %v5488 = vsel %vm5458, %v5486, %v5487
      %v5489 = vrot.slane %v3197, 7
      %v5490 = vsel %vm5458, %v5487, %v5489
      %v5491 = vrot.slane %v3198, 7
      %v5492 = vsel %vm5458, %v5489, %v5491
      %v5493 = vrot.slane %v3199, 7
      %v5494 = vsel %vm5458, %v5491, %v5493
      %v5495 = vrot.slane %v3200, 7
      %v5496 = vrot.slane %v3201, 7
      %v5497 = vsel %vm5458, %v5495, %v5496
      %v5498 = vrot.slane %v3202, 7
      %v5499 = vsel %vm5458, %v5496, %v5498
      %v5500 = vrot.slane %v3203, 7
      %v5501 = vsel %vm5458, %v5498, %v5500
      %v5502 = vrot.slane %v3204, 7
      %v5503 = vsel %vm5458, %v5500, %v5502
      %v5504 = vrot.slane %v3205, 7
      %v5505 = vrot.slane %v3206, 7
      %v5506 = vsel %vm5458, %v5504, %v5505
      %v5507 = vrot.slane %v3207, 7
      %v5508 = vsel %vm5458, %v5505, %v5507
      %v5509 = vrot.slane %v3208, 7
      %v5510 = vsel %vm5458, %v5507, %v5509
      %v5511 = vrot.slane %v3209, 7
      %v5512 = vsel %vm5458, %v5509, %v5511
      %v5513 = vrot.slane %v3210, 7
      %v5514 = vrot.slane %v3211, 7
      %v5515 = vsel %vm5458, %v5513, %v5514
      %v5516 = vrot.slane %v3212, 7
      %v5517 = vsel %vm5458, %v5514, %v5516
      %v5518 = vrot.slane %v3213, 7
      %v5519 = vsel %vm5458, %v5516, %v5518
      %v5520 = vrot.slane %v3214, 7
      %v5521 = vsel %vm5458, %v5518, %v5520
      %v5522 = vrot.slane %v3215, 7
      %v5523 = vrot.slane %v3216, 7
      %v5524 = vsel %vm5458, %v5522, %v5523
      %v5525 = vrot.slane %v3217, 7
      %v5526 = vsel %vm5458, %v5523, %v5525
      %v5527 = vrot.slane %v3218, 7
      %v5528 = vsel %vm5458, %v5525, %v5527
      %v5529 = vrot.slane %v3219, 7
      %v5530 = vsel %vm5458, %v5527, %v5529
      %v5531 = vrot.slane %v3220, 7
      %v5532 = vrot.slane %v3221, 7
      %v5533 = vsel %vm5458, %v5531, %v5532
      %v5534 = vrot.slane %v3222, 7
      %v5535 = vsel %vm5458, %v5532, %v5534
      %v5536 = vrot.slane %v3223, 7
      %v5537 = vsel %vm5458, %v5534, %v5536
      %v5538 = vrot.slane %v3224, 7
      %v5539 = vsel %vm5458, %v5536, %v5538
      %v5540 = vrot.slane %v3225, 7
      %v5541 = vrot.slane %v3226, 7
      %v5542 = vsel %vm5458, %v5540, %v5541
      %v5543 = vrot.slane %v3227, 7
      %v5544 = vsel %vm5458, %v5541, %v5543
      %v5545 = vrot.slane %v3228, 7
      %v5546 = vsel %vm5458, %v5543, %v5545
      %v5547 = vrot.slane %v3229, 7
      %v5548 = vsel %vm5458, %v5545, %v5547
      %v5549 = vrot.slane %v3230, 7
      %v5550 = vrot.slane %v3231, 7
      %v5551 = vsel %vm5458, %v5549, %v5550
      %v5552 = vrot.slane %v3232, 7
      %v5553 = vsel %vm5458, %v5550, %v5552
      %v5554 = vrot.slane %v3233, 7
      %v5555 = vsel %vm5458, %v5552, %v5554
      %v5556 = vrot.slane %v3234, 7
      %v5557 = vsel %vm5458, %v5554, %v5556
      %v5558 = vrot.slane %v3235, 7
      %v5559 = vrot.slane %v3236, 7
      %v5560 = vsel %vm5458, %v5558, %v5559
      %v5561 = vrot.slane %v3237, 7
      %v5562 = vsel %vm5458, %v5559, %v5561
      %v5563 = vrot.slane %v3238, 7
      %v5564 = vsel %vm5458, %v5561, %v5563
      %v5565 = vrot.slane %v3239, 7
      %v5566 = vsel %vm5458, %v5563, %v5565
      %v5567 = vrot.slane %v3240, 7
      %v5568 = vrot.slane %v3241, 7
      %v5569 = vsel %vm5458, %v5567, %v5568
      %v5570 = vrot.slane %v3242, 7
      %v5571 = vsel %vm5458, %v5568, %v5570
      %v5572 = vrot.slane %v3243, 7
      %v5573 = vsel %vm5458, %v5570, %v5572
      %v5574 = vrot.slane %v3244, 7
      %v5575 = vsel %vm5458, %v5572, %v5574
      %v5576 = vrot.slane %v3245, 7
      %v5577 = vrot.slane %v3246, 7
      %v5578 = vsel %vm5458, %v5576, %v5577
      %v5579 = vrot.slane %v3247, 7
      %v5580 = vsel %vm5458, %v5577, %v5579
      %v5581 = vrot.slane %v3248, 7
      %v5582 = vsel %vm5458, %v5579, %v5581
      %v5583 = vrot.slane %v3249, 7
      %v5584 = vsel %vm5458, %v5581, %v5583
      %v5585 = vrot.slane %v3250, 7
      %v5586 = vrot.slane %v3251, 7
      %v5587 = vsel %vm5458, %v5585, %v5586
      %v5588 = vrot.slane %v3252, 7
      %v5589 = vsel %vm5458, %v5586, %v5588
      %v5590 = vrot.slane %v3253, 7
      %v5591 = vsel %vm5458, %v5588, %v5590
      %v5592 = vrot.slane %v3254, 7
      %v5593 = vsel %vm5458, %v5590, %v5592
      %v5594 = vrot.slane %v3255, 7
      %v5595 = vrot.slane %v3256, 7
      %v5596 = vsel %vm5458, %v5594, %v5595
      %v5597 = vrot.slane %v3257, 7
      %v5598 = vsel %vm5458, %v5595, %v5597
      %v5599 = vrot.slane %v3258, 7
      %v5600 = vsel %vm5458, %v5597, %v5599
      %v5601 = vrot.slane %v3259, 7
      %v5602 = vsel %vm5458, %v5599, %v5601
      %v5667 = vadd.f32 %v5394, %v5461
      %v5668 = vadd.f32 %v5395, %v5463
      %v5669 = vadd.f32 %v5396, %v5465
      %v5670 = vadd.f32 %v5397, %v5467
      %v5671 = vadd.f32 %v5398, %v5470
      %v5672 = vadd.f32 %v5399, %v5472
      %v5673 = vadd.f32 %v5400, %v5474
      %v5674 = vadd.f32 %v5401, %v5476
      %v5675 = vadd.f32 %v5402, %v5479
      %v5676 = vadd.f32 %v5403, %v5481
      %v5677 = vadd.f32 %v5404, %v5483
      %v5678 = vadd.f32 %v5405, %v5485
      %v5679 = vadd.f32 %v5406, %v5488
      %v5680 = vadd.f32 %v5407, %v5490
      %v5681 = vadd.f32 %v5408, %v5492
      %v5682 = vadd.f32 %v5409, %v5494
      %v5683 = vadd.f32 %v5410, %v5497
      %v5684 = vadd.f32 %v5411, %v5499
      %v5685 = vadd.f32 %v5412, %v5501
      %v5686 = vadd.f32 %v5413, %v5503
      %v5687 = vadd.f32 %v5414, %v5506
      %v5688 = vadd.f32 %v5415, %v5508
      %v5689 = vadd.f32 %v5416, %v5510
      %v5690 = vadd.f32 %v5417, %v5512
      %v5691 = vadd.f32 %v5418, %v5515
      %v5692 = vadd.f32 %v5419, %v5517
      %v5693 = vadd.f32 %v5420, %v5519
      %v5694 = vadd.f32 %v5421, %v5521
      %v5695 = vadd.f32 %v5422, %v5524
      %v5696 = vadd.f32 %v5423, %v5526
      %v5697 = vadd.f32 %v5424, %v5528
      %v5698 = vadd.f32 %v5425, %v5530
      %v5699 = vadd.f32 %v5426, %v5533
      %v5700 = vadd.f32 %v5427, %v5535
      %v5701 = vadd.f32 %v5428, %v5537
      %v5702 = vadd.f32 %v5429, %v5539
      %v5703 = vadd.f32 %v5430, %v5542
      %v5704 = vadd.f32 %v5431, %v5544
      %v5705 = vadd.f32 %v5432, %v5546
      %v5706 = vadd.f32 %v5433, %v5548
      %v5707 = vadd.f32 %v5434, %v5551
      %v5708 = vadd.f32 %v5435, %v5553
      %v5709 = vadd.f32 %v5436, %v5555
      %v5710 = vadd.f32 %v5437, %v5557
      %v5711 = vadd.f32 %v5438, %v5560
      %v5712 = vadd.f32 %v5439, %v5562
      %v5713 = vadd.f32 %v5440, %v5564
      %v5714 = vadd.f32 %v5441, %v5566
      %v5715 = vadd.f32 %v5442, %v5569
      %v5716 = vadd.f32 %v5443, %v5571
      %v5717 = vadd.f32 %v5444, %v5573
      %v5718 = vadd.f32 %v5445, %v5575
      %v5719 = vadd.f32 %v5446, %v5578
      %v5720 = vadd.f32 %v5447, %v5580
      %v5721 = vadd.f32 %v5448, %v5582
      %v5722 = vadd.f32 %v5449, %v5584
      %v5723 = vadd.f32 %v5450, %v5587
      %v5724 = vadd.f32 %v5451, %v5589
      %v5725 = vadd.f32 %v5452, %v5591
      %v5726 = vadd.f32 %v5453, %v5593
      %v5727 = vadd.f32 %v5454, %v5596
      %v5728 = vadd.f32 %v5455, %v5598
      %v5729 = vadd.f32 %v5456, %v5600
      %v5730 = vadd.f32 %v5457, %v5602
      %v5731 = vmul.f32 %v3040, 0.0076144193
      %v5732 = vmul.f32 %v3045, 0.0076144193
      %v5733 = vmul.f32 %v3050, 0.0076144193
      %v5734 = vmul.f32 %v3055, 0.0076144193
      %v5735 = vmul.f32 %v3060, 0.0076144193
      %v5736 = vmul.f32 %v3065, 0.0076144193
      %v5737 = vmul.f32 %v3070, 0.0076144193
      %v5738 = vmul.f32 %v3075, 0.0076144193
      %v5739 = vmul.f32 %v3080, 0.0076144193
      %v5740 = vmul.f32 %v3085, 0.0076144193
      %v5741 = vmul.f32 %v3090, 0.0076144193
      %v5742 = vmul.f32 %v3095, 0.0076144193
      %v5743 = vmul.f32 %v3100, 0.0076144193
      %v5744 = vmul.f32 %v3105, 0.0076144193
      %v5745 = vmul.f32 %v3110, 0.0076144193
      %v5746 = vmul.f32 %v3115, 0.0076144193
      %v5747 = vadd.f32 %v5667, %v3117
      %v5748 = vadd.f32 %v5668, %v3118
      %v5749 = vadd.f32 %v5669, %v3119
      %v5750 = vadd.f32 %v5670, %v5731
      %v5751 = vadd.f32 %v5671, %v3121
      %v5752 = vadd.f32 %v5672, %v3122
      %v5753 = vadd.f32 %v5673, %v3123
      %v5754 = vadd.f32 %v5674, %v5732
      %v5755 = vadd.f32 %v5675, %v3125
      %v5756 = vadd.f32 %v5676, %v3126
      %v5757 = vadd.f32 %v5677, %v3127
      %v5758 = vadd.f32 %v5678, %v5733
      %v5759 = vadd.f32 %v5679, %v3129
      %v5760 = vadd.f32 %v5680, %v3130
      %v5761 = vadd.f32 %v5681, %v3131
      %v5762 = vadd.f32 %v5682, %v5734
      %v5763 = vadd.f32 %v5683, %v3133
      %v5764 = vadd.f32 %v5684, %v3134
      %v5765 = vadd.f32 %v5685, %v3135
      %v5766 = vadd.f32 %v5686, %v5735
      %v5767 = vadd.f32 %v5687, %v3137
      %v5768 = vadd.f32 %v5688, %v3138
      %v5769 = vadd.f32 %v5689, %v3139
      %v5770 = vadd.f32 %v5690, %v5736
      %v5771 = vadd.f32 %v5691, %v3141
      %v5772 = vadd.f32 %v5692, %v3142
      %v5773 = vadd.f32 %v5693, %v3143
      %v5774 = vadd.f32 %v5694, %v5737
      %v5775 = vadd.f32 %v5695, %v3145
      %v5776 = vadd.f32 %v5696, %v3146
      %v5777 = vadd.f32 %v5697, %v3147
      %v5778 = vadd.f32 %v5698, %v5738
      %v5779 = vadd.f32 %v5699, %v3149
      %v5780 = vadd.f32 %v5700, %v3150
      %v5781 = vadd.f32 %v5701, %v3151
      %v5782 = vadd.f32 %v5702, %v5739
      %v5783 = vadd.f32 %v5703, %v3153
      %v5784 = vadd.f32 %v5704, %v3154
      %v5785 = vadd.f32 %v5705, %v3155
      %v5786 = vadd.f32 %v5706, %v5740
      %v5787 = vadd.f32 %v5707, %v3157
      %v5788 = vadd.f32 %v5708, %v3158
      %v5789 = vadd.f32 %v5709, %v3159
      %v5790 = vadd.f32 %v5710, %v5741
      %v5791 = vadd.f32 %v5711, %v3161
      %v5792 = vadd.f32 %v5712, %v3162
      %v5793 = vadd.f32 %v5713, %v3163
      %v5794 = vadd.f32 %v5714, %v5742
      %v5795 = vadd.f32 %v5715, %v3165
      %v5796 = vadd.f32 %v5716, %v3166
      %v5797 = vadd.f32 %v5717, %v3167
      %v5798 = vadd.f32 %v5718, %v5743
      %v5799 = vadd.f32 %v5719, %v3169
      %v5800 = vadd.f32 %v5720, %v3170
      %v5801 = vadd.f32 %v5721, %v3171
      %v5802 = vadd.f32 %v5722, %v5744
      %v5803 = vadd.f32 %v5723, %v3173
      %v5804 = vadd.f32 %v5724, %v3174
      %v5805 = vadd.f32 %v5725, %v3175
      %v5806 = vadd.f32 %v5726, %v5745
      %v5807 = vadd.f32 %v5727, %v3177
      %v5808 = vadd.f32 %v5728, %v3178
      %v5809 = vadd.f32 %v5729, %v3179
      %v5810 = vadd.f32 %v5730, %v5746
      %v5811 = vmul.f32 %v5747, 0.0076144193
      %v5812 = vmul.f32 %v5748, 0.0076144193
      %v5813 = vmul.f32 %v5749, 0.0076144193
      %v5814 = vmul.f32 %v5750, 0.0076144193
      %v5815 = vmul.f32 %v5751, 0.0076144193
      %v5816 = vmul.f32 %v5752, 0.0076144193
      %v5817 = vmul.f32 %v5753, 0.0076144193
      %v5818 = vmul.f32 %v5754, 0.0076144193
      %v5819 = vmul.f32 %v5755, 0.0076144193
      %v5820 = vmul.f32 %v5756, 0.0076144193
      %v5821 = vmul.f32 %v5757, 0.0076144193
      %v5822 = vmul.f32 %v5758, 0.0076144193
      %v5823 = vmul.f32 %v5759, 0.0076144193
      %v5824 = vmul.f32 %v5760, 0.0076144193
      %v5825 = vmul.f32 %v5761, 0.0076144193
      %v5826 = vmul.f32 %v5762, 0.0076144193
      %v5827 = vmul.f32 %v5763, 0.0076144193
      %v5828 = vmul.f32 %v5764, 0.0076144193
      %v5829 = vmul.f32 %v5765, 0.0076144193
      %v5830 = vmul.f32 %v5766, 0.0076144193
      %v5831 = vmul.f32 %v5767, 0.0076144193
      %v5832 = vmul.f32 %v5768, 0.0076144193
      %v5833 = vmul.f32 %v5769, 0.0076144193
      %v5834 = vmul.f32 %v5770, 0.0076144193
      %v5835 = vmul.f32 %v5771, 0.0076144193
      %v5836 = vmul.f32 %v5772, 0.0076144193
      %v5837 = vmul.f32 %v5773, 0.0076144193
      %v5838 = vmul.f32 %v5774, 0.0076144193
      %v5839 = vmul.f32 %v5775, 0.0076144193
      %v5840 = vmul.f32 %v5776, 0.0076144193
      %v5841 = vmul.f32 %v5777, 0.0076144193
      %v5842 = vmul.f32 %v5778, 0.0076144193
      %v5843 = vmul.f32 %v5751, 0.03607497
      %v5844 = vmul.f32 %v5752, 0.03607497
      %v5845 = vmul.f32 %v5753, 0.03607497
      %v5846 = vmul.f32 %v5754, 0.03607497
      %v5847 = vmul.f32 %v5755, 0.03607497
      %v5848 = vmul.f32 %v5756, 0.03607497
      %v5849 = vmul.f32 %v5757, 0.03607497
      %v5850 = vmul.f32 %v5758, 0.03607497
      %v5851 = vmul.f32 %v5759, 0.03607497
      %v5852 = vmul.f32 %v5760, 0.03607497
      %v5853 = vmul.f32 %v5761, 0.03607497
      %v5854 = vmul.f32 %v5762, 0.03607497
      %v5855 = vmul.f32 %v5763, 0.03607497
      %v5856 = vmul.f32 %v5764, 0.03607497
      %v5857 = vmul.f32 %v5765, 0.03607497
      %v5858 = vmul.f32 %v5766, 0.03607497
      %v5859 = vmul.f32 %v5767, 0.03607497
      %v5860 = vmul.f32 %v5768, 0.03607497
      %v5861 = vmul.f32 %v5769, 0.03607497
      %v5862 = vmul.f32 %v5770, 0.03607497
      %v5863 = vmul.f32 %v5771, 0.03607497
      %v5864 = vmul.f32 %v5772, 0.03607497
      %v5865 = vmul.f32 %v5773, 0.03607497
      %v5866 = vmul.f32 %v5774, 0.03607497
      %v5867 = vmul.f32 %v5775, 0.03607497
      %v5868 = vmul.f32 %v5776, 0.03607497
      %v5869 = vmul.f32 %v5777, 0.03607497
      %v5870 = vmul.f32 %v5778, 0.03607497
      %v5871 = vmul.f32 %v5779, 0.03607497
      %v5872 = vmul.f32 %v5780, 0.03607497
      %v5873 = vmul.f32 %v5781, 0.03607497
      %v5874 = vmul.f32 %v5782, 0.03607497
      %v5875 = vadd.f32 %v5811, %v5843
      %v5876 = vadd.f32 %v5812, %v5844
      %v5877 = vadd.f32 %v5813, %v5845
      %v5878 = vadd.f32 %v5814, %v5846
      %v5879 = vadd.f32 %v5815, %v5847
      %v5880 = vadd.f32 %v5816, %v5848
      %v5881 = vadd.f32 %v5817, %v5849
      %v5882 = vadd.f32 %v5818, %v5850
      %v5883 = vadd.f32 %v5819, %v5851
      %v5884 = vadd.f32 %v5820, %v5852
      %v5885 = vadd.f32 %v5821, %v5853
      %v5886 = vadd.f32 %v5822, %v5854
      %v5887 = vadd.f32 %v5823, %v5855
      %v5888 = vadd.f32 %v5824, %v5856
      %v5889 = vadd.f32 %v5825, %v5857
      %v5890 = vadd.f32 %v5826, %v5858
      %v5891 = vadd.f32 %v5827, %v5859
      %v5892 = vadd.f32 %v5828, %v5860
      %v5893 = vadd.f32 %v5829, %v5861
      %v5894 = vadd.f32 %v5830, %v5862
      %v5895 = vadd.f32 %v5831, %v5863
      %v5896 = vadd.f32 %v5832, %v5864
      %v5897 = vadd.f32 %v5833, %v5865
      %v5898 = vadd.f32 %v5834, %v5866
      %v5899 = vadd.f32 %v5835, %v5867
      %v5900 = vadd.f32 %v5836, %v5868
      %v5901 = vadd.f32 %v5837, %v5869
      %v5902 = vadd.f32 %v5838, %v5870
      %v5903 = vadd.f32 %v5839, %v5871
      %v5904 = vadd.f32 %v5840, %v5872
      %v5905 = vadd.f32 %v5841, %v5873
      %v5906 = vadd.f32 %v5842, %v5874
      %v5907 = vmul.f32 %v5755, 0.10958608
      %v5908 = vmul.f32 %v5756, 0.10958608
      %v5909 = vmul.f32 %v5757, 0.10958608
      %v5910 = vmul.f32 %v5758, 0.10958608
      %v5911 = vmul.f32 %v5759, 0.10958608
      %v5912 = vmul.f32 %v5760, 0.10958608
      %v5913 = vmul.f32 %v5761, 0.10958608
      %v5914 = vmul.f32 %v5762, 0.10958608
      %v5915 = vmul.f32 %v5763, 0.10958608
      %v5916 = vmul.f32 %v5764, 0.10958608
      %v5917 = vmul.f32 %v5765, 0.10958608
      %v5918 = vmul.f32 %v5766, 0.10958608
      %v5919 = vmul.f32 %v5767, 0.10958608
      %v5920 = vmul.f32 %v5768, 0.10958608
      %v5921 = vmul.f32 %v5769, 0.10958608
      %v5922 = vmul.f32 %v5770, 0.10958608
      %v5923 = vmul.f32 %v5771, 0.10958608
      %v5924 = vmul.f32 %v5772, 0.10958608
      %v5925 = vmul.f32 %v5773, 0.10958608
      %v5926 = vmul.f32 %v5774, 0.10958608
      %v5927 = vmul.f32 %v5775, 0.10958608
      %v5928 = vmul.f32 %v5776, 0.10958608
      %v5929 = vmul.f32 %v5777, 0.10958608
      %v5930 = vmul.f32 %v5778, 0.10958608
      %v5931 = vmul.f32 %v5779, 0.10958608
      %v5932 = vmul.f32 %v5780, 0.10958608
      %v5933 = vmul.f32 %v5781, 0.10958608
      %v5934 = vmul.f32 %v5782, 0.10958608
      %v5935 = vmul.f32 %v5783, 0.10958608
      %v5936 = vmul.f32 %v5784, 0.10958608
      %v5937 = vmul.f32 %v5785, 0.10958608
      %v5938 = vmul.f32 %v5786, 0.10958608
      %v5939 = vadd.f32 %v5875, %v5907
      %v5940 = vadd.f32 %v5876, %v5908
      %v5941 = vadd.f32 %v5877, %v5909
      %v5942 = vadd.f32 %v5878, %v5910
      %v5943 = vadd.f32 %v5879, %v5911
      %v5944 = vadd.f32 %v5880, %v5912
      %v5945 = vadd.f32 %v5881, %v5913
      %v5946 = vadd.f32 %v5882, %v5914
      %v5947 = vadd.f32 %v5883, %v5915
      %v5948 = vadd.f32 %v5884, %v5916
      %v5949 = vadd.f32 %v5885, %v5917
      %v5950 = vadd.f32 %v5886, %v5918
      %v5951 = vadd.f32 %v5887, %v5919
      %v5952 = vadd.f32 %v5888, %v5920
      %v5953 = vadd.f32 %v5889, %v5921
      %v5954 = vadd.f32 %v5890, %v5922
      %v5955 = vadd.f32 %v5891, %v5923
      %v5956 = vadd.f32 %v5892, %v5924
      %v5957 = vadd.f32 %v5893, %v5925
      %v5958 = vadd.f32 %v5894, %v5926
      %v5959 = vadd.f32 %v5895, %v5927
      %v5960 = vadd.f32 %v5896, %v5928
      %v5961 = vadd.f32 %v5897, %v5929
      %v5962 = vadd.f32 %v5898, %v5930
      %v5963 = vadd.f32 %v5899, %v5931
      %v5964 = vadd.f32 %v5900, %v5932
      %v5965 = vadd.f32 %v5901, %v5933
      %v5966 = vadd.f32 %v5902, %v5934
      %v5967 = vadd.f32 %v5903, %v5935
      %v5968 = vadd.f32 %v5904, %v5936
      %v5969 = vadd.f32 %v5905, %v5937
      %v5970 = vadd.f32 %v5906, %v5938
      %v5971 = vmul.f32 %v5759, 0.21344455
      %v5972 = vmul.f32 %v5760, 0.21344455
      %v5973 = vmul.f32 %v5761, 0.21344455
      %v5974 = vmul.f32 %v5762, 0.21344455
      %v5975 = vmul.f32 %v5763, 0.21344455
      %v5976 = vmul.f32 %v5764, 0.21344455
      %v5977 = vmul.f32 %v5765, 0.21344455
      %v5978 = vmul.f32 %v5766, 0.21344455
      %v5979 = vmul.f32 %v5767, 0.21344455
      %v5980 = vmul.f32 %v5768, 0.21344455
      %v5981 = vmul.f32 %v5769, 0.21344455
      %v5982 = vmul.f32 %v5770, 0.21344455
      %v5983 = vmul.f32 %v5771, 0.21344455
      %v5984 = vmul.f32 %v5772, 0.21344455
      %v5985 = vmul.f32 %v5773, 0.21344455
      %v5986 = vmul.f32 %v5774, 0.21344455
      %v5987 = vmul.f32 %v5775, 0.21344455
      %v5988 = vmul.f32 %v5776, 0.21344455
      %v5989 = vmul.f32 %v5777, 0.21344455
      %v5990 = vmul.f32 %v5778, 0.21344455
      %v5991 = vmul.f32 %v5779, 0.21344455
      %v5992 = vmul.f32 %v5780, 0.21344455
      %v5993 = vmul.f32 %v5781, 0.21344455
      %v5994 = vmul.f32 %v5782, 0.21344455
      %v5995 = vmul.f32 %v5783, 0.21344455
      %v5996 = vmul.f32 %v5784, 0.21344455
      %v5997 = vmul.f32 %v5785, 0.21344455
      %v5998 = vmul.f32 %v5786, 0.21344455
      %v5999 = vmul.f32 %v5787, 0.21344455
      %v6000 = vmul.f32 %v5788, 0.21344455
      %v6001 = vmul.f32 %v5789, 0.21344455
      %v6002 = vmul.f32 %v5790, 0.21344455
      %v6003 = vadd.f32 %v5939, %v5971
      %v6004 = vadd.f32 %v5940, %v5972
      %v6005 = vadd.f32 %v5941, %v5973
      %v6006 = vadd.f32 %v5942, %v5974
      %v6007 = vadd.f32 %v5943, %v5975
      %v6008 = vadd.f32 %v5944, %v5976
      %v6009 = vadd.f32 %v5945, %v5977
      %v6010 = vadd.f32 %v5946, %v5978
      %v6011 = vadd.f32 %v5947, %v5979
      %v6012 = vadd.f32 %v5948, %v5980
      %v6013 = vadd.f32 %v5949, %v5981
      %v6014 = vadd.f32 %v5950, %v5982
      %v6015 = vadd.f32 %v5951, %v5983
      %v6016 = vadd.f32 %v5952, %v5984
      %v6017 = vadd.f32 %v5953, %v5985
      %v6018 = vadd.f32 %v5954, %v5986
      %v6019 = vadd.f32 %v5955, %v5987
      %v6020 = vadd.f32 %v5956, %v5988
      %v6021 = vadd.f32 %v5957, %v5989
      %v6022 = vadd.f32 %v5958, %v5990
      %v6023 = vadd.f32 %v5959, %v5991
      %v6024 = vadd.f32 %v5960, %v5992
      %v6025 = vadd.f32 %v5961, %v5993
      %v6026 = vadd.f32 %v5962, %v5994
      %v6027 = vadd.f32 %v5963, %v5995
      %v6028 = vadd.f32 %v5964, %v5996
      %v6029 = vadd.f32 %v5965, %v5997
      %v6030 = vadd.f32 %v5966, %v5998
      %v6031 = vadd.f32 %v5967, %v5999
      %v6032 = vadd.f32 %v5968, %v6000
      %v6033 = vadd.f32 %v5969, %v6001
      %v6034 = vadd.f32 %v5970, %v6002
      %v6035 = vmul.f32 %v5763, 0.26656
      %v6036 = vmul.f32 %v5764, 0.26656
      %v6037 = vmul.f32 %v5765, 0.26656
      %v6038 = vmul.f32 %v5766, 0.26656
      %v6039 = vmul.f32 %v5767, 0.26656
      %v6040 = vmul.f32 %v5768, 0.26656
      %v6041 = vmul.f32 %v5769, 0.26656
      %v6042 = vmul.f32 %v5770, 0.26656
      %v6043 = vmul.f32 %v5771, 0.26656
      %v6044 = vmul.f32 %v5772, 0.26656
      %v6045 = vmul.f32 %v5773, 0.26656
      %v6046 = vmul.f32 %v5774, 0.26656
      %v6047 = vmul.f32 %v5775, 0.26656
      %v6048 = vmul.f32 %v5776, 0.26656
      %v6049 = vmul.f32 %v5777, 0.26656
      %v6050 = vmul.f32 %v5778, 0.26656
      %v6051 = vmul.f32 %v5779, 0.26656
      %v6052 = vmul.f32 %v5780, 0.26656
      %v6053 = vmul.f32 %v5781, 0.26656
      %v6054 = vmul.f32 %v5782, 0.26656
      %v6055 = vmul.f32 %v5783, 0.26656
      %v6056 = vmul.f32 %v5784, 0.26656
      %v6057 = vmul.f32 %v5785, 0.26656
      %v6058 = vmul.f32 %v5786, 0.26656
      %v6059 = vmul.f32 %v5787, 0.26656
      %v6060 = vmul.f32 %v5788, 0.26656
      %v6061 = vmul.f32 %v5789, 0.26656
      %v6062 = vmul.f32 %v5790, 0.26656
      %v6063 = vmul.f32 %v5791, 0.26656
      %v6064 = vmul.f32 %v5792, 0.26656
      %v6065 = vmul.f32 %v5793, 0.26656
      %v6066 = vmul.f32 %v5794, 0.26656
      %v6067 = vadd.f32 %v6003, %v6035
      %v6068 = vadd.f32 %v6004, %v6036
      %v6069 = vadd.f32 %v6005, %v6037
      %v6070 = vadd.f32 %v6006, %v6038
      %v6071 = vadd.f32 %v6007, %v6039
      %v6072 = vadd.f32 %v6008, %v6040
      %v6073 = vadd.f32 %v6009, %v6041
      %v6074 = vadd.f32 %v6010, %v6042
      %v6075 = vadd.f32 %v6011, %v6043
      %v6076 = vadd.f32 %v6012, %v6044
      %v6077 = vadd.f32 %v6013, %v6045
      %v6078 = vadd.f32 %v6014, %v6046
      %v6079 = vadd.f32 %v6015, %v6047
      %v6080 = vadd.f32 %v6016, %v6048
      %v6081 = vadd.f32 %v6017, %v6049
      %v6082 = vadd.f32 %v6018, %v6050
      %v6083 = vadd.f32 %v6019, %v6051
      %v6084 = vadd.f32 %v6020, %v6052
      %v6085 = vadd.f32 %v6021, %v6053
      %v6086 = vadd.f32 %v6022, %v6054
      %v6087 = vadd.f32 %v6023, %v6055
      %v6088 = vadd.f32 %v6024, %v6056
      %v6089 = vadd.f32 %v6025, %v6057
      %v6090 = vadd.f32 %v6026, %v6058
      %v6091 = vadd.f32 %v6027, %v6059
      %v6092 = vadd.f32 %v6028, %v6060
      %v6093 = vadd.f32 %v6029, %v6061
      %v6094 = vadd.f32 %v6030, %v6062
      %v6095 = vadd.f32 %v6031, %v6063
      %v6096 = vadd.f32 %v6032, %v6064
      %v6097 = vadd.f32 %v6033, %v6065
      %v6098 = vadd.f32 %v6034, %v6066
      %v6099 = vmul.f32 %v5791, 0.21344455
      %v6100 = vmul.f32 %v5792, 0.21344455
      %v6101 = vmul.f32 %v5793, 0.21344455
      %v6102 = vmul.f32 %v5794, 0.21344455
      %v6103 = vmul.f32 %v5795, 0.21344455
      %v6104 = vmul.f32 %v5796, 0.21344455
      %v6105 = vmul.f32 %v5797, 0.21344455
      %v6106 = vmul.f32 %v5798, 0.21344455
      %v6107 = vadd.f32 %v6067, %v5979
      %v6108 = vadd.f32 %v6068, %v5980
      %v6109 = vadd.f32 %v6069, %v5981
      %v6110 = vadd.f32 %v6070, %v5982
      %v6111 = vadd.f32 %v6071, %v5983
      %v6112 = vadd.f32 %v6072, %v5984
      %v6113 = vadd.f32 %v6073, %v5985
      %v6114 = vadd.f32 %v6074, %v5986
      %v6115 = vadd.f32 %v6075, %v5987
      %v6116 = vadd.f32 %v6076, %v5988
      %v6117 = vadd.f32 %v6077, %v5989
      %v6118 = vadd.f32 %v6078, %v5990
      %v6119 = vadd.f32 %v6079, %v5991
      %v6120 = vadd.f32 %v6080, %v5992
      %v6121 = vadd.f32 %v6081, %v5993
      %v6122 = vadd.f32 %v6082, %v5994
      %v6123 = vadd.f32 %v6083, %v5995
      %v6124 = vadd.f32 %v6084, %v5996
      %v6125 = vadd.f32 %v6085, %v5997
      %v6126 = vadd.f32 %v6086, %v5998
      %v6127 = vadd.f32 %v6087, %v5999
      %v6128 = vadd.f32 %v6088, %v6000
      %v6129 = vadd.f32 %v6089, %v6001
      %v6130 = vadd.f32 %v6090, %v6002
      %v6131 = vadd.f32 %v6091, %v6099
      %v6132 = vadd.f32 %v6092, %v6100
      %v6133 = vadd.f32 %v6093, %v6101
      %v6134 = vadd.f32 %v6094, %v6102
      %v6135 = vadd.f32 %v6095, %v6103
      %v6136 = vadd.f32 %v6096, %v6104
      %v6137 = vadd.f32 %v6097, %v6105
      %v6138 = vadd.f32 %v6098, %v6106
      %v6139 = vmul.f32 %v5787, 0.10958608
      %v6140 = vmul.f32 %v5788, 0.10958608
      %v6141 = vmul.f32 %v5789, 0.10958608
      %v6142 = vmul.f32 %v5790, 0.10958608
      %v6143 = vmul.f32 %v5791, 0.10958608
      %v6144 = vmul.f32 %v5792, 0.10958608
      %v6145 = vmul.f32 %v5793, 0.10958608
      %v6146 = vmul.f32 %v5794, 0.10958608
      %v6147 = vmul.f32 %v5795, 0.10958608
      %v6148 = vmul.f32 %v5796, 0.10958608
      %v6149 = vmul.f32 %v5797, 0.10958608
      %v6150 = vmul.f32 %v5798, 0.10958608
      %v6151 = vmul.f32 %v5799, 0.10958608
      %v6152 = vmul.f32 %v5800, 0.10958608
      %v6153 = vmul.f32 %v5801, 0.10958608
      %v6154 = vmul.f32 %v5802, 0.10958608
      %v6155 = vadd.f32 %v6107, %v5923
      %v6156 = vadd.f32 %v6108, %v5924
      %v6157 = vadd.f32 %v6109, %v5925
      %v6158 = vadd.f32 %v6110, %v5926
      %v6159 = vadd.f32 %v6111, %v5927
      %v6160 = vadd.f32 %v6112, %v5928
      %v6161 = vadd.f32 %v6113, %v5929
      %v6162 = vadd.f32 %v6114, %v5930
      %v6163 = vadd.f32 %v6115, %v5931
      %v6164 = vadd.f32 %v6116, %v5932
      %v6165 = vadd.f32 %v6117, %v5933
      %v6166 = vadd.f32 %v6118, %v5934
      %v6167 = vadd.f32 %v6119, %v5935
      %v6168 = vadd.f32 %v6120, %v5936
      %v6169 = vadd.f32 %v6121, %v5937
      %v6170 = vadd.f32 %v6122, %v5938
      %v6171 = vadd.f32 %v6123, %v6139
      %v6172 = vadd.f32 %v6124, %v6140
      %v6173 = vadd.f32 %v6125, %v6141
      %v6174 = vadd.f32 %v6126, %v6142
      %v6175 = vadd.f32 %v6127, %v6143
      %v6176 = vadd.f32 %v6128, %v6144
      %v6177 = vadd.f32 %v6129, %v6145
      %v6178 = vadd.f32 %v6130, %v6146
      %v6179 = vadd.f32 %v6131, %v6147
      %v6180 = vadd.f32 %v6132, %v6148
      %v6181 = vadd.f32 %v6133, %v6149
      %v6182 = vadd.f32 %v6134, %v6150
      %v6183 = vadd.f32 %v6135, %v6151
      %v6184 = vadd.f32 %v6136, %v6152
      %v6185 = vadd.f32 %v6137, %v6153
      %v6186 = vadd.f32 %v6138, %v6154
      %v6187 = vmul.f32 %v5783, 0.03607497
      %v6188 = vmul.f32 %v5784, 0.03607497
      %v6189 = vmul.f32 %v5785, 0.03607497
      %v6190 = vmul.f32 %v5786, 0.03607497
      %v6191 = vmul.f32 %v5787, 0.03607497
      %v6192 = vmul.f32 %v5788, 0.03607497
      %v6193 = vmul.f32 %v5789, 0.03607497
      %v6194 = vmul.f32 %v5790, 0.03607497
      %v6195 = vmul.f32 %v5791, 0.03607497
      %v6196 = vmul.f32 %v5792, 0.03607497
      %v6197 = vmul.f32 %v5793, 0.03607497
      %v6198 = vmul.f32 %v5794, 0.03607497
      %v6199 = vmul.f32 %v5795, 0.03607497
      %v6200 = vmul.f32 %v5796, 0.03607497
      %v6201 = vmul.f32 %v5797, 0.03607497
      %v6202 = vmul.f32 %v5798, 0.03607497
      %v6203 = vmul.f32 %v5799, 0.03607497
      %v6204 = vmul.f32 %v5800, 0.03607497
      %v6205 = vmul.f32 %v5801, 0.03607497
      %v6206 = vmul.f32 %v5802, 0.03607497
      %v6207 = vmul.f32 %v5803, 0.03607497
      %v6208 = vmul.f32 %v5804, 0.03607497
      %v6209 = vmul.f32 %v5805, 0.03607497
      %v6210 = vmul.f32 %v5806, 0.03607497
      %v6211 = vadd.f32 %v6155, %v5867
      %v6212 = vadd.f32 %v6156, %v5868
      %v6213 = vadd.f32 %v6157, %v5869
      %v6214 = vadd.f32 %v6158, %v5870
      %v6215 = vadd.f32 %v6159, %v5871
      %v6216 = vadd.f32 %v6160, %v5872
      %v6217 = vadd.f32 %v6161, %v5873
      %v6218 = vadd.f32 %v6162, %v5874
      %v6219 = vadd.f32 %v6163, %v6187
      %v6220 = vadd.f32 %v6164, %v6188
      %v6221 = vadd.f32 %v6165, %v6189
      %v6222 = vadd.f32 %v6166, %v6190
      %v6223 = vadd.f32 %v6167, %v6191
      %v6224 = vadd.f32 %v6168, %v6192
      %v6225 = vadd.f32 %v6169, %v6193
      %v6226 = vadd.f32 %v6170, %v6194
      %v6227 = vadd.f32 %v6171, %v6195
      %v6228 = vadd.f32 %v6172, %v6196
      %v6229 = vadd.f32 %v6173, %v6197
      %v6230 = vadd.f32 %v6174, %v6198
      %v6231 = vadd.f32 %v6175, %v6199
      %v6232 = vadd.f32 %v6176, %v6200
      %v6233 = vadd.f32 %v6177, %v6201
      %v6234 = vadd.f32 %v6178, %v6202
      %v6235 = vadd.f32 %v6179, %v6203
      %v6236 = vadd.f32 %v6180, %v6204
      %v6237 = vadd.f32 %v6181, %v6205
      %v6238 = vadd.f32 %v6182, %v6206
      %v6239 = vadd.f32 %v6183, %v6207
      %v6240 = vadd.f32 %v6184, %v6208
      %v6241 = vadd.f32 %v6185, %v6209
      %v6242 = vadd.f32 %v6186, %v6210
      %v6243 = vmul.f32 %v5779, 0.0076144193
      %v6244 = vmul.f32 %v5780, 0.0076144193
      %v6245 = vmul.f32 %v5781, 0.0076144193
      %v6246 = vmul.f32 %v5782, 0.0076144193
      %v6247 = vmul.f32 %v5783, 0.0076144193
      %v6248 = vmul.f32 %v5784, 0.0076144193
      %v6249 = vmul.f32 %v5785, 0.0076144193
      %v6250 = vmul.f32 %v5786, 0.0076144193
      %v6251 = vmul.f32 %v5787, 0.0076144193
      %v6252 = vmul.f32 %v5788, 0.0076144193
      %v6253 = vmul.f32 %v5789, 0.0076144193
      %v6254 = vmul.f32 %v5790, 0.0076144193
      %v6255 = vmul.f32 %v5791, 0.0076144193
      %v6256 = vmul.f32 %v5792, 0.0076144193
      %v6257 = vmul.f32 %v5793, 0.0076144193
      %v6258 = vmul.f32 %v5794, 0.0076144193
      %v6259 = vmul.f32 %v5795, 0.0076144193
      %v6260 = vmul.f32 %v5796, 0.0076144193
      %v6261 = vmul.f32 %v5797, 0.0076144193
      %v6262 = vmul.f32 %v5798, 0.0076144193
      %v6263 = vmul.f32 %v5799, 0.0076144193
      %v6264 = vmul.f32 %v5800, 0.0076144193
      %v6265 = vmul.f32 %v5801, 0.0076144193
      %v6266 = vmul.f32 %v5802, 0.0076144193
      %v6267 = vmul.f32 %v5803, 0.0076144193
      %v6268 = vmul.f32 %v5804, 0.0076144193
      %v6269 = vmul.f32 %v5805, 0.0076144193
      %v6270 = vmul.f32 %v5806, 0.0076144193
      %v6271 = vmul.f32 %v5807, 0.0076144193
      %v6272 = vmul.f32 %v5808, 0.0076144193
      %v6273 = vmul.f32 %v5809, 0.0076144193
      %v6274 = vmul.f32 %v5810, 0.0076144193
      %v6275 = vadd.f32 %v6211, %v6243
      %v6276 = vadd.f32 %v6212, %v6244
      %v6277 = vadd.f32 %v6213, %v6245
      %v6278 = vadd.f32 %v6214, %v6246
      %v6279 = vadd.f32 %v6215, %v6247
      %v6280 = vadd.f32 %v6216, %v6248
      %v6281 = vadd.f32 %v6217, %v6249
      %v6282 = vadd.f32 %v6218, %v6250
      %v6283 = vadd.f32 %v6219, %v6251
      %v6284 = vadd.f32 %v6220, %v6252
      %v6285 = vadd.f32 %v6221, %v6253
      %v6286 = vadd.f32 %v6222, %v6254
      %v6287 = vadd.f32 %v6223, %v6255
      %v6288 = vadd.f32 %v6224, %v6256
      %v6289 = vadd.f32 %v6225, %v6257
      %v6290 = vadd.f32 %v6226, %v6258
      %v6291 = vadd.f32 %v6227, %v6259
      %v6292 = vadd.f32 %v6228, %v6260
      %v6293 = vadd.f32 %v6229, %v6261
      %v6294 = vadd.f32 %v6230, %v6262
      %v6295 = vadd.f32 %v6231, %v6263
      %v6296 = vadd.f32 %v6232, %v6264
      %v6297 = vadd.f32 %v6233, %v6265
      %v6298 = vadd.f32 %v6234, %v6266
      %v6299 = vadd.f32 %v6235, %v6267
      %v6300 = vadd.f32 %v6236, %v6268
      %v6301 = vadd.f32 %v6237, %v6269
      %v6302 = vadd.f32 %v6238, %v6270
      %v6303 = vadd.f32 %v6239, %v6271
      %v6304 = vadd.f32 %v6240, %v6272
      %v6305 = vadd.f32 %v6241, %v6273
      %v6306 = vadd.f32 %v6242, %v6274
      %v6307 = vmul.f32 %v6275, %v6275
      %v6308 = vmul.f32 %v6276, %v6276
      %v6309 = vmul.f32 %v6277, %v6277
      %v6310 = vmul.f32 %v6278, %v6278
      %v6311 = vmul.f32 %v6279, %v6279
      %v6312 = vmul.f32 %v6280, %v6280
      %v6313 = vmul.f32 %v6281, %v6281
      %v6314 = vmul.f32 %v6282, %v6282
      %v6315 = vmul.f32 %v6283, %v6283
      %v6316 = vmul.f32 %v6284, %v6284
      %v6317 = vmul.f32 %v6285, %v6285
      %v6318 = vmul.f32 %v6286, %v6286
      %v6319 = vmul.f32 %v6287, %v6287
      %v6320 = vmul.f32 %v6288, %v6288
      %v6321 = vmul.f32 %v6289, %v6289
      %v6322 = vmul.f32 %v6290, %v6290
      %v6323 = vmul.f32 %v6291, %v6291
      %v6324 = vmul.f32 %v6292, %v6292
      %v6325 = vmul.f32 %v6293, %v6293
      %v6326 = vmul.f32 %v6294, %v6294
      %v6327 = vmul.f32 %v6295, %v6295
      %v6328 = vmul.f32 %v6296, %v6296
      %v6329 = vmul.f32 %v6297, %v6297
      %v6330 = vmul.f32 %v6298, %v6298
      %v6331 = vmul.f32 %v6299, %v6299
      %v6332 = vmul.f32 %v6300, %v6300
      %v6333 = vmul.f32 %v6301, %v6301
      %v6334 = vmul.f32 %v6302, %v6302
      %v6335 = vmul.f32 %v6303, %v6303
      %v6336 = vmul.f32 %v6304, %v6304
      %v6337 = vmul.f32 %v6305, %v6305
      %v6338 = vmul.f32 %v6306, %v6306
      %6371 = vrot.lane.b32.xlu0 %v6307, 32
      %v6372 = vpop.permute.xlu0 %6371
      %6373 = vrot.lane.b32.xlu0 %v6308, 32
      %v6374 = vpop.permute.xlu0 %6373
      %6375 = vrot.lane.b32.xlu0 %v6309, 32
      %v6376 = vpop.permute.xlu0 %6375
      %6377 = vrot.lane.b32.xlu0 %v6310, 32
      %v6378 = vpop.permute.xlu0 %6377
      %6379 = vrot.lane.b32.xlu0 %v6311, 32
      %v6380 = vpop.permute.xlu0 %6379
      %6381 = vrot.lane.b32.xlu0 %v6312, 32
      %v6382 = vpop.permute.xlu0 %6381
      %6383 = vrot.lane.b32.xlu0 %v6313, 32
      %v6384 = vpop.permute.xlu0 %6383
      %6385 = vrot.lane.b32.xlu0 %v6314, 32
      %v6386 = vpop.permute.xlu0 %6385
      %6387 = vrot.lane.b32.xlu0 %v6315, 32
      %v6388 = vpop.permute.xlu0 %6387
      %6389 = vrot.lane.b32.xlu0 %v6316, 32
      %v6390 = vpop.permute.xlu0 %6389
      %6391 = vrot.lane.b32.xlu0 %v6317, 32
      %v6392 = vpop.permute.xlu0 %6391
      %6393 = vrot.lane.b32.xlu0 %v6318, 32
      %v6394 = vpop.permute.xlu0 %6393
      %6395 = vrot.lane.b32.xlu0 %v6319, 32
      %v6396 = vpop.permute.xlu0 %6395
      %6397 = vrot.lane.b32.xlu0 %v6320, 32
      %v6398 = vpop.permute.xlu0 %6397
      %6399 = vrot.lane.b32.xlu0 %v6321, 32
      %v6400 = vpop.permute.xlu0 %6399
      %6401 = vrot.lane.b32.xlu0 %v6322, 32
      %v6402 = vpop.permute.xlu0 %6401
      %6403 = vrot.lane.b32.xlu0 %v6323, 32
      %v6404 = vpop.permute.xlu0 %6403
      %6405 = vrot.lane.b32.xlu0 %v6324, 32
      %v6406 = vpop.permute.xlu0 %6405
      %6407 = vrot.lane.b32.xlu0 %v6325, 32
      %v6408 = vpop.permute.xlu0 %6407
      %6409 = vrot.lane.b32.xlu0 %v6326, 32
      %v6410 = vpop.permute.xlu0 %6409
      %6411 = vrot.lane.b32.xlu0 %v6327, 32
      %v6412 = vpop.permute.xlu0 %6411
      %6413 = vrot.lane.b32.xlu0 %v6328, 32
      %v6414 = vpop.permute.xlu0 %6413
      %6415 = vrot.lane.b32.xlu0 %v6329, 32
      %v6416 = vpop.permute.xlu0 %6415
      %6417 = vrot.lane.b32.xlu0 %v6330, 32
      %v6418 = vpop.permute.xlu0 %6417
      %6419 = vrot.lane.b32.xlu0 %v6331, 32
      %v6420 = vpop.permute.xlu0 %6419
      %6421 = vrot.lane.b32.xlu0 %v6332, 32
      %v6422 = vpop.permute.xlu0 %6421
      %6423 = vrot.lane.b32.xlu0 %v6333, 32
      %v6424 = vpop.permute.xlu0 %6423
      %6425 = vrot.lane.b32.xlu0 %v6334, 32
      %v6426 = vpop.permute.xlu0 %6425
      %6427 = vrot.lane.b32.xlu0 %v6335, 32
      %v6428 = vpop.permute.xlu0 %6427
      %6429 = vrot.lane.b32.xlu0 %v6336, 32
      %v6430 = vpop.permute.xlu0 %6429
      %6431 = vrot.lane.b32.xlu0 %v6337, 32
      %v6432 = vpop.permute.xlu0 %6431
      %6433 = vrot.lane.b32.xlu0 %v6338, 32
      %v6434 = vpop.permute.xlu0 %6433
      %v6467 = vsub.f32 %v6275, %v6372
      %v6468 = vsub.f32 %v6276, %v6374
      %v6469 = vsub.f32 %v6277, %v6376
      %v6470 = vsub.f32 %v6278, %v6378
      %v6471 = vsub.f32 %v6279, %v6380
      %v6472 = vsub.f32 %v6280, %v6382
      %v6473 = vsub.f32 %v6281, %v6384
      %v6474 = vsub.f32 %v6282, %v6386
      %v6475 = vsub.f32 %v6283, %v6388
      %v6476 = vsub.f32 %v6284, %v6390
      %v6477 = vsub.f32 %v6285, %v6392
      %v6478 = vsub.f32 %v6286, %v6394
      %v6479 = vsub.f32 %v6287, %v6396
      %v6480 = vsub.f32 %v6288, %v6398
      %v6481 = vsub.f32 %v6289, %v6400
      %v6482 = vsub.f32 %v6290, %v6402
      %v6483 = vsub.f32 %v6291, %v6404
      %v6484 = vsub.f32 %v6292, %v6406
      %v6485 = vsub.f32 %v6293, %v6408
      %v6486 = vsub.f32 %v6294, %v6410
      %v6487 = vsub.f32 %v6295, %v6412
      %v6488 = vsub.f32 %v6296, %v6414
      %v6489 = vsub.f32 %v6297, %v6416
      %v6490 = vsub.f32 %v6298, %v6418
      %v6491 = vsub.f32 %v6299, %v6420
      %v6492 = vsub.f32 %v6300, %v6422
      %v6493 = vsub.f32 %v6301, %v6424
      %v6494 = vsub.f32 %v6302, %v6426
      %v6495 = vsub.f32 %v6303, %v6428
      %v6496 = vsub.f32 %v6304, %v6430
      %v6497 = vsub.f32 %v6305, %v6432
      %v6498 = vsub.f32 %v6306, %v6434
      %6531 = vrot.lane.b32.xlu0 %v6275, 112
      %v6532 = vpop.permute.xlu0 %6531
      %6533 = vrot.lane.b32.xlu0 %v6276, 112
      %v6534 = vpop.permute.xlu0 %6533
      %6535 = vrot.lane.b32.xlu0 %v6277, 112
      %v6536 = vpop.permute.xlu0 %6535
      %6537 = vrot.lane.b32.xlu0 %v6278, 112
      %v6538 = vpop.permute.xlu0 %6537
      %6539 = vrot.lane.b32.xlu0 %v6279, 112
      %v6540 = vpop.permute.xlu0 %6539
      %6541 = vrot.lane.b32.xlu0 %v6280, 112
      %v6542 = vpop.permute.xlu0 %6541
      %6543 = vrot.lane.b32.xlu0 %v6281, 112
      %v6544 = vpop.permute.xlu0 %6543
      %6545 = vrot.lane.b32.xlu0 %v6282, 112
      %v6546 = vpop.permute.xlu0 %6545
      %6547 = vrot.lane.b32.xlu0 %v6283, 112
      %v6548 = vpop.permute.xlu0 %6547
      %6549 = vrot.lane.b32.xlu0 %v6284, 112
      %v6550 = vpop.permute.xlu0 %6549
      %6551 = vrot.lane.b32.xlu0 %v6285, 112
      %v6552 = vpop.permute.xlu0 %6551
      %6553 = vrot.lane.b32.xlu0 %v6286, 112
      %v6554 = vpop.permute.xlu0 %6553
      %6555 = vrot.lane.b32.xlu0 %v6287, 112
      %v6556 = vpop.permute.xlu0 %6555
      %6557 = vrot.lane.b32.xlu0 %v6288, 112
      %v6558 = vpop.permute.xlu0 %6557
      %6559 = vrot.lane.b32.xlu0 %v6289, 112
      %v6560 = vpop.permute.xlu0 %6559
      %6561 = vrot.lane.b32.xlu0 %v6290, 112
      %v6562 = vpop.permute.xlu0 %6561
      %6563 = vrot.lane.b32.xlu0 %v6291, 112
      %v6564 = vpop.permute.xlu0 %6563
      %6565 = vrot.lane.b32.xlu0 %v6292, 112
      %v6566 = vpop.permute.xlu0 %6565
      %6567 = vrot.lane.b32.xlu0 %v6293, 112
      %v6568 = vpop.permute.xlu0 %6567
      %6569 = vrot.lane.b32.xlu0 %v6294, 112
      %v6570 = vpop.permute.xlu0 %6569
      %6571 = vrot.lane.b32.xlu0 %v6295, 112
      %v6572 = vpop.permute.xlu0 %6571
      %6573 = vrot.lane.b32.xlu0 %v6296, 112
      %v6574 = vpop.permute.xlu0 %6573
      %6575 = vrot.lane.b32.xlu0 %v6297, 112
      %v6576 = vpop.permute.xlu0 %6575
      %6577 = vrot.lane.b32.xlu0 %v6298, 112
      %v6578 = vpop.permute.xlu0 %6577
      %6579 = vrot.lane.b32.xlu0 %v6299, 112
      %v6580 = vpop.permute.xlu0 %6579
      %6581 = vrot.lane.b32.xlu0 %v6300, 112
      %v6582 = vpop.permute.xlu0 %6581
      %6583 = vrot.lane.b32.xlu0 %v6301, 112
      %v6584 = vpop.permute.xlu0 %6583
      %6585 = vrot.lane.b32.xlu0 %v6302, 112
      %v6586 = vpop.permute.xlu0 %6585
      %6587 = vrot.lane.b32.xlu0 %v6303, 112
      %v6588 = vpop.permute.xlu0 %6587
      %6589 = vrot.lane.b32.xlu0 %v6304, 112
      %v6590 = vpop.permute.xlu0 %6589
      %6591 = vrot.lane.b32.xlu0 %v6305, 112
      %v6592 = vpop.permute.xlu0 %6591
      %6593 = vrot.lane.b32.xlu0 %v6306, 112
      %v6594 = vpop.permute.xlu0 %6593
      %v6627 = vmul.f32 %v6275, %v6532
      %v6628 = vmul.f32 %v6276, %v6534
      %v6629 = vmul.f32 %v6277, %v6536
      %v6630 = vmul.f32 %v6278, %v6538
      %v6631 = vmul.f32 %v6279, %v6540
      %v6632 = vmul.f32 %v6280, %v6542
      %v6633 = vmul.f32 %v6281, %v6544
      %v6634 = vmul.f32 %v6282, %v6546
      %v6635 = vmul.f32 %v6283, %v6548
      %v6636 = vmul.f32 %v6284, %v6550
      %v6637 = vmul.f32 %v6285, %v6552
      %v6638 = vmul.f32 %v6286, %v6554
      %v6639 = vmul.f32 %v6287, %v6556
      %v6640 = vmul.f32 %v6288, %v6558
      %v6641 = vmul.f32 %v6289, %v6560
      %v6642 = vmul.f32 %v6290, %v6562
      %v6643 = vmul.f32 %v6291, %v6564
      %v6644 = vmul.f32 %v6292, %v6566
      %v6645 = vmul.f32 %v6293, %v6568
      %v6646 = vmul.f32 %v6294, %v6570
      %v6647 = vmul.f32 %v6295, %v6572
      %v6648 = vmul.f32 %v6296, %v6574
      %v6649 = vmul.f32 %v6297, %v6576
      %v6650 = vmul.f32 %v6298, %v6578
      %v6651 = vmul.f32 %v6299, %v6580
      %v6652 = vmul.f32 %v6300, %v6582
      %v6653 = vmul.f32 %v6301, %v6584
      %v6654 = vmul.f32 %v6302, %v6586
      %v6655 = vmul.f32 %v6303, %v6588
      %v6656 = vmul.f32 %v6304, %v6590
      %v6657 = vmul.f32 %v6305, %v6592
      %v6658 = vmul.f32 %v6306, %v6594
      %6691 = vrot.lane.b32.xlu0 %v6627, 64
      %v6692 = vpop.permute.xlu0 %6691
      %6693 = vrot.lane.b32.xlu0 %v6628, 64
      %v6694 = vpop.permute.xlu0 %6693
      %6695 = vrot.lane.b32.xlu0 %v6629, 64
      %v6696 = vpop.permute.xlu0 %6695
      %6697 = vrot.lane.b32.xlu0 %v6630, 64
      %v6698 = vpop.permute.xlu0 %6697
      %6699 = vrot.lane.b32.xlu0 %v6631, 64
      %v6700 = vpop.permute.xlu0 %6699
      %6701 = vrot.lane.b32.xlu0 %v6632, 64
      %v6702 = vpop.permute.xlu0 %6701
      %6703 = vrot.lane.b32.xlu0 %v6633, 64
      %v6704 = vpop.permute.xlu0 %6703
      %6705 = vrot.lane.b32.xlu0 %v6634, 64
      %v6706 = vpop.permute.xlu0 %6705
      %6707 = vrot.lane.b32.xlu0 %v6635, 64
      %v6708 = vpop.permute.xlu0 %6707
      %6709 = vrot.lane.b32.xlu0 %v6636, 64
      %v6710 = vpop.permute.xlu0 %6709
      %6711 = vrot.lane.b32.xlu0 %v6637, 64
      %v6712 = vpop.permute.xlu0 %6711
      %6713 = vrot.lane.b32.xlu0 %v6638, 64
      %v6714 = vpop.permute.xlu0 %6713
      %6715 = vrot.lane.b32.xlu0 %v6639, 64
      %v6716 = vpop.permute.xlu0 %6715
      %6717 = vrot.lane.b32.xlu0 %v6640, 64
      %v6718 = vpop.permute.xlu0 %6717
      %6719 = vrot.lane.b32.xlu0 %v6641, 64
      %v6720 = vpop.permute.xlu0 %6719
      %6721 = vrot.lane.b32.xlu0 %v6642, 64
      %v6722 = vpop.permute.xlu0 %6721
      %6723 = vrot.lane.b32.xlu0 %v6643, 64
      %v6724 = vpop.permute.xlu0 %6723
      %6725 = vrot.lane.b32.xlu0 %v6644, 64
      %v6726 = vpop.permute.xlu0 %6725
      %6727 = vrot.lane.b32.xlu0 %v6645, 64
      %v6728 = vpop.permute.xlu0 %6727
      %6729 = vrot.lane.b32.xlu0 %v6646, 64
      %v6730 = vpop.permute.xlu0 %6729
      %6731 = vrot.lane.b32.xlu0 %v6647, 64
      %v6732 = vpop.permute.xlu0 %6731
      %6733 = vrot.lane.b32.xlu0 %v6648, 64
      %v6734 = vpop.permute.xlu0 %6733
      %6735 = vrot.lane.b32.xlu0 %v6649, 64
      %v6736 = vpop.permute.xlu0 %6735
      %6737 = vrot.lane.b32.xlu0 %v6650, 64
      %v6738 = vpop.permute.xlu0 %6737
      %6739 = vrot.lane.b32.xlu0 %v6651, 64
      %v6740 = vpop.permute.xlu0 %6739
      %6741 = vrot.lane.b32.xlu0 %v6652, 64
      %v6742 = vpop.permute.xlu0 %6741
      %6743 = vrot.lane.b32.xlu0 %v6653, 64
      %v6744 = vpop.permute.xlu0 %6743
      %6745 = vrot.lane.b32.xlu0 %v6654, 64
      %v6746 = vpop.permute.xlu0 %6745
      %6747 = vrot.lane.b32.xlu0 %v6655, 64
      %v6748 = vpop.permute.xlu0 %6747
      %6749 = vrot.lane.b32.xlu0 %v6656, 64
      %v6750 = vpop.permute.xlu0 %6749
      %6751 = vrot.lane.b32.xlu0 %v6657, 64
      %v6752 = vpop.permute.xlu0 %6751
      %6753 = vrot.lane.b32.xlu0 %v6658, 64
      %v6754 = vpop.permute.xlu0 %6753
      %v6787 = vsub.f32 %v6275, %v6692
      %v6788 = vsub.f32 %v6276, %v6694
      %v6789 = vsub.f32 %v6277, %v6696
      %v6790 = vsub.f32 %v6278, %v6698
      %v6791 = vsub.f32 %v6279, %v6700
      %v6792 = vsub.f32 %v6280, %v6702
      %v6793 = vsub.f32 %v6281, %v6704
      %v6794 = vsub.f32 %v6282, %v6706
      %v6795 = vsub.f32 %v6283, %v6708
      %v6796 = vsub.f32 %v6284, %v6710
      %v6797 = vsub.f32 %v6285, %v6712
      %v6798 = vsub.f32 %v6286, %v6714
      %v6799 = vsub.f32 %v6287, %v6716
      %v6800 = vsub.f32 %v6288, %v6718
      %v6801 = vsub.f32 %v6289, %v6720
      %v6802 = vsub.f32 %v6290, %v6722
      %v6803 = vsub.f32 %v6291, %v6724
      %v6804 = vsub.f32 %v6292, %v6726
      %v6805 = vsub.f32 %v6293, %v6728
      %v6806 = vsub.f32 %v6294, %v6730
      %v6807 = vsub.f32 %v6295, %v6732
      %v6808 = vsub.f32 %v6296, %v6734
      %v6809 = vsub.f32 %v6297, %v6736
      %v6810 = vsub.f32 %v6298, %v6738
      %v6811 = vsub.f32 %v6299, %v6740
      %v6812 = vsub.f32 %v6300, %v6742
      %v6813 = vsub.f32 %v6301, %v6744
      %v6814 = vsub.f32 %v6302, %v6746
      %v6815 = vsub.f32 %v6303, %v6748
      %v6816 = vsub.f32 %v6304, %v6750
      %v6817 = vsub.f32 %v6305, %v6752
      %v6818 = vsub.f32 %v6306, %v6754
      %v6819 = vmul.f32 %v6275, 2.0
      %v6820 = vmul.f32 %v6276, 2.0
      %v6821 = vmul.f32 %v6277, 2.0
      %v6822 = vmul.f32 %v6278, 2.0
      %v6823 = vmul.f32 %v6279, 2.0
      %v6824 = vmul.f32 %v6280, 2.0
      %v6825 = vmul.f32 %v6281, 2.0
      %v6826 = vmul.f32 %v6282, 2.0
      %v6827 = vmul.f32 %v6283, 2.0
      %v6828 = vmul.f32 %v6284, 2.0
      %v6829 = vmul.f32 %v6285, 2.0
      %v6830 = vmul.f32 %v6286, 2.0
      %v6831 = vmul.f32 %v6287, 2.0
      %v6832 = vmul.f32 %v6288, 2.0
      %v6833 = vmul.f32 %v6289, 2.0
      %v6834 = vmul.f32 %v6290, 2.0
      %v6835 = vmul.f32 %v6291, 2.0
      %v6836 = vmul.f32 %v6292, 2.0
      %v6837 = vmul.f32 %v6293, 2.0
      %v6838 = vmul.f32 %v6294, 2.0
      %v6839 = vmul.f32 %v6295, 2.0
      %v6840 = vmul.f32 %v6296, 2.0
      %v6841 = vmul.f32 %v6297, 2.0
      %v6842 = vmul.f32 %v6298, 2.0
      %v6843 = vmul.f32 %v6299, 2.0
      %v6844 = vmul.f32 %v6300, 2.0
      %v6845 = vmul.f32 %v6301, 2.0
      %v6846 = vmul.f32 %v6302, 2.0
      %v6847 = vmul.f32 %v6303, 2.0
      %v6848 = vmul.f32 %v6304, 2.0
      %v6849 = vmul.f32 %v6305, 2.0
      %v6850 = vmul.f32 %v6306, 2.0
      %v6851 = vmul.f32 %v6819, %v6532
      %v6852 = vmul.f32 %v6820, %v6534
      %v6853 = vmul.f32 %v6821, %v6536
      %v6854 = vmul.f32 %v6822, %v6538
      %v6855 = vmul.f32 %v6823, %v6540
      %v6856 = vmul.f32 %v6824, %v6542
      %v6857 = vmul.f32 %v6825, %v6544
      %v6858 = vmul.f32 %v6826, %v6546
      %v6859 = vmul.f32 %v6827, %v6548
      %v6860 = vmul.f32 %v6828, %v6550
      %v6861 = vmul.f32 %v6829, %v6552
      %v6862 = vmul.f32 %v6830, %v6554
      %v6863 = vmul.f32 %v6831, %v6556
      %v6864 = vmul.f32 %v6832, %v6558
      %v6865 = vmul.f32 %v6833, %v6560
      %v6866 = vmul.f32 %v6834, %v6562
      %v6867 = vmul.f32 %v6835, %v6564
      %v6868 = vmul.f32 %v6836, %v6566
      %v6869 = vmul.f32 %v6837, %v6568
      %v6870 = vmul.f32 %v6838, %v6570
      %v6871 = vmul.f32 %v6839, %v6572
      %v6872 = vmul.f32 %v6840, %v6574
      %v6873 = vmul.f32 %v6841, %v6576
      %v6874 = vmul.f32 %v6842, %v6578
      %v6875 = vmul.f32 %v6843, %v6580
      %v6876 = vmul.f32 %v6844, %v6582
      %v6877 = vmul.f32 %v6845, %v6584
      %v6878 = vmul.f32 %v6846, %v6586
      %v6879 = vmul.f32 %v6847, %v6588
      %v6880 = vmul.f32 %v6848, %v6590
      %v6881 = vmul.f32 %v6849, %v6592
      %v6882 = vmul.f32 %v6850, %v6594
      %v6883 = vadd.f32 %v6851, 0.0001
      %v6884 = vadd.f32 %v6852, 0.0001
      %v6885 = vadd.f32 %v6853, 0.0001
      %v6886 = vadd.f32 %v6854, 0.0001
      %v6887 = vadd.f32 %v6855, 0.0001
      %v6888 = vadd.f32 %v6856, 0.0001
      %v6889 = vadd.f32 %v6857, 0.0001
      %v6890 = vadd.f32 %v6858, 0.0001
      %v6891 = vadd.f32 %v6859, 0.0001
      %v6892 = vadd.f32 %v6860, 0.0001
      %v6893 = vadd.f32 %v6861, 0.0001
      %v6894 = vadd.f32 %v6862, 0.0001
      %v6895 = vadd.f32 %v6863, 0.0001
      %v6896 = vadd.f32 %v6864, 0.0001
      %v6897 = vadd.f32 %v6865, 0.0001
      %v6898 = vadd.f32 %v6866, 0.0001
      %v6899 = vadd.f32 %v6867, 0.0001
      %v6900 = vadd.f32 %v6868, 0.0001
      %v6901 = vadd.f32 %v6869, 0.0001
      %v6902 = vadd.f32 %v6870, 0.0001
      %v6903 = vadd.f32 %v6871, 0.0001
      %v6904 = vadd.f32 %v6872, 0.0001
      %v6905 = vadd.f32 %v6873, 0.0001
      %v6906 = vadd.f32 %v6874, 0.0001
      %v6907 = vadd.f32 %v6875, 0.0001
      %v6908 = vadd.f32 %v6876, 0.0001
      %v6909 = vadd.f32 %v6877, 0.0001
      %v6910 = vadd.f32 %v6878, 0.0001
      %v6911 = vadd.f32 %v6879, 0.0001
      %v6912 = vadd.f32 %v6880, 0.0001
      %v6913 = vadd.f32 %v6881, 0.0001
      %v6914 = vadd.f32 %v6882, 0.0001
      %v6915 = vmul.f32 %v6787, 2.0
      %v6916 = vmul.f32 %v6788, 2.0
      %v6917 = vmul.f32 %v6789, 2.0
      %v6918 = vmul.f32 %v6790, 2.0
      %v6919 = vmul.f32 %v6791, 2.0
      %v6920 = vmul.f32 %v6792, 2.0
      %v6921 = vmul.f32 %v6793, 2.0
      %v6922 = vmul.f32 %v6794, 2.0
      %v6923 = vmul.f32 %v6795, 2.0
      %v6924 = vmul.f32 %v6796, 2.0
      %v6925 = vmul.f32 %v6797, 2.0
      %v6926 = vmul.f32 %v6798, 2.0
      %v6927 = vmul.f32 %v6799, 2.0
      %v6928 = vmul.f32 %v6800, 2.0
      %v6929 = vmul.f32 %v6801, 2.0
      %v6930 = vmul.f32 %v6802, 2.0
      %v6931 = vmul.f32 %v6803, 2.0
      %v6932 = vmul.f32 %v6804, 2.0
      %v6933 = vmul.f32 %v6805, 2.0
      %v6934 = vmul.f32 %v6806, 2.0
      %v6935 = vmul.f32 %v6807, 2.0
      %v6936 = vmul.f32 %v6808, 2.0
      %v6937 = vmul.f32 %v6809, 2.0
      %v6938 = vmul.f32 %v6810, 2.0
      %v6939 = vmul.f32 %v6811, 2.0
      %v6940 = vmul.f32 %v6812, 2.0
      %v6941 = vmul.f32 %v6813, 2.0
      %v6942 = vmul.f32 %v6814, 2.0
      %v6943 = vmul.f32 %v6815, 2.0
      %v6944 = vmul.f32 %v6816, 2.0
      %v6945 = vmul.f32 %v6817, 2.0
      %v6946 = vmul.f32 %v6818, 2.0
      %v6947 = vadd.f32 %v6915, 0.0009
      %v6948 = vadd.f32 %v6916, 0.0009
      %v6949 = vadd.f32 %v6917, 0.0009
      %v6950 = vadd.f32 %v6918, 0.0009
      %v6951 = vadd.f32 %v6919, 0.0009
      %v6952 = vadd.f32 %v6920, 0.0009
      %v6953 = vadd.f32 %v6921, 0.0009
      %v6954 = vadd.f32 %v6922, 0.0009
      %v6955 = vadd.f32 %v6923, 0.0009
      %v6956 = vadd.f32 %v6924, 0.0009
      %v6957 = vadd.f32 %v6925, 0.0009
      %v6958 = vadd.f32 %v6926, 0.0009
      %v6959 = vadd.f32 %v6927, 0.0009
      %v6960 = vadd.f32 %v6928, 0.0009
      %v6961 = vadd.f32 %v6929, 0.0009
      %v6962 = vadd.f32 %v6930, 0.0009
      %v6963 = vadd.f32 %v6931, 0.0009
      %v6964 = vadd.f32 %v6932, 0.0009
      %v6965 = vadd.f32 %v6933, 0.0009
      %v6966 = vadd.f32 %v6934, 0.0009
      %v6967 = vadd.f32 %v6935, 0.0009
      %v6968 = vadd.f32 %v6936, 0.0009
      %v6969 = vadd.f32 %v6937, 0.0009
      %v6970 = vadd.f32 %v6938, 0.0009
      %v6971 = vadd.f32 %v6939, 0.0009
      %v6972 = vadd.f32 %v6940, 0.0009
      %v6973 = vadd.f32 %v6941, 0.0009
      %v6974 = vadd.f32 %v6942, 0.0009
      %v6975 = vadd.f32 %v6943, 0.0009
      %v6976 = vadd.f32 %v6944, 0.0009
      %v6977 = vadd.f32 %v6945, 0.0009
      %v6978 = vadd.f32 %v6946, 0.0009
      %7011 = vrot.lane.b32.xlu0 %v6947, 64
      %v7012 = vpop.permute.xlu0 %7011
      %7013 = vrot.lane.b32.xlu0 %v6948, 64
      %v7014 = vpop.permute.xlu0 %7013
      %7015 = vrot.lane.b32.xlu0 %v6949, 64
      %v7016 = vpop.permute.xlu0 %7015
      %7017 = vrot.lane.b32.xlu0 %v6950, 64
      %v7018 = vpop.permute.xlu0 %7017
      %7019 = vrot.lane.b32.xlu0 %v6951, 64
      %v7020 = vpop.permute.xlu0 %7019
      %7021 = vrot.lane.b32.xlu0 %v6952, 64
      %v7022 = vpop.permute.xlu0 %7021
      %7023 = vrot.lane.b32.xlu0 %v6953, 64
      %v7024 = vpop.permute.xlu0 %7023
      %7025 = vrot.lane.b32.xlu0 %v6954, 64
      %v7026 = vpop.permute.xlu0 %7025
      %7027 = vrot.lane.b32.xlu0 %v6955, 64
      %v7028 = vpop.permute.xlu0 %7027
      %7029 = vrot.lane.b32.xlu0 %v6956, 64
      %v7030 = vpop.permute.xlu0 %7029
      %7031 = vrot.lane.b32.xlu0 %v6957, 64
      %v7032 = vpop.permute.xlu0 %7031
      %7033 = vrot.lane.b32.xlu0 %v6958, 64
      %v7034 = vpop.permute.xlu0 %7033
      %7035 = vrot.lane.b32.xlu0 %v6959, 64
      %v7036 = vpop.permute.xlu0 %7035
      %7037 = vrot.lane.b32.xlu0 %v6960, 64
      %v7038 = vpop.permute.xlu0 %7037
      %7039 = vrot.lane.b32.xlu0 %v6961, 64
      %v7040 = vpop.permute.xlu0 %7039
      %7041 = vrot.lane.b32.xlu0 %v6962, 64
      %v7042 = vpop.permute.xlu0 %7041
      %7043 = vrot.lane.b32.xlu0 %v6963, 64
      %v7044 = vpop.permute.xlu0 %7043
      %7045 = vrot.lane.b32.xlu0 %v6964, 64
      %v7046 = vpop.permute.xlu0 %7045
      %7047 = vrot.lane.b32.xlu0 %v6965, 64
      %v7048 = vpop.permute.xlu0 %7047
      %7049 = vrot.lane.b32.xlu0 %v6966, 64
      %v7050 = vpop.permute.xlu0 %7049
      %7051 = vrot.lane.b32.xlu0 %v6967, 64
      %v7052 = vpop.permute.xlu0 %7051
      %7053 = vrot.lane.b32.xlu0 %v6968, 64
      %v7054 = vpop.permute.xlu0 %7053
      %7055 = vrot.lane.b32.xlu0 %v6969, 64
      %v7056 = vpop.permute.xlu0 %7055
      %7057 = vrot.lane.b32.xlu0 %v6970, 64
      %v7058 = vpop.permute.xlu0 %7057
      %7059 = vrot.lane.b32.xlu0 %v6971, 64
      %v7060 = vpop.permute.xlu0 %7059
      %7061 = vrot.lane.b32.xlu0 %v6972, 64
      %v7062 = vpop.permute.xlu0 %7061
      %7063 = vrot.lane.b32.xlu0 %v6973, 64
      %v7064 = vpop.permute.xlu0 %7063
      %7065 = vrot.lane.b32.xlu0 %v6974, 64
      %v7066 = vpop.permute.xlu0 %7065
      %7067 = vrot.lane.b32.xlu0 %v6975, 64
      %v7068 = vpop.permute.xlu0 %7067
      %7069 = vrot.lane.b32.xlu0 %v6976, 64
      %v7070 = vpop.permute.xlu0 %7069
      %7071 = vrot.lane.b32.xlu0 %v6977, 64
      %v7072 = vpop.permute.xlu0 %7071
      %7073 = vrot.lane.b32.xlu0 %v6978, 64
      %v7074 = vpop.permute.xlu0 %7073
      %v7107 = vmul.f32 %v6883, %v7012
      %v7108 = vmul.f32 %v6884, %v7014
      %v7109 = vmul.f32 %v6885, %v7016
      %v7110 = vmul.f32 %v6886, %v7018
      %v7111 = vmul.f32 %v6887, %v7020
      %v7112 = vmul.f32 %v6888, %v7022
      %v7113 = vmul.f32 %v6889, %v7024
      %v7114 = vmul.f32 %v6890, %v7026
      %v7115 = vmul.f32 %v6891, %v7028
      %v7116 = vmul.f32 %v6892, %v7030
      %v7117 = vmul.f32 %v6893, %v7032
      %v7118 = vmul.f32 %v6894, %v7034
      %v7119 = vmul.f32 %v6895, %v7036
      %v7120 = vmul.f32 %v6896, %v7038
      %v7121 = vmul.f32 %v6897, %v7040
      %v7122 = vmul.f32 %v6898, %v7042
      %v7123 = vmul.f32 %v6899, %v7044
      %v7124 = vmul.f32 %v6900, %v7046
      %v7125 = vmul.f32 %v6901, %v7048
      %v7126 = vmul.f32 %v6902, %v7050
      %v7127 = vmul.f32 %v6903, %v7052
      %v7128 = vmul.f32 %v6904, %v7054
      %v7129 = vmul.f32 %v6905, %v7056
      %v7130 = vmul.f32 %v6906, %v7058
      %v7131 = vmul.f32 %v6907, %v7060
      %v7132 = vmul.f32 %v6908, %v7062
      %v7133 = vmul.f32 %v6909, %v7064
      %v7134 = vmul.f32 %v6910, %v7066
      %v7135 = vmul.f32 %v6911, %v7068
      %v7136 = vmul.f32 %v6912, %v7070
      %v7137 = vmul.f32 %v6913, %v7072
      %v7138 = vmul.f32 %v6914, %v7074
      %7139 = vrot.lane.b32.xlu0 %v6307, 112
      %v7140 = vpop.permute.xlu0 %7139
      %7141 = vrot.lane.b32.xlu0 %v6308, 112
      %v7142 = vpop.permute.xlu0 %7141
      %7143 = vrot.lane.b32.xlu0 %v6309, 112
      %v7144 = vpop.permute.xlu0 %7143
      %7145 = vrot.lane.b32.xlu0 %v6310, 112
      %v7146 = vpop.permute.xlu0 %7145
      %7147 = vrot.lane.b32.xlu0 %v6311, 112
      %v7148 = vpop.permute.xlu0 %7147
      %7149 = vrot.lane.b32.xlu0 %v6312, 112
      %v7150 = vpop.permute.xlu0 %7149
      %7151 = vrot.lane.b32.xlu0 %v6313, 112
      %v7152 = vpop.permute.xlu0 %7151
      %7153 = vrot.lane.b32.xlu0 %v6314, 112
      %v7154 = vpop.permute.xlu0 %7153
      %7155 = vrot.lane.b32.xlu0 %v6315, 112
      %v7156 = vpop.permute.xlu0 %7155
      %7157 = vrot.lane.b32.xlu0 %v6316, 112
      %v7158 = vpop.permute.xlu0 %7157
      %7159 = vrot.lane.b32.xlu0 %v6317, 112
      %v7160 = vpop.permute.xlu0 %7159
      %7161 = vrot.lane.b32.xlu0 %v6318, 112
      %v7162 = vpop.permute.xlu0 %7161
      %7163 = vrot.lane.b32.xlu0 %v6319, 112
      %v7164 = vpop.permute.xlu0 %7163
      %7165 = vrot.lane.b32.xlu0 %v6320, 112
      %v7166 = vpop.permute.xlu0 %7165
      %7167 = vrot.lane.b32.xlu0 %v6321, 112
      %v7168 = vpop.permute.xlu0 %7167
      %7169 = vrot.lane.b32.xlu0 %v6322, 112
      %v7170 = vpop.permute.xlu0 %7169
      %7171 = vrot.lane.b32.xlu0 %v6323, 112
      %v7172 = vpop.permute.xlu0 %7171
      %7173 = vrot.lane.b32.xlu0 %v6324, 112
      %v7174 = vpop.permute.xlu0 %7173
      %7175 = vrot.lane.b32.xlu0 %v6325, 112
      %v7176 = vpop.permute.xlu0 %7175
      %7177 = vrot.lane.b32.xlu0 %v6326, 112
      %v7178 = vpop.permute.xlu0 %7177
      %7179 = vrot.lane.b32.xlu0 %v6327, 112
      %v7180 = vpop.permute.xlu0 %7179
      %7181 = vrot.lane.b32.xlu0 %v6328, 112
      %v7182 = vpop.permute.xlu0 %7181
      %7183 = vrot.lane.b32.xlu0 %v6329, 112
      %v7184 = vpop.permute.xlu0 %7183
      %7185 = vrot.lane.b32.xlu0 %v6330, 112
      %v7186 = vpop.permute.xlu0 %7185
      %7187 = vrot.lane.b32.xlu0 %v6331, 112
      %v7188 = vpop.permute.xlu0 %7187
      %7189 = vrot.lane.b32.xlu0 %v6332, 112
      %v7190 = vpop.permute.xlu0 %7189
      %7191 = vrot.lane.b32.xlu0 %v6333, 112
      %v7192 = vpop.permute.xlu0 %7191
      %7193 = vrot.lane.b32.xlu0 %v6334, 112
      %v7194 = vpop.permute.xlu0 %7193
      %7195 = vrot.lane.b32.xlu0 %v6335, 112
      %v7196 = vpop.permute.xlu0 %7195
      %7197 = vrot.lane.b32.xlu0 %v6336, 112
      %v7198 = vpop.permute.xlu0 %7197
      %7199 = vrot.lane.b32.xlu0 %v6337, 112
      %v7200 = vpop.permute.xlu0 %7199
      %7201 = vrot.lane.b32.xlu0 %v6338, 112
      %v7202 = vpop.permute.xlu0 %7201
      %v7235 = vadd.f32 %v6307, %v7140
      %v7236 = vadd.f32 %v6308, %v7142
      %v7237 = vadd.f32 %v6309, %v7144
      %v7238 = vadd.f32 %v6310, %v7146
      %v7239 = vadd.f32 %v6311, %v7148
      %v7240 = vadd.f32 %v6312, %v7150
      %v7241 = vadd.f32 %v6313, %v7152
      %v7242 = vadd.f32 %v6314, %v7154
      %v7243 = vadd.f32 %v6315, %v7156
      %v7244 = vadd.f32 %v6316, %v7158
      %v7245 = vadd.f32 %v6317, %v7160
      %v7246 = vadd.f32 %v6318, %v7162
      %v7247 = vadd.f32 %v6319, %v7164
      %v7248 = vadd.f32 %v6320, %v7166
      %v7249 = vadd.f32 %v6321, %v7168
      %v7250 = vadd.f32 %v6322, %v7170
      %v7251 = vadd.f32 %v6323, %v7172
      %v7252 = vadd.f32 %v6324, %v7174
      %v7253 = vadd.f32 %v6325, %v7176
      %v7254 = vadd.f32 %v6326, %v7178
      %v7255 = vadd.f32 %v6327, %v7180
      %v7256 = vadd.f32 %v6328, %v7182
      %v7257 = vadd.f32 %v6329, %v7184
      %v7258 = vadd.f32 %v6330, %v7186
      %v7259 = vadd.f32 %v6331, %v7188
      %v7260 = vadd.f32 %v6332, %v7190
      %v7261 = vadd.f32 %v6333, %v7192
      %v7262 = vadd.f32 %v6334, %v7194
      %v7263 = vadd.f32 %v6335, %v7196
      %v7264 = vadd.f32 %v6336, %v7198
      %v7265 = vadd.f32 %v6337, %v7200
      %v7266 = vadd.f32 %v6338, %v7202
      %v7267 = vadd.f32 %v7235, 0.0001
      %v7268 = vadd.f32 %v7236, 0.0001
      %v7269 = vadd.f32 %v7237, 0.0001
      %v7270 = vadd.f32 %v7238, 0.0001
      %v7271 = vadd.f32 %v7239, 0.0001
      %v7272 = vadd.f32 %v7240, 0.0001
      %v7273 = vadd.f32 %v7241, 0.0001
      %v7274 = vadd.f32 %v7242, 0.0001
      %v7275 = vadd.f32 %v7243, 0.0001
      %v7276 = vadd.f32 %v7244, 0.0001
      %v7277 = vadd.f32 %v7245, 0.0001
      %v7278 = vadd.f32 %v7246, 0.0001
      %v7279 = vadd.f32 %v7247, 0.0001
      %v7280 = vadd.f32 %v7248, 0.0001
      %v7281 = vadd.f32 %v7249, 0.0001
      %v7282 = vadd.f32 %v7250, 0.0001
      %v7283 = vadd.f32 %v7251, 0.0001
      %v7284 = vadd.f32 %v7252, 0.0001
      %v7285 = vadd.f32 %v7253, 0.0001
      %v7286 = vadd.f32 %v7254, 0.0001
      %v7287 = vadd.f32 %v7255, 0.0001
      %v7288 = vadd.f32 %v7256, 0.0001
      %v7289 = vadd.f32 %v7257, 0.0001
      %v7290 = vadd.f32 %v7258, 0.0001
      %v7291 = vadd.f32 %v7259, 0.0001
      %v7292 = vadd.f32 %v7260, 0.0001
      %v7293 = vadd.f32 %v7261, 0.0001
      %v7294 = vadd.f32 %v7262, 0.0001
      %v7295 = vadd.f32 %v7263, 0.0001
      %v7296 = vadd.f32 %v7264, 0.0001
      %v7297 = vadd.f32 %v7265, 0.0001
      %v7298 = vadd.f32 %v7266, 0.0001
      %7331 = vrot.lane.b32.xlu0 %v6467, 112
      %v7332 = vpop.permute.xlu0 %7331
      %7333 = vrot.lane.b32.xlu0 %v6468, 112
      %v7334 = vpop.permute.xlu0 %7333
      %7335 = vrot.lane.b32.xlu0 %v6469, 112
      %v7336 = vpop.permute.xlu0 %7335
      %7337 = vrot.lane.b32.xlu0 %v6470, 112
      %v7338 = vpop.permute.xlu0 %7337
      %7339 = vrot.lane.b32.xlu0 %v6471, 112
      %v7340 = vpop.permute.xlu0 %7339
      %7341 = vrot.lane.b32.xlu0 %v6472, 112
      %v7342 = vpop.permute.xlu0 %7341
      %7343 = vrot.lane.b32.xlu0 %v6473, 112
      %v7344 = vpop.permute.xlu0 %7343
      %7345 = vrot.lane.b32.xlu0 %v6474, 112
      %v7346 = vpop.permute.xlu0 %7345
      %7347 = vrot.lane.b32.xlu0 %v6475, 112
      %v7348 = vpop.permute.xlu0 %7347
      %7349 = vrot.lane.b32.xlu0 %v6476, 112
      %v7350 = vpop.permute.xlu0 %7349
      %7351 = vrot.lane.b32.xlu0 %v6477, 112
      %v7352 = vpop.permute.xlu0 %7351
      %7353 = vrot.lane.b32.xlu0 %v6478, 112
      %v7354 = vpop.permute.xlu0 %7353
      %7355 = vrot.lane.b32.xlu0 %v6479, 112
      %v7356 = vpop.permute.xlu0 %7355
      %7357 = vrot.lane.b32.xlu0 %v6480, 112
      %v7358 = vpop.permute.xlu0 %7357
      %7359 = vrot.lane.b32.xlu0 %v6481, 112
      %v7360 = vpop.permute.xlu0 %7359
      %7361 = vrot.lane.b32.xlu0 %v6482, 112
      %v7362 = vpop.permute.xlu0 %7361
      %7363 = vrot.lane.b32.xlu0 %v6483, 112
      %v7364 = vpop.permute.xlu0 %7363
      %7365 = vrot.lane.b32.xlu0 %v6484, 112
      %v7366 = vpop.permute.xlu0 %7365
      %7367 = vrot.lane.b32.xlu0 %v6485, 112
      %v7368 = vpop.permute.xlu0 %7367
      %7369 = vrot.lane.b32.xlu0 %v6486, 112
      %v7370 = vpop.permute.xlu0 %7369
      %7371 = vrot.lane.b32.xlu0 %v6487, 112
      %v7372 = vpop.permute.xlu0 %7371
      %7373 = vrot.lane.b32.xlu0 %v6488, 112
      %v7374 = vpop.permute.xlu0 %7373
      %7375 = vrot.lane.b32.xlu0 %v6489, 112
      %v7376 = vpop.permute.xlu0 %7375
      %7377 = vrot.lane.b32.xlu0 %v6490, 112
      %v7378 = vpop.permute.xlu0 %7377
      %7379 = vrot.lane.b32.xlu0 %v6491, 112
      %v7380 = vpop.permute.xlu0 %7379
      %7381 = vrot.lane.b32.xlu0 %v6492, 112
      %v7382 = vpop.permute.xlu0 %7381
      %7383 = vrot.lane.b32.xlu0 %v6493, 112
      %v7384 = vpop.permute.xlu0 %7383
      %7385 = vrot.lane.b32.xlu0 %v6494, 112
      %v7386 = vpop.permute.xlu0 %7385
      %7387 = vrot.lane.b32.xlu0 %v6495, 112
      %v7388 = vpop.permute.xlu0 %7387
      %7389 = vrot.lane.b32.xlu0 %v6496, 112
      %v7390 = vpop.permute.xlu0 %7389
      %7391 = vrot.lane.b32.xlu0 %v6497, 112
      %v7392 = vpop.permute.xlu0 %7391
      %7393 = vrot.lane.b32.xlu0 %v6498, 112
      %v7394 = vpop.permute.xlu0 %7393
      %v7427 = vadd.f32 %v6467, %v7332
      %v7428 = vadd.f32 %v6468, %v7334
      %v7429 = vadd.f32 %v6469, %v7336
      %v7430 = vadd.f32 %v6470, %v7338
      %v7431 = vadd.f32 %v6471, %v7340
      %v7432 = vadd.f32 %v6472, %v7342
      %v7433 = vadd.f32 %v6473, %v7344
      %v7434 = vadd.f32 %v6474, %v7346
      %v7435 = vadd.f32 %v6475, %v7348
      %v7436 = vadd.f32 %v6476, %v7350
      %v7437 = vadd.f32 %v6477, %v7352
      %v7438 = vadd.f32 %v6478, %v7354
      %v7439 = vadd.f32 %v6479, %v7356
      %v7440 = vadd.f32 %v6480, %v7358
      %v7441 = vadd.f32 %v6481, %v7360
      %v7442 = vadd.f32 %v6482, %v7362
      %v7443 = vadd.f32 %v6483, %v7364
      %v7444 = vadd.f32 %v6484, %v7366
      %v7445 = vadd.f32 %v6485, %v7368
      %v7446 = vadd.f32 %v6486, %v7370
      %v7447 = vadd.f32 %v6487, %v7372
      %v7448 = vadd.f32 %v6488, %v7374
      %v7449 = vadd.f32 %v6489, %v7376
      %v7450 = vadd.f32 %v6490, %v7378
      %v7451 = vadd.f32 %v6491, %v7380
      %v7452 = vadd.f32 %v6492, %v7382
      %v7453 = vadd.f32 %v6493, %v7384
      %v7454 = vadd.f32 %v6494, %v7386
      %v7455 = vadd.f32 %v6495, %v7388
      %v7456 = vadd.f32 %v6496, %v7390
      %v7457 = vadd.f32 %v6497, %v7392
      %v7458 = vadd.f32 %v6498, %v7394
      %v7459 = vadd.f32 %v7427, 0.0009
      %v7460 = vadd.f32 %v7428, 0.0009
      %v7461 = vadd.f32 %v7429, 0.0009
      %v7462 = vadd.f32 %v7430, 0.0009
      %v7463 = vadd.f32 %v7431, 0.0009
      %v7464 = vadd.f32 %v7432, 0.0009
      %v7465 = vadd.f32 %v7433, 0.0009
      %v7466 = vadd.f32 %v7434, 0.0009
      %v7467 = vadd.f32 %v7435, 0.0009
      %v7468 = vadd.f32 %v7436, 0.0009
      %v7469 = vadd.f32 %v7437, 0.0009
      %v7470 = vadd.f32 %v7438, 0.0009
      %v7471 = vadd.f32 %v7439, 0.0009
      %v7472 = vadd.f32 %v7440, 0.0009
      %v7473 = vadd.f32 %v7441, 0.0009
      %v7474 = vadd.f32 %v7442, 0.0009
      %v7475 = vadd.f32 %v7443, 0.0009
      %v7476 = vadd.f32 %v7444, 0.0009
      %v7477 = vadd.f32 %v7445, 0.0009
      %v7478 = vadd.f32 %v7446, 0.0009
      %v7479 = vadd.f32 %v7447, 0.0009
      %v7480 = vadd.f32 %v7448, 0.0009
      %v7481 = vadd.f32 %v7449, 0.0009
      %v7482 = vadd.f32 %v7450, 0.0009
      %v7483 = vadd.f32 %v7451, 0.0009
      %v7484 = vadd.f32 %v7452, 0.0009
      %v7485 = vadd.f32 %v7453, 0.0009
      %v7486 = vadd.f32 %v7454, 0.0009
      %v7487 = vadd.f32 %v7455, 0.0009
      %v7488 = vadd.f32 %v7456, 0.0009
      %v7489 = vadd.f32 %v7457, 0.0009
      %v7490 = vadd.f32 %v7458, 0.0009
      %7523 = vrot.lane.b32.xlu0 %v7459, 96
      %v7524 = vpop.permute.xlu0 %7523
      %7525 = vrot.lane.b32.xlu0 %v7460, 96
      %v7526 = vpop.permute.xlu0 %7525
      %7527 = vrot.lane.b32.xlu0 %v7461, 96
      %v7528 = vpop.permute.xlu0 %7527
      %7529 = vrot.lane.b32.xlu0 %v7462, 96
      %v7530 = vpop.permute.xlu0 %7529
      %7531 = vrot.lane.b32.xlu0 %v7463, 96
      %v7532 = vpop.permute.xlu0 %7531
      %7533 = vrot.lane.b32.xlu0 %v7464, 96
      %v7534 = vpop.permute.xlu0 %7533
      %7535 = vrot.lane.b32.xlu0 %v7465, 96
      %v7536 = vpop.permute.xlu0 %7535
      %7537 = vrot.lane.b32.xlu0 %v7466, 96
      %v7538 = vpop.permute.xlu0 %7537
      %7539 = vrot.lane.b32.xlu0 %v7467, 96
      %v7540 = vpop.permute.xlu0 %7539
      %7541 = vrot.lane.b32.xlu0 %v7468, 96
      %v7542 = vpop.permute.xlu0 %7541
      %7543 = vrot.lane.b32.xlu0 %v7469, 96
      %v7544 = vpop.permute.xlu0 %7543
      %7545 = vrot.lane.b32.xlu0 %v7470, 96
      %v7546 = vpop.permute.xlu0 %7545
      %7547 = vrot.lane.b32.xlu0 %v7471, 96
      %v7548 = vpop.permute.xlu0 %7547
      %7549 = vrot.lane.b32.xlu0 %v7472, 96
      %v7550 = vpop.permute.xlu0 %7549
      %7551 = vrot.lane.b32.xlu0 %v7473, 96
      %v7552 = vpop.permute.xlu0 %7551
      %7553 = vrot.lane.b32.xlu0 %v7474, 96
      %v7554 = vpop.permute.xlu0 %7553
      %7555 = vrot.lane.b32.xlu0 %v7475, 96
      %v7556 = vpop.permute.xlu0 %7555
      %7557 = vrot.lane.b32.xlu0 %v7476, 96
      %v7558 = vpop.permute.xlu0 %7557
      %7559 = vrot.lane.b32.xlu0 %v7477, 96
      %v7560 = vpop.permute.xlu0 %7559
      %7561 = vrot.lane.b32.xlu0 %v7478, 96
      %v7562 = vpop.permute.xlu0 %7561
      %7563 = vrot.lane.b32.xlu0 %v7479, 96
      %v7564 = vpop.permute.xlu0 %7563
      %7565 = vrot.lane.b32.xlu0 %v7480, 96
      %v7566 = vpop.permute.xlu0 %7565
      %7567 = vrot.lane.b32.xlu0 %v7481, 96
      %v7568 = vpop.permute.xlu0 %7567
      %7569 = vrot.lane.b32.xlu0 %v7482, 96
      %v7570 = vpop.permute.xlu0 %7569
      %7571 = vrot.lane.b32.xlu0 %v7483, 96
      %v7572 = vpop.permute.xlu0 %7571
      %7573 = vrot.lane.b32.xlu0 %v7484, 96
      %v7574 = vpop.permute.xlu0 %7573
      %7575 = vrot.lane.b32.xlu0 %v7485, 96
      %v7576 = vpop.permute.xlu0 %7575
      %7577 = vrot.lane.b32.xlu0 %v7486, 96
      %v7578 = vpop.permute.xlu0 %7577
      %7579 = vrot.lane.b32.xlu0 %v7487, 96
      %v7580 = vpop.permute.xlu0 %7579
      %7581 = vrot.lane.b32.xlu0 %v7488, 96
      %v7582 = vpop.permute.xlu0 %7581
      %7583 = vrot.lane.b32.xlu0 %v7489, 96
      %v7584 = vpop.permute.xlu0 %7583
      %7585 = vrot.lane.b32.xlu0 %v7490, 96
      %v7586 = vpop.permute.xlu0 %7585
      %v7619 = vmul.f32 %v7267, %v7524
      %v7620 = vmul.f32 %v7268, %v7526
      %v7621 = vmul.f32 %v7269, %v7528
      %v7622 = vmul.f32 %v7270, %v7530
      %v7623 = vmul.f32 %v7271, %v7532
      %v7624 = vmul.f32 %v7272, %v7534
      %v7625 = vmul.f32 %v7273, %v7536
      %v7626 = vmul.f32 %v7274, %v7538
      %v7627 = vmul.f32 %v7275, %v7540
      %v7628 = vmul.f32 %v7276, %v7542
      %v7629 = vmul.f32 %v7277, %v7544
      %v7630 = vmul.f32 %v7278, %v7546
      %v7631 = vmul.f32 %v7279, %v7548
      %v7632 = vmul.f32 %v7280, %v7550
      %v7633 = vmul.f32 %v7281, %v7552
      %v7634 = vmul.f32 %v7282, %v7554
      %v7635 = vmul.f32 %v7283, %v7556
      %v7636 = vmul.f32 %v7284, %v7558
      %v7637 = vmul.f32 %v7285, %v7560
      %v7638 = vmul.f32 %v7286, %v7562
      %v7639 = vmul.f32 %v7287, %v7564
      %v7640 = vmul.f32 %v7288, %v7566
      %v7641 = vmul.f32 %v7289, %v7568
      %v7642 = vmul.f32 %v7290, %v7570
      %v7643 = vmul.f32 %v7291, %v7572
      %v7644 = vmul.f32 %v7292, %v7574
      %v7645 = vmul.f32 %v7293, %v7576
      %v7646 = vmul.f32 %v7294, %v7578
      %v7647 = vmul.f32 %v7295, %v7580
      %v7648 = vmul.f32 %v7296, %v7582
      %v7649 = vmul.f32 %v7297, %v7584
      %v7650 = vmul.f32 %v7298, %v7586
      %v7651 = vrcp.pop %v7619
      %v7652 = vmul.f32 %v7107, %v7651
      %v7653 = vrcp.pop %v7620
      %v7654 = vmul.f32 %v7108, %v7653
      %v7655 = vrcp.pop %v7621
      %v7656 = vmul.f32 %v7109, %v7655
      %v7657 = vrcp.pop %v7622
      %v7658 = vmul.f32 %v7110, %v7657
      %v7659 = vrcp.pop %v7623
      %v7660 = vmul.f32 %v7111, %v7659
      %v7661 = vrcp.pop %v7624
      %v7662 = vmul.f32 %v7112, %v7661
      %v7663 = vrcp.pop %v7625
      %v7664 = vmul.f32 %v7113, %v7663
      %v7665 = vrcp.pop %v7626
      %v7666 = vmul.f32 %v7114, %v7665
      %v7667 = vrcp.pop %v7627
      %v7668 = vmul.f32 %v7115, %v7667
      %v7669 = vrcp.pop %v7628
      %v7670 = vmul.f32 %v7116, %v7669
      %v7671 = vrcp.pop %v7629
      %v7672 = vmul.f32 %v7117, %v7671
      %v7673 = vrcp.pop %v7630
      %v7674 = vmul.f32 %v7118, %v7673
      %v7675 = vrcp.pop %v7631
      %v7676 = vmul.f32 %v7119, %v7675
      %v7677 = vrcp.pop %v7632
      %v7678 = vmul.f32 %v7120, %v7677
      %v7679 = vrcp.pop %v7633
      %v7680 = vmul.f32 %v7121, %v7679
      %v7681 = vrcp.pop %v7634
      %v7682 = vmul.f32 %v7122, %v7681
      %v7683 = vrcp.pop %v7635
      %v7684 = vmul.f32 %v7123, %v7683
      %v7685 = vrcp.pop %v7636
      %v7686 = vmul.f32 %v7124, %v7685
      %v7687 = vrcp.pop %v7637
      %v7688 = vmul.f32 %v7125, %v7687
      %v7689 = vrcp.pop %v7638
      %v7690 = vmul.f32 %v7126, %v7689
      %v7691 = vrcp.pop %v7639
      %v7692 = vmul.f32 %v7127, %v7691
      %v7693 = vrcp.pop %v7640
      %v7694 = vmul.f32 %v7128, %v7693
      %v7695 = vrcp.pop %v7641
      %v7696 = vmul.f32 %v7129, %v7695
      %v7697 = vrcp.pop %v7642
      %v7698 = vmul.f32 %v7130, %v7697
      %v7699 = vrcp.pop %v7643
      %v7700 = vmul.f32 %v7131, %v7699
      %v7701 = vrcp.pop %v7644
      %v7702 = vmul.f32 %v7132, %v7701
      %v7703 = vrcp.pop %v7645
      %v7704 = vmul.f32 %v7133, %v7703
      %v7705 = vrcp.pop %v7646
      %v7706 = vmul.f32 %v7134, %v7705
      %v7707 = vrcp.pop %v7647
      %v7708 = vmul.f32 %v7135, %v7707
      %v7709 = vrcp.pop %v7648
      %v7710 = vmul.f32 %v7136, %v7709
      %v7711 = vrcp.pop %v7649
      %v7712 = vmul.f32 %v7137, %v7711
      %v7713 = vrcp.pop %v7650
      %v7714 = vmul.f32 %v7138, %v7713
      %v7715 = vsub.f32 %v1131, %v1212
      %v7716 = vsub.f32 %v1132, %v1213
      %v7717 = vsub.f32 %v1133, %v1214
      %v7718 = vsub.f32 %v1134, %v1215
      %v7719 = vsub.f32 %v1135, %v1216
      %v7720 = vsub.f32 %v1136, %v1217
      %v7721 = vsub.f32 %v1137, %v1218
      %v7722 = vsub.f32 %v1138, %v1219
      %v7723 = vsub.f32 %v1139, %v1220
      %v7724 = vsub.f32 %v1140, %v1221
      %v7725 = vsub.f32 %v1141, %v1222
      %v7726 = vsub.f32 %v1142, %v1223
      %v7727 = vsub.f32 %v1143, %v1224
      %v7728 = vsub.f32 %v1144, %v1225
      %v7729 = vsub.f32 %v1145, %v1226
      %v7730 = vsub.f32 %v1146, %v1227
      %v7731 = vsub.f32 %v1147, %v1228
      %v7732 = vsub.f32 %v1148, %v1229
      %v7733 = vsub.f32 %v1149, %v1230
      %v7734 = vsub.f32 %v1150, %v1231
      %v7735 = vsub.f32 %v1151, %v1232
      %v7736 = vsub.f32 %v1152, %v1233
      %v7737 = vsub.f32 %v1153, %v1234
      %v7738 = vsub.f32 %v1154, %v1235
      %v7739 = vsub.f32 %v1155, %v1236
      %v7740 = vsub.f32 %v1156, %v1237
      %v7741 = vsub.f32 %v1157, %v1238
      %v7742 = vsub.f32 %v1158, %v1239
      %v7743 = vsub.f32 %v1159, %v1240
      %v7744 = vsub.f32 %v1160, %v1241
      %v7745 = vsub.f32 %v1161, %v1242
      %v7746 = vsub.f32 %v1162, %v1243
      %v7747 = vsub.f32 %v1163, %v1244
      %v7748 = vsub.f32 %v1164, %v1245
      %v7749 = vsub.f32 %v1165, %v1246
      %v7750 = vsub.f32 %v1166, %v1247
      %v7751 = vsub.f32 %v1167, %v1248
      %v7752 = vsub.f32 %v1168, %v1249
      %v7753 = vsub.f32 %v1169, %v1250
      %v7754 = vsub.f32 %v1170, %v1251
      %v7755 = vand.u32 2147483647, %v7715
      %v7756 = vand.u32 2147483647, %v7716
      %v7757 = vand.u32 2147483647, %v7717
      %v7758 = vand.u32 2147483647, %v7718
      %v7759 = vand.u32 2147483647, %v7719
      %v7760 = vand.u32 2147483647, %v7720
      %v7761 = vand.u32 2147483647, %v7721
      %v7762 = vand.u32 2147483647, %v7722
      %v7763 = vand.u32 2147483647, %v7723
      %v7764 = vand.u32 2147483647, %v7724
      %v7765 = vand.u32 2147483647, %v7725
      %v7766 = vand.u32 2147483647, %v7726
      %v7767 = vand.u32 2147483647, %v7727
      %v7768 = vand.u32 2147483647, %v7728
      %v7769 = vand.u32 2147483647, %v7729
      %v7770 = vand.u32 2147483647, %v7730
      %v7771 = vand.u32 2147483647, %v7731
      %v7772 = vand.u32 2147483647, %v7732
      %v7773 = vand.u32 2147483647, %v7733
      %v7774 = vand.u32 2147483647, %v7734
      %v7775 = vand.u32 2147483647, %v7735
      %v7776 = vand.u32 2147483647, %v7736
      %v7777 = vand.u32 2147483647, %v7737
      %v7778 = vand.u32 2147483647, %v7738
      %v7779 = vand.u32 2147483647, %v7739
      %v7780 = vand.u32 2147483647, %v7740
      %v7781 = vand.u32 2147483647, %v7741
      %v7782 = vand.u32 2147483647, %v7742
      %v7783 = vand.u32 2147483647, %v7743
      %v7784 = vand.u32 2147483647, %v7744
      %v7785 = vand.u32 2147483647, %v7745
      %v7786 = vand.u32 2147483647, %v7746
      %v7787 = vand.u32 2147483647, %v7747
      %v7788 = vand.u32 2147483647, %v7748
      %v7789 = vand.u32 2147483647, %v7749
      %v7790 = vand.u32 2147483647, %v7750
      %v7791 = vand.u32 2147483647, %v7751
      %v7792 = vand.u32 2147483647, %v7752
      %v7793 = vand.u32 2147483647, %v7753
      %v7794 = vand.u32 2147483647, %v7754
      %v7795 = vmul.f32 %v7652, 0.5
      %v7796 = vmul.f32 %v7654, 0.5
      %v7797 = vmul.f32 %v7656, 0.5
      %v7798 = vmul.f32 %v7658, 0.5
      %v7799 = vmul.f32 %v7660, 0.5
      %v7800 = vmul.f32 %v7662, 0.5
      %v7801 = vmul.f32 %v7664, 0.5
      %v7802 = vmul.f32 %v7666, 0.5
      %v7803 = vmul.f32 %v7668, 0.5
      %v7804 = vmul.f32 %v7670, 0.5
      %v7805 = vmul.f32 %v7672, 0.5
      %v7806 = vmul.f32 %v7674, 0.5
      %v7807 = vmul.f32 %v7676, 0.5
      %v7808 = vmul.f32 %v7678, 0.5
      %v7809 = vmul.f32 %v7680, 0.5
      %v7810 = vmul.f32 %v7682, 0.5
      %v7811 = vmul.f32 %v7684, 0.5
      %v7812 = vmul.f32 %v7686, 0.5
      %v7813 = vmul.f32 %v7688, 0.5
      %v7814 = vmul.f32 %v7690, 0.5
      %v7815 = vmul.f32 %v7692, 0.5
      %v7816 = vmul.f32 %v7694, 0.5
      %v7817 = vmul.f32 %v7696, 0.5
      %v7818 = vmul.f32 %v7698, 0.5
      %v7819 = vmul.f32 %v7700, 0.5
      %v7820 = vmul.f32 %v7702, 0.5
      %v7821 = vmul.f32 %v7704, 0.5
      %v7822 = vmul.f32 %v7706, 0.5
      %v7823 = vmul.f32 %v7708, 0.5
      %v7824 = vmul.f32 %v7710, 0.5
      %v7825 = vmul.f32 %v7712, 0.5
      %v7826 = vmul.f32 %v7714, 0.5
      %v7859 = vrot.slane %v7795, 4
      %v7860 = vrot.slane %v7796, 4
      %v7861 = vsel %vm4639, %v7859, %v7860
      %v7862 = vrot.slane %v7797, 4
      %v7863 = vsel %vm4639, %v7860, %v7862
      %v7864 = vrot.slane %v7798, 4
      %v7865 = vsel %vm4639, %v7862, %v7864
      %v7866 = vrot.slane %v7799, 4
      %v7867 = vrot.slane %v7800, 4
      %v7868 = vsel %vm4639, %v7866, %v7867
      %v7869 = vrot.slane %v7801, 4
      %v7870 = vsel %vm4639, %v7867, %v7869
      %v7871 = vrot.slane %v7802, 4
      %v7872 = vsel %vm4639, %v7869, %v7871
      %v7873 = vrot.slane %v7803, 4
      %v7874 = vrot.slane %v7804, 4
      %v7875 = vsel %vm4639, %v7873, %v7874
      %v7876 = vrot.slane %v7805, 4
      %v7877 = vsel %vm4639, %v7874, %v7876
      %v7878 = vrot.slane %v7806, 4
      %v7879 = vsel %vm4639, %v7876, %v7878
      %v7880 = vrot.slane %v7807, 4
      %v7881 = vrot.slane %v7808, 4
      %v7882 = vsel %vm4639, %v7880, %v7881
      %v7883 = vrot.slane %v7809, 4
      %v7884 = vsel %vm4639, %v7881, %v7883
      %v7885 = vrot.slane %v7810, 4
      %v7886 = vsel %vm4639, %v7883, %v7885
      %v7887 = vrot.slane %v7811, 4
      %v7888 = vrot.slane %v7812, 4
      %v7889 = vsel %vm4639, %v7887, %v7888
      %v7890 = vrot.slane %v7813, 4
      %v7891 = vsel %vm4639, %v7888, %v7890
      %v7892 = vrot.slane %v7814, 4
      %v7893 = vsel %vm4639, %v7890, %v7892
      %v7894 = vrot.slane %v7815, 4
      %v7895 = vrot.slane %v7816, 4
      %v7896 = vsel %vm4639, %v7894, %v7895
      %v7897 = vrot.slane %v7817, 4
      %v7898 = vsel %vm4639, %v7895, %v7897
      %v7899 = vrot.slane %v7818, 4
      %v7900 = vsel %vm4639, %v7897, %v7899
      %v7901 = vrot.slane %v7819, 4
      %v7902 = vrot.slane %v7820, 4
      %v7903 = vsel %vm4639, %v7901, %v7902
      %v7904 = vrot.slane %v7821, 4
      %v7905 = vsel %vm4639, %v7902, %v7904
      %v7906 = vrot.slane %v7822, 4
      %v7907 = vsel %vm4639, %v7904, %v7906
      %v7908 = vrot.slane %v7823, 4
      %v7909 = vrot.slane %v7824, 4
      %v7910 = vsel %vm4639, %v7908, %v7909
      %v7911 = vrot.slane %v7825, 4
      %v7912 = vsel %vm4639, %v7909, %v7911
      %v7913 = vrot.slane %v7826, 4
      %v7914 = vsel %vm4639, %v7911, %v7913
      %v7955 = vadd.f32 %v7755, %v7859
      %v7956 = vadd.f32 %v7756, %v7861
      %v7957 = vadd.f32 %v7757, %v7863
      %v7958 = vadd.f32 %v7758, %v7865
      %v7959 = vadd.f32 %v7759, %v7864
      %v7960 = vadd.f32 %v7760, %v7866
      %v7961 = vadd.f32 %v7761, %v7868
      %v7962 = vadd.f32 %v7762, %v7870
      %v7963 = vadd.f32 %v7763, %v7872
      %v7964 = vadd.f32 %v7764, %v7871
      %v7965 = vadd.f32 %v7765, %v7873
      %v7966 = vadd.f32 %v7766, %v7875
      %v7967 = vadd.f32 %v7767, %v7877
      %v7968 = vadd.f32 %v7768, %v7879
      %v7969 = vadd.f32 %v7769, %v7878
      %v7970 = vadd.f32 %v7770, %v7880
      %v7971 = vadd.f32 %v7771, %v7882
      %v7972 = vadd.f32 %v7772, %v7884
      %v7973 = vadd.f32 %v7773, %v7886
      %v7974 = vadd.f32 %v7774, %v7885
      %v7975 = vadd.f32 %v7775, %v7887
      %v7976 = vadd.f32 %v7776, %v7889
      %v7977 = vadd.f32 %v7777, %v7891
      %v7978 = vadd.f32 %v7778, %v7893
      %v7979 = vadd.f32 %v7779, %v7892
      %v7980 = vadd.f32 %v7780, %v7894
      %v7981 = vadd.f32 %v7781, %v7896
      %v7982 = vadd.f32 %v7782, %v7898
      %v7983 = vadd.f32 %v7783, %v7900
      %v7984 = vadd.f32 %v7784, %v7899
      %v7985 = vadd.f32 %v7785, %v7901
      %v7986 = vadd.f32 %v7786, %v7903
      %v7987 = vadd.f32 %v7787, %v7905
      %v7988 = vadd.f32 %v7788, %v7907
      %v7989 = vadd.f32 %v7789, %v7906
      %v7990 = vadd.f32 %v7790, %v7908
      %v7991 = vadd.f32 %v7791, %v7910
      %v7992 = vadd.f32 %v7792, %v7912
      %v7993 = vadd.f32 %v7793, %v7914
      %v7994 = vadd.f32 %v7794, %v7913
      %vm7995 = vcmask 130052
      %7996 = vst.msk [vmem:[%s187 - $0x4] sm:$0xf0] %vm7995, %v7955
      %7997 = vst.msk [vmem:[%s187 + $0x4] sm:$0xff] %vm2792, %v7956
      %7998 = vst.msk [vmem:[%s187 + $0xc] sm:$0xff] %vm2792, %v7957
      %7999 = vst.msk [vmem:[%s187 + $0x14] sm:$0xff] %vm2792, %v7958
      %vm8000 = vcmask 125952
      %8001 = vst.msk [vmem:[%s187 + $0x1c] sm:$0xf] %vm8000, %v7959
      %8002 = vst.msk [vmem:[%s187 + $0x1c] sm:$0xf0] %vm7995, %v7960
      %8003 = vst.msk [vmem:[%s187 + $0x24] sm:$0xff] %vm2792, %v7961
      %8004 = vst.msk [vmem:[%s187 + $0x2c] sm:$0xff] %vm2792, %v7962
      %8005 = vst.msk [vmem:[%s187 + $0x34] sm:$0xff] %vm2792, %v7963
      %8006 = vst.msk [vmem:[%s187 + $0x3c] sm:$0xf] %vm8000, %v7964
      %8007 = vst.msk [vmem:[%s187 + $0x3c] sm:$0xf0] %vm7995, %v7965
      %8008 = vst.msk [vmem:[%s187 + $0x44] sm:$0xff] %vm2792, %v7966
      %8009 = vst.msk [vmem:[%s187 + $0x4c] sm:$0xff] %vm2792, %v7967
      %8010 = vst.msk [vmem:[%s187 + $0x54] sm:$0xff] %vm2792, %v7968
      %8011 = vst.msk [vmem:[%s187 + $0x5c] sm:$0xf] %vm8000, %v7969
      %8012 = vst.msk [vmem:[%s187 + $0x5c] sm:$0xf0] %vm7995, %v7970
      %8013 = vst.msk [vmem:[%s187 + $0x64] sm:$0xff] %vm2792, %v7971
      %8014 = vst.msk [vmem:[%s187 + $0x6c] sm:$0xff] %vm2792, %v7972
      %8015 = vst.msk [vmem:[%s187 + $0x74] sm:$0xff] %vm2792, %v7973
      %8016 = vst.msk [vmem:[%s187 + $0x7c] sm:$0xf] %vm8000, %v7974
      %8017 = vst.msk [vmem:[%s187 + $0x7c] sm:$0xf0] %vm7995, %v7975
      %8018 = vst.msk [vmem:[%s187 + $0x84] sm:$0xff] %vm2792, %v7976
      %8019 = vst.msk [vmem:[%s187 + $0x8c] sm:$0xff] %vm2792, %v7977
      %8020 = vst.msk [vmem:[%s187 + $0x94] sm:$0xff] %vm2792, %v7978
      %8021 = vst.msk [vmem:[%s187 + $0x9c] sm:$0xf] %vm8000, %v7979
      %8022 = vst.msk [vmem:[%s187 + $0x9c] sm:$0xf0] %vm7995, %v7980
      %8023 = vst.msk [vmem:[%s187 + $0xa4] sm:$0xff] %vm2792, %v7981
      %8024 = vst.msk [vmem:[%s187 + $0xac] sm:$0xff] %vm2792, %v7982
      %8025 = vst.msk [vmem:[%s187 + $0xb4] sm:$0xff] %vm2792, %v7983
      %8026 = vst.msk [vmem:[%s187 + $0xbc] sm:$0xf] %vm8000, %v7984
      %8027 = vst.msk [vmem:[%s187 + $0xbc] sm:$0xf0] %vm7995, %v7985
      %8028 = vst.msk [vmem:[%s187 + $0xc4] sm:$0xff] %vm2792, %v7986
      %8029 = vst.msk [vmem:[%s187 + $0xcc] sm:$0xff] %vm2792, %v7987
      %8030 = vst.msk [vmem:[%s187 + $0xd4] sm:$0xff] %vm2792, %v7988
      %8031 = vst.msk [vmem:[%s187 + $0xdc] sm:$0xf] %vm8000, %v7989
      %8032 = vst.msk [vmem:[%s187 + $0xdc] sm:$0xf0] %vm7995, %v7990
      %8033 = vst.msk [vmem:[%s187 + $0xe4] sm:$0xff] %vm2792, %v7991
      %8034 = vst.msk [vmem:[%s187 + $0xec] sm:$0xff] %vm2792, %v7992
      %8035 = vst.msk [vmem:[%s187 + $0xf4] sm:$0xff] %vm2792, %v7993
      %8036 = vst.msk [vmem:[%s187 + $0xfc] sm:$0xf] %vm8000, %v7994
      %s8037 = smul.u32 8, %s18
      %p8038 = scmp.lt.s32.totalorder %s17, 1
      %s8039 = scalar_select %p8038, %s17, 1
      %p8040 = scmp.lt.s32.totalorder %s8037, 31
      %s8041 = scalar_select %p8040, %s8037, 31
      %s8042 = smul.addr %s8041, 4
      %s8043 = smul.addr %s8039, 128
      %s8044 = sadd.s32 %s8042, %s8043
      %s8045 = smul.addr %s8044, 8
      %s8046 = scalar_lea.vmem %s2, %s8045
      // Predicated region
      $region33: #{upsampling_module_forward.3} parent=27 // pred_check
        %p8047 = pneg %p97
      $region34: #{upsampling_module_forward.3} parent=27 // pred_check_branch
        %8049 = sbr.rel (%p8047) target = $region36
      $region35: #{upsampling_module_forward.3} parent=27 // pred_region
        %s8050 = smul.u32 8, %s18
      $region36: #{upsampling_module_forward.3} parent=27 // pred_fallthru
        _
    $region28: #{upsampling_module_forward.3} parent=5 // pred_fallthru
      _
    %p8051 = scmp.le.s32.totalorder 2, %s8
    // Predicated region
    $region37: #{upsampling_module_forward.3} parent=5 // pred_check
      %p8052 = pneg %p8051
    $region38: #{upsampling_module_forward.3} parent=5 // pred_check_branch
      %8054 = sbr.rel (%p8052) target = $region40
    $region39: #{upsampling_module_forward.3} parent=5 // pred_region
      %s8055 = ssub.s32 %s8, 2
      // Predicated region
      $region41: #{upsampling_module_forward.3} parent=39 // pred_check
        %p8056 = pneg %p103
      $region42: #{upsampling_module_forward.3} parent=39 // pred_check_branch
        %8058 = sbr.rel (%p8056) target = $region44
      $region43: #{upsampling_module_forward.3} parent=39 // pred_region
        %s8059 = smul.u32 8, %s20
        %p8060 = scmp.lt.s32.totalorder %s19, 1
        %s8061 = scalar_select %p8060, %s19, 1
        %p8062 = scmp.lt.s32.totalorder %s8059, 31
        %s8063 = scalar_select %p8062, %s8059, 31
        %s8064 = smul.addr %s8063, 4
        %s8065 = smul.addr %s8061, 128
        %s8066 = sadd.s32 %s8064, %s8065
        %s8067 = smul.addr %s8066, 8
        %s8068 = scalar_lea.vmem %s2, %s8067
      $region44: #{upsampling_module_forward.3} parent=39 // pred_fallthru
        _
    $region40: #{upsampling_module_forward.3} parent=5 // pred_fallthru
      _
  $region6: #{upsampling_module_forward.3} parent=0 // loop_footer
    %s12 = sadd.s32 1, %s8
  $region7: #{upsampling_module_forward.3} parent=0 // loop_footer_branch
    %7 = sbr.rel target = $region3
  $region8: #{upsampling_module_forward.3} parent=0 // loop_exit
    _

</llo_original>
